<compile_context>
chip_gen: v7x
topology: tpu7x:2x2x1
jax: 0.10.0
libtpu: 0.0.40
codegen_flags: <defaults>
</compile_context>

<pallas_src>
import jax
import jax.numpy as jnp
from jax.experimental import pallas as pl
from jax.experimental.pallas import tpu as pltpu

HIDDEN = 768        # BERT hidden size (explicit in the module: Linear(768, ...))
NUM_LABELS = 5      # stand-in for len(labels)
CLS_PAD = 128       # classifier output padded to a full lane group
VOCAB = 1024        # synthetic vocab size (lane-multiple)
TB = 128            # batch tile: fills MXU M on v5e, good on v6e/v7x


def bert_classifier_kernel(ids_ref, inv_len_ref, table_ref, w_pool_ref,
                           b_pool_ref, w_cls_ref, b_cls_ref, out_ref):
    """Fused: embed-gather (as counts@table) + masked mean -> pooler (tanh) -> classifier (ReLU)."""
    tb, s = ids_ref.shape
    vocab = table_ref.shape[0]

    # ids already have the attention mask folded in: masked positions hold the
    # out-of-range sentinel `vocab`, so they match no iota column below.
    ids = ids_ref[...]                                              # (tb, s) int32

    # One 2-D iota, hoisted out of the loop (JAX does not CSE broadcast_in_dim).
    vocab_iota = jax.lax.broadcasted_iota(jnp.int32, (tb, vocab), 1)

    # counts[b, v] = #occurrences of token v among the unmasked positions of
    # row b. S is small and static -> fully unrolled; live state is one
    # (tb, vocab) accumulator, never a 3-D (tb, s, vocab) slab.
    counts = jnp.zeros((tb, vocab), jnp.float32)
    for si in range(s):
        counts = counts + (ids[:, si:si + 1] == vocab_iota).astype(jnp.float32)

    # Fused embedding gather + masked sum as one MXU matmul.
    # bf16 is exact for integer counts <= 256 (S <= 256 asserted in wrapper).
    masked_sum = jnp.dot(counts.astype(jnp.bfloat16), table_ref[...],
                         preferred_element_type=jnp.float32)        # (tb, H) f32

    # Masked mean: reciprocal of the (clamped) token count, precomputed in the
    # wrapper, so no divide / reduction inside the kernel.
    cls_in = masked_sum * inv_len_ref[...]                          # (tb, H)

    # BERT pooler: tanh(x @ W_pool + b_pool) -> pooled_output
    pooled = jnp.tanh(
        jnp.dot(cls_in.astype(jnp.bfloat16), w_pool_ref[...],
                preferred_element_type=jnp.float32) + b_pool_ref[...])   # (tb, H)

    # Classifier head (padded to 128 output lanes) + ReLU; lane-dense store.
    logits = (jnp.dot(pooled.astype(jnp.bfloat16), w_cls_ref[...],
                      preferred_element_type=jnp.float32) + b_cls_ref[...])
    out_ref[...] = jnp.maximum(logits, 0.0)                         # (tb, 128)


def init_params(key):
    k_emb, k_wp, k_bp, k_wc, k_bc = jax.random.split(key, 5)
    scale = 0.02
    w_cls = scale * jax.random.normal(k_wc, (HIDDEN, NUM_LABELS), jnp.float32)
    b_cls = scale * jax.random.normal(k_bc, (1, NUM_LABELS), jnp.float32)
    # Pad classifier weights to a lane-dense 128-wide output.
    w_cls_p = jnp.zeros((HIDDEN, CLS_PAD), jnp.float32).at[:, :NUM_LABELS].set(w_cls)
    b_cls_p = jnp.zeros((1, CLS_PAD), jnp.float32).at[:, :NUM_LABELS].set(b_cls)
    return {
        "embedding": (scale * jax.random.normal(k_emb, (VOCAB, HIDDEN),
                                                jnp.float32)).astype(jnp.bfloat16),
        "w_pool": (scale * jax.random.normal(k_wp, (HIDDEN, HIDDEN),
                                             jnp.float32)).astype(jnp.bfloat16),
        "b_pool": scale * jax.random.normal(k_bp, (1, HIDDEN), jnp.float32),
        "w_cls": w_cls_p.astype(jnp.bfloat16),
        "b_cls": b_cls_p,
    }


def bert_classifier_forward(input_id, mask, params, *, tb=TB):
    B, S = input_id.shape
    assert S <= 256, "bf16 token multiplicities are exact only up to 256"
    table = params["embedding"]
    vocab_p, H = table.shape
    LP = params["w_cls"].shape[1]           # padded label width (128)

    # Pad batch to the tile; padded rows are fully masked (sentinel ids).
    b_pad = ((B + tb - 1) // tb) * tb
    pad = b_pad - B

    # Fold the attention mask into the ids: masked positions -> out-of-range
    # sentinel `vocab_p`, so they contribute nothing to the one-hot counts.
    ids_masked = jnp.where(mask.astype(bool), input_id.astype(jnp.int32), vocab_p)
    ids_p = jnp.pad(ids_masked, ((0, pad), (0, 0)), constant_values=vocab_p)

    # Precompute the reciprocal valid-token count (clamped for all-pad rows).
    denom = jnp.maximum(jnp.sum(mask.astype(jnp.float32), axis=1, keepdims=True), 1.0)
    inv_len_p = jnp.pad(1.0 / denom, ((0, pad), (0, 0)), constant_values=1.0)

    flops = int(2 * b_pad * (vocab_p * H + H * H + H * LP))
    bytes_accessed = int(ids_p.size * 4 + inv_len_p.size * 4
                         + table.size * 2
                         + params["w_pool"].size * 2 + params["w_cls"].size * 2
                         + params["b_pool"].size * 4 + params["b_cls"].size * 4
                         + b_pad * LP * 4)

    out = pl.pallas_call(
        bert_classifier_kernel,
        out_shape=jax.ShapeDtypeStruct((b_pad, LP), jnp.float32),
        grid=(b_pad // tb,),
        in_specs=[
            pl.BlockSpec((tb, S), lambda i: (i, 0)),            # mask-folded ids (2-D)
            pl.BlockSpec((tb, 1), lambda i: (i, 0)),            # 1 / valid-token count
            pl.BlockSpec((vocab_p, H), lambda i: (0, 0)),       # embedding table (resident)
            pl.BlockSpec((H, H), lambda i: (0, 0)),             # pooler weight (resident)
            pl.BlockSpec((1, H), lambda i: (0, 0)),             # pooler bias
            pl.BlockSpec((H, LP), lambda i: (0, 0)),            # classifier weight (padded)
            pl.BlockSpec((1, LP), lambda i: (0, 0)),            # classifier bias (padded)
        ],
        out_specs=pl.BlockSpec((tb, LP), lambda i: (i, 0)),     # lane-dense output
        compiler_params=pltpu.CompilerParams(
            dimension_semantics=("parallel",),
            # Sized for v7x's 64 MiB VMEM; ample headroom on v5e/v6e (128 MiB).
            vmem_limit_bytes=48 * 1024 * 1024),
        cost_estimate=pl.CostEstimate(
            flops=flops,
            transcendentals=int(b_pad * H),
            bytes_accessed=bytes_accessed),
    )(ids_p, inv_len_p, table, params["w_pool"], params["b_pool"],
      params["w_cls"], params["b_cls"])

    return out[:B, :NUM_LABELS]


def reference_forward(input_id, mask, params):
    # Mirrors the kernel's mixed-precision contract (bf16 weights/activations
    # at the matmul boundaries, f32 accumulation & elementwise math).
    table_f32 = params["embedding"].astype(jnp.float32)
    emb = jnp.take(table_f32, input_id, axis=0)                   # (B, S, H)
    mask_f = mask.astype(jnp.float32)[:, :, None]
    denom = jnp.maximum(jnp.sum(mask_f, axis=1), 1.0)             # (B, 1)
    cls_in = jnp.sum(emb * mask_f, axis=1) / denom                # (B, H)
    pooled = jnp.tanh(
        jnp.dot(cls_in.astype(jnp.bfloat16), params["w_pool"],
                preferred_element_type=jnp.float32) + params["b_pool"])
    logits = (jnp.dot(pooled.astype(jnp.bfloat16), params["w_cls"],
                      preferred_element_type=jnp.float32) + params["b_cls"])
    return jnp.maximum(logits, 0.0)[:, :NUM_LABELS]


if __name__ == "__main__":
    key = jax.random.PRNGKey(0)
    k_params, k_ids = jax.random.split(key)

    params = init_params(k_params)

    B, S = 2, 8
    input_id = jax.random.randint(k_ids, (B, S), 0, VOCAB, dtype=jnp.int32)
    # Attention mask: second example has 2 padding tokens at the end.
    mask = jnp.array([[1, 1, 1, 1, 1, 1, 1, 1],
                      [1, 1, 1, 1, 1, 1, 0, 0]], dtype=jnp.int32)

    out = bert_classifier_forward(input_id, mask, params)
    out = jax.block_until_ready(out)

    ref = reference_forward(input_id, mask, params)
    assert out.shape == (B, NUM_LABELS)
    assert jnp.allclose(out, ref, atol=2e-4, rtol=1e-3), \
        float(jnp.max(jnp.abs(out - ref)))

    print("KERNEL_OK")
</pallas_src>

<mosaic_0001>
module attributes {stable_mosaic.version = 11 : i64} {
  func.func @bert_classifier_kernel(%arg0: i32, %arg1: memref<128x8xi32, #tpu.memory_space<vmem>>, %arg2: memref<128x1xf32, #tpu.memory_space<vmem>>, %arg3: memref<1024x768xbf16, #tpu.memory_space<vmem>>, %arg4: memref<768x768xbf16, #tpu.memory_space<vmem>>, %arg5: memref<1x768xf32, #tpu.memory_space<vmem>>, %arg6: memref<768x128xbf16, #tpu.memory_space<vmem>>, %arg7: memref<1x128xf32, #tpu.memory_space<vmem>>, %arg8: memref<128x128xf32, #tpu.memory_space<vmem>>) attributes {dimension_semantics = [#tpu.dimension_semantics<parallel>], iteration_bounds = array<i64: 1>, scalar_prefetch = 0 : i64, scratch_operands = 0 : i64, tpu.core_type = #tpu.core_type<tc>, window_params = [{transform_indices = @transform_0, window_bounds = array<i64: 128, 8>}, {transform_indices = @transform_1, window_bounds = array<i64: 128, 1>}, {pipeline_mode = #tpu.pipeline_mode<synchronous>, transform_indices = @transform_2, window_bounds = array<i64: 1024, 768>}, {pipeline_mode = #tpu.pipeline_mode<synchronous>, transform_indices = @transform_3, window_bounds = array<i64: 768, 768>}, {pipeline_mode = #tpu.pipeline_mode<synchronous>, transform_indices = @transform_4, window_bounds = array<i64: 1, 768>}, {pipeline_mode = #tpu.pipeline_mode<synchronous>, transform_indices = @transform_5, window_bounds = array<i64: 768, 128>}, {pipeline_mode = #tpu.pipeline_mode<synchronous>, transform_indices = @transform_6, window_bounds = array<i64: 1, 128>}, {transform_indices = @transform_7, window_bounds = array<i64: 128, 128>}]} {
    %c0 = arith.constant 0 : index
    %c0_0 = arith.constant 0 : index
    %0 = vector.load %arg1[%c0, %c0_0] : memref<128x8xi32, #tpu.memory_space<vmem>>, vector<128x8xi32>
    %1 = tpu.iota {dimensions = array<i32: 1>} : vector<128x1024xi32>
    %cst = arith.constant 0.000000e+00 : f32
    %2 = vector.broadcast %cst : f32 to vector<128x1024xf32>
    %3 = vector.extract_strided_slice %0 {offsets = [0, 0], sizes = [128, 1], strides = [1, 1]} : vector<128x8xi32> to vector<128x1xi32>
    %4 = vector.broadcast %3 : vector<128x1xi32> to vector<128x1024xi32>
    %5 = arith.cmpi eq, %4, %1 : vector<128x1024xi32>
    %6 = arith.extui %5 : vector<128x1024xi1> to vector<128x1024xi32>
    %7 = arith.sitofp %6 : vector<128x1024xi32> to vector<128x1024xf32>
    %8 = arith.addf %2, %7 : vector<128x1024xf32>
    %9 = vector.extract_strided_slice %0 {offsets = [0, 1], sizes = [128, 1], strides = [1, 1]} : vector<128x8xi32> to vector<128x1xi32>
    %10 = vector.broadcast %9 : vector<128x1xi32> to vector<128x1024xi32>
    %11 = arith.cmpi eq, %10, %1 : vector<128x1024xi32>
    %12 = arith.extui %11 : vector<128x1024xi1> to vector<128x1024xi32>
    %13 = arith.sitofp %12 : vector<128x1024xi32> to vector<128x1024xf32>
    %14 = arith.addf %8, %13 : vector<128x1024xf32>
    %15 = vector.extract_strided_slice %0 {offsets = [0, 2], sizes = [128, 1], strides = [1, 1]} : vector<128x8xi32> to vector<128x1xi32>
    %16 = vector.broadcast %15 : vector<128x1xi32> to vector<128x1024xi32>
    %17 = arith.cmpi eq, %16, %1 : vector<128x1024xi32>
    %18 = arith.extui %17 : vector<128x1024xi1> to vector<128x1024xi32>
    %19 = arith.sitofp %18 : vector<128x1024xi32> to vector<128x1024xf32>
    %20 = arith.addf %14, %19 : vector<128x1024xf32>
    %21 = vector.extract_strided_slice %0 {offsets = [0, 3], sizes = [128, 1], strides = [1, 1]} : vector<128x8xi32> to vector<128x1xi32>
    %22 = vector.broadcast %21 : vector<128x1xi32> to vector<128x1024xi32>
    %23 = arith.cmpi eq, %22, %1 : vector<128x1024xi32>
    %24 = arith.extui %23 : vector<128x1024xi1> to vector<128x1024xi32>
    %25 = arith.sitofp %24 : vector<128x1024xi32> to vector<128x1024xf32>
    %26 = arith.addf %20, %25 : vector<128x1024xf32>
    %27 = vector.extract_strided_slice %0 {offsets = [0, 4], sizes = [128, 1], strides = [1, 1]} : vector<128x8xi32> to vector<128x1xi32>
    %28 = vector.broadcast %27 : vector<128x1xi32> to vector<128x1024xi32>
    %29 = arith.cmpi eq, %28, %1 : vector<128x1024xi32>
    %30 = arith.extui %29 : vector<128x1024xi1> to vector<128x1024xi32>
    %31 = arith.sitofp %30 : vector<128x1024xi32> to vector<128x1024xf32>
    %32 = arith.addf %26, %31 : vector<128x1024xf32>
    %33 = vector.extract_strided_slice %0 {offsets = [0, 5], sizes = [128, 1], strides = [1, 1]} : vector<128x8xi32> to vector<128x1xi32>
    %34 = vector.broadcast %33 : vector<128x1xi32> to vector<128x1024xi32>
    %35 = arith.cmpi eq, %34, %1 : vector<128x1024xi32>
    %36 = arith.extui %35 : vector<128x1024xi1> to vector<128x1024xi32>
    %37 = arith.sitofp %36 : vector<128x1024xi32> to vector<128x1024xf32>
    %38 = arith.addf %32, %37 : vector<128x1024xf32>
    %39 = vector.extract_strided_slice %0 {offsets = [0, 6], sizes = [128, 1], strides = [1, 1]} : vector<128x8xi32> to vector<128x1xi32>
    %40 = vector.broadcast %39 : vector<128x1xi32> to vector<128x1024xi32>
    %41 = arith.cmpi eq, %40, %1 : vector<128x1024xi32>
    %42 = arith.extui %41 : vector<128x1024xi1> to vector<128x1024xi32>
    %43 = arith.sitofp %42 : vector<128x1024xi32> to vector<128x1024xf32>
    %44 = arith.addf %38, %43 : vector<128x1024xf32>
    %45 = vector.extract_strided_slice %0 {offsets = [0, 7], sizes = [128, 1], strides = [1, 1]} : vector<128x8xi32> to vector<128x1xi32>
    %46 = vector.broadcast %45 : vector<128x1xi32> to vector<128x1024xi32>
    %47 = arith.cmpi eq, %46, %1 : vector<128x1024xi32>
    %48 = arith.extui %47 : vector<128x1024xi1> to vector<128x1024xi32>
    %49 = arith.sitofp %48 : vector<128x1024xi32> to vector<128x1024xf32>
    %50 = arith.addf %44, %49 : vector<128x1024xf32>
    %51 = arith.truncf %50 : vector<128x1024xf32> to vector<128x1024xbf16>
    %c0_1 = arith.constant 0 : index
    %c0_2 = arith.constant 0 : index
    %52 = vector.load %arg3[%c0_1, %c0_2] : memref<1024x768xbf16, #tpu.memory_space<vmem>>, vector<1024x768xbf16>
    %cst_3 = arith.constant dense<0.000000e+00> : vector<128x768xf32>
    %53 = tpu.matmul %51, %52, %cst_3 {dimension_numbers = #tpu.dot_dimension_numbers<[1], [0], [0], [1], [0, 0, 1, 1], [], []>} : vector<128x1024xbf16>, vector<1024x768xbf16>, vector<128x768xf32> -> vector<128x768xf32>
    %c0_4 = arith.constant 0 : index
    %c0_5 = arith.constant 0 : index
    %54 = vector.load %arg2[%c0_4, %c0_5] : memref<128x1xf32, #tpu.memory_space<vmem>>, vector<128x1xf32>
    %55 = vector.broadcast %54 : vector<128x1xf32> to vector<128x768xf32>
    %56 = arith.mulf %53, %55 : vector<128x768xf32>
    %57 = arith.truncf %56 : vector<128x768xf32> to vector<128x768xbf16>
    %c0_6 = arith.constant 0 : index
    %c0_7 = arith.constant 0 : index
    %58 = vector.load %arg4[%c0_6, %c0_7] : memref<768x768xbf16, #tpu.memory_space<vmem>>, vector<768x768xbf16>
    %cst_8 = arith.constant dense<0.000000e+00> : vector<128x768xf32>
    %59 = tpu.matmul %57, %58, %cst_8 {dimension_numbers = #tpu.dot_dimension_numbers<[1], [0], [0], [1], [0, 0, 1, 1], [], []>} : vector<128x768xbf16>, vector<768x768xbf16>, vector<128x768xf32> -> vector<128x768xf32>
    %c0_9 = arith.constant 0 : index
    %c0_10 = arith.constant 0 : index
    %60 = vector.load %arg5[%c0_9, %c0_10] : memref<1x768xf32, #tpu.memory_space<vmem>>, vector<1x768xf32>
    %61 = vector.broadcast %60 : vector<1x768xf32> to vector<128x768xf32>
    %62 = arith.addf %59, %61 : vector<128x768xf32>
    %63 = math.tanh %62 : vector<128x768xf32>
    %64 = arith.truncf %63 : vector<128x768xf32> to vector<128x768xbf16>
    %c0_11 = arith.constant 0 : index
    %c0_12 = arith.constant 0 : index
    %65 = vector.load %arg6[%c0_11, %c0_12] : memref<768x128xbf16, #tpu.memory_space<vmem>>, vector<768x128xbf16>
    %cst_13 = arith.constant dense<0.000000e+00> : vector<128x128xf32>
    %66 = tpu.matmul %64, %65, %cst_13 {dimension_numbers = #tpu.dot_dimension_numbers<[1], [0], [0], [1], [0, 0, 1, 1], [], []>} : vector<128x768xbf16>, vector<768x128xbf16>, vector<128x128xf32> -> vector<128x128xf32>
    %c0_14 = arith.constant 0 : index
    %c0_15 = arith.constant 0 : index
    %67 = vector.load %arg7[%c0_14, %c0_15] : memref<1x128xf32, #tpu.memory_space<vmem>>, vector<1x128xf32>
    %68 = vector.broadcast %67 : vector<1x128xf32> to vector<128x128xf32>
    %69 = arith.addf %66, %68 : vector<128x128xf32>
    %cst_16 = arith.constant 0.000000e+00 : f32
    %70 = vector.broadcast %cst_16 : f32 to vector<128x128xf32>
    %71 = arith.maximumf %69, %70 : vector<128x128xf32>
    %c0_17 = arith.constant 0 : index
    %c0_18 = arith.constant 0 : index
    %72 = vector.load %arg8[%c0_17, %c0_18] : memref<128x128xf32, #tpu.memory_space<vmem>>, vector<128x128xf32>
    tpu.vector_store %arg8[%c0_17, %c0_18], %71 {strides = array<i32>} : memref<128x128xf32, #tpu.memory_space<vmem>>, vector<128x128xf32>,
    return
  }
  func.func @transform_0(%arg0: i32) -> (i32, i32) {
    %c0_i32 = arith.constant 0 : i32
    %c0_i32_0 = arith.constant 0 : i32
    return %arg0, %c0_i32 : i32, i32
  }
  func.func @transform_1(%arg0: i32) -> (i32, i32) {
    %c0_i32 = arith.constant 0 : i32
    %c0_i32_0 = arith.constant 0 : i32
    return %arg0, %c0_i32 : i32, i32
  }
  func.func @transform_2(%arg0: i32) -> (i32, i32) {
    %c0_i32 = arith.constant 0 : i32
    %c0_i32_0 = arith.constant 0 : i32
    %c0_i32_1 = arith.constant 0 : i32
    return %c0_i32, %c0_i32_0 : i32, i32
  }
  func.func @transform_3(%arg0: i32) -> (i32, i32) {
    %c0_i32 = arith.constant 0 : i32
    %c0_i32_0 = arith.constant 0 : i32
    %c0_i32_1 = arith.constant 0 : i32
    return %c0_i32, %c0_i32_0 : i32, i32
  }
  func.func @transform_4(%arg0: i32) -> (i32, i32) {
    %c0_i32 = arith.constant 0 : i32
    %c0_i32_0 = arith.constant 0 : i32
    %c0_i32_1 = arith.constant 0 : i32
    return %c0_i32, %c0_i32_0 : i32, i32
  }
  func.func @transform_5(%arg0: i32) -> (i32, i32) {
    %c0_i32 = arith.constant 0 : i32
    %c0_i32_0 = arith.constant 0 : i32
    %c0_i32_1 = arith.constant 0 : i32
    return %c0_i32, %c0_i32_0 : i32, i32
  }
  func.func @transform_6(%arg0: i32) -> (i32, i32) {
    %c0_i32 = arith.constant 0 : i32
    %c0_i32_0 = arith.constant 0 : i32
    %c0_i32_1 = arith.constant 0 : i32
    return %c0_i32, %c0_i32_0 : i32, i32
  }
  func.func @transform_7(%arg0: i32) -> (i32, i32) {
    %c0_i32 = arith.constant 0 : i32
    %c0_i32_0 = arith.constant 0 : i32
    return %arg0, %c0_i32 : i32, i32
  }
}

</mosaic_0001>

<llo_original>
// kernel: tpu_custom_call.1
$region0: #{tpu_custom_call.1}
  #allocation0 [shape = 'u32[]', space=smem, size = 0x4, offset = 0x4, fixed_abs, tag = 'smem constant byte address 0x4 - core index']
  #allocation1 [shape = 'u32[144,128]{1,0:T(1,128)}', space=vmem, size = 0x12000, scoped, tag = 'internal scratch']
  %s0 = inlined_call_operand.vmem [shape: s32[128,8], index: 0, kind: input, shape index: {}]
  %s1 = inlined_call_operand.vmem [shape: f32[128,1], index: 1, kind: input, shape index: {}]
  %s2 = inlined_call_operand.hbm [shape: bf16[1024,768], index: 2, kind: input, shape index: {}]
  %s3 = inlined_call_operand.hbm [shape: bf16[768,768], index: 3, kind: input, shape index: {}]
  %s4 = inlined_call_operand.hbm [shape: f32[1,768], index: 4, kind: input, shape index: {}]
  %s5 = inlined_call_operand.hbm [shape: bf16[768,128], index: 5, kind: input, shape index: {}]
  %s6 = inlined_call_operand.hbm [shape: f32[1,128], index: 6, kind: input, shape index: {}]
  %s7 = inlined_call_operand.hbm [shape: f32[128,128], index: 7, kind: output, shape index: {}]
  %s8 = sld [smem:[#allocation0]]
  $region58: #{tpu_custom_call.1} parent=0
    _
  %s10 = ssub.s32 1, %s8
  %s11 = scalar_select 0, %s10, %s8
  $region1: #{tpu_custom_call.1} parent=0
    #allocation2 [shape = 'u8[1572864]{0}', space=vmem, size = 0x180000, scoped, tag = 'input window, operand 2, single buffered']
    #allocation3 [shape = 's32[1]{0}', space=sflag, size = 0x4, scoped, tag = 'scoped memory for tpu_custom_call.1']
    #allocation4 [shape = 's32[1]{0}', space=sflag, size = 0x4, scoped, tag = 'scoped memory for tpu_custom_call.1']
    #allocation5 [shape = 'u8[1179648]{0}', space=vmem, size = 0x120000, scoped, tag = 'input window, operand 3, single buffered']
    #allocation6 [shape = 's32[1]{0}', space=sflag, size = 0x4, scoped, tag = 'scoped memory for tpu_custom_call.1']
    #allocation7 [shape = 'u8[3072]{0}', space=vmem, size = 0xc00, scoped, tag = 'input window, operand 4, single buffered']
    #allocation8 [shape = 'u8[196608]{0}', space=vmem, size = 0x30000, scoped, tag = 'input window, operand 5, single buffered']
    #allocation9 [shape = 's32[1]{0}', space=sflag, size = 0x4, scoped, tag = 'scoped memory for tpu_custom_call.1']
    #allocation10 [shape = 'u8[512]{0}', space=vmem, size = 0x400, scoped, tag = 'input window, operand 6, single buffered']
    #allocation11 [shape = 'u8[65536]{0}', space=vmem, size = 0x10000, scoped, tag = 'output window, operand 0, single buffered']
    %12 = vsyncpa [#allocation3], 0
    %13 = vsyncpa [#allocation6], 0
    %14 = vsyncpa [#allocation9], 0
    %15 = vsyncpa [#allocation4], 0
    // Predicated region
    $region2: #{tpu_custom_call.1} parent=1 // pred_check
      _
    $region3: #{tpu_custom_call.1} parent=1 // pred_check_branch
      %17 = sbr.rel (0) target = $region5
    $region4: #{tpu_custom_call.1} parent=1 // pred_region
      _
    $region5: #{tpu_custom_call.1} parent=1 // pred_fallthru
      _
    // Predicated region
    $region6: #{tpu_custom_call.1} parent=1 // pred_check
      _
    $region7: #{tpu_custom_call.1} parent=1 // pred_check_branch
      %19 = sbr.rel (0) target = $region9
    $region8: #{tpu_custom_call.1} parent=1 // pred_region
      _
    $region9: #{tpu_custom_call.1} parent=1 // pred_fallthru
      _
    // Predicated region
    $region10: #{tpu_custom_call.1} parent=1 // pred_check
      _
    $region11: #{tpu_custom_call.1} parent=1 // pred_check_branch
      %21 = sbr.rel (0) target = $region13
    $region12: #{tpu_custom_call.1} parent=1 // pred_region
      %s23 = ssub.s32 49152, 49152
      %24 = vsyncadd [#allocation3], %s23
      %s25 = sshll.u32 [#allocation2], 4
      %s26 = int_to_ptr.vmem [resolvable:$true] %s25
      %31 = dma.hbm_to_vmem [thread:$0]  %s2, 49152, %s26, [#allocation3], 384, 384, 24
    $region13: #{tpu_custom_call.1} parent=1 // pred_fallthru
      _
    // Predicated region
    $region14: #{tpu_custom_call.1} parent=1 // pred_check
      _
    $region15: #{tpu_custom_call.1} parent=1 // pred_check_branch
      %33 = sbr.rel (0) target = $region17
    $region16: #{tpu_custom_call.1} parent=1 // pred_region
      %s35 = ssub.s32 36864, 36864
      %36 = vsyncadd [#allocation6], %s35
      %s37 = sshll.u32 [#allocation5], 4
      %s38 = int_to_ptr.vmem [resolvable:$true] %s37
      %43 = dma.hbm_to_vmem [thread:$0]  %s3, 36864, %s38, [#allocation6], 384, 384, 24
    $region17: #{tpu_custom_call.1} parent=1 // pred_fallthru
      _
    // Predicated region
    $region18: #{tpu_custom_call.1} parent=1 // pred_check
      _
    $region19: #{tpu_custom_call.1} parent=1 // pred_check_branch
      %45 = sbr.rel (0) target = $region21
    $region20: #{tpu_custom_call.1} parent=1 // pred_region
      %s47 = ssub.s32 96, 96
      %48 = vsyncadd [#allocation6], %s47
      %s50 = sshll.u32 [#allocation7], 4
      %s51 = int_to_ptr.vmem [resolvable:$true] %s50
      %53 = dma.hbm_to_vmem [thread:$0]  %s4, 96, %s51, [#allocation6]
    $region21: #{tpu_custom_call.1} parent=1 // pred_fallthru
      _
    // Predicated region
    $region22: #{tpu_custom_call.1} parent=1 // pred_check
      _
    $region23: #{tpu_custom_call.1} parent=1 // pred_check_branch
      %55 = sbr.rel (0) target = $region25
    $region24: #{tpu_custom_call.1} parent=1 // pred_region
      %s57 = ssub.s32 6144, 6144
      %58 = vsyncadd [#allocation9], %s57
      %s59 = sshll.u32 [#allocation8], 4
      %s60 = int_to_ptr.vmem [resolvable:$true] %s59
      %65 = dma.hbm_to_vmem [thread:$0]  %s5, 6144, %s60, [#allocation9], 64, 64, 4
    $region25: #{tpu_custom_call.1} parent=1 // pred_fallthru
      _
    // Predicated region
    $region26: #{tpu_custom_call.1} parent=1 // pred_check
      _
    $region27: #{tpu_custom_call.1} parent=1 // pred_check_branch
      %67 = sbr.rel (0) target = $region29
    $region28: #{tpu_custom_call.1} parent=1 // pred_region
      %s69 = ssub.s32 16, 16
      %70 = vsyncadd [#allocation9], %s69
      %s72 = sshll.u32 [#allocation10], 4
      %s73 = int_to_ptr.vmem [resolvable:$true] %s72
      %75 = dma.hbm_to_vmem [thread:$0]  %s6, 16, %s73, [#allocation9]
    $region29: #{tpu_custom_call.1} parent=1 // pred_fallthru
      _
    // Predicated region
    $region30: #{tpu_custom_call.1} parent=1 // pred_check
      _
    $region31: #{tpu_custom_call.1} parent=1 // pred_check_branch
      %77 = sbr.rel (0) target = $region33
    $region32: #{tpu_custom_call.1} parent=1 // pred_region
      %78 = dma.done [#allocation3], 49152
    $region33: #{tpu_custom_call.1} parent=1 // pred_fallthru
      _
    // Predicated region
    $region34: #{tpu_custom_call.1} parent=1 // pred_check
      _
    $region35: #{tpu_custom_call.1} parent=1 // pred_check_branch
      %80 = sbr.rel (0) target = $region37
    $region36: #{tpu_custom_call.1} parent=1 // pred_region
      %81 = dma.done [#allocation6], 36864
    $region37: #{tpu_custom_call.1} parent=1 // pred_fallthru
      _
    // Predicated region
    $region38: #{tpu_custom_call.1} parent=1 // pred_check
      _
    $region39: #{tpu_custom_call.1} parent=1 // pred_check_branch
      %83 = sbr.rel (0) target = $region41
    $region40: #{tpu_custom_call.1} parent=1 // pred_region
      %84 = dma.done [#allocation6], 96
    $region41: #{tpu_custom_call.1} parent=1 // pred_fallthru
      _
    // Predicated region
    $region42: #{tpu_custom_call.1} parent=1 // pred_check
      _
    $region43: #{tpu_custom_call.1} parent=1 // pred_check_branch
      %86 = sbr.rel (0) target = $region45
    $region44: #{tpu_custom_call.1} parent=1 // pred_region
      %87 = dma.done [#allocation9], 6144
    $region45: #{tpu_custom_call.1} parent=1 // pred_fallthru
      _
    // Predicated region
    $region46: #{tpu_custom_call.1} parent=1 // pred_check
      _
    $region47: #{tpu_custom_call.1} parent=1 // pred_check_branch
      %89 = sbr.rel (0) target = $region49
    $region48: #{tpu_custom_call.1} parent=1 // pred_region
      %90 = dma.done [#allocation9], 16
    $region49: #{tpu_custom_call.1} parent=1 // pred_fallthru
      _
    %v92 = vld [vmem:[%s0] sm:$0xff]
    %v93 = vld [vmem:[%s0 + $0x8] sm:$0xff]
    %v94 = vld [vmem:[%s0 + $0x10] sm:$0xff]
    %v95 = vld [vmem:[%s0 + $0x18] sm:$0xff]
    %v96 = vld [vmem:[%s0 + $0x20] sm:$0xff]
    %v97 = vld [vmem:[%s0 + $0x28] sm:$0xff]
    %v98 = vld [vmem:[%s0 + $0x30] sm:$0xff]
    %v99 = vld [vmem:[%s0 + $0x38] sm:$0xff]
    %v100 = vld [vmem:[%s0 + $0x40] sm:$0xff]
    %v101 = vld [vmem:[%s0 + $0x48] sm:$0xff]
    %v102 = vld [vmem:[%s0 + $0x50] sm:$0xff]
    %v103 = vld [vmem:[%s0 + $0x58] sm:$0xff]
    %v104 = vld [vmem:[%s0 + $0x60] sm:$0xff]
    %v105 = vld [vmem:[%s0 + $0x68] sm:$0xff]
    %v106 = vld [vmem:[%s0 + $0x70] sm:$0xff]
    %v107 = vld [vmem:[%s0 + $0x78] sm:$0xff]
    %v108 = vlaneseq
    %v109 = vand.u32 %v108, 127
    %v110 = vadd.s32 %v109, 128
    %v111 = vadd.s32 %v109, 256
    %v112 = vadd.s32 %v109, 384
    %v113 = vadd.s32 %v109, 512
    %v114 = vadd.s32 %v109, 640
    %v115 = vadd.s32 %v109, 768
    %v116 = vadd.s32 %v109, 896
    %117 = vset.pattern.permute.xlu0 0
    %118 = vperm.xlu0 %117, %v92
    %v119 = vpop.permute.xlu0 %118
    %120 = vset.pattern.permute.xlu0 0
    %121 = vperm.xlu0 %120, %v93
    %v122 = vpop.permute.xlu0 %121
    %123 = vset.pattern.permute.xlu0 0
    %124 = vperm.xlu0 %123, %v94
    %v125 = vpop.permute.xlu0 %124
    %126 = vset.pattern.permute.xlu0 0
    %127 = vperm.xlu0 %126, %v95
    %v128 = vpop.permute.xlu0 %127
    %129 = vset.pattern.permute.xlu0 0
    %130 = vperm.xlu0 %129, %v96
    %v131 = vpop.permute.xlu0 %130
    %132 = vset.pattern.permute.xlu0 0
    %133 = vperm.xlu0 %132, %v97
    %v134 = vpop.permute.xlu0 %133
    %135 = vset.pattern.permute.xlu0 0
    %136 = vperm.xlu0 %135, %v98
    %v137 = vpop.permute.xlu0 %136
    %138 = vset.pattern.permute.xlu0 0
    %139 = vperm.xlu0 %138, %v99
    %v140 = vpop.permute.xlu0 %139
    %141 = vset.pattern.permute.xlu0 0
    %142 = vperm.xlu0 %141, %v100
    %v143 = vpop.permute.xlu0 %142
    %144 = vset.pattern.permute.xlu0 0
    %145 = vperm.xlu0 %144, %v101
    %v146 = vpop.permute.xlu0 %145
    %147 = vset.pattern.permute.xlu0 0
    %148 = vperm.xlu0 %147, %v102
    %v149 = vpop.permute.xlu0 %148
    %150 = vset.pattern.permute.xlu0 0
    %151 = vperm.xlu0 %150, %v103
    %v152 = vpop.permute.xlu0 %151
    %153 = vset.pattern.permute.xlu0 0
    %154 = vperm.xlu0 %153, %v104
    %v155 = vpop.permute.xlu0 %154
    %156 = vset.pattern.permute.xlu0 0
    %157 = vperm.xlu0 %156, %v105
    %v158 = vpop.permute.xlu0 %157
    %159 = vset.pattern.permute.xlu0 0
    %160 = vperm.xlu0 %159, %v106
    %v161 = vpop.permute.xlu0 %160
    %162 = vset.pattern.permute.xlu0 0
    %163 = vperm.xlu0 %162, %v107
    %v164 = vpop.permute.xlu0 %163
    %vm165 = vcmp.eq.s32.totalorder %v119, %v109
    %vm166 = vcmp.eq.s32.totalorder %v119, %v110
    %vm167 = vcmp.eq.s32.totalorder %v119, %v111
    %vm168 = vcmp.eq.s32.totalorder %v119, %v112
    %vm169 = vcmp.eq.s32.totalorder %v119, %v113
    %vm170 = vcmp.eq.s32.totalorder %v119, %v114
    %vm171 = vcmp.eq.s32.totalorder %v119, %v115
    %vm172 = vcmp.eq.s32.totalorder %v119, %v116
    %vm173 = vcmp.eq.s32.totalorder %v122, %v109
    %vm174 = vcmp.eq.s32.totalorder %v122, %v110
    %vm175 = vcmp.eq.s32.totalorder %v122, %v111
    %vm176 = vcmp.eq.s32.totalorder %v122, %v112
    %vm177 = vcmp.eq.s32.totalorder %v122, %v113
    %vm178 = vcmp.eq.s32.totalorder %v122, %v114
    %vm179 = vcmp.eq.s32.totalorder %v122, %v115
    %vm180 = vcmp.eq.s32.totalorder %v122, %v116
    %vm181 = vcmp.eq.s32.totalorder %v125, %v109
    %vm182 = vcmp.eq.s32.totalorder %v125, %v110
    %vm183 = vcmp.eq.s32.totalorder %v125, %v111
    %vm184 = vcmp.eq.s32.totalorder %v125, %v112
    %vm185 = vcmp.eq.s32.totalorder %v125, %v113
    %vm186 = vcmp.eq.s32.totalorder %v125, %v114
    %vm187 = vcmp.eq.s32.totalorder %v125, %v115
    %vm188 = vcmp.eq.s32.totalorder %v125, %v116
    %vm189 = vcmp.eq.s32.totalorder %v128, %v109
    %vm190 = vcmp.eq.s32.totalorder %v128, %v110
    %vm191 = vcmp.eq.s32.totalorder %v128, %v111
    %vm192 = vcmp.eq.s32.totalorder %v128, %v112
    %vm193 = vcmp.eq.s32.totalorder %v128, %v113
    %vm194 = vcmp.eq.s32.totalorder %v128, %v114
    %vm195 = vcmp.eq.s32.totalorder %v128, %v115
    %vm196 = vcmp.eq.s32.totalorder %v128, %v116
    %vm197 = vcmp.eq.s32.totalorder %v131, %v109
    %vm198 = vcmp.eq.s32.totalorder %v131, %v110
    %vm199 = vcmp.eq.s32.totalorder %v131, %v111
    %vm200 = vcmp.eq.s32.totalorder %v131, %v112
    %vm201 = vcmp.eq.s32.totalorder %v131, %v113
    %vm202 = vcmp.eq.s32.totalorder %v131, %v114
    %vm203 = vcmp.eq.s32.totalorder %v131, %v115
    %vm204 = vcmp.eq.s32.totalorder %v131, %v116
    %vm205 = vcmp.eq.s32.totalorder %v134, %v109
    %vm206 = vcmp.eq.s32.totalorder %v134, %v110
    %vm207 = vcmp.eq.s32.totalorder %v134, %v111
    %vm208 = vcmp.eq.s32.totalorder %v134, %v112
    %vm209 = vcmp.eq.s32.totalorder %v134, %v113
    %vm210 = vcmp.eq.s32.totalorder %v134, %v114
    %vm211 = vcmp.eq.s32.totalorder %v134, %v115
    %vm212 = vcmp.eq.s32.totalorder %v134, %v116
    %vm213 = vcmp.eq.s32.totalorder %v137, %v109
    %vm214 = vcmp.eq.s32.totalorder %v137, %v110
    %vm215 = vcmp.eq.s32.totalorder %v137, %v111
    %vm216 = vcmp.eq.s32.totalorder %v137, %v112
    %vm217 = vcmp.eq.s32.totalorder %v137, %v113
    %vm218 = vcmp.eq.s32.totalorder %v137, %v114
    %vm219 = vcmp.eq.s32.totalorder %v137, %v115
    %vm220 = vcmp.eq.s32.totalorder %v137, %v116
    %vm221 = vcmp.eq.s32.totalorder %v140, %v109
    %vm222 = vcmp.eq.s32.totalorder %v140, %v110
    %vm223 = vcmp.eq.s32.totalorder %v140, %v111
    %vm224 = vcmp.eq.s32.totalorder %v140, %v112
    %vm225 = vcmp.eq.s32.totalorder %v140, %v113
    %vm226 = vcmp.eq.s32.totalorder %v140, %v114
    %vm227 = vcmp.eq.s32.totalorder %v140, %v115
    %vm228 = vcmp.eq.s32.totalorder %v140, %v116
    %vm229 = vcmp.eq.s32.totalorder %v143, %v109
    %vm230 = vcmp.eq.s32.totalorder %v143, %v110
    %vm231 = vcmp.eq.s32.totalorder %v143, %v111
    %vm232 = vcmp.eq.s32.totalorder %v143, %v112
    %vm233 = vcmp.eq.s32.totalorder %v143, %v113
    %vm234 = vcmp.eq.s32.totalorder %v143, %v114
    %vm235 = vcmp.eq.s32.totalorder %v143, %v115
    %vm236 = vcmp.eq.s32.totalorder %v143, %v116
    %vm237 = vcmp.eq.s32.totalorder %v146, %v109
    %vm238 = vcmp.eq.s32.totalorder %v146, %v110
    %vm239 = vcmp.eq.s32.totalorder %v146, %v111
    %vm240 = vcmp.eq.s32.totalorder %v146, %v112
    %vm241 = vcmp.eq.s32.totalorder %v146, %v113
    %vm242 = vcmp.eq.s32.totalorder %v146, %v114
    %vm243 = vcmp.eq.s32.totalorder %v146, %v115
    %vm244 = vcmp.eq.s32.totalorder %v146, %v116
    %vm245 = vcmp.eq.s32.totalorder %v149, %v109
    %vm246 = vcmp.eq.s32.totalorder %v149, %v110
    %vm247 = vcmp.eq.s32.totalorder %v149, %v111
    %vm248 = vcmp.eq.s32.totalorder %v149, %v112
    %vm249 = vcmp.eq.s32.totalorder %v149, %v113
    %vm250 = vcmp.eq.s32.totalorder %v149, %v114
    %vm251 = vcmp.eq.s32.totalorder %v149, %v115
    %vm252 = vcmp.eq.s32.totalorder %v149, %v116
    %vm253 = vcmp.eq.s32.totalorder %v152, %v109
    %vm254 = vcmp.eq.s32.totalorder %v152, %v110
    %vm255 = vcmp.eq.s32.totalorder %v152, %v111
    %vm256 = vcmp.eq.s32.totalorder %v152, %v112
    %vm257 = vcmp.eq.s32.totalorder %v152, %v113
    %vm258 = vcmp.eq.s32.totalorder %v152, %v114
    %vm259 = vcmp.eq.s32.totalorder %v152, %v115
    %vm260 = vcmp.eq.s32.totalorder %v152, %v116
    %vm261 = vcmp.eq.s32.totalorder %v155, %v109
    %vm262 = vcmp.eq.s32.totalorder %v155, %v110
    %vm263 = vcmp.eq.s32.totalorder %v155, %v111
    %vm264 = vcmp.eq.s32.totalorder %v155, %v112
    %vm265 = vcmp.eq.s32.totalorder %v155, %v113
    %vm266 = vcmp.eq.s32.totalorder %v155, %v114
    %vm267 = vcmp.eq.s32.totalorder %v155, %v115
    %vm268 = vcmp.eq.s32.totalorder %v155, %v116
    %vm269 = vcmp.eq.s32.totalorder %v158, %v109
    %vm270 = vcmp.eq.s32.totalorder %v158, %v110
    %vm271 = vcmp.eq.s32.totalorder %v158, %v111
    %vm272 = vcmp.eq.s32.totalorder %v158, %v112
    %vm273 = vcmp.eq.s32.totalorder %v158, %v113
    %vm274 = vcmp.eq.s32.totalorder %v158, %v114
    %vm275 = vcmp.eq.s32.totalorder %v158, %v115
    %vm276 = vcmp.eq.s32.totalorder %v158, %v116
    %vm277 = vcmp.eq.s32.totalorder %v161, %v109
    %vm278 = vcmp.eq.s32.totalorder %v161, %v110
    %vm279 = vcmp.eq.s32.totalorder %v161, %v111
    %vm280 = vcmp.eq.s32.totalorder %v161, %v112
    %vm281 = vcmp.eq.s32.totalorder %v161, %v113
    %vm282 = vcmp.eq.s32.totalorder %v161, %v114
    %vm283 = vcmp.eq.s32.totalorder %v161, %v115
    %vm284 = vcmp.eq.s32.totalorder %v161, %v116
    %vm285 = vcmp.eq.s32.totalorder %v164, %v109
    %vm286 = vcmp.eq.s32.totalorder %v164, %v110
    %vm287 = vcmp.eq.s32.totalorder %v164, %v111
    %vm288 = vcmp.eq.s32.totalorder %v164, %v112
    %vm289 = vcmp.eq.s32.totalorder %v164, %v113
    %vm290 = vcmp.eq.s32.totalorder %v164, %v114
    %vm291 = vcmp.eq.s32.totalorder %v164, %v115
    %vm292 = vcmp.eq.s32.totalorder %v164, %v116
    %v293 = vsel %vm165, 1, 0
    %v294 = vsel %vm166, 1, 0
    %v295 = vsel %vm167, 1, 0
    %v296 = vsel %vm168, 1, 0
    %v297 = vsel %vm169, 1, 0
    %v298 = vsel %vm170, 1, 0
    %v299 = vsel %vm171, 1, 0
    %v300 = vsel %vm172, 1, 0
    %v301 = vsel %vm173, 1, 0
    %v302 = vsel %vm174, 1, 0
    %v303 = vsel %vm175, 1, 0
    %v304 = vsel %vm176, 1, 0
    %v305 = vsel %vm177, 1, 0
    %v306 = vsel %vm178, 1, 0
    %v307 = vsel %vm179, 1, 0
    %v308 = vsel %vm180, 1, 0
    %v309 = vsel %vm181, 1, 0
    %v310 = vsel %vm182, 1, 0
    %v311 = vsel %vm183, 1, 0
    %v312 = vsel %vm184, 1, 0
    %v313 = vsel %vm185, 1, 0
    %v314 = vsel %vm186, 1, 0
    %v315 = vsel %vm187, 1, 0
    %v316 = vsel %vm188, 1, 0
    %v317 = vsel %vm189, 1, 0
    %v318 = vsel %vm190, 1, 0
    %v319 = vsel %vm191, 1, 0
    %v320 = vsel %vm192, 1, 0
    %v321 = vsel %vm193, 1, 0
    %v322 = vsel %vm194, 1, 0
    %v323 = vsel %vm195, 1, 0
    %v324 = vsel %vm196, 1, 0
    %v325 = vsel %vm197, 1, 0
    %v326 = vsel %vm198, 1, 0
    %v327 = vsel %vm199, 1, 0
    %v328 = vsel %vm200, 1, 0
    %v329 = vsel %vm201, 1, 0
    %v330 = vsel %vm202, 1, 0
    %v331 = vsel %vm203, 1, 0
    %v332 = vsel %vm204, 1, 0
    %v333 = vsel %vm205, 1, 0
    %v334 = vsel %vm206, 1, 0
    %v335 = vsel %vm207, 1, 0
    %v336 = vsel %vm208, 1, 0
    %v337 = vsel %vm209, 1, 0
    %v338 = vsel %vm210, 1, 0
    %v339 = vsel %vm211, 1, 0
    %v340 = vsel %vm212, 1, 0
    %v341 = vsel %vm213, 1, 0
    %v342 = vsel %vm214, 1, 0
    %v343 = vsel %vm215, 1, 0
    %v344 = vsel %vm216, 1, 0
    %v345 = vsel %vm217, 1, 0
    %v346 = vsel %vm218, 1, 0
    %v347 = vsel %vm219, 1, 0
    %v348 = vsel %vm220, 1, 0
    %v349 = vsel %vm221, 1, 0
    %v350 = vsel %vm222, 1, 0
    %v351 = vsel %vm223, 1, 0
    %v352 = vsel %vm224, 1, 0
    %v353 = vsel %vm225, 1, 0
    %v354 = vsel %vm226, 1, 0
    %v355 = vsel %vm227, 1, 0
    %v356 = vsel %vm228, 1, 0
    %v357 = vsel %vm229, 1, 0
    %v358 = vsel %vm230, 1, 0
    %v359 = vsel %vm231, 1, 0
    %v360 = vsel %vm232, 1, 0
    %v361 = vsel %vm233, 1, 0
    %v362 = vsel %vm234, 1, 0
    %v363 = vsel %vm235, 1, 0
    %v364 = vsel %vm236, 1, 0
    %v365 = vsel %vm237, 1, 0
    %v366 = vsel %vm238, 1, 0
    %v367 = vsel %vm239, 1, 0
    %v368 = vsel %vm240, 1, 0
    %v369 = vsel %vm241, 1, 0
    %v370 = vsel %vm242, 1, 0
    %v371 = vsel %vm243, 1, 0
    %v372 = vsel %vm244, 1, 0
    %v373 = vsel %vm245, 1, 0
    %v374 = vsel %vm246, 1, 0
    %v375 = vsel %vm247, 1, 0
    %v376 = vsel %vm248, 1, 0
    %v377 = vsel %vm249, 1, 0
    %v378 = vsel %vm250, 1, 0
    %v379 = vsel %vm251, 1, 0
    %v380 = vsel %vm252, 1, 0
    %v381 = vsel %vm253, 1, 0
    %v382 = vsel %vm254, 1, 0
    %v383 = vsel %vm255, 1, 0
    %v384 = vsel %vm256, 1, 0
    %v385 = vsel %vm257, 1, 0
    %v386 = vsel %vm258, 1, 0
    %v387 = vsel %vm259, 1, 0
    %v388 = vsel %vm260, 1, 0
    %v389 = vsel %vm261, 1, 0
    %v390 = vsel %vm262, 1, 0
    %v391 = vsel %vm263, 1, 0
    %v392 = vsel %vm264, 1, 0
    %v393 = vsel %vm265, 1, 0
    %v394 = vsel %vm266, 1, 0
    %v395 = vsel %vm267, 1, 0
    %v396 = vsel %vm268, 1, 0
    %v397 = vsel %vm269, 1, 0
    %v398 = vsel %vm270, 1, 0
    %v399 = vsel %vm271, 1, 0
    %v400 = vsel %vm272, 1, 0
    %v401 = vsel %vm273, 1, 0
    %v402 = vsel %vm274, 1, 0
    %v403 = vsel %vm275, 1, 0
    %v404 = vsel %vm276, 1, 0
    %v405 = vsel %vm277, 1, 0
    %v406 = vsel %vm278, 1, 0
    %v407 = vsel %vm279, 1, 0
    %v408 = vsel %vm280, 1, 0
    %v409 = vsel %vm281, 1, 0
    %v410 = vsel %vm282, 1, 0
    %v411 = vsel %vm283, 1, 0
    %v412 = vsel %vm284, 1, 0
    %v413 = vsel %vm285, 1, 0
    %v414 = vsel %vm286, 1, 0
    %v415 = vsel %vm287, 1, 0
    %v416 = vsel %vm288, 1, 0
    %v417 = vsel %vm289, 1, 0
    %v418 = vsel %vm290, 1, 0
    %v419 = vsel %vm291, 1, 0
    %v420 = vsel %vm292, 1, 0
    %v421 = vcvt.s32.f32 %v293
    %v422 = vcvt.s32.f32 %v294
    %v423 = vcvt.s32.f32 %v295
    %v424 = vcvt.s32.f32 %v296
    %v425 = vcvt.s32.f32 %v297
    %v426 = vcvt.s32.f32 %v298
    %v427 = vcvt.s32.f32 %v299
    %v428 = vcvt.s32.f32 %v300
    %v429 = vcvt.s32.f32 %v301
    %v430 = vcvt.s32.f32 %v302
    %v431 = vcvt.s32.f32 %v303
    %v432 = vcvt.s32.f32 %v304
    %v433 = vcvt.s32.f32 %v305
    %v434 = vcvt.s32.f32 %v306
    %v435 = vcvt.s32.f32 %v307
    %v436 = vcvt.s32.f32 %v308
    %v437 = vcvt.s32.f32 %v309
    %v438 = vcvt.s32.f32 %v310
    %v439 = vcvt.s32.f32 %v311
    %v440 = vcvt.s32.f32 %v312
    %v441 = vcvt.s32.f32 %v313
    %v442 = vcvt.s32.f32 %v314
    %v443 = vcvt.s32.f32 %v315
    %v444 = vcvt.s32.f32 %v316
    %v445 = vcvt.s32.f32 %v317
    %v446 = vcvt.s32.f32 %v318
    %v447 = vcvt.s32.f32 %v319
    %v448 = vcvt.s32.f32 %v320
    %v449 = vcvt.s32.f32 %v321
    %v450 = vcvt.s32.f32 %v322
    %v451 = vcvt.s32.f32 %v323
    %v452 = vcvt.s32.f32 %v324
    %v453 = vcvt.s32.f32 %v325
    %v454 = vcvt.s32.f32 %v326
    %v455 = vcvt.s32.f32 %v327
    %v456 = vcvt.s32.f32 %v328
    %v457 = vcvt.s32.f32 %v329
    %v458 = vcvt.s32.f32 %v330
    %v459 = vcvt.s32.f32 %v331
    %v460 = vcvt.s32.f32 %v332
    %v461 = vcvt.s32.f32 %v333
    %v462 = vcvt.s32.f32 %v334
    %v463 = vcvt.s32.f32 %v335
    %v464 = vcvt.s32.f32 %v336
    %v465 = vcvt.s32.f32 %v337
    %v466 = vcvt.s32.f32 %v338
    %v467 = vcvt.s32.f32 %v339
    %v468 = vcvt.s32.f32 %v340
    %v469 = vcvt.s32.f32 %v341
    %v470 = vcvt.s32.f32 %v342
    %v471 = vcvt.s32.f32 %v343
    %v472 = vcvt.s32.f32 %v344
    %v473 = vcvt.s32.f32 %v345
    %v474 = vcvt.s32.f32 %v346
    %v475 = vcvt.s32.f32 %v347
    %v476 = vcvt.s32.f32 %v348
    %v477 = vcvt.s32.f32 %v349
    %v478 = vcvt.s32.f32 %v350
    %v479 = vcvt.s32.f32 %v351
    %v480 = vcvt.s32.f32 %v352
    %v481 = vcvt.s32.f32 %v353
    %v482 = vcvt.s32.f32 %v354
    %v483 = vcvt.s32.f32 %v355
    %v484 = vcvt.s32.f32 %v356
    %v485 = vcvt.s32.f32 %v357
    %v486 = vcvt.s32.f32 %v358
    %v487 = vcvt.s32.f32 %v359
    %v488 = vcvt.s32.f32 %v360
    %v489 = vcvt.s32.f32 %v361
    %v490 = vcvt.s32.f32 %v362
    %v491 = vcvt.s32.f32 %v363
    %v492 = vcvt.s32.f32 %v364
    %v493 = vcvt.s32.f32 %v365
    %v494 = vcvt.s32.f32 %v366
    %v495 = vcvt.s32.f32 %v367
    %v496 = vcvt.s32.f32 %v368
    %v497 = vcvt.s32.f32 %v369
    %v498 = vcvt.s32.f32 %v370
    %v499 = vcvt.s32.f32 %v371
    %v500 = vcvt.s32.f32 %v372
    %v501 = vcvt.s32.f32 %v373
    %v502 = vcvt.s32.f32 %v374
    %v503 = vcvt.s32.f32 %v375
    %v504 = vcvt.s32.f32 %v376
    %v505 = vcvt.s32.f32 %v377
    %v506 = vcvt.s32.f32 %v378
    %v507 = vcvt.s32.f32 %v379
    %v508 = vcvt.s32.f32 %v380
    %v509 = vcvt.s32.f32 %v381
    %v510 = vcvt.s32.f32 %v382
    %v511 = vcvt.s32.f32 %v383
    %v512 = vcvt.s32.f32 %v384
    %v513 = vcvt.s32.f32 %v385
    %v514 = vcvt.s32.f32 %v386
    %v515 = vcvt.s32.f32 %v387
    %v516 = vcvt.s32.f32 %v388
    %v517 = vcvt.s32.f32 %v389
    %v518 = vcvt.s32.f32 %v390
    %v519 = vcvt.s32.f32 %v391
    %v520 = vcvt.s32.f32 %v392
    %v521 = vcvt.s32.f32 %v393
    %v522 = vcvt.s32.f32 %v394
    %v523 = vcvt.s32.f32 %v395
    %v524 = vcvt.s32.f32 %v396
    %v525 = vcvt.s32.f32 %v397
    %v526 = vcvt.s32.f32 %v398
    %v527 = vcvt.s32.f32 %v399
    %v528 = vcvt.s32.f32 %v400
    %v529 = vcvt.s32.f32 %v401
    %v530 = vcvt.s32.f32 %v402
    %v531 = vcvt.s32.f32 %v403
    %v532 = vcvt.s32.f32 %v404
    %v533 = vcvt.s32.f32 %v405
    %v534 = vcvt.s32.f32 %v406
    %v535 = vcvt.s32.f32 %v407
    %v536 = vcvt.s32.f32 %v408
    %v537 = vcvt.s32.f32 %v409
    %v538 = vcvt.s32.f32 %v410
    %v539 = vcvt.s32.f32 %v411
    %v540 = vcvt.s32.f32 %v412
    %v541 = vcvt.s32.f32 %v413
    %v542 = vcvt.s32.f32 %v414
    %v543 = vcvt.s32.f32 %v415
    %v544 = vcvt.s32.f32 %v416
    %v545 = vcvt.s32.f32 %v417
    %v546 = vcvt.s32.f32 %v418
    %v547 = vcvt.s32.f32 %v419
    %v548 = vcvt.s32.f32 %v420
    %v549 = vadd.f32 %v421, 0.0
    %v550 = vadd.f32 %v422, 0.0
    %v551 = vadd.f32 %v423, 0.0
    %v552 = vadd.f32 %v424, 0.0
    %v553 = vadd.f32 %v425, 0.0
    %v554 = vadd.f32 %v426, 0.0
    %v555 = vadd.f32 %v427, 0.0
    %v556 = vadd.f32 %v428, 0.0
    %v557 = vadd.f32 %v429, 0.0
    %v558 = vadd.f32 %v430, 0.0
    %v559 = vadd.f32 %v431, 0.0
    %v560 = vadd.f32 %v432, 0.0
    %v561 = vadd.f32 %v433, 0.0
    %v562 = vadd.f32 %v434, 0.0
    %v563 = vadd.f32 %v435, 0.0
    %v564 = vadd.f32 %v436, 0.0
    %v565 = vadd.f32 %v437, 0.0
    %v566 = vadd.f32 %v438, 0.0
    %v567 = vadd.f32 %v439, 0.0
    %v568 = vadd.f32 %v440, 0.0
    %v569 = vadd.f32 %v441, 0.0
    %v570 = vadd.f32 %v442, 0.0
    %v571 = vadd.f32 %v443, 0.0
    %v572 = vadd.f32 %v444, 0.0
    %v573 = vadd.f32 %v445, 0.0
    %v574 = vadd.f32 %v446, 0.0
    %v575 = vadd.f32 %v447, 0.0
    %v576 = vadd.f32 %v448, 0.0
    %v577 = vadd.f32 %v449, 0.0
    %v578 = vadd.f32 %v450, 0.0
    %v579 = vadd.f32 %v451, 0.0
    %v580 = vadd.f32 %v452, 0.0
    %v581 = vadd.f32 %v453, 0.0
    %v582 = vadd.f32 %v454, 0.0
    %v583 = vadd.f32 %v455, 0.0
    %v584 = vadd.f32 %v456, 0.0
    %v585 = vadd.f32 %v457, 0.0
    %v586 = vadd.f32 %v458, 0.0
    %v587 = vadd.f32 %v459, 0.0
    %v588 = vadd.f32 %v460, 0.0
    %v589 = vadd.f32 %v461, 0.0
    %v590 = vadd.f32 %v462, 0.0
    %v591 = vadd.f32 %v463, 0.0
    %v592 = vadd.f32 %v464, 0.0
    %v593 = vadd.f32 %v465, 0.0
    %v594 = vadd.f32 %v466, 0.0
    %v595 = vadd.f32 %v467, 0.0
    %v596 = vadd.f32 %v468, 0.0
    %v597 = vadd.f32 %v469, 0.0
    %v598 = vadd.f32 %v470, 0.0
    %v599 = vadd.f32 %v471, 0.0
    %v600 = vadd.f32 %v472, 0.0
    %v601 = vadd.f32 %v473, 0.0
    %v602 = vadd.f32 %v474, 0.0
    %v603 = vadd.f32 %v475, 0.0
    %v604 = vadd.f32 %v476, 0.0
    %v605 = vadd.f32 %v477, 0.0
    %v606 = vadd.f32 %v478, 0.0
    %v607 = vadd.f32 %v479, 0.0
    %v608 = vadd.f32 %v480, 0.0
    %v609 = vadd.f32 %v481, 0.0
    %v610 = vadd.f32 %v482, 0.0
    %v611 = vadd.f32 %v483, 0.0
    %v612 = vadd.f32 %v484, 0.0
    %v613 = vadd.f32 %v485, 0.0
    %v614 = vadd.f32 %v486, 0.0
    %v615 = vadd.f32 %v487, 0.0
    %v616 = vadd.f32 %v488, 0.0
    %v617 = vadd.f32 %v489, 0.0
    %v618 = vadd.f32 %v490, 0.0
    %v619 = vadd.f32 %v491, 0.0
    %v620 = vadd.f32 %v492, 0.0
    %v621 = vadd.f32 %v493, 0.0
    %v622 = vadd.f32 %v494, 0.0
    %v623 = vadd.f32 %v495, 0.0
    %v624 = vadd.f32 %v496, 0.0
    %v625 = vadd.f32 %v497, 0.0
    %v626 = vadd.f32 %v498, 0.0
    %v627 = vadd.f32 %v499, 0.0
    %v628 = vadd.f32 %v500, 0.0
    %v629 = vadd.f32 %v501, 0.0
    %v630 = vadd.f32 %v502, 0.0
    %v631 = vadd.f32 %v503, 0.0
    %v632 = vadd.f32 %v504, 0.0
    %v633 = vadd.f32 %v505, 0.0
    %v634 = vadd.f32 %v506, 0.0
    %v635 = vadd.f32 %v507, 0.0
    %v636 = vadd.f32 %v508, 0.0
    %v637 = vadd.f32 %v509, 0.0
    %v638 = vadd.f32 %v510, 0.0
    %v639 = vadd.f32 %v511, 0.0
    %v640 = vadd.f32 %v512, 0.0
    %v641 = vadd.f32 %v513, 0.0
    %v642 = vadd.f32 %v514, 0.0
    %v643 = vadd.f32 %v515, 0.0
    %v644 = vadd.f32 %v516, 0.0
    %v645 = vadd.f32 %v517, 0.0
    %v646 = vadd.f32 %v518, 0.0
    %v647 = vadd.f32 %v519, 0.0
    %v648 = vadd.f32 %v520, 0.0
    %v649 = vadd.f32 %v521, 0.0
    %v650 = vadd.f32 %v522, 0.0
    %v651 = vadd.f32 %v523, 0.0
    %v652 = vadd.f32 %v524, 0.0
    %v653 = vadd.f32 %v525, 0.0
    %v654 = vadd.f32 %v526, 0.0
    %v655 = vadd.f32 %v527, 0.0
    %v656 = vadd.f32 %v528, 0.0
    %v657 = vadd.f32 %v529, 0.0
    %v658 = vadd.f32 %v530, 0.0
    %v659 = vadd.f32 %v531, 0.0
    %v660 = vadd.f32 %v532, 0.0
    %v661 = vadd.f32 %v533, 0.0
    %v662 = vadd.f32 %v534, 0.0
    %v663 = vadd.f32 %v535, 0.0
    %v664 = vadd.f32 %v536, 0.0
    %v665 = vadd.f32 %v537, 0.0
    %v666 = vadd.f32 %v538, 0.0
    %v667 = vadd.f32 %v539, 0.0
    %v668 = vadd.f32 %v540, 0.0
    %v669 = vadd.f32 %v541, 0.0
    %v670 = vadd.f32 %v542, 0.0
    %v671 = vadd.f32 %v543, 0.0
    %v672 = vadd.f32 %v544, 0.0
    %v673 = vadd.f32 %v545, 0.0
    %v674 = vadd.f32 %v546, 0.0
    %v675 = vadd.f32 %v547, 0.0
    %v676 = vadd.f32 %v548, 0.0
    %677 = vset.pattern.permute.xlu0 1
    %678 = vperm.xlu0 %677, %v92
    %v679 = vpop.permute.xlu0 %678
    %680 = vset.pattern.permute.xlu0 1
    %681 = vperm.xlu0 %680, %v93
    %v682 = vpop.permute.xlu0 %681
    %683 = vset.pattern.permute.xlu0 1
    %684 = vperm.xlu0 %683, %v94
    %v685 = vpop.permute.xlu0 %684
    %686 = vset.pattern.permute.xlu0 1
    %687 = vperm.xlu0 %686, %v95
    %v688 = vpop.permute.xlu0 %687
    %689 = vset.pattern.permute.xlu0 1
    %690 = vperm.xlu0 %689, %v96
    %v691 = vpop.permute.xlu0 %690
    %692 = vset.pattern.permute.xlu0 1
    %693 = vperm.xlu0 %692, %v97
    %v694 = vpop.permute.xlu0 %693
    %695 = vset.pattern.permute.xlu0 1
    %696 = vperm.xlu0 %695, %v98
    %v697 = vpop.permute.xlu0 %696
    %698 = vset.pattern.permute.xlu0 1
    %699 = vperm.xlu0 %698, %v99
    %v700 = vpop.permute.xlu0 %699
    %701 = vset.pattern.permute.xlu0 1
    %702 = vperm.xlu0 %701, %v100
    %v703 = vpop.permute.xlu0 %702
    %704 = vset.pattern.permute.xlu0 1
    %705 = vperm.xlu0 %704, %v101
    %v706 = vpop.permute.xlu0 %705
    %707 = vset.pattern.permute.xlu0 1
    %708 = vperm.xlu0 %707, %v102
    %v709 = vpop.permute.xlu0 %708
    %710 = vset.pattern.permute.xlu0 1
    %711 = vperm.xlu0 %710, %v103
    %v712 = vpop.permute.xlu0 %711
    %713 = vset.pattern.permute.xlu0 1
    %714 = vperm.xlu0 %713, %v104
    %v715 = vpop.permute.xlu0 %714
    %716 = vset.pattern.permute.xlu0 1
    %717 = vperm.xlu0 %716, %v105
    %v718 = vpop.permute.xlu0 %717
    %719 = vset.pattern.permute.xlu0 1
    %720 = vperm.xlu0 %719, %v106
    %v721 = vpop.permute.xlu0 %720
    %722 = vset.pattern.permute.xlu0 1
    %723 = vperm.xlu0 %722, %v107
    %v724 = vpop.permute.xlu0 %723
    %vm725 = vcmp.eq.s32.totalorder %v679, %v109
    %vm726 = vcmp.eq.s32.totalorder %v679, %v110
    %vm727 = vcmp.eq.s32.totalorder %v679, %v111
    %vm728 = vcmp.eq.s32.totalorder %v679, %v112
    %vm729 = vcmp.eq.s32.totalorder %v679, %v113
    %vm730 = vcmp.eq.s32.totalorder %v679, %v114
    %vm731 = vcmp.eq.s32.totalorder %v679, %v115
    %vm732 = vcmp.eq.s32.totalorder %v679, %v116
    %vm733 = vcmp.eq.s32.totalorder %v682, %v109
    %vm734 = vcmp.eq.s32.totalorder %v682, %v110
    %vm735 = vcmp.eq.s32.totalorder %v682, %v111
    %vm736 = vcmp.eq.s32.totalorder %v682, %v112
    %vm737 = vcmp.eq.s32.totalorder %v682, %v113
    %vm738 = vcmp.eq.s32.totalorder %v682, %v114
    %vm739 = vcmp.eq.s32.totalorder %v682, %v115
    %vm740 = vcmp.eq.s32.totalorder %v682, %v116
    %vm741 = vcmp.eq.s32.totalorder %v685, %v109
    %vm742 = vcmp.eq.s32.totalorder %v685, %v110
    %vm743 = vcmp.eq.s32.totalorder %v685, %v111
    %vm744 = vcmp.eq.s32.totalorder %v685, %v112
    %vm745 = vcmp.eq.s32.totalorder %v685, %v113
    %vm746 = vcmp.eq.s32.totalorder %v685, %v114
    %vm747 = vcmp.eq.s32.totalorder %v685, %v115
    %vm748 = vcmp.eq.s32.totalorder %v685, %v116
    %vm749 = vcmp.eq.s32.totalorder %v688, %v109
    %vm750 = vcmp.eq.s32.totalorder %v688, %v110
    %vm751 = vcmp.eq.s32.totalorder %v688, %v111
    %vm752 = vcmp.eq.s32.totalorder %v688, %v112
    %vm753 = vcmp.eq.s32.totalorder %v688, %v113
    %vm754 = vcmp.eq.s32.totalorder %v688, %v114
    %vm755 = vcmp.eq.s32.totalorder %v688, %v115
    %vm756 = vcmp.eq.s32.totalorder %v688, %v116
    %vm757 = vcmp.eq.s32.totalorder %v691, %v109
    %vm758 = vcmp.eq.s32.totalorder %v691, %v110
    %vm759 = vcmp.eq.s32.totalorder %v691, %v111
    %vm760 = vcmp.eq.s32.totalorder %v691, %v112
    %vm761 = vcmp.eq.s32.totalorder %v691, %v113
    %vm762 = vcmp.eq.s32.totalorder %v691, %v114
    %vm763 = vcmp.eq.s32.totalorder %v691, %v115
    %vm764 = vcmp.eq.s32.totalorder %v691, %v116
    %vm765 = vcmp.eq.s32.totalorder %v694, %v109
    %vm766 = vcmp.eq.s32.totalorder %v694, %v110
    %vm767 = vcmp.eq.s32.totalorder %v694, %v111
    %vm768 = vcmp.eq.s32.totalorder %v694, %v112
    %vm769 = vcmp.eq.s32.totalorder %v694, %v113
    %vm770 = vcmp.eq.s32.totalorder %v694, %v114
    %vm771 = vcmp.eq.s32.totalorder %v694, %v115
    %vm772 = vcmp.eq.s32.totalorder %v694, %v116
    %vm773 = vcmp.eq.s32.totalorder %v697, %v109
    %vm774 = vcmp.eq.s32.totalorder %v697, %v110
    %vm775 = vcmp.eq.s32.totalorder %v697, %v111
    %vm776 = vcmp.eq.s32.totalorder %v697, %v112
    %vm777 = vcmp.eq.s32.totalorder %v697, %v113
    %vm778 = vcmp.eq.s32.totalorder %v697, %v114
    %vm779 = vcmp.eq.s32.totalorder %v697, %v115
    %vm780 = vcmp.eq.s32.totalorder %v697, %v116
    %vm781 = vcmp.eq.s32.totalorder %v700, %v109
    %vm782 = vcmp.eq.s32.totalorder %v700, %v110
    %vm783 = vcmp.eq.s32.totalorder %v700, %v111
    %vm784 = vcmp.eq.s32.totalorder %v700, %v112
    %vm785 = vcmp.eq.s32.totalorder %v700, %v113
    %vm786 = vcmp.eq.s32.totalorder %v700, %v114
    %vm787 = vcmp.eq.s32.totalorder %v700, %v115
    %vm788 = vcmp.eq.s32.totalorder %v700, %v116
    %vm789 = vcmp.eq.s32.totalorder %v703, %v109
    %vm790 = vcmp.eq.s32.totalorder %v703, %v110
    %vm791 = vcmp.eq.s32.totalorder %v703, %v111
    %vm792 = vcmp.eq.s32.totalorder %v703, %v112
    %vm793 = vcmp.eq.s32.totalorder %v703, %v113
    %vm794 = vcmp.eq.s32.totalorder %v703, %v114
    %vm795 = vcmp.eq.s32.totalorder %v703, %v115
    %vm796 = vcmp.eq.s32.totalorder %v703, %v116
    %vm797 = vcmp.eq.s32.totalorder %v706, %v109
    %vm798 = vcmp.eq.s32.totalorder %v706, %v110
    %vm799 = vcmp.eq.s32.totalorder %v706, %v111
    %vm800 = vcmp.eq.s32.totalorder %v706, %v112
    %vm801 = vcmp.eq.s32.totalorder %v706, %v113
    %vm802 = vcmp.eq.s32.totalorder %v706, %v114
    %vm803 = vcmp.eq.s32.totalorder %v706, %v115
    %vm804 = vcmp.eq.s32.totalorder %v706, %v116
    %vm805 = vcmp.eq.s32.totalorder %v709, %v109
    %vm806 = vcmp.eq.s32.totalorder %v709, %v110
    %vm807 = vcmp.eq.s32.totalorder %v709, %v111
    %vm808 = vcmp.eq.s32.totalorder %v709, %v112
    %vm809 = vcmp.eq.s32.totalorder %v709, %v113
    %vm810 = vcmp.eq.s32.totalorder %v709, %v114
    %vm811 = vcmp.eq.s32.totalorder %v709, %v115
    %vm812 = vcmp.eq.s32.totalorder %v709, %v116
    %vm813 = vcmp.eq.s32.totalorder %v712, %v109
    %vm814 = vcmp.eq.s32.totalorder %v712, %v110
    %vm815 = vcmp.eq.s32.totalorder %v712, %v111
    %vm816 = vcmp.eq.s32.totalorder %v712, %v112
    %vm817 = vcmp.eq.s32.totalorder %v712, %v113
    %vm818 = vcmp.eq.s32.totalorder %v712, %v114
    %vm819 = vcmp.eq.s32.totalorder %v712, %v115
    %vm820 = vcmp.eq.s32.totalorder %v712, %v116
    %vm821 = vcmp.eq.s32.totalorder %v715, %v109
    %vm822 = vcmp.eq.s32.totalorder %v715, %v110
    %vm823 = vcmp.eq.s32.totalorder %v715, %v111
    %vm824 = vcmp.eq.s32.totalorder %v715, %v112
    %vm825 = vcmp.eq.s32.totalorder %v715, %v113
    %vm826 = vcmp.eq.s32.totalorder %v715, %v114
    %vm827 = vcmp.eq.s32.totalorder %v715, %v115
    %vm828 = vcmp.eq.s32.totalorder %v715, %v116
    %vm829 = vcmp.eq.s32.totalorder %v718, %v109
    %vm830 = vcmp.eq.s32.totalorder %v718, %v110
    %vm831 = vcmp.eq.s32.totalorder %v718, %v111
    %vm832 = vcmp.eq.s32.totalorder %v718, %v112
    %vm833 = vcmp.eq.s32.totalorder %v718, %v113
    %vm834 = vcmp.eq.s32.totalorder %v718, %v114
    %vm835 = vcmp.eq.s32.totalorder %v718, %v115
    %vm836 = vcmp.eq.s32.totalorder %v718, %v116
    %vm837 = vcmp.eq.s32.totalorder %v721, %v109
    %vm838 = vcmp.eq.s32.totalorder %v721, %v110
    %vm839 = vcmp.eq.s32.totalorder %v721, %v111
    %vm840 = vcmp.eq.s32.totalorder %v721, %v112
    %vm841 = vcmp.eq.s32.totalorder %v721, %v113
    %vm842 = vcmp.eq.s32.totalorder %v721, %v114
    %vm843 = vcmp.eq.s32.totalorder %v721, %v115
    %vm844 = vcmp.eq.s32.totalorder %v721, %v116
    %vm845 = vcmp.eq.s32.totalorder %v724, %v109
    %vm846 = vcmp.eq.s32.totalorder %v724, %v110
    %vm847 = vcmp.eq.s32.totalorder %v724, %v111
    %vm848 = vcmp.eq.s32.totalorder %v724, %v112
    %vm849 = vcmp.eq.s32.totalorder %v724, %v113
    %vm850 = vcmp.eq.s32.totalorder %v724, %v114
    %vm851 = vcmp.eq.s32.totalorder %v724, %v115
    %vm852 = vcmp.eq.s32.totalorder %v724, %v116
    %v853 = vsel %vm725, 1, 0
    %v854 = vsel %vm726, 1, 0
    %v855 = vsel %vm727, 1, 0
    %v856 = vsel %vm728, 1, 0
    %v857 = vsel %vm729, 1, 0
    %v858 = vsel %vm730, 1, 0
    %v859 = vsel %vm731, 1, 0
    %v860 = vsel %vm732, 1, 0
    %v861 = vsel %vm733, 1, 0
    %v862 = vsel %vm734, 1, 0
    %v863 = vsel %vm735, 1, 0
    %v864 = vsel %vm736, 1, 0
    %v865 = vsel %vm737, 1, 0
    %v866 = vsel %vm738, 1, 0
    %v867 = vsel %vm739, 1, 0
    %v868 = vsel %vm740, 1, 0
    %v869 = vsel %vm741, 1, 0
    %v870 = vsel %vm742, 1, 0
    %v871 = vsel %vm743, 1, 0
    %v872 = vsel %vm744, 1, 0
    %v873 = vsel %vm745, 1, 0
    %v874 = vsel %vm746, 1, 0
    %v875 = vsel %vm747, 1, 0
    %v876 = vsel %vm748, 1, 0
    %v877 = vsel %vm749, 1, 0
    %v878 = vsel %vm750, 1, 0
    %v879 = vsel %vm751, 1, 0
    %v880 = vsel %vm752, 1, 0
    %v881 = vsel %vm753, 1, 0
    %v882 = vsel %vm754, 1, 0
    %v883 = vsel %vm755, 1, 0
    %v884 = vsel %vm756, 1, 0
    %v885 = vsel %vm757, 1, 0
    %v886 = vsel %vm758, 1, 0
    %v887 = vsel %vm759, 1, 0
    %v888 = vsel %vm760, 1, 0
    %v889 = vsel %vm761, 1, 0
    %v890 = vsel %vm762, 1, 0
    %v891 = vsel %vm763, 1, 0
    %v892 = vsel %vm764, 1, 0
    %v893 = vsel %vm765, 1, 0
    %v894 = vsel %vm766, 1, 0
    %v895 = vsel %vm767, 1, 0
    %v896 = vsel %vm768, 1, 0
    %v897 = vsel %vm769, 1, 0
    %v898 = vsel %vm770, 1, 0
    %v899 = vsel %vm771, 1, 0
    %v900 = vsel %vm772, 1, 0
    %v901 = vsel %vm773, 1, 0
    %v902 = vsel %vm774, 1, 0
    %v903 = vsel %vm775, 1, 0
    %v904 = vsel %vm776, 1, 0
    %v905 = vsel %vm777, 1, 0
    %v906 = vsel %vm778, 1, 0
    %v907 = vsel %vm779, 1, 0
    %v908 = vsel %vm780, 1, 0
    %v909 = vsel %vm781, 1, 0
    %v910 = vsel %vm782, 1, 0
    %v911 = vsel %vm783, 1, 0
    %v912 = vsel %vm784, 1, 0
    %v913 = vsel %vm785, 1, 0
    %v914 = vsel %vm786, 1, 0
    %v915 = vsel %vm787, 1, 0
    %v916 = vsel %vm788, 1, 0
    %v917 = vsel %vm789, 1, 0
    %v918 = vsel %vm790, 1, 0
    %v919 = vsel %vm791, 1, 0
    %v920 = vsel %vm792, 1, 0
    %v921 = vsel %vm793, 1, 0
    %v922 = vsel %vm794, 1, 0
    %v923 = vsel %vm795, 1, 0
    %v924 = vsel %vm796, 1, 0
    %v925 = vsel %vm797, 1, 0
    %v926 = vsel %vm798, 1, 0
    %v927 = vsel %vm799, 1, 0
    %v928 = vsel %vm800, 1, 0
    %v929 = vsel %vm801, 1, 0
    %v930 = vsel %vm802, 1, 0
    %v931 = vsel %vm803, 1, 0
    %v932 = vsel %vm804, 1, 0
    %v933 = vsel %vm805, 1, 0
    %v934 = vsel %vm806, 1, 0
    %v935 = vsel %vm807, 1, 0
    %v936 = vsel %vm808, 1, 0
    %v937 = vsel %vm809, 1, 0
    %v938 = vsel %vm810, 1, 0
    %v939 = vsel %vm811, 1, 0
    %v940 = vsel %vm812, 1, 0
    %v941 = vsel %vm813, 1, 0
    %v942 = vsel %vm814, 1, 0
    %v943 = vsel %vm815, 1, 0
    %v944 = vsel %vm816, 1, 0
    %v945 = vsel %vm817, 1, 0
    %v946 = vsel %vm818, 1, 0
    %v947 = vsel %vm819, 1, 0
    %v948 = vsel %vm820, 1, 0
    %v949 = vsel %vm821, 1, 0
    %v950 = vsel %vm822, 1, 0
    %v951 = vsel %vm823, 1, 0
    %v952 = vsel %vm824, 1, 0
    %v953 = vsel %vm825, 1, 0
    %v954 = vsel %vm826, 1, 0
    %v955 = vsel %vm827, 1, 0
    %v956 = vsel %vm828, 1, 0
    %v957 = vsel %vm829, 1, 0
    %v958 = vsel %vm830, 1, 0
    %v959 = vsel %vm831, 1, 0
    %v960 = vsel %vm832, 1, 0
    %v961 = vsel %vm833, 1, 0
    %v962 = vsel %vm834, 1, 0
    %v963 = vsel %vm835, 1, 0
    %v964 = vsel %vm836, 1, 0
    %v965 = vsel %vm837, 1, 0
    %v966 = vsel %vm838, 1, 0
    %v967 = vsel %vm839, 1, 0
    %v968 = vsel %vm840, 1, 0
    %v969 = vsel %vm841, 1, 0
    %v970 = vsel %vm842, 1, 0
    %v971 = vsel %vm843, 1, 0
    %v972 = vsel %vm844, 1, 0
    %v973 = vsel %vm845, 1, 0
    %v974 = vsel %vm846, 1, 0
    %v975 = vsel %vm847, 1, 0
    %v976 = vsel %vm848, 1, 0
    %v977 = vsel %vm849, 1, 0
    %v978 = vsel %vm850, 1, 0
    %v979 = vsel %vm851, 1, 0
    %v980 = vsel %vm852, 1, 0
    %v981 = vcvt.s32.f32 %v853
    %v982 = vcvt.s32.f32 %v854
    %v983 = vcvt.s32.f32 %v855
    %v984 = vcvt.s32.f32 %v856
    %v985 = vcvt.s32.f32 %v857
    %v986 = vcvt.s32.f32 %v858
    %v987 = vcvt.s32.f32 %v859
    %v988 = vcvt.s32.f32 %v860
    %v989 = vcvt.s32.f32 %v861
    %v990 = vcvt.s32.f32 %v862
    %v991 = vcvt.s32.f32 %v863
    %v992 = vcvt.s32.f32 %v864
    %v993 = vcvt.s32.f32 %v865
    %v994 = vcvt.s32.f32 %v866
    %v995 = vcvt.s32.f32 %v867
    %v996 = vcvt.s32.f32 %v868
    %v997 = vcvt.s32.f32 %v869
    %v998 = vcvt.s32.f32 %v870
    %v999 = vcvt.s32.f32 %v871
    %v1000 = vcvt.s32.f32 %v872
    %v1001 = vcvt.s32.f32 %v873
    %v1002 = vcvt.s32.f32 %v874
    %v1003 = vcvt.s32.f32 %v875
    %v1004 = vcvt.s32.f32 %v876
    %v1005 = vcvt.s32.f32 %v877
    %v1006 = vcvt.s32.f32 %v878
    %v1007 = vcvt.s32.f32 %v879
    %v1008 = vcvt.s32.f32 %v880
    %v1009 = vcvt.s32.f32 %v881
    %v1010 = vcvt.s32.f32 %v882
    %v1011 = vcvt.s32.f32 %v883
    %v1012 = vcvt.s32.f32 %v884
    %v1013 = vcvt.s32.f32 %v885
    %v1014 = vcvt.s32.f32 %v886
    %v1015 = vcvt.s32.f32 %v887
    %v1016 = vcvt.s32.f32 %v888
    %v1017 = vcvt.s32.f32 %v889
    %v1018 = vcvt.s32.f32 %v890
    %v1019 = vcvt.s32.f32 %v891
    %v1020 = vcvt.s32.f32 %v892
    %v1021 = vcvt.s32.f32 %v893
    %v1022 = vcvt.s32.f32 %v894
    %v1023 = vcvt.s32.f32 %v895
    %v1024 = vcvt.s32.f32 %v896
    %v1025 = vcvt.s32.f32 %v897
    %v1026 = vcvt.s32.f32 %v898
    %v1027 = vcvt.s32.f32 %v899
    %v1028 = vcvt.s32.f32 %v900
    %v1029 = vcvt.s32.f32 %v901
    %v1030 = vcvt.s32.f32 %v902
    %v1031 = vcvt.s32.f32 %v903
    %v1032 = vcvt.s32.f32 %v904
    %v1033 = vcvt.s32.f32 %v905
    %v1034 = vcvt.s32.f32 %v906
    %v1035 = vcvt.s32.f32 %v907
    %v1036 = vcvt.s32.f32 %v908
    %v1037 = vcvt.s32.f32 %v909
    %v1038 = vcvt.s32.f32 %v910
    %v1039 = vcvt.s32.f32 %v911
    %v1040 = vcvt.s32.f32 %v912
    %v1041 = vcvt.s32.f32 %v913
    %v1042 = vcvt.s32.f32 %v914
    %v1043 = vcvt.s32.f32 %v915
    %v1044 = vcvt.s32.f32 %v916
    %v1045 = vcvt.s32.f32 %v917
    %v1046 = vcvt.s32.f32 %v918
    %v1047 = vcvt.s32.f32 %v919
    %v1048 = vcvt.s32.f32 %v920
    %v1049 = vcvt.s32.f32 %v921
    %v1050 = vcvt.s32.f32 %v922
    %v1051 = vcvt.s32.f32 %v923
    %v1052 = vcvt.s32.f32 %v924
    %v1053 = vcvt.s32.f32 %v925
    %v1054 = vcvt.s32.f32 %v926
    %v1055 = vcvt.s32.f32 %v927
    %v1056 = vcvt.s32.f32 %v928
    %v1057 = vcvt.s32.f32 %v929
    %v1058 = vcvt.s32.f32 %v930
    %v1059 = vcvt.s32.f32 %v931
    %v1060 = vcvt.s32.f32 %v932
    %v1061 = vcvt.s32.f32 %v933
    %v1062 = vcvt.s32.f32 %v934
    %v1063 = vcvt.s32.f32 %v935
    %v1064 = vcvt.s32.f32 %v936
    %v1065 = vcvt.s32.f32 %v937
    %v1066 = vcvt.s32.f32 %v938
    %v1067 = vcvt.s32.f32 %v939
    %v1068 = vcvt.s32.f32 %v940
    %v1069 = vcvt.s32.f32 %v941
    %v1070 = vcvt.s32.f32 %v942
    %v1071 = vcvt.s32.f32 %v943
    %v1072 = vcvt.s32.f32 %v944
    %v1073 = vcvt.s32.f32 %v945
    %v1074 = vcvt.s32.f32 %v946
    %v1075 = vcvt.s32.f32 %v947
    %v1076 = vcvt.s32.f32 %v948
    %v1077 = vcvt.s32.f32 %v949
    %v1078 = vcvt.s32.f32 %v950
    %v1079 = vcvt.s32.f32 %v951
    %v1080 = vcvt.s32.f32 %v952
    %v1081 = vcvt.s32.f32 %v953
    %v1082 = vcvt.s32.f32 %v954
    %v1083 = vcvt.s32.f32 %v955
    %v1084 = vcvt.s32.f32 %v956
    %v1085 = vcvt.s32.f32 %v957
    %v1086 = vcvt.s32.f32 %v958
    %v1087 = vcvt.s32.f32 %v959
    %v1088 = vcvt.s32.f32 %v960
    %v1089 = vcvt.s32.f32 %v961
    %v1090 = vcvt.s32.f32 %v962
    %v1091 = vcvt.s32.f32 %v963
    %v1092 = vcvt.s32.f32 %v964
    %v1093 = vcvt.s32.f32 %v965
    %v1094 = vcvt.s32.f32 %v966
    %v1095 = vcvt.s32.f32 %v967
    %v1096 = vcvt.s32.f32 %v968
    %v1097 = vcvt.s32.f32 %v969
    %v1098 = vcvt.s32.f32 %v970
    %v1099 = vcvt.s32.f32 %v971
    %v1100 = vcvt.s32.f32 %v972
    %v1101 = vcvt.s32.f32 %v973
    %v1102 = vcvt.s32.f32 %v974
    %v1103 = vcvt.s32.f32 %v975
    %v1104 = vcvt.s32.f32 %v976
    %v1105 = vcvt.s32.f32 %v977
    %v1106 = vcvt.s32.f32 %v978
    %v1107 = vcvt.s32.f32 %v979
    %v1108 = vcvt.s32.f32 %v980
    %v1109 = vadd.f32 %v549, %v981
    %v1110 = vadd.f32 %v550, %v982
    %v1111 = vadd.f32 %v551, %v983
    %v1112 = vadd.f32 %v552, %v984
    %v1113 = vadd.f32 %v553, %v985
    %v1114 = vadd.f32 %v554, %v986
    %v1115 = vadd.f32 %v555, %v987
    %v1116 = vadd.f32 %v556, %v988
    %v1117 = vadd.f32 %v557, %v989
    %v1118 = vadd.f32 %v558, %v990
    %v1119 = vadd.f32 %v559, %v991
    %v1120 = vadd.f32 %v560, %v992
    %v1121 = vadd.f32 %v561, %v993
    %v1122 = vadd.f32 %v562, %v994
    %v1123 = vadd.f32 %v563, %v995
    %v1124 = vadd.f32 %v564, %v996
    %v1125 = vadd.f32 %v565, %v997
    %v1126 = vadd.f32 %v566, %v998
    %v1127 = vadd.f32 %v567, %v999
    %v1128 = vadd.f32 %v568, %v1000
    %v1129 = vadd.f32 %v569, %v1001
    %v1130 = vadd.f32 %v570, %v1002
    %v1131 = vadd.f32 %v571, %v1003
    %v1132 = vadd.f32 %v572, %v1004
    %v1133 = vadd.f32 %v573, %v1005
    %v1134 = vadd.f32 %v574, %v1006
    %v1135 = vadd.f32 %v575, %v1007
    %v1136 = vadd.f32 %v576, %v1008
    %v1137 = vadd.f32 %v577, %v1009
    %v1138 = vadd.f32 %v578, %v1010
    %v1139 = vadd.f32 %v579, %v1011
    %v1140 = vadd.f32 %v580, %v1012
    %v1141 = vadd.f32 %v581, %v1013
    %v1142 = vadd.f32 %v582, %v1014
    %v1143 = vadd.f32 %v583, %v1015
    %v1144 = vadd.f32 %v584, %v1016
    %v1145 = vadd.f32 %v585, %v1017
    %v1146 = vadd.f32 %v586, %v1018
    %v1147 = vadd.f32 %v587, %v1019
    %v1148 = vadd.f32 %v588, %v1020
    %v1149 = vadd.f32 %v589, %v1021
    %v1150 = vadd.f32 %v590, %v1022
    %v1151 = vadd.f32 %v591, %v1023
    %v1152 = vadd.f32 %v592, %v1024
    %v1153 = vadd.f32 %v593, %v1025
    %v1154 = vadd.f32 %v594, %v1026
    %v1155 = vadd.f32 %v595, %v1027
    %v1156 = vadd.f32 %v596, %v1028
    %v1157 = vadd.f32 %v597, %v1029
    %v1158 = vadd.f32 %v598, %v1030
    %v1159 = vadd.f32 %v599, %v1031
    %v1160 = vadd.f32 %v600, %v1032
    %v1161 = vadd.f32 %v601, %v1033
    %v1162 = vadd.f32 %v602, %v1034
    %v1163 = vadd.f32 %v603, %v1035
    %v1164 = vadd.f32 %v604, %v1036
    %v1165 = vadd.f32 %v605, %v1037
    %v1166 = vadd.f32 %v606, %v1038
    %v1167 = vadd.f32 %v607, %v1039
    %v1168 = vadd.f32 %v608, %v1040
    %v1169 = vadd.f32 %v609, %v1041
    %v1170 = vadd.f32 %v610, %v1042
    %v1171 = vadd.f32 %v611, %v1043
    %v1172 = vadd.f32 %v612, %v1044
    %v1173 = vadd.f32 %v613, %v1045
    %v1174 = vadd.f32 %v614, %v1046
    %v1175 = vadd.f32 %v615, %v1047
    %v1176 = vadd.f32 %v616, %v1048
    %v1177 = vadd.f32 %v617, %v1049
    %v1178 = vadd.f32 %v618, %v1050
    %v1179 = vadd.f32 %v619, %v1051
    %v1180 = vadd.f32 %v620, %v1052
    %v1181 = vadd.f32 %v621, %v1053
    %v1182 = vadd.f32 %v622, %v1054
    %v1183 = vadd.f32 %v623, %v1055
    %v1184 = vadd.f32 %v624, %v1056
    %v1185 = vadd.f32 %v625, %v1057
    %v1186 = vadd.f32 %v626, %v1058
    %v1187 = vadd.f32 %v627, %v1059
    %v1188 = vadd.f32 %v628, %v1060
    %v1189 = vadd.f32 %v629, %v1061
    %v1190 = vadd.f32 %v630, %v1062
    %v1191 = vadd.f32 %v631, %v1063
    %v1192 = vadd.f32 %v632, %v1064
    %v1193 = vadd.f32 %v633, %v1065
    %v1194 = vadd.f32 %v634, %v1066
    %v1195 = vadd.f32 %v635, %v1067
    %v1196 = vadd.f32 %v636, %v1068
    %v1197 = vadd.f32 %v637, %v1069
    %v1198 = vadd.f32 %v638, %v1070
    %v1199 = vadd.f32 %v639, %v1071
    %v1200 = vadd.f32 %v640, %v1072
    %v1201 = vadd.f32 %v641, %v1073
    %v1202 = vadd.f32 %v642, %v1074
    %v1203 = vadd.f32 %v643, %v1075
    %v1204 = vadd.f32 %v644, %v1076
    %v1205 = vadd.f32 %v645, %v1077
    %v1206 = vadd.f32 %v646, %v1078
    %v1207 = vadd.f32 %v647, %v1079
    %v1208 = vadd.f32 %v648, %v1080
    %v1209 = vadd.f32 %v649, %v1081
    %v1210 = vadd.f32 %v650, %v1082
    %v1211 = vadd.f32 %v651, %v1083
    %v1212 = vadd.f32 %v652, %v1084
    %v1213 = vadd.f32 %v653, %v1085
    %v1214 = vadd.f32 %v654, %v1086
    %v1215 = vadd.f32 %v655, %v1087
    %v1216 = vadd.f32 %v656, %v1088
    %v1217 = vadd.f32 %v657, %v1089
    %v1218 = vadd.f32 %v658, %v1090
    %v1219 = vadd.f32 %v659, %v1091
    %v1220 = vadd.f32 %v660, %v1092
    %v1221 = vadd.f32 %v661, %v1093
    %v1222 = vadd.f32 %v662, %v1094
    %v1223 = vadd.f32 %v663, %v1095
    %v1224 = vadd.f32 %v664, %v1096
    %v1225 = vadd.f32 %v665, %v1097
    %v1226 = vadd.f32 %v666, %v1098
    %v1227 = vadd.f32 %v667, %v1099
    %v1228 = vadd.f32 %v668, %v1100
    %v1229 = vadd.f32 %v669, %v1101
    %v1230 = vadd.f32 %v670, %v1102
    %v1231 = vadd.f32 %v671, %v1103
    %v1232 = vadd.f32 %v672, %v1104
    %v1233 = vadd.f32 %v673, %v1105
    %v1234 = vadd.f32 %v674, %v1106
    %v1235 = vadd.f32 %v675, %v1107
    %v1236 = vadd.f32 %v676, %v1108
    %1237 = vset.pattern.permute.xlu0 2
    %1238 = vperm.xlu0 %1237, %v92
    %v1239 = vpop.permute.xlu0 %1238
    %1240 = vset.pattern.permute.xlu0 2
    %1241 = vperm.xlu0 %1240, %v93
    %v1242 = vpop.permute.xlu0 %1241
    %1243 = vset.pattern.permute.xlu0 2
    %1244 = vperm.xlu0 %1243, %v94
    %v1245 = vpop.permute.xlu0 %1244
    %1246 = vset.pattern.permute.xlu0 2
    %1247 = vperm.xlu0 %1246, %v95
    %v1248 = vpop.permute.xlu0 %1247
    %1249 = vset.pattern.permute.xlu0 2
    %1250 = vperm.xlu0 %1249, %v96
    %v1251 = vpop.permute.xlu0 %1250
    %1252 = vset.pattern.permute.xlu0 2
    %1253 = vperm.xlu0 %1252, %v97
    %v1254 = vpop.permute.xlu0 %1253
    %1255 = vset.pattern.permute.xlu0 2
    %1256 = vperm.xlu0 %1255, %v98
    %v1257 = vpop.permute.xlu0 %1256
    %1258 = vset.pattern.permute.xlu0 2
    %1259 = vperm.xlu0 %1258, %v99
    %v1260 = vpop.permute.xlu0 %1259
    %1261 = vset.pattern.permute.xlu0 2
    %1262 = vperm.xlu0 %1261, %v100
    %v1263 = vpop.permute.xlu0 %1262
    %1264 = vset.pattern.permute.xlu0 2
    %1265 = vperm.xlu0 %1264, %v101
    %v1266 = vpop.permute.xlu0 %1265
    %1267 = vset.pattern.permute.xlu0 2
    %1268 = vperm.xlu0 %1267, %v102
    %v1269 = vpop.permute.xlu0 %1268
    %1270 = vset.pattern.permute.xlu0 2
    %1271 = vperm.xlu0 %1270, %v103
    %v1272 = vpop.permute.xlu0 %1271
    %1273 = vset.pattern.permute.xlu0 2
    %1274 = vperm.xlu0 %1273, %v104
    %v1275 = vpop.permute.xlu0 %1274
    %1276 = vset.pattern.permute.xlu0 2
    %1277 = vperm.xlu0 %1276, %v105
    %v1278 = vpop.permute.xlu0 %1277
    %1279 = vset.pattern.permute.xlu0 2
    %1280 = vperm.xlu0 %1279, %v106
    %v1281 = vpop.permute.xlu0 %1280
    %1282 = vset.pattern.permute.xlu0 2
    %1283 = vperm.xlu0 %1282, %v107
    %v1284 = vpop.permute.xlu0 %1283
    %vm1285 = vcmp.eq.s32.totalorder %v1239, %v109
    %vm1286 = vcmp.eq.s32.totalorder %v1239, %v110
    %vm1287 = vcmp.eq.s32.totalorder %v1239, %v111
    %vm1288 = vcmp.eq.s32.totalorder %v1239, %v112
    %vm1289 = vcmp.eq.s32.totalorder %v1239, %v113
    %vm1290 = vcmp.eq.s32.totalorder %v1239, %v114
    %vm1291 = vcmp.eq.s32.totalorder %v1239, %v115
    %vm1292 = vcmp.eq.s32.totalorder %v1239, %v116
    %vm1293 = vcmp.eq.s32.totalorder %v1242, %v109
    %vm1294 = vcmp.eq.s32.totalorder %v1242, %v110
    %vm1295 = vcmp.eq.s32.totalorder %v1242, %v111
    %vm1296 = vcmp.eq.s32.totalorder %v1242, %v112
    %vm1297 = vcmp.eq.s32.totalorder %v1242, %v113
    %vm1298 = vcmp.eq.s32.totalorder %v1242, %v114
    %vm1299 = vcmp.eq.s32.totalorder %v1242, %v115
    %vm1300 = vcmp.eq.s32.totalorder %v1242, %v116
    %vm1301 = vcmp.eq.s32.totalorder %v1245, %v109
    %vm1302 = vcmp.eq.s32.totalorder %v1245, %v110
    %vm1303 = vcmp.eq.s32.totalorder %v1245, %v111
    %vm1304 = vcmp.eq.s32.totalorder %v1245, %v112
    %vm1305 = vcmp.eq.s32.totalorder %v1245, %v113
    %vm1306 = vcmp.eq.s32.totalorder %v1245, %v114
    %vm1307 = vcmp.eq.s32.totalorder %v1245, %v115
    %vm1308 = vcmp.eq.s32.totalorder %v1245, %v116
    %vm1309 = vcmp.eq.s32.totalorder %v1248, %v109
    %vm1310 = vcmp.eq.s32.totalorder %v1248, %v110
    %vm1311 = vcmp.eq.s32.totalorder %v1248, %v111
    %vm1312 = vcmp.eq.s32.totalorder %v1248, %v112
    %vm1313 = vcmp.eq.s32.totalorder %v1248, %v113
    %vm1314 = vcmp.eq.s32.totalorder %v1248, %v114
    %vm1315 = vcmp.eq.s32.totalorder %v1248, %v115
    %vm1316 = vcmp.eq.s32.totalorder %v1248, %v116
    %vm1317 = vcmp.eq.s32.totalorder %v1251, %v109
    %vm1318 = vcmp.eq.s32.totalorder %v1251, %v110
    %vm1319 = vcmp.eq.s32.totalorder %v1251, %v111
    %vm1320 = vcmp.eq.s32.totalorder %v1251, %v112
    %vm1321 = vcmp.eq.s32.totalorder %v1251, %v113
    %vm1322 = vcmp.eq.s32.totalorder %v1251, %v114
    %vm1323 = vcmp.eq.s32.totalorder %v1251, %v115
    %vm1324 = vcmp.eq.s32.totalorder %v1251, %v116
    %vm1325 = vcmp.eq.s32.totalorder %v1254, %v109
    %vm1326 = vcmp.eq.s32.totalorder %v1254, %v110
    %vm1327 = vcmp.eq.s32.totalorder %v1254, %v111
    %vm1328 = vcmp.eq.s32.totalorder %v1254, %v112
    %vm1329 = vcmp.eq.s32.totalorder %v1254, %v113
    %vm1330 = vcmp.eq.s32.totalorder %v1254, %v114
    %vm1331 = vcmp.eq.s32.totalorder %v1254, %v115
    %vm1332 = vcmp.eq.s32.totalorder %v1254, %v116
    %vm1333 = vcmp.eq.s32.totalorder %v1257, %v109
    %vm1334 = vcmp.eq.s32.totalorder %v1257, %v110
    %vm1335 = vcmp.eq.s32.totalorder %v1257, %v111
    %vm1336 = vcmp.eq.s32.totalorder %v1257, %v112
    %vm1337 = vcmp.eq.s32.totalorder %v1257, %v113
    %vm1338 = vcmp.eq.s32.totalorder %v1257, %v114
    %vm1339 = vcmp.eq.s32.totalorder %v1257, %v115
    %vm1340 = vcmp.eq.s32.totalorder %v1257, %v116
    %vm1341 = vcmp.eq.s32.totalorder %v1260, %v109
    %vm1342 = vcmp.eq.s32.totalorder %v1260, %v110
    %vm1343 = vcmp.eq.s32.totalorder %v1260, %v111
    %vm1344 = vcmp.eq.s32.totalorder %v1260, %v112
    %vm1345 = vcmp.eq.s32.totalorder %v1260, %v113
    %vm1346 = vcmp.eq.s32.totalorder %v1260, %v114
    %vm1347 = vcmp.eq.s32.totalorder %v1260, %v115
    %vm1348 = vcmp.eq.s32.totalorder %v1260, %v116
    %vm1349 = vcmp.eq.s32.totalorder %v1263, %v109
    %vm1350 = vcmp.eq.s32.totalorder %v1263, %v110
    %vm1351 = vcmp.eq.s32.totalorder %v1263, %v111
    %vm1352 = vcmp.eq.s32.totalorder %v1263, %v112
    %vm1353 = vcmp.eq.s32.totalorder %v1263, %v113
    %vm1354 = vcmp.eq.s32.totalorder %v1263, %v114
    %vm1355 = vcmp.eq.s32.totalorder %v1263, %v115
    %vm1356 = vcmp.eq.s32.totalorder %v1263, %v116
    %vm1357 = vcmp.eq.s32.totalorder %v1266, %v109
    %vm1358 = vcmp.eq.s32.totalorder %v1266, %v110
    %vm1359 = vcmp.eq.s32.totalorder %v1266, %v111
    %vm1360 = vcmp.eq.s32.totalorder %v1266, %v112
    %vm1361 = vcmp.eq.s32.totalorder %v1266, %v113
    %vm1362 = vcmp.eq.s32.totalorder %v1266, %v114
    %vm1363 = vcmp.eq.s32.totalorder %v1266, %v115
    %vm1364 = vcmp.eq.s32.totalorder %v1266, %v116
    %vm1365 = vcmp.eq.s32.totalorder %v1269, %v109
    %vm1366 = vcmp.eq.s32.totalorder %v1269, %v110
    %vm1367 = vcmp.eq.s32.totalorder %v1269, %v111
    %vm1368 = vcmp.eq.s32.totalorder %v1269, %v112
    %vm1369 = vcmp.eq.s32.totalorder %v1269, %v113
    %vm1370 = vcmp.eq.s32.totalorder %v1269, %v114
    %vm1371 = vcmp.eq.s32.totalorder %v1269, %v115
    %vm1372 = vcmp.eq.s32.totalorder %v1269, %v116
    %vm1373 = vcmp.eq.s32.totalorder %v1272, %v109
    %vm1374 = vcmp.eq.s32.totalorder %v1272, %v110
    %vm1375 = vcmp.eq.s32.totalorder %v1272, %v111
    %vm1376 = vcmp.eq.s32.totalorder %v1272, %v112
    %vm1377 = vcmp.eq.s32.totalorder %v1272, %v113
    %vm1378 = vcmp.eq.s32.totalorder %v1272, %v114
    %vm1379 = vcmp.eq.s32.totalorder %v1272, %v115
    %vm1380 = vcmp.eq.s32.totalorder %v1272, %v116
    %vm1381 = vcmp.eq.s32.totalorder %v1275, %v109
    %vm1382 = vcmp.eq.s32.totalorder %v1275, %v110
    %vm1383 = vcmp.eq.s32.totalorder %v1275, %v111
    %vm1384 = vcmp.eq.s32.totalorder %v1275, %v112
    %vm1385 = vcmp.eq.s32.totalorder %v1275, %v113
    %vm1386 = vcmp.eq.s32.totalorder %v1275, %v114
    %vm1387 = vcmp.eq.s32.totalorder %v1275, %v115
    %vm1388 = vcmp.eq.s32.totalorder %v1275, %v116
    %vm1389 = vcmp.eq.s32.totalorder %v1278, %v109
    %vm1390 = vcmp.eq.s32.totalorder %v1278, %v110
    %vm1391 = vcmp.eq.s32.totalorder %v1278, %v111
    %vm1392 = vcmp.eq.s32.totalorder %v1278, %v112
    %vm1393 = vcmp.eq.s32.totalorder %v1278, %v113
    %vm1394 = vcmp.eq.s32.totalorder %v1278, %v114
    %vm1395 = vcmp.eq.s32.totalorder %v1278, %v115
    %vm1396 = vcmp.eq.s32.totalorder %v1278, %v116
    %vm1397 = vcmp.eq.s32.totalorder %v1281, %v109
    %vm1398 = vcmp.eq.s32.totalorder %v1281, %v110
    %vm1399 = vcmp.eq.s32.totalorder %v1281, %v111
    %vm1400 = vcmp.eq.s32.totalorder %v1281, %v112
    %vm1401 = vcmp.eq.s32.totalorder %v1281, %v113
    %vm1402 = vcmp.eq.s32.totalorder %v1281, %v114
    %vm1403 = vcmp.eq.s32.totalorder %v1281, %v115
    %vm1404 = vcmp.eq.s32.totalorder %v1281, %v116
    %vm1405 = vcmp.eq.s32.totalorder %v1284, %v109
    %vm1406 = vcmp.eq.s32.totalorder %v1284, %v110
    %vm1407 = vcmp.eq.s32.totalorder %v1284, %v111
    %vm1408 = vcmp.eq.s32.totalorder %v1284, %v112
    %vm1409 = vcmp.eq.s32.totalorder %v1284, %v113
    %vm1410 = vcmp.eq.s32.totalorder %v1284, %v114
    %vm1411 = vcmp.eq.s32.totalorder %v1284, %v115
    %vm1412 = vcmp.eq.s32.totalorder %v1284, %v116
    %v1413 = vsel %vm1285, 1, 0
    %v1414 = vsel %vm1286, 1, 0
    %v1415 = vsel %vm1287, 1, 0
    %v1416 = vsel %vm1288, 1, 0
    %v1417 = vsel %vm1289, 1, 0
    %v1418 = vsel %vm1290, 1, 0
    %v1419 = vsel %vm1291, 1, 0
    %v1420 = vsel %vm1292, 1, 0
    %v1421 = vsel %vm1293, 1, 0
    %v1422 = vsel %vm1294, 1, 0
    %v1423 = vsel %vm1295, 1, 0
    %v1424 = vsel %vm1296, 1, 0
    %v1425 = vsel %vm1297, 1, 0
    %v1426 = vsel %vm1298, 1, 0
    %v1427 = vsel %vm1299, 1, 0
    %v1428 = vsel %vm1300, 1, 0
    %v1429 = vsel %vm1301, 1, 0
    %v1430 = vsel %vm1302, 1, 0
    %v1431 = vsel %vm1303, 1, 0
    %v1432 = vsel %vm1304, 1, 0
    %v1433 = vsel %vm1305, 1, 0
    %v1434 = vsel %vm1306, 1, 0
    %v1435 = vsel %vm1307, 1, 0
    %v1436 = vsel %vm1308, 1, 0
    %v1437 = vsel %vm1309, 1, 0
    %v1438 = vsel %vm1310, 1, 0
    %v1439 = vsel %vm1311, 1, 0
    %v1440 = vsel %vm1312, 1, 0
    %v1441 = vsel %vm1313, 1, 0
    %v1442 = vsel %vm1314, 1, 0
    %v1443 = vsel %vm1315, 1, 0
    %v1444 = vsel %vm1316, 1, 0
    %v1445 = vsel %vm1317, 1, 0
    %v1446 = vsel %vm1318, 1, 0
    %v1447 = vsel %vm1319, 1, 0
    %v1448 = vsel %vm1320, 1, 0
    %v1449 = vsel %vm1321, 1, 0
    %v1450 = vsel %vm1322, 1, 0
    %v1451 = vsel %vm1323, 1, 0
    %v1452 = vsel %vm1324, 1, 0
    %v1453 = vsel %vm1325, 1, 0
    %v1454 = vsel %vm1326, 1, 0
    %v1455 = vsel %vm1327, 1, 0
    %v1456 = vsel %vm1328, 1, 0
    %v1457 = vsel %vm1329, 1, 0
    %v1458 = vsel %vm1330, 1, 0
    %v1459 = vsel %vm1331, 1, 0
    %v1460 = vsel %vm1332, 1, 0
    %v1461 = vsel %vm1333, 1, 0
    %v1462 = vsel %vm1334, 1, 0
    %v1463 = vsel %vm1335, 1, 0
    %v1464 = vsel %vm1336, 1, 0
    %v1465 = vsel %vm1337, 1, 0
    %v1466 = vsel %vm1338, 1, 0
    %v1467 = vsel %vm1339, 1, 0
    %v1468 = vsel %vm1340, 1, 0
    %v1469 = vsel %vm1341, 1, 0
    %v1470 = vsel %vm1342, 1, 0
    %v1471 = vsel %vm1343, 1, 0
    %v1472 = vsel %vm1344, 1, 0
    %v1473 = vsel %vm1345, 1, 0
    %v1474 = vsel %vm1346, 1, 0
    %v1475 = vsel %vm1347, 1, 0
    %v1476 = vsel %vm1348, 1, 0
    %v1477 = vsel %vm1349, 1, 0
    %v1478 = vsel %vm1350, 1, 0
    %v1479 = vsel %vm1351, 1, 0
    %v1480 = vsel %vm1352, 1, 0
    %v1481 = vsel %vm1353, 1, 0
    %v1482 = vsel %vm1354, 1, 0
    %v1483 = vsel %vm1355, 1, 0
    %v1484 = vsel %vm1356, 1, 0
    %v1485 = vsel %vm1357, 1, 0
    %v1486 = vsel %vm1358, 1, 0
    %v1487 = vsel %vm1359, 1, 0
    %v1488 = vsel %vm1360, 1, 0
    %v1489 = vsel %vm1361, 1, 0
    %v1490 = vsel %vm1362, 1, 0
    %v1491 = vsel %vm1363, 1, 0
    %v1492 = vsel %vm1364, 1, 0
    %v1493 = vsel %vm1365, 1, 0
    %v1494 = vsel %vm1366, 1, 0
    %v1495 = vsel %vm1367, 1, 0
    %v1496 = vsel %vm1368, 1, 0
    %v1497 = vsel %vm1369, 1, 0
    %v1498 = vsel %vm1370, 1, 0
    %v1499 = vsel %vm1371, 1, 0
    %v1500 = vsel %vm1372, 1, 0
    %v1501 = vsel %vm1373, 1, 0
    %v1502 = vsel %vm1374, 1, 0
    %v1503 = vsel %vm1375, 1, 0
    %v1504 = vsel %vm1376, 1, 0
    %v1505 = vsel %vm1377, 1, 0
    %v1506 = vsel %vm1378, 1, 0
    %v1507 = vsel %vm1379, 1, 0
    %v1508 = vsel %vm1380, 1, 0
    %v1509 = vsel %vm1381, 1, 0
    %v1510 = vsel %vm1382, 1, 0
    %v1511 = vsel %vm1383, 1, 0
    %v1512 = vsel %vm1384, 1, 0
    %v1513 = vsel %vm1385, 1, 0
    %v1514 = vsel %vm1386, 1, 0
    %v1515 = vsel %vm1387, 1, 0
    %v1516 = vsel %vm1388, 1, 0
    %v1517 = vsel %vm1389, 1, 0
    %v1518 = vsel %vm1390, 1, 0
    %v1519 = vsel %vm1391, 1, 0
    %v1520 = vsel %vm1392, 1, 0
    %v1521 = vsel %vm1393, 1, 0
    %v1522 = vsel %vm1394, 1, 0
    %v1523 = vsel %vm1395, 1, 0
    %v1524 = vsel %vm1396, 1, 0
    %v1525 = vsel %vm1397, 1, 0
    %v1526 = vsel %vm1398, 1, 0
    %v1527 = vsel %vm1399, 1, 0
    %v1528 = vsel %vm1400, 1, 0
    %v1529 = vsel %vm1401, 1, 0
    %v1530 = vsel %vm1402, 1, 0
    %v1531 = vsel %vm1403, 1, 0
    %v1532 = vsel %vm1404, 1, 0
    %v1533 = vsel %vm1405, 1, 0
    %v1534 = vsel %vm1406, 1, 0
    %v1535 = vsel %vm1407, 1, 0
    %v1536 = vsel %vm1408, 1, 0
    %v1537 = vsel %vm1409, 1, 0
    %v1538 = vsel %vm1410, 1, 0
    %v1539 = vsel %vm1411, 1, 0
    %v1540 = vsel %vm1412, 1, 0
    %v1541 = vcvt.s32.f32 %v1413
    %v1542 = vcvt.s32.f32 %v1414
    %v1543 = vcvt.s32.f32 %v1415
    %v1544 = vcvt.s32.f32 %v1416
    %v1545 = vcvt.s32.f32 %v1417
    %v1546 = vcvt.s32.f32 %v1418
    %v1547 = vcvt.s32.f32 %v1419
    %v1548 = vcvt.s32.f32 %v1420
    %v1549 = vcvt.s32.f32 %v1421
    %v1550 = vcvt.s32.f32 %v1422
    %v1551 = vcvt.s32.f32 %v1423
    %v1552 = vcvt.s32.f32 %v1424
    %v1553 = vcvt.s32.f32 %v1425
    %v1554 = vcvt.s32.f32 %v1426
    %v1555 = vcvt.s32.f32 %v1427
    %v1556 = vcvt.s32.f32 %v1428
    %v1557 = vcvt.s32.f32 %v1429
    %v1558 = vcvt.s32.f32 %v1430
    %v1559 = vcvt.s32.f32 %v1431
    %v1560 = vcvt.s32.f32 %v1432
    %v1561 = vcvt.s32.f32 %v1433
    %v1562 = vcvt.s32.f32 %v1434
    %v1563 = vcvt.s32.f32 %v1435
    %v1564 = vcvt.s32.f32 %v1436
    %v1565 = vcvt.s32.f32 %v1437
    %v1566 = vcvt.s32.f32 %v1438
    %v1567 = vcvt.s32.f32 %v1439
    %v1568 = vcvt.s32.f32 %v1440
    %v1569 = vcvt.s32.f32 %v1441
    %v1570 = vcvt.s32.f32 %v1442
    %v1571 = vcvt.s32.f32 %v1443
    %v1572 = vcvt.s32.f32 %v1444
    %v1573 = vcvt.s32.f32 %v1445
    %v1574 = vcvt.s32.f32 %v1446
    %v1575 = vcvt.s32.f32 %v1447
    %v1576 = vcvt.s32.f32 %v1448
    %v1577 = vcvt.s32.f32 %v1449
    %v1578 = vcvt.s32.f32 %v1450
    %v1579 = vcvt.s32.f32 %v1451
    %v1580 = vcvt.s32.f32 %v1452
    %v1581 = vcvt.s32.f32 %v1453
    %v1582 = vcvt.s32.f32 %v1454
    %v1583 = vcvt.s32.f32 %v1455
    %v1584 = vcvt.s32.f32 %v1456
    %v1585 = vcvt.s32.f32 %v1457
    %v1586 = vcvt.s32.f32 %v1458
    %v1587 = vcvt.s32.f32 %v1459
    %v1588 = vcvt.s32.f32 %v1460
    %v1589 = vcvt.s32.f32 %v1461
    %v1590 = vcvt.s32.f32 %v1462
    %v1591 = vcvt.s32.f32 %v1463
    %v1592 = vcvt.s32.f32 %v1464
    %v1593 = vcvt.s32.f32 %v1465
    %v1594 = vcvt.s32.f32 %v1466
    %v1595 = vcvt.s32.f32 %v1467
    %v1596 = vcvt.s32.f32 %v1468
    %v1597 = vcvt.s32.f32 %v1469
    %v1598 = vcvt.s32.f32 %v1470
    %v1599 = vcvt.s32.f32 %v1471
    %v1600 = vcvt.s32.f32 %v1472
    %v1601 = vcvt.s32.f32 %v1473
    %v1602 = vcvt.s32.f32 %v1474
    %v1603 = vcvt.s32.f32 %v1475
    %v1604 = vcvt.s32.f32 %v1476
    %v1605 = vcvt.s32.f32 %v1477
    %v1606 = vcvt.s32.f32 %v1478
    %v1607 = vcvt.s32.f32 %v1479
    %v1608 = vcvt.s32.f32 %v1480
    %v1609 = vcvt.s32.f32 %v1481
    %v1610 = vcvt.s32.f32 %v1482
    %v1611 = vcvt.s32.f32 %v1483
    %v1612 = vcvt.s32.f32 %v1484
    %v1613 = vcvt.s32.f32 %v1485
    %v1614 = vcvt.s32.f32 %v1486
    %v1615 = vcvt.s32.f32 %v1487
    %v1616 = vcvt.s32.f32 %v1488
    %v1617 = vcvt.s32.f32 %v1489
    %v1618 = vcvt.s32.f32 %v1490
    %v1619 = vcvt.s32.f32 %v1491
    %v1620 = vcvt.s32.f32 %v1492
    %v1621 = vcvt.s32.f32 %v1493
    %v1622 = vcvt.s32.f32 %v1494
    %v1623 = vcvt.s32.f32 %v1495
    %v1624 = vcvt.s32.f32 %v1496
    %v1625 = vcvt.s32.f32 %v1497
    %v1626 = vcvt.s32.f32 %v1498
    %v1627 = vcvt.s32.f32 %v1499
    %v1628 = vcvt.s32.f32 %v1500
    %v1629 = vcvt.s32.f32 %v1501
    %v1630 = vcvt.s32.f32 %v1502
    %v1631 = vcvt.s32.f32 %v1503
    %v1632 = vcvt.s32.f32 %v1504
    %v1633 = vcvt.s32.f32 %v1505
    %v1634 = vcvt.s32.f32 %v1506
    %v1635 = vcvt.s32.f32 %v1507
    %v1636 = vcvt.s32.f32 %v1508
    %v1637 = vcvt.s32.f32 %v1509
    %v1638 = vcvt.s32.f32 %v1510
    %v1639 = vcvt.s32.f32 %v1511
    %v1640 = vcvt.s32.f32 %v1512
    %v1641 = vcvt.s32.f32 %v1513
    %v1642 = vcvt.s32.f32 %v1514
    %v1643 = vcvt.s32.f32 %v1515
    %v1644 = vcvt.s32.f32 %v1516
    %v1645 = vcvt.s32.f32 %v1517
    %v1646 = vcvt.s32.f32 %v1518
    %v1647 = vcvt.s32.f32 %v1519
    %v1648 = vcvt.s32.f32 %v1520
    %v1649 = vcvt.s32.f32 %v1521
    %v1650 = vcvt.s32.f32 %v1522
    %v1651 = vcvt.s32.f32 %v1523
    %v1652 = vcvt.s32.f32 %v1524
    %v1653 = vcvt.s32.f32 %v1525
    %v1654 = vcvt.s32.f32 %v1526
    %v1655 = vcvt.s32.f32 %v1527
    %v1656 = vcvt.s32.f32 %v1528
    %v1657 = vcvt.s32.f32 %v1529
    %v1658 = vcvt.s32.f32 %v1530
    %v1659 = vcvt.s32.f32 %v1531
    %v1660 = vcvt.s32.f32 %v1532
    %v1661 = vcvt.s32.f32 %v1533
    %v1662 = vcvt.s32.f32 %v1534
    %v1663 = vcvt.s32.f32 %v1535
    %v1664 = vcvt.s32.f32 %v1536
    %v1665 = vcvt.s32.f32 %v1537
    %v1666 = vcvt.s32.f32 %v1538
    %v1667 = vcvt.s32.f32 %v1539
    %v1668 = vcvt.s32.f32 %v1540
    %v1669 = vadd.f32 %v1109, %v1541
    %v1670 = vadd.f32 %v1110, %v1542
    %v1671 = vadd.f32 %v1111, %v1543
    %v1672 = vadd.f32 %v1112, %v1544
    %v1673 = vadd.f32 %v1113, %v1545
    %v1674 = vadd.f32 %v1114, %v1546
    %v1675 = vadd.f32 %v1115, %v1547
    %v1676 = vadd.f32 %v1116, %v1548
    %v1677 = vadd.f32 %v1117, %v1549
    %v1678 = vadd.f32 %v1118, %v1550
    %v1679 = vadd.f32 %v1119, %v1551
    %v1680 = vadd.f32 %v1120, %v1552
    %v1681 = vadd.f32 %v1121, %v1553
    %v1682 = vadd.f32 %v1122, %v1554
    %v1683 = vadd.f32 %v1123, %v1555
    %v1684 = vadd.f32 %v1124, %v1556
    %v1685 = vadd.f32 %v1125, %v1557
    %v1686 = vadd.f32 %v1126, %v1558
    %v1687 = vadd.f32 %v1127, %v1559
    %v1688 = vadd.f32 %v1128, %v1560
    %v1689 = vadd.f32 %v1129, %v1561
    %v1690 = vadd.f32 %v1130, %v1562
    %v1691 = vadd.f32 %v1131, %v1563
    %v1692 = vadd.f32 %v1132, %v1564
    %v1693 = vadd.f32 %v1133, %v1565
    %v1694 = vadd.f32 %v1134, %v1566
    %v1695 = vadd.f32 %v1135, %v1567
    %v1696 = vadd.f32 %v1136, %v1568
    %v1697 = vadd.f32 %v1137, %v1569
    %v1698 = vadd.f32 %v1138, %v1570
    %v1699 = vadd.f32 %v1139, %v1571
    %v1700 = vadd.f32 %v1140, %v1572
    %v1701 = vadd.f32 %v1141, %v1573
    %v1702 = vadd.f32 %v1142, %v1574
    %v1703 = vadd.f32 %v1143, %v1575
    %v1704 = vadd.f32 %v1144, %v1576
    %v1705 = vadd.f32 %v1145, %v1577
    %v1706 = vadd.f32 %v1146, %v1578
    %v1707 = vadd.f32 %v1147, %v1579
    %v1708 = vadd.f32 %v1148, %v1580
    %v1709 = vadd.f32 %v1149, %v1581
    %v1710 = vadd.f32 %v1150, %v1582
    %v1711 = vadd.f32 %v1151, %v1583
    %v1712 = vadd.f32 %v1152, %v1584
    %v1713 = vadd.f32 %v1153, %v1585
    %v1714 = vadd.f32 %v1154, %v1586
    %v1715 = vadd.f32 %v1155, %v1587
    %v1716 = vadd.f32 %v1156, %v1588
    %v1717 = vadd.f32 %v1157, %v1589
    %v1718 = vadd.f32 %v1158, %v1590
    %v1719 = vadd.f32 %v1159, %v1591
    %v1720 = vadd.f32 %v1160, %v1592
    %v1721 = vadd.f32 %v1161, %v1593
    %v1722 = vadd.f32 %v1162, %v1594
    %v1723 = vadd.f32 %v1163, %v1595
    %v1724 = vadd.f32 %v1164, %v1596
    %v1725 = vadd.f32 %v1165, %v1597
    %v1726 = vadd.f32 %v1166, %v1598
    %v1727 = vadd.f32 %v1167, %v1599
    %v1728 = vadd.f32 %v1168, %v1600
    %v1729 = vadd.f32 %v1169, %v1601
    %v1730 = vadd.f32 %v1170, %v1602
    %v1731 = vadd.f32 %v1171, %v1603
    %v1732 = vadd.f32 %v1172, %v1604
    %v1733 = vadd.f32 %v1173, %v1605
    %v1734 = vadd.f32 %v1174, %v1606
    %v1735 = vadd.f32 %v1175, %v1607
    %v1736 = vadd.f32 %v1176, %v1608
    %v1737 = vadd.f32 %v1177, %v1609
    %v1738 = vadd.f32 %v1178, %v1610
    %v1739 = vadd.f32 %v1179, %v1611
    %v1740 = vadd.f32 %v1180, %v1612
    %v1741 = vadd.f32 %v1181, %v1613
    %v1742 = vadd.f32 %v1182, %v1614
    %v1743 = vadd.f32 %v1183, %v1615
    %v1744 = vadd.f32 %v1184, %v1616
    %v1745 = vadd.f32 %v1185, %v1617
    %v1746 = vadd.f32 %v1186, %v1618
    %v1747 = vadd.f32 %v1187, %v1619
    %v1748 = vadd.f32 %v1188, %v1620
    %v1749 = vadd.f32 %v1189, %v1621
    %v1750 = vadd.f32 %v1190, %v1622
    %v1751 = vadd.f32 %v1191, %v1623
    %v1752 = vadd.f32 %v1192, %v1624
    %v1753 = vadd.f32 %v1193, %v1625
    %v1754 = vadd.f32 %v1194, %v1626
    %v1755 = vadd.f32 %v1195, %v1627
    %v1756 = vadd.f32 %v1196, %v1628
    %v1757 = vadd.f32 %v1197, %v1629
    %v1758 = vadd.f32 %v1198, %v1630
    %v1759 = vadd.f32 %v1199, %v1631
    %v1760 = vadd.f32 %v1200, %v1632
    %v1761 = vadd.f32 %v1201, %v1633
    %v1762 = vadd.f32 %v1202, %v1634
    %v1763 = vadd.f32 %v1203, %v1635
    %v1764 = vadd.f32 %v1204, %v1636
    %v1765 = vadd.f32 %v1205, %v1637
    %v1766 = vadd.f32 %v1206, %v1638
    %v1767 = vadd.f32 %v1207, %v1639
    %v1768 = vadd.f32 %v1208, %v1640
    %v1769 = vadd.f32 %v1209, %v1641
    %v1770 = vadd.f32 %v1210, %v1642
    %v1771 = vadd.f32 %v1211, %v1643
    %v1772 = vadd.f32 %v1212, %v1644
    %v1773 = vadd.f32 %v1213, %v1645
    %v1774 = vadd.f32 %v1214, %v1646
    %v1775 = vadd.f32 %v1215, %v1647
    %v1776 = vadd.f32 %v1216, %v1648
    %v1777 = vadd.f32 %v1217, %v1649
    %v1778 = vadd.f32 %v1218, %v1650
    %v1779 = vadd.f32 %v1219, %v1651
    %v1780 = vadd.f32 %v1220, %v1652
    %v1781 = vadd.f32 %v1221, %v1653
    %v1782 = vadd.f32 %v1222, %v1654
    %v1783 = vadd.f32 %v1223, %v1655
    %v1784 = vadd.f32 %v1224, %v1656
    %v1785 = vadd.f32 %v1225, %v1657
    %v1786 = vadd.f32 %v1226, %v1658
    %v1787 = vadd.f32 %v1227, %v1659
    %v1788 = vadd.f32 %v1228, %v1660
    %v1789 = vadd.f32 %v1229, %v1661
    %v1790 = vadd.f32 %v1230, %v1662
    %v1791 = vadd.f32 %v1231, %v1663
    %v1792 = vadd.f32 %v1232, %v1664
    %v1793 = vadd.f32 %v1233, %v1665
    %v1794 = vadd.f32 %v1234, %v1666
    %v1795 = vadd.f32 %v1235, %v1667
    %v1796 = vadd.f32 %v1236, %v1668
    %1797 = vset.pattern.permute.xlu0 3
    %1798 = vperm.xlu0 %1797, %v92
    %v1799 = vpop.permute.xlu0 %1798
    %1800 = vset.pattern.permute.xlu0 3
    %1801 = vperm.xlu0 %1800, %v93
    %v1802 = vpop.permute.xlu0 %1801
    %1803 = vset.pattern.permute.xlu0 3
    %1804 = vperm.xlu0 %1803, %v94
    %v1805 = vpop.permute.xlu0 %1804
    %1806 = vset.pattern.permute.xlu0 3
    %1807 = vperm.xlu0 %1806, %v95
    %v1808 = vpop.permute.xlu0 %1807
    %1809 = vset.pattern.permute.xlu0 3
    %1810 = vperm.xlu0 %1809, %v96
    %v1811 = vpop.permute.xlu0 %1810
    %1812 = vset.pattern.permute.xlu0 3
    %1813 = vperm.xlu0 %1812, %v97
    %v1814 = vpop.permute.xlu0 %1813
    %1815 = vset.pattern.permute.xlu0 3
    %1816 = vperm.xlu0 %1815, %v98
    %v1817 = vpop.permute.xlu0 %1816
    %1818 = vset.pattern.permute.xlu0 3
    %1819 = vperm.xlu0 %1818, %v99
    %v1820 = vpop.permute.xlu0 %1819
    %1821 = vset.pattern.permute.xlu0 3
    %1822 = vperm.xlu0 %1821, %v100
    %v1823 = vpop.permute.xlu0 %1822
    %1824 = vset.pattern.permute.xlu0 3
    %1825 = vperm.xlu0 %1824, %v101
    %v1826 = vpop.permute.xlu0 %1825
    %1827 = vset.pattern.permute.xlu0 3
    %1828 = vperm.xlu0 %1827, %v102
    %v1829 = vpop.permute.xlu0 %1828
    %1830 = vset.pattern.permute.xlu0 3
    %1831 = vperm.xlu0 %1830, %v103
    %v1832 = vpop.permute.xlu0 %1831
    %1833 = vset.pattern.permute.xlu0 3
    %1834 = vperm.xlu0 %1833, %v104
    %v1835 = vpop.permute.xlu0 %1834
    %1836 = vset.pattern.permute.xlu0 3
    %1837 = vperm.xlu0 %1836, %v105
    %v1838 = vpop.permute.xlu0 %1837
    %1839 = vset.pattern.permute.xlu0 3
    %1840 = vperm.xlu0 %1839, %v106
    %v1841 = vpop.permute.xlu0 %1840
    %1842 = vset.pattern.permute.xlu0 3
    %1843 = vperm.xlu0 %1842, %v107
    %v1844 = vpop.permute.xlu0 %1843
    %vm1845 = vcmp.eq.s32.totalorder %v1799, %v109
    %vm1846 = vcmp.eq.s32.totalorder %v1799, %v110
    %vm1847 = vcmp.eq.s32.totalorder %v1799, %v111
    %vm1848 = vcmp.eq.s32.totalorder %v1799, %v112
    %vm1849 = vcmp.eq.s32.totalorder %v1799, %v113
    %vm1850 = vcmp.eq.s32.totalorder %v1799, %v114
    %vm1851 = vcmp.eq.s32.totalorder %v1799, %v115
    %vm1852 = vcmp.eq.s32.totalorder %v1799, %v116
    %vm1853 = vcmp.eq.s32.totalorder %v1802, %v109
    %vm1854 = vcmp.eq.s32.totalorder %v1802, %v110
    %vm1855 = vcmp.eq.s32.totalorder %v1802, %v111
    %vm1856 = vcmp.eq.s32.totalorder %v1802, %v112
    %vm1857 = vcmp.eq.s32.totalorder %v1802, %v113
    %vm1858 = vcmp.eq.s32.totalorder %v1802, %v114
    %vm1859 = vcmp.eq.s32.totalorder %v1802, %v115
    %vm1860 = vcmp.eq.s32.totalorder %v1802, %v116
    %vm1861 = vcmp.eq.s32.totalorder %v1805, %v109
    %vm1862 = vcmp.eq.s32.totalorder %v1805, %v110
    %vm1863 = vcmp.eq.s32.totalorder %v1805, %v111
    %vm1864 = vcmp.eq.s32.totalorder %v1805, %v112
    %vm1865 = vcmp.eq.s32.totalorder %v1805, %v113
    %vm1866 = vcmp.eq.s32.totalorder %v1805, %v114
    %vm1867 = vcmp.eq.s32.totalorder %v1805, %v115
    %vm1868 = vcmp.eq.s32.totalorder %v1805, %v116
    %vm1869 = vcmp.eq.s32.totalorder %v1808, %v109
    %vm1870 = vcmp.eq.s32.totalorder %v1808, %v110
    %vm1871 = vcmp.eq.s32.totalorder %v1808, %v111
    %vm1872 = vcmp.eq.s32.totalorder %v1808, %v112
    %vm1873 = vcmp.eq.s32.totalorder %v1808, %v113
    %vm1874 = vcmp.eq.s32.totalorder %v1808, %v114
    %vm1875 = vcmp.eq.s32.totalorder %v1808, %v115
    %vm1876 = vcmp.eq.s32.totalorder %v1808, %v116
    %vm1877 = vcmp.eq.s32.totalorder %v1811, %v109
    %vm1878 = vcmp.eq.s32.totalorder %v1811, %v110
    %vm1879 = vcmp.eq.s32.totalorder %v1811, %v111
    %vm1880 = vcmp.eq.s32.totalorder %v1811, %v112
    %vm1881 = vcmp.eq.s32.totalorder %v1811, %v113
    %vm1882 = vcmp.eq.s32.totalorder %v1811, %v114
    %vm1883 = vcmp.eq.s32.totalorder %v1811, %v115
    %vm1884 = vcmp.eq.s32.totalorder %v1811, %v116
    %vm1885 = vcmp.eq.s32.totalorder %v1814, %v109
    %vm1886 = vcmp.eq.s32.totalorder %v1814, %v110
    %vm1887 = vcmp.eq.s32.totalorder %v1814, %v111
    %vm1888 = vcmp.eq.s32.totalorder %v1814, %v112
    %vm1889 = vcmp.eq.s32.totalorder %v1814, %v113
    %vm1890 = vcmp.eq.s32.totalorder %v1814, %v114
    %vm1891 = vcmp.eq.s32.totalorder %v1814, %v115
    %vm1892 = vcmp.eq.s32.totalorder %v1814, %v116
    %vm1893 = vcmp.eq.s32.totalorder %v1817, %v109
    %vm1894 = vcmp.eq.s32.totalorder %v1817, %v110
    %vm1895 = vcmp.eq.s32.totalorder %v1817, %v111
    %vm1896 = vcmp.eq.s32.totalorder %v1817, %v112
    %vm1897 = vcmp.eq.s32.totalorder %v1817, %v113
    %vm1898 = vcmp.eq.s32.totalorder %v1817, %v114
    %vm1899 = vcmp.eq.s32.totalorder %v1817, %v115
    %vm1900 = vcmp.eq.s32.totalorder %v1817, %v116
    %vm1901 = vcmp.eq.s32.totalorder %v1820, %v109
    %vm1902 = vcmp.eq.s32.totalorder %v1820, %v110
    %vm1903 = vcmp.eq.s32.totalorder %v1820, %v111
    %vm1904 = vcmp.eq.s32.totalorder %v1820, %v112
    %vm1905 = vcmp.eq.s32.totalorder %v1820, %v113
    %vm1906 = vcmp.eq.s32.totalorder %v1820, %v114
    %vm1907 = vcmp.eq.s32.totalorder %v1820, %v115
    %vm1908 = vcmp.eq.s32.totalorder %v1820, %v116
    %vm1909 = vcmp.eq.s32.totalorder %v1823, %v109
    %vm1910 = vcmp.eq.s32.totalorder %v1823, %v110
    %vm1911 = vcmp.eq.s32.totalorder %v1823, %v111
    %vm1912 = vcmp.eq.s32.totalorder %v1823, %v112
    %vm1913 = vcmp.eq.s32.totalorder %v1823, %v113
    %vm1914 = vcmp.eq.s32.totalorder %v1823, %v114
    %vm1915 = vcmp.eq.s32.totalorder %v1823, %v115
    %vm1916 = vcmp.eq.s32.totalorder %v1823, %v116
    %vm1917 = vcmp.eq.s32.totalorder %v1826, %v109
    %vm1918 = vcmp.eq.s32.totalorder %v1826, %v110
    %vm1919 = vcmp.eq.s32.totalorder %v1826, %v111
    %vm1920 = vcmp.eq.s32.totalorder %v1826, %v112
    %vm1921 = vcmp.eq.s32.totalorder %v1826, %v113
    %vm1922 = vcmp.eq.s32.totalorder %v1826, %v114
    %vm1923 = vcmp.eq.s32.totalorder %v1826, %v115
    %vm1924 = vcmp.eq.s32.totalorder %v1826, %v116
    %vm1925 = vcmp.eq.s32.totalorder %v1829, %v109
    %vm1926 = vcmp.eq.s32.totalorder %v1829, %v110
    %vm1927 = vcmp.eq.s32.totalorder %v1829, %v111
    %vm1928 = vcmp.eq.s32.totalorder %v1829, %v112
    %vm1929 = vcmp.eq.s32.totalorder %v1829, %v113
    %vm1930 = vcmp.eq.s32.totalorder %v1829, %v114
    %vm1931 = vcmp.eq.s32.totalorder %v1829, %v115
    %vm1932 = vcmp.eq.s32.totalorder %v1829, %v116
    %vm1933 = vcmp.eq.s32.totalorder %v1832, %v109
    %vm1934 = vcmp.eq.s32.totalorder %v1832, %v110
    %vm1935 = vcmp.eq.s32.totalorder %v1832, %v111
    %vm1936 = vcmp.eq.s32.totalorder %v1832, %v112
    %vm1937 = vcmp.eq.s32.totalorder %v1832, %v113
    %vm1938 = vcmp.eq.s32.totalorder %v1832, %v114
    %vm1939 = vcmp.eq.s32.totalorder %v1832, %v115
    %vm1940 = vcmp.eq.s32.totalorder %v1832, %v116
    %vm1941 = vcmp.eq.s32.totalorder %v1835, %v109
    %vm1942 = vcmp.eq.s32.totalorder %v1835, %v110
    %vm1943 = vcmp.eq.s32.totalorder %v1835, %v111
    %vm1944 = vcmp.eq.s32.totalorder %v1835, %v112
    %vm1945 = vcmp.eq.s32.totalorder %v1835, %v113
    %vm1946 = vcmp.eq.s32.totalorder %v1835, %v114
    %vm1947 = vcmp.eq.s32.totalorder %v1835, %v115
    %vm1948 = vcmp.eq.s32.totalorder %v1835, %v116
    %vm1949 = vcmp.eq.s32.totalorder %v1838, %v109
    %vm1950 = vcmp.eq.s32.totalorder %v1838, %v110
    %vm1951 = vcmp.eq.s32.totalorder %v1838, %v111
    %vm1952 = vcmp.eq.s32.totalorder %v1838, %v112
    %vm1953 = vcmp.eq.s32.totalorder %v1838, %v113
    %vm1954 = vcmp.eq.s32.totalorder %v1838, %v114
    %vm1955 = vcmp.eq.s32.totalorder %v1838, %v115
    %vm1956 = vcmp.eq.s32.totalorder %v1838, %v116
    %vm1957 = vcmp.eq.s32.totalorder %v1841, %v109
    %vm1958 = vcmp.eq.s32.totalorder %v1841, %v110
    %vm1959 = vcmp.eq.s32.totalorder %v1841, %v111
    %vm1960 = vcmp.eq.s32.totalorder %v1841, %v112
    %vm1961 = vcmp.eq.s32.totalorder %v1841, %v113
    %vm1962 = vcmp.eq.s32.totalorder %v1841, %v114
    %vm1963 = vcmp.eq.s32.totalorder %v1841, %v115
    %vm1964 = vcmp.eq.s32.totalorder %v1841, %v116
    %vm1965 = vcmp.eq.s32.totalorder %v1844, %v109
    %vm1966 = vcmp.eq.s32.totalorder %v1844, %v110
    %vm1967 = vcmp.eq.s32.totalorder %v1844, %v111
    %vm1968 = vcmp.eq.s32.totalorder %v1844, %v112
    %vm1969 = vcmp.eq.s32.totalorder %v1844, %v113
    %vm1970 = vcmp.eq.s32.totalorder %v1844, %v114
    %vm1971 = vcmp.eq.s32.totalorder %v1844, %v115
    %vm1972 = vcmp.eq.s32.totalorder %v1844, %v116
    %v1973 = vsel %vm1845, 1, 0
    %v1974 = vsel %vm1846, 1, 0
    %v1975 = vsel %vm1847, 1, 0
    %v1976 = vsel %vm1848, 1, 0
    %v1977 = vsel %vm1849, 1, 0
    %v1978 = vsel %vm1850, 1, 0
    %v1979 = vsel %vm1851, 1, 0
    %v1980 = vsel %vm1852, 1, 0
    %v1981 = vsel %vm1853, 1, 0
    %v1982 = vsel %vm1854, 1, 0
    %v1983 = vsel %vm1855, 1, 0
    %v1984 = vsel %vm1856, 1, 0
    %v1985 = vsel %vm1857, 1, 0
    %v1986 = vsel %vm1858, 1, 0
    %v1987 = vsel %vm1859, 1, 0
    %v1988 = vsel %vm1860, 1, 0
    %v1989 = vsel %vm1861, 1, 0
    %v1990 = vsel %vm1862, 1, 0
    %v1991 = vsel %vm1863, 1, 0
    %v1992 = vsel %vm1864, 1, 0
    %v1993 = vsel %vm1865, 1, 0
    %v1994 = vsel %vm1866, 1, 0
    %v1995 = vsel %vm1867, 1, 0
    %v1996 = vsel %vm1868, 1, 0
    %v1997 = vsel %vm1869, 1, 0
    %v1998 = vsel %vm1870, 1, 0
    %v1999 = vsel %vm1871, 1, 0
    %v2000 = vsel %vm1872, 1, 0
    %v2001 = vsel %vm1873, 1, 0
    %v2002 = vsel %vm1874, 1, 0
    %v2003 = vsel %vm1875, 1, 0
    %v2004 = vsel %vm1876, 1, 0
    %v2005 = vsel %vm1877, 1, 0
    %v2006 = vsel %vm1878, 1, 0
    %v2007 = vsel %vm1879, 1, 0
    %v2008 = vsel %vm1880, 1, 0
    %v2009 = vsel %vm1881, 1, 0
    %v2010 = vsel %vm1882, 1, 0
    %v2011 = vsel %vm1883, 1, 0
    %v2012 = vsel %vm1884, 1, 0
    %v2013 = vsel %vm1885, 1, 0
    %v2014 = vsel %vm1886, 1, 0
    %v2015 = vsel %vm1887, 1, 0
    %v2016 = vsel %vm1888, 1, 0
    %v2017 = vsel %vm1889, 1, 0
    %v2018 = vsel %vm1890, 1, 0
    %v2019 = vsel %vm1891, 1, 0
    %v2020 = vsel %vm1892, 1, 0
    %v2021 = vsel %vm1893, 1, 0
    %v2022 = vsel %vm1894, 1, 0
    %v2023 = vsel %vm1895, 1, 0
    %v2024 = vsel %vm1896, 1, 0
    %v2025 = vsel %vm1897, 1, 0
    %v2026 = vsel %vm1898, 1, 0
    %v2027 = vsel %vm1899, 1, 0
    %v2028 = vsel %vm1900, 1, 0
    %v2029 = vsel %vm1901, 1, 0
    %v2030 = vsel %vm1902, 1, 0
    %v2031 = vsel %vm1903, 1, 0
    %v2032 = vsel %vm1904, 1, 0
    %v2033 = vsel %vm1905, 1, 0
    %v2034 = vsel %vm1906, 1, 0
    %v2035 = vsel %vm1907, 1, 0
    %v2036 = vsel %vm1908, 1, 0
    %v2037 = vsel %vm1909, 1, 0
    %v2038 = vsel %vm1910, 1, 0
    %v2039 = vsel %vm1911, 1, 0
    %v2040 = vsel %vm1912, 1, 0
    %v2041 = vsel %vm1913, 1, 0
    %v2042 = vsel %vm1914, 1, 0
    %v2043 = vsel %vm1915, 1, 0
    %v2044 = vsel %vm1916, 1, 0
    %v2045 = vsel %vm1917, 1, 0
    %v2046 = vsel %vm1918, 1, 0
    %v2047 = vsel %vm1919, 1, 0
    %v2048 = vsel %vm1920, 1, 0
    %v2049 = vsel %vm1921, 1, 0
    %v2050 = vsel %vm1922, 1, 0
    %v2051 = vsel %vm1923, 1, 0
    %v2052 = vsel %vm1924, 1, 0
    %v2053 = vsel %vm1925, 1, 0
    %v2054 = vsel %vm1926, 1, 0
    %v2055 = vsel %vm1927, 1, 0
    %v2056 = vsel %vm1928, 1, 0
    %v2057 = vsel %vm1929, 1, 0
    %v2058 = vsel %vm1930, 1, 0
    %v2059 = vsel %vm1931, 1, 0
    %v2060 = vsel %vm1932, 1, 0
    %v2061 = vsel %vm1933, 1, 0
    %v2062 = vsel %vm1934, 1, 0
    %v2063 = vsel %vm1935, 1, 0
    %v2064 = vsel %vm1936, 1, 0
    %v2065 = vsel %vm1937, 1, 0
    %v2066 = vsel %vm1938, 1, 0
    %v2067 = vsel %vm1939, 1, 0
    %v2068 = vsel %vm1940, 1, 0
    %v2069 = vsel %vm1941, 1, 0
    %v2070 = vsel %vm1942, 1, 0
    %v2071 = vsel %vm1943, 1, 0
    %v2072 = vsel %vm1944, 1, 0
    %v2073 = vsel %vm1945, 1, 0
    %v2074 = vsel %vm1946, 1, 0
    %v2075 = vsel %vm1947, 1, 0
    %v2076 = vsel %vm1948, 1, 0
    %v2077 = vsel %vm1949, 1, 0
    %v2078 = vsel %vm1950, 1, 0
    %v2079 = vsel %vm1951, 1, 0
    %v2080 = vsel %vm1952, 1, 0
    %v2081 = vsel %vm1953, 1, 0
    %v2082 = vsel %vm1954, 1, 0
    %v2083 = vsel %vm1955, 1, 0
    %v2084 = vsel %vm1956, 1, 0
    %v2085 = vsel %vm1957, 1, 0
    %v2086 = vsel %vm1958, 1, 0
    %v2087 = vsel %vm1959, 1, 0
    %v2088 = vsel %vm1960, 1, 0
    %v2089 = vsel %vm1961, 1, 0
    %v2090 = vsel %vm1962, 1, 0
    %v2091 = vsel %vm1963, 1, 0
    %v2092 = vsel %vm1964, 1, 0
    %v2093 = vsel %vm1965, 1, 0
    %v2094 = vsel %vm1966, 1, 0
    %v2095 = vsel %vm1967, 1, 0
    %v2096 = vsel %vm1968, 1, 0
    %v2097 = vsel %vm1969, 1, 0
    %v2098 = vsel %vm1970, 1, 0
    %v2099 = vsel %vm1971, 1, 0
    %v2100 = vsel %vm1972, 1, 0
    %v2101 = vcvt.s32.f32 %v1973
    %v2102 = vcvt.s32.f32 %v1974
    %v2103 = vcvt.s32.f32 %v1975
    %v2104 = vcvt.s32.f32 %v1976
    %v2105 = vcvt.s32.f32 %v1977
    %v2106 = vcvt.s32.f32 %v1978
    %v2107 = vcvt.s32.f32 %v1979
    %v2108 = vcvt.s32.f32 %v1980
    %v2109 = vcvt.s32.f32 %v1981
    %v2110 = vcvt.s32.f32 %v1982
    %v2111 = vcvt.s32.f32 %v1983
    %v2112 = vcvt.s32.f32 %v1984
    %v2113 = vcvt.s32.f32 %v1985
    %v2114 = vcvt.s32.f32 %v1986
    %v2115 = vcvt.s32.f32 %v1987
    %v2116 = vcvt.s32.f32 %v1988
    %v2117 = vcvt.s32.f32 %v1989
    %v2118 = vcvt.s32.f32 %v1990
    %v2119 = vcvt.s32.f32 %v1991
    %v2120 = vcvt.s32.f32 %v1992
    %v2121 = vcvt.s32.f32 %v1993
    %v2122 = vcvt.s32.f32 %v1994
    %v2123 = vcvt.s32.f32 %v1995
    %v2124 = vcvt.s32.f32 %v1996
    %v2125 = vcvt.s32.f32 %v1997
    %v2126 = vcvt.s32.f32 %v1998
    %v2127 = vcvt.s32.f32 %v1999
    %v2128 = vcvt.s32.f32 %v2000
    %v2129 = vcvt.s32.f32 %v2001
    %v2130 = vcvt.s32.f32 %v2002
    %v2131 = vcvt.s32.f32 %v2003
    %v2132 = vcvt.s32.f32 %v2004
    %v2133 = vcvt.s32.f32 %v2005
    %v2134 = vcvt.s32.f32 %v2006
    %v2135 = vcvt.s32.f32 %v2007
    %v2136 = vcvt.s32.f32 %v2008
    %v2137 = vcvt.s32.f32 %v2009
    %v2138 = vcvt.s32.f32 %v2010
    %v2139 = vcvt.s32.f32 %v2011
    %v2140 = vcvt.s32.f32 %v2012
    %v2141 = vcvt.s32.f32 %v2013
    %v2142 = vcvt.s32.f32 %v2014
    %v2143 = vcvt.s32.f32 %v2015
    %v2144 = vcvt.s32.f32 %v2016
    %v2145 = vcvt.s32.f32 %v2017
    %v2146 = vcvt.s32.f32 %v2018
    %v2147 = vcvt.s32.f32 %v2019
    %v2148 = vcvt.s32.f32 %v2020
    %v2149 = vcvt.s32.f32 %v2021
    %v2150 = vcvt.s32.f32 %v2022
    %v2151 = vcvt.s32.f32 %v2023
    %v2152 = vcvt.s32.f32 %v2024
    %v2153 = vcvt.s32.f32 %v2025
    %v2154 = vcvt.s32.f32 %v2026
    %v2155 = vcvt.s32.f32 %v2027
    %v2156 = vcvt.s32.f32 %v2028
    %v2157 = vcvt.s32.f32 %v2029
    %v2158 = vcvt.s32.f32 %v2030
    %v2159 = vcvt.s32.f32 %v2031
    %v2160 = vcvt.s32.f32 %v2032
    %v2161 = vcvt.s32.f32 %v2033
    %v2162 = vcvt.s32.f32 %v2034
    %v2163 = vcvt.s32.f32 %v2035
    %v2164 = vcvt.s32.f32 %v2036
    %v2165 = vcvt.s32.f32 %v2037
    %v2166 = vcvt.s32.f32 %v2038
    %v2167 = vcvt.s32.f32 %v2039
    %v2168 = vcvt.s32.f32 %v2040
    %v2169 = vcvt.s32.f32 %v2041
    %v2170 = vcvt.s32.f32 %v2042
    %v2171 = vcvt.s32.f32 %v2043
    %v2172 = vcvt.s32.f32 %v2044
    %v2173 = vcvt.s32.f32 %v2045
    %v2174 = vcvt.s32.f32 %v2046
    %v2175 = vcvt.s32.f32 %v2047
    %v2176 = vcvt.s32.f32 %v2048
    %v2177 = vcvt.s32.f32 %v2049
    %v2178 = vcvt.s32.f32 %v2050
    %v2179 = vcvt.s32.f32 %v2051
    %v2180 = vcvt.s32.f32 %v2052
    %v2181 = vcvt.s32.f32 %v2053
    %v2182 = vcvt.s32.f32 %v2054
    %v2183 = vcvt.s32.f32 %v2055
    %v2184 = vcvt.s32.f32 %v2056
    %v2185 = vcvt.s32.f32 %v2057
    %v2186 = vcvt.s32.f32 %v2058
    %v2187 = vcvt.s32.f32 %v2059
    %v2188 = vcvt.s32.f32 %v2060
    %v2189 = vcvt.s32.f32 %v2061
    %v2190 = vcvt.s32.f32 %v2062
    %v2191 = vcvt.s32.f32 %v2063
    %v2192 = vcvt.s32.f32 %v2064
    %v2193 = vcvt.s32.f32 %v2065
    %v2194 = vcvt.s32.f32 %v2066
    %v2195 = vcvt.s32.f32 %v2067
    %v2196 = vcvt.s32.f32 %v2068
    %v2197 = vcvt.s32.f32 %v2069
    %v2198 = vcvt.s32.f32 %v2070
    %v2199 = vcvt.s32.f32 %v2071
    %v2200 = vcvt.s32.f32 %v2072
    %v2201 = vcvt.s32.f32 %v2073
    %v2202 = vcvt.s32.f32 %v2074
    %v2203 = vcvt.s32.f32 %v2075
    %v2204 = vcvt.s32.f32 %v2076
    %v2205 = vcvt.s32.f32 %v2077
    %v2206 = vcvt.s32.f32 %v2078
    %v2207 = vcvt.s32.f32 %v2079
    %v2208 = vcvt.s32.f32 %v2080
    %v2209 = vcvt.s32.f32 %v2081
    %v2210 = vcvt.s32.f32 %v2082
    %v2211 = vcvt.s32.f32 %v2083
    %v2212 = vcvt.s32.f32 %v2084
    %v2213 = vcvt.s32.f32 %v2085
    %v2214 = vcvt.s32.f32 %v2086
    %v2215 = vcvt.s32.f32 %v2087
    %v2216 = vcvt.s32.f32 %v2088
    %v2217 = vcvt.s32.f32 %v2089
    %v2218 = vcvt.s32.f32 %v2090
    %v2219 = vcvt.s32.f32 %v2091
    %v2220 = vcvt.s32.f32 %v2092
    %v2221 = vcvt.s32.f32 %v2093
    %v2222 = vcvt.s32.f32 %v2094
    %v2223 = vcvt.s32.f32 %v2095
    %v2224 = vcvt.s32.f32 %v2096
    %v2225 = vcvt.s32.f32 %v2097
    %v2226 = vcvt.s32.f32 %v2098
    %v2227 = vcvt.s32.f32 %v2099
    %v2228 = vcvt.s32.f32 %v2100
    %v2229 = vadd.f32 %v1669, %v2101
    %v2230 = vadd.f32 %v1670, %v2102
    %v2231 = vadd.f32 %v1671, %v2103
    %v2232 = vadd.f32 %v1672, %v2104
    %v2233 = vadd.f32 %v1673, %v2105
    %v2234 = vadd.f32 %v1674, %v2106
    %v2235 = vadd.f32 %v1675, %v2107
    %v2236 = vadd.f32 %v1676, %v2108
    %v2237 = vadd.f32 %v1677, %v2109
    %v2238 = vadd.f32 %v1678, %v2110
    %v2239 = vadd.f32 %v1679, %v2111
    %v2240 = vadd.f32 %v1680, %v2112
    %v2241 = vadd.f32 %v1681, %v2113
    %v2242 = vadd.f32 %v1682, %v2114
    %v2243 = vadd.f32 %v1683, %v2115
    %v2244 = vadd.f32 %v1684, %v2116
    %v2245 = vadd.f32 %v1685, %v2117
    %v2246 = vadd.f32 %v1686, %v2118
    %v2247 = vadd.f32 %v1687, %v2119
    %v2248 = vadd.f32 %v1688, %v2120
    %v2249 = vadd.f32 %v1689, %v2121
    %v2250 = vadd.f32 %v1690, %v2122
    %v2251 = vadd.f32 %v1691, %v2123
    %v2252 = vadd.f32 %v1692, %v2124
    %v2253 = vadd.f32 %v1693, %v2125
    %v2254 = vadd.f32 %v1694, %v2126
    %v2255 = vadd.f32 %v1695, %v2127
    %v2256 = vadd.f32 %v1696, %v2128
    %v2257 = vadd.f32 %v1697, %v2129
    %v2258 = vadd.f32 %v1698, %v2130
    %v2259 = vadd.f32 %v1699, %v2131
    %v2260 = vadd.f32 %v1700, %v2132
    %v2261 = vadd.f32 %v1701, %v2133
    %v2262 = vadd.f32 %v1702, %v2134
    %v2263 = vadd.f32 %v1703, %v2135
    %v2264 = vadd.f32 %v1704, %v2136
    %v2265 = vadd.f32 %v1705, %v2137
    %v2266 = vadd.f32 %v1706, %v2138
    %v2267 = vadd.f32 %v1707, %v2139
    %v2268 = vadd.f32 %v1708, %v2140
    %v2269 = vadd.f32 %v1709, %v2141
    %v2270 = vadd.f32 %v1710, %v2142
    %v2271 = vadd.f32 %v1711, %v2143
    %v2272 = vadd.f32 %v1712, %v2144
    %v2273 = vadd.f32 %v1713, %v2145
    %v2274 = vadd.f32 %v1714, %v2146
    %v2275 = vadd.f32 %v1715, %v2147
    %v2276 = vadd.f32 %v1716, %v2148
    %v2277 = vadd.f32 %v1717, %v2149
    %v2278 = vadd.f32 %v1718, %v2150
    %v2279 = vadd.f32 %v1719, %v2151
    %v2280 = vadd.f32 %v1720, %v2152
    %v2281 = vadd.f32 %v1721, %v2153
    %v2282 = vadd.f32 %v1722, %v2154
    %v2283 = vadd.f32 %v1723, %v2155
    %v2284 = vadd.f32 %v1724, %v2156
    %v2285 = vadd.f32 %v1725, %v2157
    %v2286 = vadd.f32 %v1726, %v2158
    %v2287 = vadd.f32 %v1727, %v2159
    %v2288 = vadd.f32 %v1728, %v2160
    %v2289 = vadd.f32 %v1729, %v2161
    %v2290 = vadd.f32 %v1730, %v2162
    %v2291 = vadd.f32 %v1731, %v2163
    %v2292 = vadd.f32 %v1732, %v2164
    %v2293 = vadd.f32 %v1733, %v2165
    %v2294 = vadd.f32 %v1734, %v2166
    %v2295 = vadd.f32 %v1735, %v2167
    %v2296 = vadd.f32 %v1736, %v2168
    %v2297 = vadd.f32 %v1737, %v2169
    %v2298 = vadd.f32 %v1738, %v2170
    %v2299 = vadd.f32 %v1739, %v2171
    %v2300 = vadd.f32 %v1740, %v2172
    %v2301 = vadd.f32 %v1741, %v2173
    %v2302 = vadd.f32 %v1742, %v2174
    %v2303 = vadd.f32 %v1743, %v2175
    %v2304 = vadd.f32 %v1744, %v2176
    %v2305 = vadd.f32 %v1745, %v2177
    %v2306 = vadd.f32 %v1746, %v2178
    %v2307 = vadd.f32 %v1747, %v2179
    %v2308 = vadd.f32 %v1748, %v2180
    %v2309 = vadd.f32 %v1749, %v2181
    %v2310 = vadd.f32 %v1750, %v2182
    %v2311 = vadd.f32 %v1751, %v2183
    %v2312 = vadd.f32 %v1752, %v2184
    %v2313 = vadd.f32 %v1753, %v2185
    %v2314 = vadd.f32 %v1754, %v2186
    %v2315 = vadd.f32 %v1755, %v2187
    %v2316 = vadd.f32 %v1756, %v2188
    %v2317 = vadd.f32 %v1757, %v2189
    %v2318 = vadd.f32 %v1758, %v2190
    %v2319 = vadd.f32 %v1759, %v2191
    %v2320 = vadd.f32 %v1760, %v2192
    %v2321 = vadd.f32 %v1761, %v2193
    %v2322 = vadd.f32 %v1762, %v2194
    %v2323 = vadd.f32 %v1763, %v2195
    %v2324 = vadd.f32 %v1764, %v2196
    %v2325 = vadd.f32 %v1765, %v2197
    %v2326 = vadd.f32 %v1766, %v2198
    %v2327 = vadd.f32 %v1767, %v2199
    %v2328 = vadd.f32 %v1768, %v2200
    %v2329 = vadd.f32 %v1769, %v2201
    %v2330 = vadd.f32 %v1770, %v2202
    %v2331 = vadd.f32 %v1771, %v2203
    %v2332 = vadd.f32 %v1772, %v2204
    %v2333 = vadd.f32 %v1773, %v2205
    %v2334 = vadd.f32 %v1774, %v2206
    %v2335 = vadd.f32 %v1775, %v2207
    %v2336 = vadd.f32 %v1776, %v2208
    %v2337 = vadd.f32 %v1777, %v2209
    %v2338 = vadd.f32 %v1778, %v2210
    %v2339 = vadd.f32 %v1779, %v2211
    %v2340 = vadd.f32 %v1780, %v2212
    %v2341 = vadd.f32 %v1781, %v2213
    %v2342 = vadd.f32 %v1782, %v2214
    %v2343 = vadd.f32 %v1783, %v2215
    %v2344 = vadd.f32 %v1784, %v2216
    %v2345 = vadd.f32 %v1785, %v2217
    %v2346 = vadd.f32 %v1786, %v2218
    %v2347 = vadd.f32 %v1787, %v2219
    %v2348 = vadd.f32 %v1788, %v2220
    %v2349 = vadd.f32 %v1789, %v2221
    %v2350 = vadd.f32 %v1790, %v2222
    %v2351 = vadd.f32 %v1791, %v2223
    %v2352 = vadd.f32 %v1792, %v2224
    %v2353 = vadd.f32 %v1793, %v2225
    %v2354 = vadd.f32 %v1794, %v2226
    %v2355 = vadd.f32 %v1795, %v2227
    %v2356 = vadd.f32 %v1796, %v2228
    %2357 = vset.pattern.permute.xlu0 4
    %2358 = vperm.xlu0 %2357, %v92
    %v2359 = vpop.permute.xlu0 %2358
    %2360 = vset.pattern.permute.xlu0 4
    %2361 = vperm.xlu0 %2360, %v93
    %v2362 = vpop.permute.xlu0 %2361
    %2363 = vset.pattern.permute.xlu0 4
    %2364 = vperm.xlu0 %2363, %v94
    %v2365 = vpop.permute.xlu0 %2364
    %2366 = vset.pattern.permute.xlu0 4
    %2367 = vperm.xlu0 %2366, %v95
    %v2368 = vpop.permute.xlu0 %2367
    %2369 = vset.pattern.permute.xlu0 4
    %2370 = vperm.xlu0 %2369, %v96
    %v2371 = vpop.permute.xlu0 %2370
    %2372 = vset.pattern.permute.xlu0 4
    %2373 = vperm.xlu0 %2372, %v97
    %v2374 = vpop.permute.xlu0 %2373
    %2375 = vset.pattern.permute.xlu0 4
    %2376 = vperm.xlu0 %2375, %v98
    %v2377 = vpop.permute.xlu0 %2376
    %2378 = vset.pattern.permute.xlu0 4
    %2379 = vperm.xlu0 %2378, %v99
    %v2380 = vpop.permute.xlu0 %2379
    %2381 = vset.pattern.permute.xlu0 4
    %2382 = vperm.xlu0 %2381, %v100
    %v2383 = vpop.permute.xlu0 %2382
    %2384 = vset.pattern.permute.xlu0 4
    %2385 = vperm.xlu0 %2384, %v101
    %v2386 = vpop.permute.xlu0 %2385
    %2387 = vset.pattern.permute.xlu0 4
    %2388 = vperm.xlu0 %2387, %v102
    %v2389 = vpop.permute.xlu0 %2388
    %2390 = vset.pattern.permute.xlu0 4
    %2391 = vperm.xlu0 %2390, %v103
    %v2392 = vpop.permute.xlu0 %2391
    %2393 = vset.pattern.permute.xlu0 4
    %2394 = vperm.xlu0 %2393, %v104
    %v2395 = vpop.permute.xlu0 %2394
    %2396 = vset.pattern.permute.xlu0 4
    %2397 = vperm.xlu0 %2396, %v105
    %v2398 = vpop.permute.xlu0 %2397
    %2399 = vset.pattern.permute.xlu0 4
    %2400 = vperm.xlu0 %2399, %v106
    %v2401 = vpop.permute.xlu0 %2400
    %2402 = vset.pattern.permute.xlu0 4
    %2403 = vperm.xlu0 %2402, %v107
    %v2404 = vpop.permute.xlu0 %2403
    %vm2405 = vcmp.eq.s32.totalorder %v2359, %v109
    %vm2406 = vcmp.eq.s32.totalorder %v2359, %v110
    %vm2407 = vcmp.eq.s32.totalorder %v2359, %v111
    %vm2408 = vcmp.eq.s32.totalorder %v2359, %v112
    %vm2409 = vcmp.eq.s32.totalorder %v2359, %v113
    %vm2410 = vcmp.eq.s32.totalorder %v2359, %v114
    %vm2411 = vcmp.eq.s32.totalorder %v2359, %v115
    %vm2412 = vcmp.eq.s32.totalorder %v2359, %v116
    %vm2413 = vcmp.eq.s32.totalorder %v2362, %v109
    %vm2414 = vcmp.eq.s32.totalorder %v2362, %v110
    %vm2415 = vcmp.eq.s32.totalorder %v2362, %v111
    %vm2416 = vcmp.eq.s32.totalorder %v2362, %v112
    %vm2417 = vcmp.eq.s32.totalorder %v2362, %v113
    %vm2418 = vcmp.eq.s32.totalorder %v2362, %v114
    %vm2419 = vcmp.eq.s32.totalorder %v2362, %v115
    %vm2420 = vcmp.eq.s32.totalorder %v2362, %v116
    %vm2421 = vcmp.eq.s32.totalorder %v2365, %v109
    %vm2422 = vcmp.eq.s32.totalorder %v2365, %v110
    %vm2423 = vcmp.eq.s32.totalorder %v2365, %v111
    %vm2424 = vcmp.eq.s32.totalorder %v2365, %v112
    %vm2425 = vcmp.eq.s32.totalorder %v2365, %v113
    %vm2426 = vcmp.eq.s32.totalorder %v2365, %v114
    %vm2427 = vcmp.eq.s32.totalorder %v2365, %v115
    %vm2428 = vcmp.eq.s32.totalorder %v2365, %v116
    %vm2429 = vcmp.eq.s32.totalorder %v2368, %v109
    %vm2430 = vcmp.eq.s32.totalorder %v2368, %v110
    %vm2431 = vcmp.eq.s32.totalorder %v2368, %v111
    %vm2432 = vcmp.eq.s32.totalorder %v2368, %v112
    %vm2433 = vcmp.eq.s32.totalorder %v2368, %v113
    %vm2434 = vcmp.eq.s32.totalorder %v2368, %v114
    %vm2435 = vcmp.eq.s32.totalorder %v2368, %v115
    %vm2436 = vcmp.eq.s32.totalorder %v2368, %v116
    %vm2437 = vcmp.eq.s32.totalorder %v2371, %v109
    %vm2438 = vcmp.eq.s32.totalorder %v2371, %v110
    %vm2439 = vcmp.eq.s32.totalorder %v2371, %v111
    %vm2440 = vcmp.eq.s32.totalorder %v2371, %v112
    %vm2441 = vcmp.eq.s32.totalorder %v2371, %v113
    %vm2442 = vcmp.eq.s32.totalorder %v2371, %v114
    %vm2443 = vcmp.eq.s32.totalorder %v2371, %v115
    %vm2444 = vcmp.eq.s32.totalorder %v2371, %v116
    %vm2445 = vcmp.eq.s32.totalorder %v2374, %v109
    %vm2446 = vcmp.eq.s32.totalorder %v2374, %v110
    %vm2447 = vcmp.eq.s32.totalorder %v2374, %v111
    %vm2448 = vcmp.eq.s32.totalorder %v2374, %v112
    %vm2449 = vcmp.eq.s32.totalorder %v2374, %v113
    %vm2450 = vcmp.eq.s32.totalorder %v2374, %v114
    %vm2451 = vcmp.eq.s32.totalorder %v2374, %v115
    %vm2452 = vcmp.eq.s32.totalorder %v2374, %v116
    %vm2453 = vcmp.eq.s32.totalorder %v2377, %v109
    %vm2454 = vcmp.eq.s32.totalorder %v2377, %v110
    %vm2455 = vcmp.eq.s32.totalorder %v2377, %v111
    %vm2456 = vcmp.eq.s32.totalorder %v2377, %v112
    %vm2457 = vcmp.eq.s32.totalorder %v2377, %v113
    %vm2458 = vcmp.eq.s32.totalorder %v2377, %v114
    %vm2459 = vcmp.eq.s32.totalorder %v2377, %v115
    %vm2460 = vcmp.eq.s32.totalorder %v2377, %v116
    %vm2461 = vcmp.eq.s32.totalorder %v2380, %v109
    %vm2462 = vcmp.eq.s32.totalorder %v2380, %v110
    %vm2463 = vcmp.eq.s32.totalorder %v2380, %v111
    %vm2464 = vcmp.eq.s32.totalorder %v2380, %v112
    %vm2465 = vcmp.eq.s32.totalorder %v2380, %v113
    %vm2466 = vcmp.eq.s32.totalorder %v2380, %v114
    %vm2467 = vcmp.eq.s32.totalorder %v2380, %v115
    %vm2468 = vcmp.eq.s32.totalorder %v2380, %v116
    %vm2469 = vcmp.eq.s32.totalorder %v2383, %v109
    %vm2470 = vcmp.eq.s32.totalorder %v2383, %v110
    %vm2471 = vcmp.eq.s32.totalorder %v2383, %v111
    %vm2472 = vcmp.eq.s32.totalorder %v2383, %v112
    %vm2473 = vcmp.eq.s32.totalorder %v2383, %v113
    %vm2474 = vcmp.eq.s32.totalorder %v2383, %v114
    %vm2475 = vcmp.eq.s32.totalorder %v2383, %v115
    %vm2476 = vcmp.eq.s32.totalorder %v2383, %v116
    %vm2477 = vcmp.eq.s32.totalorder %v2386, %v109
    %vm2478 = vcmp.eq.s32.totalorder %v2386, %v110
    %vm2479 = vcmp.eq.s32.totalorder %v2386, %v111
    %vm2480 = vcmp.eq.s32.totalorder %v2386, %v112
    %vm2481 = vcmp.eq.s32.totalorder %v2386, %v113
    %vm2482 = vcmp.eq.s32.totalorder %v2386, %v114
    %vm2483 = vcmp.eq.s32.totalorder %v2386, %v115
    %vm2484 = vcmp.eq.s32.totalorder %v2386, %v116
    %vm2485 = vcmp.eq.s32.totalorder %v2389, %v109
    %vm2486 = vcmp.eq.s32.totalorder %v2389, %v110
    %vm2487 = vcmp.eq.s32.totalorder %v2389, %v111
    %vm2488 = vcmp.eq.s32.totalorder %v2389, %v112
    %vm2489 = vcmp.eq.s32.totalorder %v2389, %v113
    %vm2490 = vcmp.eq.s32.totalorder %v2389, %v114
    %vm2491 = vcmp.eq.s32.totalorder %v2389, %v115
    %vm2492 = vcmp.eq.s32.totalorder %v2389, %v116
    %vm2493 = vcmp.eq.s32.totalorder %v2392, %v109
    %vm2494 = vcmp.eq.s32.totalorder %v2392, %v110
    %vm2495 = vcmp.eq.s32.totalorder %v2392, %v111
    %vm2496 = vcmp.eq.s32.totalorder %v2392, %v112
    %vm2497 = vcmp.eq.s32.totalorder %v2392, %v113
    %vm2498 = vcmp.eq.s32.totalorder %v2392, %v114
    %vm2499 = vcmp.eq.s32.totalorder %v2392, %v115
    %vm2500 = vcmp.eq.s32.totalorder %v2392, %v116
    %vm2501 = vcmp.eq.s32.totalorder %v2395, %v109
    %vm2502 = vcmp.eq.s32.totalorder %v2395, %v110
    %vm2503 = vcmp.eq.s32.totalorder %v2395, %v111
    %vm2504 = vcmp.eq.s32.totalorder %v2395, %v112
    %vm2505 = vcmp.eq.s32.totalorder %v2395, %v113
    %vm2506 = vcmp.eq.s32.totalorder %v2395, %v114
    %vm2507 = vcmp.eq.s32.totalorder %v2395, %v115
    %vm2508 = vcmp.eq.s32.totalorder %v2395, %v116
    %vm2509 = vcmp.eq.s32.totalorder %v2398, %v109
    %vm2510 = vcmp.eq.s32.totalorder %v2398, %v110
    %vm2511 = vcmp.eq.s32.totalorder %v2398, %v111
    %vm2512 = vcmp.eq.s32.totalorder %v2398, %v112
    %vm2513 = vcmp.eq.s32.totalorder %v2398, %v113
    %vm2514 = vcmp.eq.s32.totalorder %v2398, %v114
    %vm2515 = vcmp.eq.s32.totalorder %v2398, %v115
    %vm2516 = vcmp.eq.s32.totalorder %v2398, %v116
    %vm2517 = vcmp.eq.s32.totalorder %v2401, %v109
    %vm2518 = vcmp.eq.s32.totalorder %v2401, %v110
    %vm2519 = vcmp.eq.s32.totalorder %v2401, %v111
    %vm2520 = vcmp.eq.s32.totalorder %v2401, %v112
    %vm2521 = vcmp.eq.s32.totalorder %v2401, %v113
    %vm2522 = vcmp.eq.s32.totalorder %v2401, %v114
    %vm2523 = vcmp.eq.s32.totalorder %v2401, %v115
    %vm2524 = vcmp.eq.s32.totalorder %v2401, %v116
    %vm2525 = vcmp.eq.s32.totalorder %v2404, %v109
    %vm2526 = vcmp.eq.s32.totalorder %v2404, %v110
    %vm2527 = vcmp.eq.s32.totalorder %v2404, %v111
    %vm2528 = vcmp.eq.s32.totalorder %v2404, %v112
    %vm2529 = vcmp.eq.s32.totalorder %v2404, %v113
    %vm2530 = vcmp.eq.s32.totalorder %v2404, %v114
    %vm2531 = vcmp.eq.s32.totalorder %v2404, %v115
    %vm2532 = vcmp.eq.s32.totalorder %v2404, %v116
    %v2533 = vsel %vm2405, 1, 0
    %v2534 = vsel %vm2406, 1, 0
    %v2535 = vsel %vm2407, 1, 0
    %v2536 = vsel %vm2408, 1, 0
    %v2537 = vsel %vm2409, 1, 0
    %v2538 = vsel %vm2410, 1, 0
    %v2539 = vsel %vm2411, 1, 0
    %v2540 = vsel %vm2412, 1, 0
    %v2541 = vsel %vm2413, 1, 0
    %v2542 = vsel %vm2414, 1, 0
    %v2543 = vsel %vm2415, 1, 0
    %v2544 = vsel %vm2416, 1, 0
    %v2545 = vsel %vm2417, 1, 0
    %v2546 = vsel %vm2418, 1, 0
    %v2547 = vsel %vm2419, 1, 0
    %v2548 = vsel %vm2420, 1, 0
    %v2549 = vsel %vm2421, 1, 0
    %v2550 = vsel %vm2422, 1, 0
    %v2551 = vsel %vm2423, 1, 0
    %v2552 = vsel %vm2424, 1, 0
    %v2553 = vsel %vm2425, 1, 0
    %v2554 = vsel %vm2426, 1, 0
    %v2555 = vsel %vm2427, 1, 0
    %v2556 = vsel %vm2428, 1, 0
    %v2557 = vsel %vm2429, 1, 0
    %v2558 = vsel %vm2430, 1, 0
    %v2559 = vsel %vm2431, 1, 0
    %v2560 = vsel %vm2432, 1, 0
    %v2561 = vsel %vm2433, 1, 0
    %v2562 = vsel %vm2434, 1, 0
    %v2563 = vsel %vm2435, 1, 0
    %v2564 = vsel %vm2436, 1, 0
    %v2565 = vsel %vm2437, 1, 0
    %v2566 = vsel %vm2438, 1, 0
    %v2567 = vsel %vm2439, 1, 0
    %v2568 = vsel %vm2440, 1, 0
    %v2569 = vsel %vm2441, 1, 0
    %v2570 = vsel %vm2442, 1, 0
    %v2571 = vsel %vm2443, 1, 0
    %v2572 = vsel %vm2444, 1, 0
    %v2573 = vsel %vm2445, 1, 0
    %v2574 = vsel %vm2446, 1, 0
    %v2575 = vsel %vm2447, 1, 0
    %v2576 = vsel %vm2448, 1, 0
    %v2577 = vsel %vm2449, 1, 0
    %v2578 = vsel %vm2450, 1, 0
    %v2579 = vsel %vm2451, 1, 0
    %v2580 = vsel %vm2452, 1, 0
    %v2581 = vsel %vm2453, 1, 0
    %v2582 = vsel %vm2454, 1, 0
    %v2583 = vsel %vm2455, 1, 0
    %v2584 = vsel %vm2456, 1, 0
    %v2585 = vsel %vm2457, 1, 0
    %v2586 = vsel %vm2458, 1, 0
    %v2587 = vsel %vm2459, 1, 0
    %v2588 = vsel %vm2460, 1, 0
    %v2589 = vsel %vm2461, 1, 0
    %v2590 = vsel %vm2462, 1, 0
    %v2591 = vsel %vm2463, 1, 0
    %v2592 = vsel %vm2464, 1, 0
    %v2593 = vsel %vm2465, 1, 0
    %v2594 = vsel %vm2466, 1, 0
    %v2595 = vsel %vm2467, 1, 0
    %v2596 = vsel %vm2468, 1, 0
    %v2597 = vsel %vm2469, 1, 0
    %v2598 = vsel %vm2470, 1, 0
    %v2599 = vsel %vm2471, 1, 0
    %v2600 = vsel %vm2472, 1, 0
    %v2601 = vsel %vm2473, 1, 0
    %v2602 = vsel %vm2474, 1, 0
    %v2603 = vsel %vm2475, 1, 0
    %v2604 = vsel %vm2476, 1, 0
    %v2605 = vsel %vm2477, 1, 0
    %v2606 = vsel %vm2478, 1, 0
    %v2607 = vsel %vm2479, 1, 0
    %v2608 = vsel %vm2480, 1, 0
    %v2609 = vsel %vm2481, 1, 0
    %v2610 = vsel %vm2482, 1, 0
    %v2611 = vsel %vm2483, 1, 0
    %v2612 = vsel %vm2484, 1, 0
    %v2613 = vsel %vm2485, 1, 0
    %v2614 = vsel %vm2486, 1, 0
    %v2615 = vsel %vm2487, 1, 0
    %v2616 = vsel %vm2488, 1, 0
    %v2617 = vsel %vm2489, 1, 0
    %v2618 = vsel %vm2490, 1, 0
    %v2619 = vsel %vm2491, 1, 0
    %v2620 = vsel %vm2492, 1, 0
    %v2621 = vsel %vm2493, 1, 0
    %v2622 = vsel %vm2494, 1, 0
    %v2623 = vsel %vm2495, 1, 0
    %v2624 = vsel %vm2496, 1, 0
    %v2625 = vsel %vm2497, 1, 0
    %v2626 = vsel %vm2498, 1, 0
    %v2627 = vsel %vm2499, 1, 0
    %v2628 = vsel %vm2500, 1, 0
    %v2629 = vsel %vm2501, 1, 0
    %v2630 = vsel %vm2502, 1, 0
    %v2631 = vsel %vm2503, 1, 0
    %v2632 = vsel %vm2504, 1, 0
    %v2633 = vsel %vm2505, 1, 0
    %v2634 = vsel %vm2506, 1, 0
    %v2635 = vsel %vm2507, 1, 0
    %v2636 = vsel %vm2508, 1, 0
    %v2637 = vsel %vm2509, 1, 0
    %v2638 = vsel %vm2510, 1, 0
    %v2639 = vsel %vm2511, 1, 0
    %v2640 = vsel %vm2512, 1, 0
    %v2641 = vsel %vm2513, 1, 0
    %v2642 = vsel %vm2514, 1, 0
    %v2643 = vsel %vm2515, 1, 0
    %v2644 = vsel %vm2516, 1, 0
    %v2645 = vsel %vm2517, 1, 0
    %v2646 = vsel %vm2518, 1, 0
    %v2647 = vsel %vm2519, 1, 0
    %v2648 = vsel %vm2520, 1, 0
    %v2649 = vsel %vm2521, 1, 0
    %v2650 = vsel %vm2522, 1, 0
    %v2651 = vsel %vm2523, 1, 0
    %v2652 = vsel %vm2524, 1, 0
    %v2653 = vsel %vm2525, 1, 0
    %v2654 = vsel %vm2526, 1, 0
    %v2655 = vsel %vm2527, 1, 0
    %v2656 = vsel %vm2528, 1, 0
    %v2657 = vsel %vm2529, 1, 0
    %v2658 = vsel %vm2530, 1, 0
    %v2659 = vsel %vm2531, 1, 0
    %v2660 = vsel %vm2532, 1, 0
    %v2661 = vcvt.s32.f32 %v2533
    %v2662 = vcvt.s32.f32 %v2534
    %v2663 = vcvt.s32.f32 %v2535
    %v2664 = vcvt.s32.f32 %v2536
    %v2665 = vcvt.s32.f32 %v2537
    %v2666 = vcvt.s32.f32 %v2538
    %v2667 = vcvt.s32.f32 %v2539
    %v2668 = vcvt.s32.f32 %v2540
    %v2669 = vcvt.s32.f32 %v2541
    %v2670 = vcvt.s32.f32 %v2542
    %v2671 = vcvt.s32.f32 %v2543
    %v2672 = vcvt.s32.f32 %v2544
    %v2673 = vcvt.s32.f32 %v2545
    %v2674 = vcvt.s32.f32 %v2546
    %v2675 = vcvt.s32.f32 %v2547
    %v2676 = vcvt.s32.f32 %v2548
    %v2677 = vcvt.s32.f32 %v2549
    %v2678 = vcvt.s32.f32 %v2550
    %v2679 = vcvt.s32.f32 %v2551
    %v2680 = vcvt.s32.f32 %v2552
    %v2681 = vcvt.s32.f32 %v2553
    %v2682 = vcvt.s32.f32 %v2554
    %v2683 = vcvt.s32.f32 %v2555
    %v2684 = vcvt.s32.f32 %v2556
    %v2685 = vcvt.s32.f32 %v2557
    %v2686 = vcvt.s32.f32 %v2558
    %v2687 = vcvt.s32.f32 %v2559
    %v2688 = vcvt.s32.f32 %v2560
    %v2689 = vcvt.s32.f32 %v2561
    %v2690 = vcvt.s32.f32 %v2562
    %v2691 = vcvt.s32.f32 %v2563
    %v2692 = vcvt.s32.f32 %v2564
    %v2693 = vcvt.s32.f32 %v2565
    %v2694 = vcvt.s32.f32 %v2566
    %v2695 = vcvt.s32.f32 %v2567
    %v2696 = vcvt.s32.f32 %v2568
    %v2697 = vcvt.s32.f32 %v2569
    %v2698 = vcvt.s32.f32 %v2570
    %v2699 = vcvt.s32.f32 %v2571
    %v2700 = vcvt.s32.f32 %v2572
    %v2701 = vcvt.s32.f32 %v2573
    %v2702 = vcvt.s32.f32 %v2574
    %v2703 = vcvt.s32.f32 %v2575
    %v2704 = vcvt.s32.f32 %v2576
    %v2705 = vcvt.s32.f32 %v2577
    %v2706 = vcvt.s32.f32 %v2578
    %v2707 = vcvt.s32.f32 %v2579
    %v2708 = vcvt.s32.f32 %v2580
    %v2709 = vcvt.s32.f32 %v2581
    %v2710 = vcvt.s32.f32 %v2582
    %v2711 = vcvt.s32.f32 %v2583
    %v2712 = vcvt.s32.f32 %v2584
    %v2713 = vcvt.s32.f32 %v2585
    %v2714 = vcvt.s32.f32 %v2586
    %v2715 = vcvt.s32.f32 %v2587
    %v2716 = vcvt.s32.f32 %v2588
    %v2717 = vcvt.s32.f32 %v2589
    %v2718 = vcvt.s32.f32 %v2590
    %v2719 = vcvt.s32.f32 %v2591
    %v2720 = vcvt.s32.f32 %v2592
    %v2721 = vcvt.s32.f32 %v2593
    %v2722 = vcvt.s32.f32 %v2594
    %v2723 = vcvt.s32.f32 %v2595
    %v2724 = vcvt.s32.f32 %v2596
    %v2725 = vcvt.s32.f32 %v2597
    %v2726 = vcvt.s32.f32 %v2598
    %v2727 = vcvt.s32.f32 %v2599
    %v2728 = vcvt.s32.f32 %v2600
    %v2729 = vcvt.s32.f32 %v2601
    %v2730 = vcvt.s32.f32 %v2602
    %v2731 = vcvt.s32.f32 %v2603
    %v2732 = vcvt.s32.f32 %v2604
    %v2733 = vcvt.s32.f32 %v2605
    %v2734 = vcvt.s32.f32 %v2606
    %v2735 = vcvt.s32.f32 %v2607
    %v2736 = vcvt.s32.f32 %v2608
    %v2737 = vcvt.s32.f32 %v2609
    %v2738 = vcvt.s32.f32 %v2610
    %v2739 = vcvt.s32.f32 %v2611
    %v2740 = vcvt.s32.f32 %v2612
    %v2741 = vcvt.s32.f32 %v2613
    %v2742 = vcvt.s32.f32 %v2614
    %v2743 = vcvt.s32.f32 %v2615
    %v2744 = vcvt.s32.f32 %v2616
    %v2745 = vcvt.s32.f32 %v2617
    %v2746 = vcvt.s32.f32 %v2618
    %v2747 = vcvt.s32.f32 %v2619
    %v2748 = vcvt.s32.f32 %v2620
    %v2749 = vcvt.s32.f32 %v2621
    %v2750 = vcvt.s32.f32 %v2622
    %v2751 = vcvt.s32.f32 %v2623
    %v2752 = vcvt.s32.f32 %v2624
    %v2753 = vcvt.s32.f32 %v2625
    %v2754 = vcvt.s32.f32 %v2626
    %v2755 = vcvt.s32.f32 %v2627
    %v2756 = vcvt.s32.f32 %v2628
    %v2757 = vcvt.s32.f32 %v2629
    %v2758 = vcvt.s32.f32 %v2630
    %v2759 = vcvt.s32.f32 %v2631
    %v2760 = vcvt.s32.f32 %v2632
    %v2761 = vcvt.s32.f32 %v2633
    %v2762 = vcvt.s32.f32 %v2634
    %v2763 = vcvt.s32.f32 %v2635
    %v2764 = vcvt.s32.f32 %v2636
    %v2765 = vcvt.s32.f32 %v2637
    %v2766 = vcvt.s32.f32 %v2638
    %v2767 = vcvt.s32.f32 %v2639
    %v2768 = vcvt.s32.f32 %v2640
    %v2769 = vcvt.s32.f32 %v2641
    %v2770 = vcvt.s32.f32 %v2642
    %v2771 = vcvt.s32.f32 %v2643
    %v2772 = vcvt.s32.f32 %v2644
    %v2773 = vcvt.s32.f32 %v2645
    %v2774 = vcvt.s32.f32 %v2646
    %v2775 = vcvt.s32.f32 %v2647
    %v2776 = vcvt.s32.f32 %v2648
    %v2777 = vcvt.s32.f32 %v2649
    %v2778 = vcvt.s32.f32 %v2650
    %v2779 = vcvt.s32.f32 %v2651
    %v2780 = vcvt.s32.f32 %v2652
    %v2781 = vcvt.s32.f32 %v2653
    %v2782 = vcvt.s32.f32 %v2654
    %v2783 = vcvt.s32.f32 %v2655
    %v2784 = vcvt.s32.f32 %v2656
    %v2785 = vcvt.s32.f32 %v2657
    %v2786 = vcvt.s32.f32 %v2658
    %v2787 = vcvt.s32.f32 %v2659
    %v2788 = vcvt.s32.f32 %v2660
    %v2789 = vadd.f32 %v2229, %v2661
    %v2790 = vadd.f32 %v2230, %v2662
    %v2791 = vadd.f32 %v2231, %v2663
    %v2792 = vadd.f32 %v2232, %v2664
    %v2793 = vadd.f32 %v2233, %v2665
    %v2794 = vadd.f32 %v2234, %v2666
    %v2795 = vadd.f32 %v2235, %v2667
    %v2796 = vadd.f32 %v2236, %v2668
    %v2797 = vadd.f32 %v2237, %v2669
    %v2798 = vadd.f32 %v2238, %v2670
    %v2799 = vadd.f32 %v2239, %v2671
    %v2800 = vadd.f32 %v2240, %v2672
    %v2801 = vadd.f32 %v2241, %v2673
    %v2802 = vadd.f32 %v2242, %v2674
    %v2803 = vadd.f32 %v2243, %v2675
    %v2804 = vadd.f32 %v2244, %v2676
    %v2805 = vadd.f32 %v2245, %v2677
    %v2806 = vadd.f32 %v2246, %v2678
    %v2807 = vadd.f32 %v2247, %v2679
    %v2808 = vadd.f32 %v2248, %v2680
    %v2809 = vadd.f32 %v2249, %v2681
    %v2810 = vadd.f32 %v2250, %v2682
    %v2811 = vadd.f32 %v2251, %v2683
    %v2812 = vadd.f32 %v2252, %v2684
    %v2813 = vadd.f32 %v2253, %v2685
    %v2814 = vadd.f32 %v2254, %v2686
    %v2815 = vadd.f32 %v2255, %v2687
    %v2816 = vadd.f32 %v2256, %v2688
    %v2817 = vadd.f32 %v2257, %v2689
    %v2818 = vadd.f32 %v2258, %v2690
    %v2819 = vadd.f32 %v2259, %v2691
    %v2820 = vadd.f32 %v2260, %v2692
    %v2821 = vadd.f32 %v2261, %v2693
    %v2822 = vadd.f32 %v2262, %v2694
    %v2823 = vadd.f32 %v2263, %v2695
    %v2824 = vadd.f32 %v2264, %v2696
    %v2825 = vadd.f32 %v2265, %v2697
    %v2826 = vadd.f32 %v2266, %v2698
    %v2827 = vadd.f32 %v2267, %v2699
    %v2828 = vadd.f32 %v2268, %v2700
    %v2829 = vadd.f32 %v2269, %v2701
    %v2830 = vadd.f32 %v2270, %v2702
    %v2831 = vadd.f32 %v2271, %v2703
    %v2832 = vadd.f32 %v2272, %v2704
    %v2833 = vadd.f32 %v2273, %v2705
    %v2834 = vadd.f32 %v2274, %v2706
    %v2835 = vadd.f32 %v2275, %v2707
    %v2836 = vadd.f32 %v2276, %v2708
    %v2837 = vadd.f32 %v2277, %v2709
    %v2838 = vadd.f32 %v2278, %v2710
    %v2839 = vadd.f32 %v2279, %v2711
    %v2840 = vadd.f32 %v2280, %v2712
    %v2841 = vadd.f32 %v2281, %v2713
    %v2842 = vadd.f32 %v2282, %v2714
    %v2843 = vadd.f32 %v2283, %v2715
    %v2844 = vadd.f32 %v2284, %v2716
    %v2845 = vadd.f32 %v2285, %v2717
    %v2846 = vadd.f32 %v2286, %v2718
    %v2847 = vadd.f32 %v2287, %v2719
    %v2848 = vadd.f32 %v2288, %v2720
    %v2849 = vadd.f32 %v2289, %v2721
    %v2850 = vadd.f32 %v2290, %v2722
    %v2851 = vadd.f32 %v2291, %v2723
    %v2852 = vadd.f32 %v2292, %v2724
    %v2853 = vadd.f32 %v2293, %v2725
    %v2854 = vadd.f32 %v2294, %v2726
    %v2855 = vadd.f32 %v2295, %v2727
    %v2856 = vadd.f32 %v2296, %v2728
    %v2857 = vadd.f32 %v2297, %v2729
    %v2858 = vadd.f32 %v2298, %v2730
    %v2859 = vadd.f32 %v2299, %v2731
    %v2860 = vadd.f32 %v2300, %v2732
    %v2861 = vadd.f32 %v2301, %v2733
    %v2862 = vadd.f32 %v2302, %v2734
    %v2863 = vadd.f32 %v2303, %v2735
    %v2864 = vadd.f32 %v2304, %v2736
    %v2865 = vadd.f32 %v2305, %v2737
    %v2866 = vadd.f32 %v2306, %v2738
    %v2867 = vadd.f32 %v2307, %v2739
    %v2868 = vadd.f32 %v2308, %v2740
    %v2869 = vadd.f32 %v2309, %v2741
    %v2870 = vadd.f32 %v2310, %v2742
    %v2871 = vadd.f32 %v2311, %v2743
    %v2872 = vadd.f32 %v2312, %v2744
    %v2873 = vadd.f32 %v2313, %v2745
    %v2874 = vadd.f32 %v2314, %v2746
    %v2875 = vadd.f32 %v2315, %v2747
    %v2876 = vadd.f32 %v2316, %v2748
    %v2877 = vadd.f32 %v2317, %v2749
    %v2878 = vadd.f32 %v2318, %v2750
    %v2879 = vadd.f32 %v2319, %v2751
    %v2880 = vadd.f32 %v2320, %v2752
    %v2881 = vadd.f32 %v2321, %v2753
    %v2882 = vadd.f32 %v2322, %v2754
    %v2883 = vadd.f32 %v2323, %v2755
    %v2884 = vadd.f32 %v2324, %v2756
    %v2885 = vadd.f32 %v2325, %v2757
    %v2886 = vadd.f32 %v2326, %v2758
    %v2887 = vadd.f32 %v2327, %v2759
    %v2888 = vadd.f32 %v2328, %v2760
    %v2889 = vadd.f32 %v2329, %v2761
    %v2890 = vadd.f32 %v2330, %v2762
    %v2891 = vadd.f32 %v2331, %v2763
    %v2892 = vadd.f32 %v2332, %v2764
    %v2893 = vadd.f32 %v2333, %v2765
    %v2894 = vadd.f32 %v2334, %v2766
    %v2895 = vadd.f32 %v2335, %v2767
    %v2896 = vadd.f32 %v2336, %v2768
    %v2897 = vadd.f32 %v2337, %v2769
    %v2898 = vadd.f32 %v2338, %v2770
    %v2899 = vadd.f32 %v2339, %v2771
    %v2900 = vadd.f32 %v2340, %v2772
    %v2901 = vadd.f32 %v2341, %v2773
    %v2902 = vadd.f32 %v2342, %v2774
    %v2903 = vadd.f32 %v2343, %v2775
    %v2904 = vadd.f32 %v2344, %v2776
    %v2905 = vadd.f32 %v2345, %v2777
    %v2906 = vadd.f32 %v2346, %v2778
    %v2907 = vadd.f32 %v2347, %v2779
    %v2908 = vadd.f32 %v2348, %v2780
    %v2909 = vadd.f32 %v2349, %v2781
    %v2910 = vadd.f32 %v2350, %v2782
    %v2911 = vadd.f32 %v2351, %v2783
    %v2912 = vadd.f32 %v2352, %v2784
    %v2913 = vadd.f32 %v2353, %v2785
    %v2914 = vadd.f32 %v2354, %v2786
    %v2915 = vadd.f32 %v2355, %v2787
    %v2916 = vadd.f32 %v2356, %v2788
    %2917 = vset.pattern.permute.xlu0 5
    %2918 = vperm.xlu0 %2917, %v92
    %v2919 = vpop.permute.xlu0 %2918
    %2920 = vset.pattern.permute.xlu0 5
    %2921 = vperm.xlu0 %2920, %v93
    %v2922 = vpop.permute.xlu0 %2921
    %2923 = vset.pattern.permute.xlu0 5
    %2924 = vperm.xlu0 %2923, %v94
    %v2925 = vpop.permute.xlu0 %2924
    %2926 = vset.pattern.permute.xlu0 5
    %2927 = vperm.xlu0 %2926, %v95
    %v2928 = vpop.permute.xlu0 %2927
    %2929 = vset.pattern.permute.xlu0 5
    %2930 = vperm.xlu0 %2929, %v96
    %v2931 = vpop.permute.xlu0 %2930
    %2932 = vset.pattern.permute.xlu0 5
    %2933 = vperm.xlu0 %2932, %v97
    %v2934 = vpop.permute.xlu0 %2933
    %2935 = vset.pattern.permute.xlu0 5
    %2936 = vperm.xlu0 %2935, %v98
    %v2937 = vpop.permute.xlu0 %2936
    %2938 = vset.pattern.permute.xlu0 5
    %2939 = vperm.xlu0 %2938, %v99
    %v2940 = vpop.permute.xlu0 %2939
    %2941 = vset.pattern.permute.xlu0 5
    %2942 = vperm.xlu0 %2941, %v100
    %v2943 = vpop.permute.xlu0 %2942
    %2944 = vset.pattern.permute.xlu0 5
    %2945 = vperm.xlu0 %2944, %v101
    %v2946 = vpop.permute.xlu0 %2945
    %2947 = vset.pattern.permute.xlu0 5
    %2948 = vperm.xlu0 %2947, %v102
    %v2949 = vpop.permute.xlu0 %2948
    %2950 = vset.pattern.permute.xlu0 5
    %2951 = vperm.xlu0 %2950, %v103
    %v2952 = vpop.permute.xlu0 %2951
    %2953 = vset.pattern.permute.xlu0 5
    %2954 = vperm.xlu0 %2953, %v104
    %v2955 = vpop.permute.xlu0 %2954
    %2956 = vset.pattern.permute.xlu0 5
    %2957 = vperm.xlu0 %2956, %v105
    %v2958 = vpop.permute.xlu0 %2957
    %2959 = vset.pattern.permute.xlu0 5
    %2960 = vperm.xlu0 %2959, %v106
    %v2961 = vpop.permute.xlu0 %2960
    %2962 = vset.pattern.permute.xlu0 5
    %2963 = vperm.xlu0 %2962, %v107
    %v2964 = vpop.permute.xlu0 %2963
    %vm2965 = vcmp.eq.s32.totalorder %v2919, %v109
    %vm2966 = vcmp.eq.s32.totalorder %v2919, %v110
    %vm2967 = vcmp.eq.s32.totalorder %v2919, %v111
    %vm2968 = vcmp.eq.s32.totalorder %v2919, %v112
    %vm2969 = vcmp.eq.s32.totalorder %v2919, %v113
    %vm2970 = vcmp.eq.s32.totalorder %v2919, %v114
    %vm2971 = vcmp.eq.s32.totalorder %v2919, %v115
    %vm2972 = vcmp.eq.s32.totalorder %v2919, %v116
    %vm2973 = vcmp.eq.s32.totalorder %v2922, %v109
    %vm2974 = vcmp.eq.s32.totalorder %v2922, %v110
    %vm2975 = vcmp.eq.s32.totalorder %v2922, %v111
    %vm2976 = vcmp.eq.s32.totalorder %v2922, %v112
    %vm2977 = vcmp.eq.s32.totalorder %v2922, %v113
    %vm2978 = vcmp.eq.s32.totalorder %v2922, %v114
    %vm2979 = vcmp.eq.s32.totalorder %v2922, %v115
    %vm2980 = vcmp.eq.s32.totalorder %v2922, %v116
    %vm2981 = vcmp.eq.s32.totalorder %v2925, %v109
    %vm2982 = vcmp.eq.s32.totalorder %v2925, %v110
    %vm2983 = vcmp.eq.s32.totalorder %v2925, %v111
    %vm2984 = vcmp.eq.s32.totalorder %v2925, %v112
    %vm2985 = vcmp.eq.s32.totalorder %v2925, %v113
    %vm2986 = vcmp.eq.s32.totalorder %v2925, %v114
    %vm2987 = vcmp.eq.s32.totalorder %v2925, %v115
    %vm2988 = vcmp.eq.s32.totalorder %v2925, %v116
    %vm2989 = vcmp.eq.s32.totalorder %v2928, %v109
    %vm2990 = vcmp.eq.s32.totalorder %v2928, %v110
    %vm2991 = vcmp.eq.s32.totalorder %v2928, %v111
    %vm2992 = vcmp.eq.s32.totalorder %v2928, %v112
    %vm2993 = vcmp.eq.s32.totalorder %v2928, %v113
    %vm2994 = vcmp.eq.s32.totalorder %v2928, %v114
    %vm2995 = vcmp.eq.s32.totalorder %v2928, %v115
    %vm2996 = vcmp.eq.s32.totalorder %v2928, %v116
    %vm2997 = vcmp.eq.s32.totalorder %v2931, %v109
    %vm2998 = vcmp.eq.s32.totalorder %v2931, %v110
    %vm2999 = vcmp.eq.s32.totalorder %v2931, %v111
    %vm3000 = vcmp.eq.s32.totalorder %v2931, %v112
    %vm3001 = vcmp.eq.s32.totalorder %v2931, %v113
    %vm3002 = vcmp.eq.s32.totalorder %v2931, %v114
    %vm3003 = vcmp.eq.s32.totalorder %v2931, %v115
    %vm3004 = vcmp.eq.s32.totalorder %v2931, %v116
    %vm3005 = vcmp.eq.s32.totalorder %v2934, %v109
    %vm3006 = vcmp.eq.s32.totalorder %v2934, %v110
    %vm3007 = vcmp.eq.s32.totalorder %v2934, %v111
    %vm3008 = vcmp.eq.s32.totalorder %v2934, %v112
    %vm3009 = vcmp.eq.s32.totalorder %v2934, %v113
    %vm3010 = vcmp.eq.s32.totalorder %v2934, %v114
    %vm3011 = vcmp.eq.s32.totalorder %v2934, %v115
    %vm3012 = vcmp.eq.s32.totalorder %v2934, %v116
    %vm3013 = vcmp.eq.s32.totalorder %v2937, %v109
    %vm3014 = vcmp.eq.s32.totalorder %v2937, %v110
    %vm3015 = vcmp.eq.s32.totalorder %v2937, %v111
    %vm3016 = vcmp.eq.s32.totalorder %v2937, %v112
    %vm3017 = vcmp.eq.s32.totalorder %v2937, %v113
    %vm3018 = vcmp.eq.s32.totalorder %v2937, %v114
    %vm3019 = vcmp.eq.s32.totalorder %v2937, %v115
    %vm3020 = vcmp.eq.s32.totalorder %v2937, %v116
    %vm3021 = vcmp.eq.s32.totalorder %v2940, %v109
    %vm3022 = vcmp.eq.s32.totalorder %v2940, %v110
    %vm3023 = vcmp.eq.s32.totalorder %v2940, %v111
    %vm3024 = vcmp.eq.s32.totalorder %v2940, %v112
    %vm3025 = vcmp.eq.s32.totalorder %v2940, %v113
    %vm3026 = vcmp.eq.s32.totalorder %v2940, %v114
    %vm3027 = vcmp.eq.s32.totalorder %v2940, %v115
    %vm3028 = vcmp.eq.s32.totalorder %v2940, %v116
    %vm3029 = vcmp.eq.s32.totalorder %v2943, %v109
    %vm3030 = vcmp.eq.s32.totalorder %v2943, %v110
    %vm3031 = vcmp.eq.s32.totalorder %v2943, %v111
    %vm3032 = vcmp.eq.s32.totalorder %v2943, %v112
    %vm3033 = vcmp.eq.s32.totalorder %v2943, %v113
    %vm3034 = vcmp.eq.s32.totalorder %v2943, %v114
    %vm3035 = vcmp.eq.s32.totalorder %v2943, %v115
    %vm3036 = vcmp.eq.s32.totalorder %v2943, %v116
    %vm3037 = vcmp.eq.s32.totalorder %v2946, %v109
    %vm3038 = vcmp.eq.s32.totalorder %v2946, %v110
    %vm3039 = vcmp.eq.s32.totalorder %v2946, %v111
    %vm3040 = vcmp.eq.s32.totalorder %v2946, %v112
    %vm3041 = vcmp.eq.s32.totalorder %v2946, %v113
    %vm3042 = vcmp.eq.s32.totalorder %v2946, %v114
    %vm3043 = vcmp.eq.s32.totalorder %v2946, %v115
    %vm3044 = vcmp.eq.s32.totalorder %v2946, %v116
    %vm3045 = vcmp.eq.s32.totalorder %v2949, %v109
    %vm3046 = vcmp.eq.s32.totalorder %v2949, %v110
    %vm3047 = vcmp.eq.s32.totalorder %v2949, %v111
    %vm3048 = vcmp.eq.s32.totalorder %v2949, %v112
    %vm3049 = vcmp.eq.s32.totalorder %v2949, %v113
    %vm3050 = vcmp.eq.s32.totalorder %v2949, %v114
    %vm3051 = vcmp.eq.s32.totalorder %v2949, %v115
    %vm3052 = vcmp.eq.s32.totalorder %v2949, %v116
    %vm3053 = vcmp.eq.s32.totalorder %v2952, %v109
    %vm3054 = vcmp.eq.s32.totalorder %v2952, %v110
    %vm3055 = vcmp.eq.s32.totalorder %v2952, %v111
    %vm3056 = vcmp.eq.s32.totalorder %v2952, %v112
    %vm3057 = vcmp.eq.s32.totalorder %v2952, %v113
    %vm3058 = vcmp.eq.s32.totalorder %v2952, %v114
    %vm3059 = vcmp.eq.s32.totalorder %v2952, %v115
    %vm3060 = vcmp.eq.s32.totalorder %v2952, %v116
    %vm3061 = vcmp.eq.s32.totalorder %v2955, %v109
    %vm3062 = vcmp.eq.s32.totalorder %v2955, %v110
    %vm3063 = vcmp.eq.s32.totalorder %v2955, %v111
    %vm3064 = vcmp.eq.s32.totalorder %v2955, %v112
    %vm3065 = vcmp.eq.s32.totalorder %v2955, %v113
    %vm3066 = vcmp.eq.s32.totalorder %v2955, %v114
    %vm3067 = vcmp.eq.s32.totalorder %v2955, %v115
    %vm3068 = vcmp.eq.s32.totalorder %v2955, %v116
    %vm3069 = vcmp.eq.s32.totalorder %v2958, %v109
    %vm3070 = vcmp.eq.s32.totalorder %v2958, %v110
    %vm3071 = vcmp.eq.s32.totalorder %v2958, %v111
    %vm3072 = vcmp.eq.s32.totalorder %v2958, %v112
    %vm3073 = vcmp.eq.s32.totalorder %v2958, %v113
    %vm3074 = vcmp.eq.s32.totalorder %v2958, %v114
    %vm3075 = vcmp.eq.s32.totalorder %v2958, %v115
    %vm3076 = vcmp.eq.s32.totalorder %v2958, %v116
    %vm3077 = vcmp.eq.s32.totalorder %v2961, %v109
    %vm3078 = vcmp.eq.s32.totalorder %v2961, %v110
    %vm3079 = vcmp.eq.s32.totalorder %v2961, %v111
    %vm3080 = vcmp.eq.s32.totalorder %v2961, %v112
    %vm3081 = vcmp.eq.s32.totalorder %v2961, %v113
    %vm3082 = vcmp.eq.s32.totalorder %v2961, %v114
    %vm3083 = vcmp.eq.s32.totalorder %v2961, %v115
    %vm3084 = vcmp.eq.s32.totalorder %v2961, %v116
    %vm3085 = vcmp.eq.s32.totalorder %v2964, %v109
    %vm3086 = vcmp.eq.s32.totalorder %v2964, %v110
    %vm3087 = vcmp.eq.s32.totalorder %v2964, %v111
    %vm3088 = vcmp.eq.s32.totalorder %v2964, %v112
    %vm3089 = vcmp.eq.s32.totalorder %v2964, %v113
    %vm3090 = vcmp.eq.s32.totalorder %v2964, %v114
    %vm3091 = vcmp.eq.s32.totalorder %v2964, %v115
    %vm3092 = vcmp.eq.s32.totalorder %v2964, %v116
    %v3093 = vsel %vm2965, 1, 0
    %v3094 = vsel %vm2966, 1, 0
    %v3095 = vsel %vm2967, 1, 0
    %v3096 = vsel %vm2968, 1, 0
    %v3097 = vsel %vm2969, 1, 0
    %v3098 = vsel %vm2970, 1, 0
    %v3099 = vsel %vm2971, 1, 0
    %v3100 = vsel %vm2972, 1, 0
    %v3101 = vsel %vm2973, 1, 0
    %v3102 = vsel %vm2974, 1, 0
    %v3103 = vsel %vm2975, 1, 0
    %v3104 = vsel %vm2976, 1, 0
    %v3105 = vsel %vm2977, 1, 0
    %v3106 = vsel %vm2978, 1, 0
    %v3107 = vsel %vm2979, 1, 0
    %v3108 = vsel %vm2980, 1, 0
    %v3109 = vsel %vm2981, 1, 0
    %v3110 = vsel %vm2982, 1, 0
    %v3111 = vsel %vm2983, 1, 0
    %v3112 = vsel %vm2984, 1, 0
    %v3113 = vsel %vm2985, 1, 0
    %v3114 = vsel %vm2986, 1, 0
    %v3115 = vsel %vm2987, 1, 0
    %v3116 = vsel %vm2988, 1, 0
    %v3117 = vsel %vm2989, 1, 0
    %v3118 = vsel %vm2990, 1, 0
    %v3119 = vsel %vm2991, 1, 0
    %v3120 = vsel %vm2992, 1, 0
    %v3121 = vsel %vm2993, 1, 0
    %v3122 = vsel %vm2994, 1, 0
    %v3123 = vsel %vm2995, 1, 0
    %v3124 = vsel %vm2996, 1, 0
    %v3125 = vsel %vm2997, 1, 0
    %v3126 = vsel %vm2998, 1, 0
    %v3127 = vsel %vm2999, 1, 0
    %v3128 = vsel %vm3000, 1, 0
    %v3129 = vsel %vm3001, 1, 0
    %v3130 = vsel %vm3002, 1, 0
    %v3131 = vsel %vm3003, 1, 0
    %v3132 = vsel %vm3004, 1, 0
    %v3133 = vsel %vm3005, 1, 0
    %v3134 = vsel %vm3006, 1, 0
    %v3135 = vsel %vm3007, 1, 0
    %v3136 = vsel %vm3008, 1, 0
    %v3137 = vsel %vm3009, 1, 0
    %v3138 = vsel %vm3010, 1, 0
    %v3139 = vsel %vm3011, 1, 0
    %v3140 = vsel %vm3012, 1, 0
    %v3141 = vsel %vm3013, 1, 0
    %v3142 = vsel %vm3014, 1, 0
    %v3143 = vsel %vm3015, 1, 0
    %v3144 = vsel %vm3016, 1, 0
    %v3145 = vsel %vm3017, 1, 0
    %v3146 = vsel %vm3018, 1, 0
    %v3147 = vsel %vm3019, 1, 0
    %v3148 = vsel %vm3020, 1, 0
    %v3149 = vsel %vm3021, 1, 0
    %v3150 = vsel %vm3022, 1, 0
    %v3151 = vsel %vm3023, 1, 0
    %v3152 = vsel %vm3024, 1, 0
    %v3153 = vsel %vm3025, 1, 0
    %v3154 = vsel %vm3026, 1, 0
    %v3155 = vsel %vm3027, 1, 0
    %v3156 = vsel %vm3028, 1, 0
    %v3157 = vsel %vm3029, 1, 0
    %v3158 = vsel %vm3030, 1, 0
    %v3159 = vsel %vm3031, 1, 0
    %v3160 = vsel %vm3032, 1, 0
    %v3161 = vsel %vm3033, 1, 0
    %v3162 = vsel %vm3034, 1, 0
    %v3163 = vsel %vm3035, 1, 0
    %v3164 = vsel %vm3036, 1, 0
    %v3165 = vsel %vm3037, 1, 0
    %v3166 = vsel %vm3038, 1, 0
    %v3167 = vsel %vm3039, 1, 0
    %v3168 = vsel %vm3040, 1, 0
    %v3169 = vsel %vm3041, 1, 0
    %v3170 = vsel %vm3042, 1, 0
    %v3171 = vsel %vm3043, 1, 0
    %v3172 = vsel %vm3044, 1, 0
    %v3173 = vsel %vm3045, 1, 0
    %v3174 = vsel %vm3046, 1, 0
    %v3175 = vsel %vm3047, 1, 0
    %v3176 = vsel %vm3048, 1, 0
    %v3177 = vsel %vm3049, 1, 0
    %v3178 = vsel %vm3050, 1, 0
    %v3179 = vsel %vm3051, 1, 0
    %v3180 = vsel %vm3052, 1, 0
    %v3181 = vsel %vm3053, 1, 0
    %v3182 = vsel %vm3054, 1, 0
    %v3183 = vsel %vm3055, 1, 0
    %v3184 = vsel %vm3056, 1, 0
    %v3185 = vsel %vm3057, 1, 0
    %v3186 = vsel %vm3058, 1, 0
    %v3187 = vsel %vm3059, 1, 0
    %v3188 = vsel %vm3060, 1, 0
    %v3189 = vsel %vm3061, 1, 0
    %v3190 = vsel %vm3062, 1, 0
    %v3191 = vsel %vm3063, 1, 0
    %v3192 = vsel %vm3064, 1, 0
    %v3193 = vsel %vm3065, 1, 0
    %v3194 = vsel %vm3066, 1, 0
    %v3195 = vsel %vm3067, 1, 0
    %v3196 = vsel %vm3068, 1, 0
    %v3197 = vsel %vm3069, 1, 0
    %v3198 = vsel %vm3070, 1, 0
    %v3199 = vsel %vm3071, 1, 0
    %v3200 = vsel %vm3072, 1, 0
    %v3201 = vsel %vm3073, 1, 0
    %v3202 = vsel %vm3074, 1, 0
    %v3203 = vsel %vm3075, 1, 0
    %v3204 = vsel %vm3076, 1, 0
    %v3205 = vsel %vm3077, 1, 0
    %v3206 = vsel %vm3078, 1, 0
    %v3207 = vsel %vm3079, 1, 0
    %v3208 = vsel %vm3080, 1, 0
    %v3209 = vsel %vm3081, 1, 0
    %v3210 = vsel %vm3082, 1, 0
    %v3211 = vsel %vm3083, 1, 0
    %v3212 = vsel %vm3084, 1, 0
    %v3213 = vsel %vm3085, 1, 0
    %v3214 = vsel %vm3086, 1, 0
    %v3215 = vsel %vm3087, 1, 0
    %v3216 = vsel %vm3088, 1, 0
    %v3217 = vsel %vm3089, 1, 0
    %v3218 = vsel %vm3090, 1, 0
    %v3219 = vsel %vm3091, 1, 0
    %v3220 = vsel %vm3092, 1, 0
    %v3221 = vcvt.s32.f32 %v3093
    %v3222 = vcvt.s32.f32 %v3094
    %v3223 = vcvt.s32.f32 %v3095
    %v3224 = vcvt.s32.f32 %v3096
    %v3225 = vcvt.s32.f32 %v3097
    %v3226 = vcvt.s32.f32 %v3098
    %v3227 = vcvt.s32.f32 %v3099
    %v3228 = vcvt.s32.f32 %v3100
    %v3229 = vcvt.s32.f32 %v3101
    %v3230 = vcvt.s32.f32 %v3102
    %v3231 = vcvt.s32.f32 %v3103
    %v3232 = vcvt.s32.f32 %v3104
    %v3233 = vcvt.s32.f32 %v3105
    %v3234 = vcvt.s32.f32 %v3106
    %v3235 = vcvt.s32.f32 %v3107
    %v3236 = vcvt.s32.f32 %v3108
    %v3237 = vcvt.s32.f32 %v3109
    %v3238 = vcvt.s32.f32 %v3110
    %v3239 = vcvt.s32.f32 %v3111
    %v3240 = vcvt.s32.f32 %v3112
    %v3241 = vcvt.s32.f32 %v3113
    %v3242 = vcvt.s32.f32 %v3114
    %v3243 = vcvt.s32.f32 %v3115
    %v3244 = vcvt.s32.f32 %v3116
    %v3245 = vcvt.s32.f32 %v3117
    %v3246 = vcvt.s32.f32 %v3118
    %v3247 = vcvt.s32.f32 %v3119
    %v3248 = vcvt.s32.f32 %v3120
    %v3249 = vcvt.s32.f32 %v3121
    %v3250 = vcvt.s32.f32 %v3122
    %v3251 = vcvt.s32.f32 %v3123
    %v3252 = vcvt.s32.f32 %v3124
    %v3253 = vcvt.s32.f32 %v3125
    %v3254 = vcvt.s32.f32 %v3126
    %v3255 = vcvt.s32.f32 %v3127
    %v3256 = vcvt.s32.f32 %v3128
    %v3257 = vcvt.s32.f32 %v3129
    %v3258 = vcvt.s32.f32 %v3130
    %v3259 = vcvt.s32.f32 %v3131
    %v3260 = vcvt.s32.f32 %v3132
    %v3261 = vcvt.s32.f32 %v3133
    %v3262 = vcvt.s32.f32 %v3134
    %v3263 = vcvt.s32.f32 %v3135
    %v3264 = vcvt.s32.f32 %v3136
    %v3265 = vcvt.s32.f32 %v3137
    %v3266 = vcvt.s32.f32 %v3138
    %v3267 = vcvt.s32.f32 %v3139
    %v3268 = vcvt.s32.f32 %v3140
    %v3269 = vcvt.s32.f32 %v3141
    %v3270 = vcvt.s32.f32 %v3142
    %v3271 = vcvt.s32.f32 %v3143
    %v3272 = vcvt.s32.f32 %v3144
    %v3273 = vcvt.s32.f32 %v3145
    %v3274 = vcvt.s32.f32 %v3146
    %v3275 = vcvt.s32.f32 %v3147
    %v3276 = vcvt.s32.f32 %v3148
    %v3277 = vcvt.s32.f32 %v3149
    %v3278 = vcvt.s32.f32 %v3150
    %v3279 = vcvt.s32.f32 %v3151
    %v3280 = vcvt.s32.f32 %v3152
    %v3281 = vcvt.s32.f32 %v3153
    %v3282 = vcvt.s32.f32 %v3154
    %v3283 = vcvt.s32.f32 %v3155
    %v3284 = vcvt.s32.f32 %v3156
    %v3285 = vcvt.s32.f32 %v3157
    %v3286 = vcvt.s32.f32 %v3158
    %v3287 = vcvt.s32.f32 %v3159
    %v3288 = vcvt.s32.f32 %v3160
    %v3289 = vcvt.s32.f32 %v3161
    %v3290 = vcvt.s32.f32 %v3162
    %v3291 = vcvt.s32.f32 %v3163
    %v3292 = vcvt.s32.f32 %v3164
    %v3293 = vcvt.s32.f32 %v3165
    %v3294 = vcvt.s32.f32 %v3166
    %v3295 = vcvt.s32.f32 %v3167
    %v3296 = vcvt.s32.f32 %v3168
    %v3297 = vcvt.s32.f32 %v3169
    %v3298 = vcvt.s32.f32 %v3170
    %v3299 = vcvt.s32.f32 %v3171
    %v3300 = vcvt.s32.f32 %v3172
    %v3301 = vcvt.s32.f32 %v3173
    %v3302 = vcvt.s32.f32 %v3174
    %v3303 = vcvt.s32.f32 %v3175
    %v3304 = vcvt.s32.f32 %v3176
    %v3305 = vcvt.s32.f32 %v3177
    %v3306 = vcvt.s32.f32 %v3178
    %v3307 = vcvt.s32.f32 %v3179
    %v3308 = vcvt.s32.f32 %v3180
    %v3309 = vcvt.s32.f32 %v3181
    %v3310 = vcvt.s32.f32 %v3182
    %v3311 = vcvt.s32.f32 %v3183
    %v3312 = vcvt.s32.f32 %v3184
    %v3313 = vcvt.s32.f32 %v3185
    %v3314 = vcvt.s32.f32 %v3186
    %v3315 = vcvt.s32.f32 %v3187
    %v3316 = vcvt.s32.f32 %v3188
    %v3317 = vcvt.s32.f32 %v3189
    %v3318 = vcvt.s32.f32 %v3190
    %v3319 = vcvt.s32.f32 %v3191
    %v3320 = vcvt.s32.f32 %v3192
    %v3321 = vcvt.s32.f32 %v3193
    %v3322 = vcvt.s32.f32 %v3194
    %v3323 = vcvt.s32.f32 %v3195
    %v3324 = vcvt.s32.f32 %v3196
    %v3325 = vcvt.s32.f32 %v3197
    %v3326 = vcvt.s32.f32 %v3198
    %v3327 = vcvt.s32.f32 %v3199
    %v3328 = vcvt.s32.f32 %v3200
    %v3329 = vcvt.s32.f32 %v3201
    %v3330 = vcvt.s32.f32 %v3202
    %v3331 = vcvt.s32.f32 %v3203
    %v3332 = vcvt.s32.f32 %v3204
    %v3333 = vcvt.s32.f32 %v3205
    %v3334 = vcvt.s32.f32 %v3206
    %v3335 = vcvt.s32.f32 %v3207
    %v3336 = vcvt.s32.f32 %v3208
    %v3337 = vcvt.s32.f32 %v3209
    %v3338 = vcvt.s32.f32 %v3210
    %v3339 = vcvt.s32.f32 %v3211
    %v3340 = vcvt.s32.f32 %v3212
    %v3341 = vcvt.s32.f32 %v3213
    %v3342 = vcvt.s32.f32 %v3214
    %v3343 = vcvt.s32.f32 %v3215
    %v3344 = vcvt.s32.f32 %v3216
    %v3345 = vcvt.s32.f32 %v3217
    %v3346 = vcvt.s32.f32 %v3218
    %v3347 = vcvt.s32.f32 %v3219
    %v3348 = vcvt.s32.f32 %v3220
    %v3349 = vadd.f32 %v2789, %v3221
    %v3350 = vadd.f32 %v2790, %v3222
    %v3351 = vadd.f32 %v2791, %v3223
    %v3352 = vadd.f32 %v2792, %v3224
    %v3353 = vadd.f32 %v2793, %v3225
    %v3354 = vadd.f32 %v2794, %v3226
    %v3355 = vadd.f32 %v2795, %v3227
    %v3356 = vadd.f32 %v2796, %v3228
    %v3357 = vadd.f32 %v2797, %v3229
    %v3358 = vadd.f32 %v2798, %v3230
    %v3359 = vadd.f32 %v2799, %v3231
    %v3360 = vadd.f32 %v2800, %v3232
    %v3361 = vadd.f32 %v2801, %v3233
    %v3362 = vadd.f32 %v2802, %v3234
    %v3363 = vadd.f32 %v2803, %v3235
    %v3364 = vadd.f32 %v2804, %v3236
    %v3365 = vadd.f32 %v2805, %v3237
    %v3366 = vadd.f32 %v2806, %v3238
    %v3367 = vadd.f32 %v2807, %v3239
    %v3368 = vadd.f32 %v2808, %v3240
    %v3369 = vadd.f32 %v2809, %v3241
    %v3370 = vadd.f32 %v2810, %v3242
    %v3371 = vadd.f32 %v2811, %v3243
    %v3372 = vadd.f32 %v2812, %v3244
    %v3373 = vadd.f32 %v2813, %v3245
    %v3374 = vadd.f32 %v2814, %v3246
    %v3375 = vadd.f32 %v2815, %v3247
    %v3376 = vadd.f32 %v2816, %v3248
    %v3377 = vadd.f32 %v2817, %v3249
    %v3378 = vadd.f32 %v2818, %v3250
    %v3379 = vadd.f32 %v2819, %v3251
    %v3380 = vadd.f32 %v2820, %v3252
    %v3381 = vadd.f32 %v2821, %v3253
    %v3382 = vadd.f32 %v2822, %v3254
    %v3383 = vadd.f32 %v2823, %v3255
    %v3384 = vadd.f32 %v2824, %v3256
    %v3385 = vadd.f32 %v2825, %v3257
    %v3386 = vadd.f32 %v2826, %v3258
    %v3387 = vadd.f32 %v2827, %v3259
    %v3388 = vadd.f32 %v2828, %v3260
    %v3389 = vadd.f32 %v2829, %v3261
    %v3390 = vadd.f32 %v2830, %v3262
    %v3391 = vadd.f32 %v2831, %v3263
    %v3392 = vadd.f32 %v2832, %v3264
    %v3393 = vadd.f32 %v2833, %v3265
    %v3394 = vadd.f32 %v2834, %v3266
    %v3395 = vadd.f32 %v2835, %v3267
    %v3396 = vadd.f32 %v2836, %v3268
    %v3397 = vadd.f32 %v2837, %v3269
    %v3398 = vadd.f32 %v2838, %v3270
    %v3399 = vadd.f32 %v2839, %v3271
    %v3400 = vadd.f32 %v2840, %v3272
    %v3401 = vadd.f32 %v2841, %v3273
    %v3402 = vadd.f32 %v2842, %v3274
    %v3403 = vadd.f32 %v2843, %v3275
    %v3404 = vadd.f32 %v2844, %v3276
    %v3405 = vadd.f32 %v2845, %v3277
    %v3406 = vadd.f32 %v2846, %v3278
    %v3407 = vadd.f32 %v2847, %v3279
    %v3408 = vadd.f32 %v2848, %v3280
    %v3409 = vadd.f32 %v2849, %v3281
    %v3410 = vadd.f32 %v2850, %v3282
    %v3411 = vadd.f32 %v2851, %v3283
    %v3412 = vadd.f32 %v2852, %v3284
    %v3413 = vadd.f32 %v2853, %v3285
    %v3414 = vadd.f32 %v2854, %v3286
    %v3415 = vadd.f32 %v2855, %v3287
    %v3416 = vadd.f32 %v2856, %v3288
    %v3417 = vadd.f32 %v2857, %v3289
    %v3418 = vadd.f32 %v2858, %v3290
    %v3419 = vadd.f32 %v2859, %v3291
    %v3420 = vadd.f32 %v2860, %v3292
    %v3421 = vadd.f32 %v2861, %v3293
    %v3422 = vadd.f32 %v2862, %v3294
    %v3423 = vadd.f32 %v2863, %v3295
    %v3424 = vadd.f32 %v2864, %v3296
    %v3425 = vadd.f32 %v2865, %v3297
    %v3426 = vadd.f32 %v2866, %v3298
    %v3427 = vadd.f32 %v2867, %v3299
    %v3428 = vadd.f32 %v2868, %v3300
    %v3429 = vadd.f32 %v2869, %v3301
    %v3430 = vadd.f32 %v2870, %v3302
    %v3431 = vadd.f32 %v2871, %v3303
    %v3432 = vadd.f32 %v2872, %v3304
    %v3433 = vadd.f32 %v2873, %v3305
    %v3434 = vadd.f32 %v2874, %v3306
    %v3435 = vadd.f32 %v2875, %v3307
    %v3436 = vadd.f32 %v2876, %v3308
    %v3437 = vadd.f32 %v2877, %v3309
    %v3438 = vadd.f32 %v2878, %v3310
    %v3439 = vadd.f32 %v2879, %v3311
    %v3440 = vadd.f32 %v2880, %v3312
    %v3441 = vadd.f32 %v2881, %v3313
    %v3442 = vadd.f32 %v2882, %v3314
    %v3443 = vadd.f32 %v2883, %v3315
    %v3444 = vadd.f32 %v2884, %v3316
    %v3445 = vadd.f32 %v2885, %v3317
    %v3446 = vadd.f32 %v2886, %v3318
    %v3447 = vadd.f32 %v2887, %v3319
    %v3448 = vadd.f32 %v2888, %v3320
    %v3449 = vadd.f32 %v2889, %v3321
    %v3450 = vadd.f32 %v2890, %v3322
    %v3451 = vadd.f32 %v2891, %v3323
    %v3452 = vadd.f32 %v2892, %v3324
    %v3453 = vadd.f32 %v2893, %v3325
    %v3454 = vadd.f32 %v2894, %v3326
    %v3455 = vadd.f32 %v2895, %v3327
    %v3456 = vadd.f32 %v2896, %v3328
    %v3457 = vadd.f32 %v2897, %v3329
    %v3458 = vadd.f32 %v2898, %v3330
    %v3459 = vadd.f32 %v2899, %v3331
    %v3460 = vadd.f32 %v2900, %v3332
    %v3461 = vadd.f32 %v2901, %v3333
    %v3462 = vadd.f32 %v2902, %v3334
    %v3463 = vadd.f32 %v2903, %v3335
    %v3464 = vadd.f32 %v2904, %v3336
    %v3465 = vadd.f32 %v2905, %v3337
    %v3466 = vadd.f32 %v2906, %v3338
    %v3467 = vadd.f32 %v2907, %v3339
    %v3468 = vadd.f32 %v2908, %v3340
    %v3469 = vadd.f32 %v2909, %v3341
    %v3470 = vadd.f32 %v2910, %v3342
    %v3471 = vadd.f32 %v2911, %v3343
    %v3472 = vadd.f32 %v2912, %v3344
    %v3473 = vadd.f32 %v2913, %v3345
    %v3474 = vadd.f32 %v2914, %v3346
    %v3475 = vadd.f32 %v2915, %v3347
    %v3476 = vadd.f32 %v2916, %v3348
    %3477 = vset.pattern.permute.xlu0 6
    %3478 = vperm.xlu0 %3477, %v92
    %v3479 = vpop.permute.xlu0 %3478
    %3480 = vset.pattern.permute.xlu0 6
    %3481 = vperm.xlu0 %3480, %v93
    %v3482 = vpop.permute.xlu0 %3481
    %3483 = vset.pattern.permute.xlu0 6
    %3484 = vperm.xlu0 %3483, %v94
    %v3485 = vpop.permute.xlu0 %3484
    %3486 = vset.pattern.permute.xlu0 6
    %3487 = vperm.xlu0 %3486, %v95
    %v3488 = vpop.permute.xlu0 %3487
    %3489 = vset.pattern.permute.xlu0 6
    %3490 = vperm.xlu0 %3489, %v96
    %v3491 = vpop.permute.xlu0 %3490
    %3492 = vset.pattern.permute.xlu0 6
    %3493 = vperm.xlu0 %3492, %v97
    %v3494 = vpop.permute.xlu0 %3493
    %3495 = vset.pattern.permute.xlu0 6
    %3496 = vperm.xlu0 %3495, %v98
    %v3497 = vpop.permute.xlu0 %3496
    %3498 = vset.pattern.permute.xlu0 6
    %3499 = vperm.xlu0 %3498, %v99
    %v3500 = vpop.permute.xlu0 %3499
    %3501 = vset.pattern.permute.xlu0 6
    %3502 = vperm.xlu0 %3501, %v100
    %v3503 = vpop.permute.xlu0 %3502
    %3504 = vset.pattern.permute.xlu0 6
    %3505 = vperm.xlu0 %3504, %v101
    %v3506 = vpop.permute.xlu0 %3505
    %3507 = vset.pattern.permute.xlu0 6
    %3508 = vperm.xlu0 %3507, %v102
    %v3509 = vpop.permute.xlu0 %3508
    %3510 = vset.pattern.permute.xlu0 6
    %3511 = vperm.xlu0 %3510, %v103
    %v3512 = vpop.permute.xlu0 %3511
    %3513 = vset.pattern.permute.xlu0 6
    %3514 = vperm.xlu0 %3513, %v104
    %v3515 = vpop.permute.xlu0 %3514
    %3516 = vset.pattern.permute.xlu0 6
    %3517 = vperm.xlu0 %3516, %v105
    %v3518 = vpop.permute.xlu0 %3517
    %3519 = vset.pattern.permute.xlu0 6
    %3520 = vperm.xlu0 %3519, %v106
    %v3521 = vpop.permute.xlu0 %3520
    %3522 = vset.pattern.permute.xlu0 6
    %3523 = vperm.xlu0 %3522, %v107
    %v3524 = vpop.permute.xlu0 %3523
    %vm3525 = vcmp.eq.s32.totalorder %v3479, %v109
    %vm3526 = vcmp.eq.s32.totalorder %v3479, %v110
    %vm3527 = vcmp.eq.s32.totalorder %v3479, %v111
    %vm3528 = vcmp.eq.s32.totalorder %v3479, %v112
    %vm3529 = vcmp.eq.s32.totalorder %v3479, %v113
    %vm3530 = vcmp.eq.s32.totalorder %v3479, %v114
    %vm3531 = vcmp.eq.s32.totalorder %v3479, %v115
    %vm3532 = vcmp.eq.s32.totalorder %v3479, %v116
    %vm3533 = vcmp.eq.s32.totalorder %v3482, %v109
    %vm3534 = vcmp.eq.s32.totalorder %v3482, %v110
    %vm3535 = vcmp.eq.s32.totalorder %v3482, %v111
    %vm3536 = vcmp.eq.s32.totalorder %v3482, %v112
    %vm3537 = vcmp.eq.s32.totalorder %v3482, %v113
    %vm3538 = vcmp.eq.s32.totalorder %v3482, %v114
    %vm3539 = vcmp.eq.s32.totalorder %v3482, %v115
    %vm3540 = vcmp.eq.s32.totalorder %v3482, %v116
    %vm3541 = vcmp.eq.s32.totalorder %v3485, %v109
    %vm3542 = vcmp.eq.s32.totalorder %v3485, %v110
    %vm3543 = vcmp.eq.s32.totalorder %v3485, %v111
    %vm3544 = vcmp.eq.s32.totalorder %v3485, %v112
    %vm3545 = vcmp.eq.s32.totalorder %v3485, %v113
    %vm3546 = vcmp.eq.s32.totalorder %v3485, %v114
    %vm3547 = vcmp.eq.s32.totalorder %v3485, %v115
    %vm3548 = vcmp.eq.s32.totalorder %v3485, %v116
    %vm3549 = vcmp.eq.s32.totalorder %v3488, %v109
    %vm3550 = vcmp.eq.s32.totalorder %v3488, %v110
    %vm3551 = vcmp.eq.s32.totalorder %v3488, %v111
    %vm3552 = vcmp.eq.s32.totalorder %v3488, %v112
    %vm3553 = vcmp.eq.s32.totalorder %v3488, %v113
    %vm3554 = vcmp.eq.s32.totalorder %v3488, %v114
    %vm3555 = vcmp.eq.s32.totalorder %v3488, %v115
    %vm3556 = vcmp.eq.s32.totalorder %v3488, %v116
    %vm3557 = vcmp.eq.s32.totalorder %v3491, %v109
    %vm3558 = vcmp.eq.s32.totalorder %v3491, %v110
    %vm3559 = vcmp.eq.s32.totalorder %v3491, %v111
    %vm3560 = vcmp.eq.s32.totalorder %v3491, %v112
    %vm3561 = vcmp.eq.s32.totalorder %v3491, %v113
    %vm3562 = vcmp.eq.s32.totalorder %v3491, %v114
    %vm3563 = vcmp.eq.s32.totalorder %v3491, %v115
    %vm3564 = vcmp.eq.s32.totalorder %v3491, %v116
    %vm3565 = vcmp.eq.s32.totalorder %v3494, %v109
    %vm3566 = vcmp.eq.s32.totalorder %v3494, %v110
    %vm3567 = vcmp.eq.s32.totalorder %v3494, %v111
    %vm3568 = vcmp.eq.s32.totalorder %v3494, %v112
    %vm3569 = vcmp.eq.s32.totalorder %v3494, %v113
    %vm3570 = vcmp.eq.s32.totalorder %v3494, %v114
    %vm3571 = vcmp.eq.s32.totalorder %v3494, %v115
    %vm3572 = vcmp.eq.s32.totalorder %v3494, %v116
    %vm3573 = vcmp.eq.s32.totalorder %v3497, %v109
    %vm3574 = vcmp.eq.s32.totalorder %v3497, %v110
    %vm3575 = vcmp.eq.s32.totalorder %v3497, %v111
    %vm3576 = vcmp.eq.s32.totalorder %v3497, %v112
    %vm3577 = vcmp.eq.s32.totalorder %v3497, %v113
    %vm3578 = vcmp.eq.s32.totalorder %v3497, %v114
    %vm3579 = vcmp.eq.s32.totalorder %v3497, %v115
    %vm3580 = vcmp.eq.s32.totalorder %v3497, %v116
    %vm3581 = vcmp.eq.s32.totalorder %v3500, %v109
    %vm3582 = vcmp.eq.s32.totalorder %v3500, %v110
    %vm3583 = vcmp.eq.s32.totalorder %v3500, %v111
    %vm3584 = vcmp.eq.s32.totalorder %v3500, %v112
    %vm3585 = vcmp.eq.s32.totalorder %v3500, %v113
    %vm3586 = vcmp.eq.s32.totalorder %v3500, %v114
    %vm3587 = vcmp.eq.s32.totalorder %v3500, %v115
    %vm3588 = vcmp.eq.s32.totalorder %v3500, %v116
    %vm3589 = vcmp.eq.s32.totalorder %v3503, %v109
    %vm3590 = vcmp.eq.s32.totalorder %v3503, %v110
    %vm3591 = vcmp.eq.s32.totalorder %v3503, %v111
    %vm3592 = vcmp.eq.s32.totalorder %v3503, %v112
    %vm3593 = vcmp.eq.s32.totalorder %v3503, %v113
    %vm3594 = vcmp.eq.s32.totalorder %v3503, %v114
    %vm3595 = vcmp.eq.s32.totalorder %v3503, %v115
    %vm3596 = vcmp.eq.s32.totalorder %v3503, %v116
    %vm3597 = vcmp.eq.s32.totalorder %v3506, %v109
    %vm3598 = vcmp.eq.s32.totalorder %v3506, %v110
    %vm3599 = vcmp.eq.s32.totalorder %v3506, %v111
    %vm3600 = vcmp.eq.s32.totalorder %v3506, %v112
    %vm3601 = vcmp.eq.s32.totalorder %v3506, %v113
    %vm3602 = vcmp.eq.s32.totalorder %v3506, %v114
    %vm3603 = vcmp.eq.s32.totalorder %v3506, %v115
    %vm3604 = vcmp.eq.s32.totalorder %v3506, %v116
    %vm3605 = vcmp.eq.s32.totalorder %v3509, %v109
    %vm3606 = vcmp.eq.s32.totalorder %v3509, %v110
    %vm3607 = vcmp.eq.s32.totalorder %v3509, %v111
    %vm3608 = vcmp.eq.s32.totalorder %v3509, %v112
    %vm3609 = vcmp.eq.s32.totalorder %v3509, %v113
    %vm3610 = vcmp.eq.s32.totalorder %v3509, %v114
    %vm3611 = vcmp.eq.s32.totalorder %v3509, %v115
    %vm3612 = vcmp.eq.s32.totalorder %v3509, %v116
    %vm3613 = vcmp.eq.s32.totalorder %v3512, %v109
    %vm3614 = vcmp.eq.s32.totalorder %v3512, %v110
    %vm3615 = vcmp.eq.s32.totalorder %v3512, %v111
    %vm3616 = vcmp.eq.s32.totalorder %v3512, %v112
    %vm3617 = vcmp.eq.s32.totalorder %v3512, %v113
    %vm3618 = vcmp.eq.s32.totalorder %v3512, %v114
    %vm3619 = vcmp.eq.s32.totalorder %v3512, %v115
    %vm3620 = vcmp.eq.s32.totalorder %v3512, %v116
    %vm3621 = vcmp.eq.s32.totalorder %v3515, %v109
    %vm3622 = vcmp.eq.s32.totalorder %v3515, %v110
    %vm3623 = vcmp.eq.s32.totalorder %v3515, %v111
    %vm3624 = vcmp.eq.s32.totalorder %v3515, %v112
    %vm3625 = vcmp.eq.s32.totalorder %v3515, %v113
    %vm3626 = vcmp.eq.s32.totalorder %v3515, %v114
    %vm3627 = vcmp.eq.s32.totalorder %v3515, %v115
    %vm3628 = vcmp.eq.s32.totalorder %v3515, %v116
    %vm3629 = vcmp.eq.s32.totalorder %v3518, %v109
    %vm3630 = vcmp.eq.s32.totalorder %v3518, %v110
    %vm3631 = vcmp.eq.s32.totalorder %v3518, %v111
    %vm3632 = vcmp.eq.s32.totalorder %v3518, %v112
    %vm3633 = vcmp.eq.s32.totalorder %v3518, %v113
    %vm3634 = vcmp.eq.s32.totalorder %v3518, %v114
    %vm3635 = vcmp.eq.s32.totalorder %v3518, %v115
    %vm3636 = vcmp.eq.s32.totalorder %v3518, %v116
    %vm3637 = vcmp.eq.s32.totalorder %v3521, %v109
    %vm3638 = vcmp.eq.s32.totalorder %v3521, %v110
    %vm3639 = vcmp.eq.s32.totalorder %v3521, %v111
    %vm3640 = vcmp.eq.s32.totalorder %v3521, %v112
    %vm3641 = vcmp.eq.s32.totalorder %v3521, %v113
    %vm3642 = vcmp.eq.s32.totalorder %v3521, %v114
    %vm3643 = vcmp.eq.s32.totalorder %v3521, %v115
    %vm3644 = vcmp.eq.s32.totalorder %v3521, %v116
    %vm3645 = vcmp.eq.s32.totalorder %v3524, %v109
    %vm3646 = vcmp.eq.s32.totalorder %v3524, %v110
    %vm3647 = vcmp.eq.s32.totalorder %v3524, %v111
    %vm3648 = vcmp.eq.s32.totalorder %v3524, %v112
    %vm3649 = vcmp.eq.s32.totalorder %v3524, %v113
    %vm3650 = vcmp.eq.s32.totalorder %v3524, %v114
    %vm3651 = vcmp.eq.s32.totalorder %v3524, %v115
    %vm3652 = vcmp.eq.s32.totalorder %v3524, %v116
    %v3653 = vsel %vm3525, 1, 0
    %v3654 = vsel %vm3526, 1, 0
    %v3655 = vsel %vm3527, 1, 0
    %v3656 = vsel %vm3528, 1, 0
    %v3657 = vsel %vm3529, 1, 0
    %v3658 = vsel %vm3530, 1, 0
    %v3659 = vsel %vm3531, 1, 0
    %v3660 = vsel %vm3532, 1, 0
    %v3661 = vsel %vm3533, 1, 0
    %v3662 = vsel %vm3534, 1, 0
    %v3663 = vsel %vm3535, 1, 0
    %v3664 = vsel %vm3536, 1, 0
    %v3665 = vsel %vm3537, 1, 0
    %v3666 = vsel %vm3538, 1, 0
    %v3667 = vsel %vm3539, 1, 0
    %v3668 = vsel %vm3540, 1, 0
    %v3669 = vsel %vm3541, 1, 0
    %v3670 = vsel %vm3542, 1, 0
    %v3671 = vsel %vm3543, 1, 0
    %v3672 = vsel %vm3544, 1, 0
    %v3673 = vsel %vm3545, 1, 0
    %v3674 = vsel %vm3546, 1, 0
    %v3675 = vsel %vm3547, 1, 0
    %v3676 = vsel %vm3548, 1, 0
    %v3677 = vsel %vm3549, 1, 0
    %v3678 = vsel %vm3550, 1, 0
    %v3679 = vsel %vm3551, 1, 0
    %v3680 = vsel %vm3552, 1, 0
    %v3681 = vsel %vm3553, 1, 0
    %v3682 = vsel %vm3554, 1, 0
    %v3683 = vsel %vm3555, 1, 0
    %v3684 = vsel %vm3556, 1, 0
    %v3685 = vsel %vm3557, 1, 0
    %v3686 = vsel %vm3558, 1, 0
    %v3687 = vsel %vm3559, 1, 0
    %v3688 = vsel %vm3560, 1, 0
    %v3689 = vsel %vm3561, 1, 0
    %v3690 = vsel %vm3562, 1, 0
    %v3691 = vsel %vm3563, 1, 0
    %v3692 = vsel %vm3564, 1, 0
    %v3693 = vsel %vm3565, 1, 0
    %v3694 = vsel %vm3566, 1, 0
    %v3695 = vsel %vm3567, 1, 0
    %v3696 = vsel %vm3568, 1, 0
    %v3697 = vsel %vm3569, 1, 0
    %v3698 = vsel %vm3570, 1, 0
    %v3699 = vsel %vm3571, 1, 0
    %v3700 = vsel %vm3572, 1, 0
    %v3701 = vsel %vm3573, 1, 0
    %v3702 = vsel %vm3574, 1, 0
    %v3703 = vsel %vm3575, 1, 0
    %v3704 = vsel %vm3576, 1, 0
    %v3705 = vsel %vm3577, 1, 0
    %v3706 = vsel %vm3578, 1, 0
    %v3707 = vsel %vm3579, 1, 0
    %v3708 = vsel %vm3580, 1, 0
    %v3709 = vsel %vm3581, 1, 0
    %v3710 = vsel %vm3582, 1, 0
    %v3711 = vsel %vm3583, 1, 0
    %v3712 = vsel %vm3584, 1, 0
    %v3713 = vsel %vm3585, 1, 0
    %v3714 = vsel %vm3586, 1, 0
    %v3715 = vsel %vm3587, 1, 0
    %v3716 = vsel %vm3588, 1, 0
    %v3717 = vsel %vm3589, 1, 0
    %v3718 = vsel %vm3590, 1, 0
    %v3719 = vsel %vm3591, 1, 0
    %v3720 = vsel %vm3592, 1, 0
    %v3721 = vsel %vm3593, 1, 0
    %v3722 = vsel %vm3594, 1, 0
    %v3723 = vsel %vm3595, 1, 0
    %v3724 = vsel %vm3596, 1, 0
    %v3725 = vsel %vm3597, 1, 0
    %v3726 = vsel %vm3598, 1, 0
    %v3727 = vsel %vm3599, 1, 0
    %v3728 = vsel %vm3600, 1, 0
    %v3729 = vsel %vm3601, 1, 0
    %v3730 = vsel %vm3602, 1, 0
    %v3731 = vsel %vm3603, 1, 0
    %v3732 = vsel %vm3604, 1, 0
    %v3733 = vsel %vm3605, 1, 0
    %v3734 = vsel %vm3606, 1, 0
    %v3735 = vsel %vm3607, 1, 0
    %v3736 = vsel %vm3608, 1, 0
    %v3737 = vsel %vm3609, 1, 0
    %v3738 = vsel %vm3610, 1, 0
    %v3739 = vsel %vm3611, 1, 0
    %v3740 = vsel %vm3612, 1, 0
    %v3741 = vsel %vm3613, 1, 0
    %v3742 = vsel %vm3614, 1, 0
    %v3743 = vsel %vm3615, 1, 0
    %v3744 = vsel %vm3616, 1, 0
    %v3745 = vsel %vm3617, 1, 0
    %v3746 = vsel %vm3618, 1, 0
    %v3747 = vsel %vm3619, 1, 0
    %v3748 = vsel %vm3620, 1, 0
    %v3749 = vsel %vm3621, 1, 0
    %v3750 = vsel %vm3622, 1, 0
    %v3751 = vsel %vm3623, 1, 0
    %v3752 = vsel %vm3624, 1, 0
    %v3753 = vsel %vm3625, 1, 0
    %v3754 = vsel %vm3626, 1, 0
    %v3755 = vsel %vm3627, 1, 0
    %v3756 = vsel %vm3628, 1, 0
    %v3757 = vsel %vm3629, 1, 0
    %v3758 = vsel %vm3630, 1, 0
    %v3759 = vsel %vm3631, 1, 0
    %v3760 = vsel %vm3632, 1, 0
    %v3761 = vsel %vm3633, 1, 0
    %v3762 = vsel %vm3634, 1, 0
    %v3763 = vsel %vm3635, 1, 0
    %v3764 = vsel %vm3636, 1, 0
    %v3765 = vsel %vm3637, 1, 0
    %v3766 = vsel %vm3638, 1, 0
    %v3767 = vsel %vm3639, 1, 0
    %v3768 = vsel %vm3640, 1, 0
    %v3769 = vsel %vm3641, 1, 0
    %v3770 = vsel %vm3642, 1, 0
    %v3771 = vsel %vm3643, 1, 0
    %v3772 = vsel %vm3644, 1, 0
    %v3773 = vsel %vm3645, 1, 0
    %v3774 = vsel %vm3646, 1, 0
    %v3775 = vsel %vm3647, 1, 0
    %v3776 = vsel %vm3648, 1, 0
    %v3777 = vsel %vm3649, 1, 0
    %v3778 = vsel %vm3650, 1, 0
    %v3779 = vsel %vm3651, 1, 0
    %v3780 = vsel %vm3652, 1, 0
    %v3781 = vcvt.s32.f32 %v3653
    %v3782 = vcvt.s32.f32 %v3654
    %v3783 = vcvt.s32.f32 %v3655
    %v3784 = vcvt.s32.f32 %v3656
    %v3785 = vcvt.s32.f32 %v3657
    %v3786 = vcvt.s32.f32 %v3658
    %v3787 = vcvt.s32.f32 %v3659
    %v3788 = vcvt.s32.f32 %v3660
    %v3789 = vcvt.s32.f32 %v3661
    %v3790 = vcvt.s32.f32 %v3662
    %v3791 = vcvt.s32.f32 %v3663
    %v3792 = vcvt.s32.f32 %v3664
    %v3793 = vcvt.s32.f32 %v3665
    %v3794 = vcvt.s32.f32 %v3666
    %v3795 = vcvt.s32.f32 %v3667
    %v3796 = vcvt.s32.f32 %v3668
    %v3797 = vcvt.s32.f32 %v3669
    %v3798 = vcvt.s32.f32 %v3670
    %v3799 = vcvt.s32.f32 %v3671
    %v3800 = vcvt.s32.f32 %v3672
    %v3801 = vcvt.s32.f32 %v3673
    %v3802 = vcvt.s32.f32 %v3674
    %v3803 = vcvt.s32.f32 %v3675
    %v3804 = vcvt.s32.f32 %v3676
    %v3805 = vcvt.s32.f32 %v3677
    %v3806 = vcvt.s32.f32 %v3678
    %v3807 = vcvt.s32.f32 %v3679
    %v3808 = vcvt.s32.f32 %v3680
    %v3809 = vcvt.s32.f32 %v3681
    %v3810 = vcvt.s32.f32 %v3682
    %v3811 = vcvt.s32.f32 %v3683
    %v3812 = vcvt.s32.f32 %v3684
    %v3813 = vcvt.s32.f32 %v3685
    %v3814 = vcvt.s32.f32 %v3686
    %v3815 = vcvt.s32.f32 %v3687
    %v3816 = vcvt.s32.f32 %v3688
    %v3817 = vcvt.s32.f32 %v3689
    %v3818 = vcvt.s32.f32 %v3690
    %v3819 = vcvt.s32.f32 %v3691
    %v3820 = vcvt.s32.f32 %v3692
    %v3821 = vcvt.s32.f32 %v3693
    %v3822 = vcvt.s32.f32 %v3694
    %v3823 = vcvt.s32.f32 %v3695
    %v3824 = vcvt.s32.f32 %v3696
    %v3825 = vcvt.s32.f32 %v3697
    %v3826 = vcvt.s32.f32 %v3698
    %v3827 = vcvt.s32.f32 %v3699
    %v3828 = vcvt.s32.f32 %v3700
    %v3829 = vcvt.s32.f32 %v3701
    %v3830 = vcvt.s32.f32 %v3702
    %v3831 = vcvt.s32.f32 %v3703
    %v3832 = vcvt.s32.f32 %v3704
    %v3833 = vcvt.s32.f32 %v3705
    %v3834 = vcvt.s32.f32 %v3706
    %v3835 = vcvt.s32.f32 %v3707
    %v3836 = vcvt.s32.f32 %v3708
    %v3837 = vcvt.s32.f32 %v3709
    %v3838 = vcvt.s32.f32 %v3710
    %v3839 = vcvt.s32.f32 %v3711
    %v3840 = vcvt.s32.f32 %v3712
    %v3841 = vcvt.s32.f32 %v3713
    %v3842 = vcvt.s32.f32 %v3714
    %v3843 = vcvt.s32.f32 %v3715
    %v3844 = vcvt.s32.f32 %v3716
    %v3845 = vcvt.s32.f32 %v3717
    %v3846 = vcvt.s32.f32 %v3718
    %v3847 = vcvt.s32.f32 %v3719
    %v3848 = vcvt.s32.f32 %v3720
    %v3849 = vcvt.s32.f32 %v3721
    %v3850 = vcvt.s32.f32 %v3722
    %v3851 = vcvt.s32.f32 %v3723
    %v3852 = vcvt.s32.f32 %v3724
    %v3853 = vcvt.s32.f32 %v3725
    %v3854 = vcvt.s32.f32 %v3726
    %v3855 = vcvt.s32.f32 %v3727
    %v3856 = vcvt.s32.f32 %v3728
    %v3857 = vcvt.s32.f32 %v3729
    %v3858 = vcvt.s32.f32 %v3730
    %v3859 = vcvt.s32.f32 %v3731
    %v3860 = vcvt.s32.f32 %v3732
    %v3861 = vcvt.s32.f32 %v3733
    %v3862 = vcvt.s32.f32 %v3734
    %v3863 = vcvt.s32.f32 %v3735
    %v3864 = vcvt.s32.f32 %v3736
    %v3865 = vcvt.s32.f32 %v3737
    %v3866 = vcvt.s32.f32 %v3738
    %v3867 = vcvt.s32.f32 %v3739
    %v3868 = vcvt.s32.f32 %v3740
    %v3869 = vcvt.s32.f32 %v3741
    %v3870 = vcvt.s32.f32 %v3742
    %v3871 = vcvt.s32.f32 %v3743
    %v3872 = vcvt.s32.f32 %v3744
    %v3873 = vcvt.s32.f32 %v3745
    %v3874 = vcvt.s32.f32 %v3746
    %v3875 = vcvt.s32.f32 %v3747
    %v3876 = vcvt.s32.f32 %v3748
    %v3877 = vcvt.s32.f32 %v3749
    %v3878 = vcvt.s32.f32 %v3750
    %v3879 = vcvt.s32.f32 %v3751
    %v3880 = vcvt.s32.f32 %v3752
    %v3881 = vcvt.s32.f32 %v3753
    %v3882 = vcvt.s32.f32 %v3754
    %v3883 = vcvt.s32.f32 %v3755
    %v3884 = vcvt.s32.f32 %v3756
    %v3885 = vcvt.s32.f32 %v3757
    %v3886 = vcvt.s32.f32 %v3758
    %v3887 = vcvt.s32.f32 %v3759
    %v3888 = vcvt.s32.f32 %v3760
    %v3889 = vcvt.s32.f32 %v3761
    %v3890 = vcvt.s32.f32 %v3762
    %v3891 = vcvt.s32.f32 %v3763
    %v3892 = vcvt.s32.f32 %v3764
    %v3893 = vcvt.s32.f32 %v3765
    %v3894 = vcvt.s32.f32 %v3766
    %v3895 = vcvt.s32.f32 %v3767
    %v3896 = vcvt.s32.f32 %v3768
    %v3897 = vcvt.s32.f32 %v3769
    %v3898 = vcvt.s32.f32 %v3770
    %v3899 = vcvt.s32.f32 %v3771
    %v3900 = vcvt.s32.f32 %v3772
    %v3901 = vcvt.s32.f32 %v3773
    %v3902 = vcvt.s32.f32 %v3774
    %v3903 = vcvt.s32.f32 %v3775
    %v3904 = vcvt.s32.f32 %v3776
    %v3905 = vcvt.s32.f32 %v3777
    %v3906 = vcvt.s32.f32 %v3778
    %v3907 = vcvt.s32.f32 %v3779
    %v3908 = vcvt.s32.f32 %v3780
    %v3909 = vadd.f32 %v3349, %v3781
    %v3910 = vadd.f32 %v3350, %v3782
    %v3911 = vadd.f32 %v3351, %v3783
    %v3912 = vadd.f32 %v3352, %v3784
    %v3913 = vadd.f32 %v3353, %v3785
    %v3914 = vadd.f32 %v3354, %v3786
    %v3915 = vadd.f32 %v3355, %v3787
    %v3916 = vadd.f32 %v3356, %v3788
    %v3917 = vadd.f32 %v3357, %v3789
    %v3918 = vadd.f32 %v3358, %v3790
    %v3919 = vadd.f32 %v3359, %v3791
    %v3920 = vadd.f32 %v3360, %v3792
    %v3921 = vadd.f32 %v3361, %v3793
    %v3922 = vadd.f32 %v3362, %v3794
    %v3923 = vadd.f32 %v3363, %v3795
    %v3924 = vadd.f32 %v3364, %v3796
    %v3925 = vadd.f32 %v3365, %v3797
    %v3926 = vadd.f32 %v3366, %v3798
    %v3927 = vadd.f32 %v3367, %v3799
    %v3928 = vadd.f32 %v3368, %v3800
    %v3929 = vadd.f32 %v3369, %v3801
    %v3930 = vadd.f32 %v3370, %v3802
    %v3931 = vadd.f32 %v3371, %v3803
    %v3932 = vadd.f32 %v3372, %v3804
    %v3933 = vadd.f32 %v3373, %v3805
    %v3934 = vadd.f32 %v3374, %v3806
    %v3935 = vadd.f32 %v3375, %v3807
    %v3936 = vadd.f32 %v3376, %v3808
    %v3937 = vadd.f32 %v3377, %v3809
    %v3938 = vadd.f32 %v3378, %v3810
    %v3939 = vadd.f32 %v3379, %v3811
    %v3940 = vadd.f32 %v3380, %v3812
    %v3941 = vadd.f32 %v3381, %v3813
    %v3942 = vadd.f32 %v3382, %v3814
    %v3943 = vadd.f32 %v3383, %v3815
    %v3944 = vadd.f32 %v3384, %v3816
    %v3945 = vadd.f32 %v3385, %v3817
    %v3946 = vadd.f32 %v3386, %v3818
    %v3947 = vadd.f32 %v3387, %v3819
    %v3948 = vadd.f32 %v3388, %v3820
    %v3949 = vadd.f32 %v3389, %v3821
    %v3950 = vadd.f32 %v3390, %v3822
    %v3951 = vadd.f32 %v3391, %v3823
    %v3952 = vadd.f32 %v3392, %v3824
    %v3953 = vadd.f32 %v3393, %v3825
    %v3954 = vadd.f32 %v3394, %v3826
    %v3955 = vadd.f32 %v3395, %v3827
    %v3956 = vadd.f32 %v3396, %v3828
    %v3957 = vadd.f32 %v3397, %v3829
    %v3958 = vadd.f32 %v3398, %v3830
    %v3959 = vadd.f32 %v3399, %v3831
    %v3960 = vadd.f32 %v3400, %v3832
    %v3961 = vadd.f32 %v3401, %v3833
    %v3962 = vadd.f32 %v3402, %v3834
    %v3963 = vadd.f32 %v3403, %v3835
    %v3964 = vadd.f32 %v3404, %v3836
    %v3965 = vadd.f32 %v3405, %v3837
    %v3966 = vadd.f32 %v3406, %v3838
    %v3967 = vadd.f32 %v3407, %v3839
    %v3968 = vadd.f32 %v3408, %v3840
    %v3969 = vadd.f32 %v3409, %v3841
    %v3970 = vadd.f32 %v3410, %v3842
    %v3971 = vadd.f32 %v3411, %v3843
    %v3972 = vadd.f32 %v3412, %v3844
    %v3973 = vadd.f32 %v3413, %v3845
    %v3974 = vadd.f32 %v3414, %v3846
    %v3975 = vadd.f32 %v3415, %v3847
    %v3976 = vadd.f32 %v3416, %v3848
    %v3977 = vadd.f32 %v3417, %v3849
    %v3978 = vadd.f32 %v3418, %v3850
    %v3979 = vadd.f32 %v3419, %v3851
    %v3980 = vadd.f32 %v3420, %v3852
    %v3981 = vadd.f32 %v3421, %v3853
    %v3982 = vadd.f32 %v3422, %v3854
    %v3983 = vadd.f32 %v3423, %v3855
    %v3984 = vadd.f32 %v3424, %v3856
    %v3985 = vadd.f32 %v3425, %v3857
    %v3986 = vadd.f32 %v3426, %v3858
    %v3987 = vadd.f32 %v3427, %v3859
    %v3988 = vadd.f32 %v3428, %v3860
    %v3989 = vadd.f32 %v3429, %v3861
    %v3990 = vadd.f32 %v3430, %v3862
    %v3991 = vadd.f32 %v3431, %v3863
    %v3992 = vadd.f32 %v3432, %v3864
    %v3993 = vadd.f32 %v3433, %v3865
    %v3994 = vadd.f32 %v3434, %v3866
    %v3995 = vadd.f32 %v3435, %v3867
    %v3996 = vadd.f32 %v3436, %v3868
    %v3997 = vadd.f32 %v3437, %v3869
    %v3998 = vadd.f32 %v3438, %v3870
    %v3999 = vadd.f32 %v3439, %v3871
    %v4000 = vadd.f32 %v3440, %v3872
    %v4001 = vadd.f32 %v3441, %v3873
    %v4002 = vadd.f32 %v3442, %v3874
    %v4003 = vadd.f32 %v3443, %v3875
    %v4004 = vadd.f32 %v3444, %v3876
    %v4005 = vadd.f32 %v3445, %v3877
    %v4006 = vadd.f32 %v3446, %v3878
    %v4007 = vadd.f32 %v3447, %v3879
    %v4008 = vadd.f32 %v3448, %v3880
    %v4009 = vadd.f32 %v3449, %v3881
    %v4010 = vadd.f32 %v3450, %v3882
    %v4011 = vadd.f32 %v3451, %v3883
    %v4012 = vadd.f32 %v3452, %v3884
    %v4013 = vadd.f32 %v3453, %v3885
    %v4014 = vadd.f32 %v3454, %v3886
    %v4015 = vadd.f32 %v3455, %v3887
    %v4016 = vadd.f32 %v3456, %v3888
    %v4017 = vadd.f32 %v3457, %v3889
    %v4018 = vadd.f32 %v3458, %v3890
    %v4019 = vadd.f32 %v3459, %v3891
    %v4020 = vadd.f32 %v3460, %v3892
    %v4021 = vadd.f32 %v3461, %v3893
    %v4022 = vadd.f32 %v3462, %v3894
    %v4023 = vadd.f32 %v3463, %v3895
    %v4024 = vadd.f32 %v3464, %v3896
    %v4025 = vadd.f32 %v3465, %v3897
    %v4026 = vadd.f32 %v3466, %v3898
    %v4027 = vadd.f32 %v3467, %v3899
    %v4028 = vadd.f32 %v3468, %v3900
    %v4029 = vadd.f32 %v3469, %v3901
    %v4030 = vadd.f32 %v3470, %v3902
    %v4031 = vadd.f32 %v3471, %v3903
    %v4032 = vadd.f32 %v3472, %v3904
    %v4033 = vadd.f32 %v3473, %v3905
    %v4034 = vadd.f32 %v3474, %v3906
    %v4035 = vadd.f32 %v3475, %v3907
    %v4036 = vadd.f32 %v3476, %v3908
    %4037 = vset.pattern.permute.xlu0 7
    %4038 = vperm.xlu0 %4037, %v92
    %v4039 = vpop.permute.xlu0 %4038
    %4040 = vset.pattern.permute.xlu0 7
    %4041 = vperm.xlu0 %4040, %v93
    %v4042 = vpop.permute.xlu0 %4041
    %4043 = vset.pattern.permute.xlu0 7
    %4044 = vperm.xlu0 %4043, %v94
    %v4045 = vpop.permute.xlu0 %4044
    %4046 = vset.pattern.permute.xlu0 7
    %4047 = vperm.xlu0 %4046, %v95
    %v4048 = vpop.permute.xlu0 %4047
    %4049 = vset.pattern.permute.xlu0 7
    %4050 = vperm.xlu0 %4049, %v96
    %v4051 = vpop.permute.xlu0 %4050
    %4052 = vset.pattern.permute.xlu0 7
    %4053 = vperm.xlu0 %4052, %v97
    %v4054 = vpop.permute.xlu0 %4053
    %4055 = vset.pattern.permute.xlu0 7
    %4056 = vperm.xlu0 %4055, %v98
    %v4057 = vpop.permute.xlu0 %4056
    %4058 = vset.pattern.permute.xlu0 7
    %4059 = vperm.xlu0 %4058, %v99
    %v4060 = vpop.permute.xlu0 %4059
    %4061 = vset.pattern.permute.xlu0 7
    %4062 = vperm.xlu0 %4061, %v100
    %v4063 = vpop.permute.xlu0 %4062
    %4064 = vset.pattern.permute.xlu0 7
    %4065 = vperm.xlu0 %4064, %v101
    %v4066 = vpop.permute.xlu0 %4065
    %4067 = vset.pattern.permute.xlu0 7
    %4068 = vperm.xlu0 %4067, %v102
    %v4069 = vpop.permute.xlu0 %4068
    %4070 = vset.pattern.permute.xlu0 7
    %4071 = vperm.xlu0 %4070, %v103
    %v4072 = vpop.permute.xlu0 %4071
    %4073 = vset.pattern.permute.xlu0 7
    %4074 = vperm.xlu0 %4073, %v104
    %v4075 = vpop.permute.xlu0 %4074
    %4076 = vset.pattern.permute.xlu0 7
    %4077 = vperm.xlu0 %4076, %v105
    %v4078 = vpop.permute.xlu0 %4077
    %4079 = vset.pattern.permute.xlu0 7
    %4080 = vperm.xlu0 %4079, %v106
    %v4081 = vpop.permute.xlu0 %4080
    %4082 = vset.pattern.permute.xlu0 7
    %4083 = vperm.xlu0 %4082, %v107
    %v4084 = vpop.permute.xlu0 %4083
    %vm4085 = vcmp.eq.s32.totalorder %v4039, %v109
    %vm4086 = vcmp.eq.s32.totalorder %v4039, %v110
    %vm4087 = vcmp.eq.s32.totalorder %v4039, %v111
    %vm4088 = vcmp.eq.s32.totalorder %v4039, %v112
    %vm4089 = vcmp.eq.s32.totalorder %v4039, %v113
    %vm4090 = vcmp.eq.s32.totalorder %v4039, %v114
    %vm4091 = vcmp.eq.s32.totalorder %v4039, %v115
    %vm4092 = vcmp.eq.s32.totalorder %v4039, %v116
    %vm4093 = vcmp.eq.s32.totalorder %v4042, %v109
    %vm4094 = vcmp.eq.s32.totalorder %v4042, %v110
    %vm4095 = vcmp.eq.s32.totalorder %v4042, %v111
    %vm4096 = vcmp.eq.s32.totalorder %v4042, %v112
    %vm4097 = vcmp.eq.s32.totalorder %v4042, %v113
    %vm4098 = vcmp.eq.s32.totalorder %v4042, %v114
    %vm4099 = vcmp.eq.s32.totalorder %v4042, %v115
    %vm4100 = vcmp.eq.s32.totalorder %v4042, %v116
    %vm4101 = vcmp.eq.s32.totalorder %v4045, %v109
    %vm4102 = vcmp.eq.s32.totalorder %v4045, %v110
    %vm4103 = vcmp.eq.s32.totalorder %v4045, %v111
    %vm4104 = vcmp.eq.s32.totalorder %v4045, %v112
    %vm4105 = vcmp.eq.s32.totalorder %v4045, %v113
    %vm4106 = vcmp.eq.s32.totalorder %v4045, %v114
    %vm4107 = vcmp.eq.s32.totalorder %v4045, %v115
    %vm4108 = vcmp.eq.s32.totalorder %v4045, %v116
    %vm4109 = vcmp.eq.s32.totalorder %v4048, %v109
    %vm4110 = vcmp.eq.s32.totalorder %v4048, %v110
    %vm4111 = vcmp.eq.s32.totalorder %v4048, %v111
    %vm4112 = vcmp.eq.s32.totalorder %v4048, %v112
    %vm4113 = vcmp.eq.s32.totalorder %v4048, %v113
    %vm4114 = vcmp.eq.s32.totalorder %v4048, %v114
    %vm4115 = vcmp.eq.s32.totalorder %v4048, %v115
    %vm4116 = vcmp.eq.s32.totalorder %v4048, %v116
    %vm4117 = vcmp.eq.s32.totalorder %v4051, %v109
    %vm4118 = vcmp.eq.s32.totalorder %v4051, %v110
    %vm4119 = vcmp.eq.s32.totalorder %v4051, %v111
    %vm4120 = vcmp.eq.s32.totalorder %v4051, %v112
    %vm4121 = vcmp.eq.s32.totalorder %v4051, %v113
    %vm4122 = vcmp.eq.s32.totalorder %v4051, %v114
    %vm4123 = vcmp.eq.s32.totalorder %v4051, %v115
    %vm4124 = vcmp.eq.s32.totalorder %v4051, %v116
    %vm4125 = vcmp.eq.s32.totalorder %v4054, %v109
    %vm4126 = vcmp.eq.s32.totalorder %v4054, %v110
    %vm4127 = vcmp.eq.s32.totalorder %v4054, %v111
    %vm4128 = vcmp.eq.s32.totalorder %v4054, %v112
    %vm4129 = vcmp.eq.s32.totalorder %v4054, %v113
    %vm4130 = vcmp.eq.s32.totalorder %v4054, %v114
    %vm4131 = vcmp.eq.s32.totalorder %v4054, %v115
    %vm4132 = vcmp.eq.s32.totalorder %v4054, %v116
    %vm4133 = vcmp.eq.s32.totalorder %v4057, %v109
    %vm4134 = vcmp.eq.s32.totalorder %v4057, %v110
    %vm4135 = vcmp.eq.s32.totalorder %v4057, %v111
    %vm4136 = vcmp.eq.s32.totalorder %v4057, %v112
    %vm4137 = vcmp.eq.s32.totalorder %v4057, %v113
    %vm4138 = vcmp.eq.s32.totalorder %v4057, %v114
    %vm4139 = vcmp.eq.s32.totalorder %v4057, %v115
    %vm4140 = vcmp.eq.s32.totalorder %v4057, %v116
    %vm4141 = vcmp.eq.s32.totalorder %v4060, %v109
    %vm4142 = vcmp.eq.s32.totalorder %v4060, %v110
    %vm4143 = vcmp.eq.s32.totalorder %v4060, %v111
    %vm4144 = vcmp.eq.s32.totalorder %v4060, %v112
    %vm4145 = vcmp.eq.s32.totalorder %v4060, %v113
    %vm4146 = vcmp.eq.s32.totalorder %v4060, %v114
    %vm4147 = vcmp.eq.s32.totalorder %v4060, %v115
    %vm4148 = vcmp.eq.s32.totalorder %v4060, %v116
    %vm4149 = vcmp.eq.s32.totalorder %v4063, %v109
    %vm4150 = vcmp.eq.s32.totalorder %v4063, %v110
    %vm4151 = vcmp.eq.s32.totalorder %v4063, %v111
    %vm4152 = vcmp.eq.s32.totalorder %v4063, %v112
    %vm4153 = vcmp.eq.s32.totalorder %v4063, %v113
    %vm4154 = vcmp.eq.s32.totalorder %v4063, %v114
    %vm4155 = vcmp.eq.s32.totalorder %v4063, %v115
    %vm4156 = vcmp.eq.s32.totalorder %v4063, %v116
    %vm4157 = vcmp.eq.s32.totalorder %v4066, %v109
    %vm4158 = vcmp.eq.s32.totalorder %v4066, %v110
    %vm4159 = vcmp.eq.s32.totalorder %v4066, %v111
    %vm4160 = vcmp.eq.s32.totalorder %v4066, %v112
    %vm4161 = vcmp.eq.s32.totalorder %v4066, %v113
    %vm4162 = vcmp.eq.s32.totalorder %v4066, %v114
    %vm4163 = vcmp.eq.s32.totalorder %v4066, %v115
    %vm4164 = vcmp.eq.s32.totalorder %v4066, %v116
    %vm4165 = vcmp.eq.s32.totalorder %v4069, %v109
    %vm4166 = vcmp.eq.s32.totalorder %v4069, %v110
    %vm4167 = vcmp.eq.s32.totalorder %v4069, %v111
    %vm4168 = vcmp.eq.s32.totalorder %v4069, %v112
    %vm4169 = vcmp.eq.s32.totalorder %v4069, %v113
    %vm4170 = vcmp.eq.s32.totalorder %v4069, %v114
    %vm4171 = vcmp.eq.s32.totalorder %v4069, %v115
    %vm4172 = vcmp.eq.s32.totalorder %v4069, %v116
    %vm4173 = vcmp.eq.s32.totalorder %v4072, %v109
    %vm4174 = vcmp.eq.s32.totalorder %v4072, %v110
    %vm4175 = vcmp.eq.s32.totalorder %v4072, %v111
    %vm4176 = vcmp.eq.s32.totalorder %v4072, %v112
    %vm4177 = vcmp.eq.s32.totalorder %v4072, %v113
    %vm4178 = vcmp.eq.s32.totalorder %v4072, %v114
    %vm4179 = vcmp.eq.s32.totalorder %v4072, %v115
    %vm4180 = vcmp.eq.s32.totalorder %v4072, %v116
    %vm4181 = vcmp.eq.s32.totalorder %v4075, %v109
    %vm4182 = vcmp.eq.s32.totalorder %v4075, %v110
    %vm4183 = vcmp.eq.s32.totalorder %v4075, %v111
    %vm4184 = vcmp.eq.s32.totalorder %v4075, %v112
    %vm4185 = vcmp.eq.s32.totalorder %v4075, %v113
    %vm4186 = vcmp.eq.s32.totalorder %v4075, %v114
    %vm4187 = vcmp.eq.s32.totalorder %v4075, %v115
    %vm4188 = vcmp.eq.s32.totalorder %v4075, %v116
    %vm4189 = vcmp.eq.s32.totalorder %v4078, %v109
    %vm4190 = vcmp.eq.s32.totalorder %v4078, %v110
    %vm4191 = vcmp.eq.s32.totalorder %v4078, %v111
    %vm4192 = vcmp.eq.s32.totalorder %v4078, %v112
    %vm4193 = vcmp.eq.s32.totalorder %v4078, %v113
    %vm4194 = vcmp.eq.s32.totalorder %v4078, %v114
    %vm4195 = vcmp.eq.s32.totalorder %v4078, %v115
    %vm4196 = vcmp.eq.s32.totalorder %v4078, %v116
    %vm4197 = vcmp.eq.s32.totalorder %v4081, %v109
    %vm4198 = vcmp.eq.s32.totalorder %v4081, %v110
    %vm4199 = vcmp.eq.s32.totalorder %v4081, %v111
    %vm4200 = vcmp.eq.s32.totalorder %v4081, %v112
    %vm4201 = vcmp.eq.s32.totalorder %v4081, %v113
    %vm4202 = vcmp.eq.s32.totalorder %v4081, %v114
    %vm4203 = vcmp.eq.s32.totalorder %v4081, %v115
    %vm4204 = vcmp.eq.s32.totalorder %v4081, %v116
    %vm4205 = vcmp.eq.s32.totalorder %v4084, %v109
    %vm4206 = vcmp.eq.s32.totalorder %v4084, %v110
    %vm4207 = vcmp.eq.s32.totalorder %v4084, %v111
    %vm4208 = vcmp.eq.s32.totalorder %v4084, %v112
    %vm4209 = vcmp.eq.s32.totalorder %v4084, %v113
    %vm4210 = vcmp.eq.s32.totalorder %v4084, %v114
    %vm4211 = vcmp.eq.s32.totalorder %v4084, %v115
    %vm4212 = vcmp.eq.s32.totalorder %v4084, %v116
    %v4213 = vsel %vm4085, 1, 0
    %v4214 = vsel %vm4086, 1, 0
    %v4215 = vsel %vm4087, 1, 0
    %v4216 = vsel %vm4088, 1, 0
    %v4217 = vsel %vm4089, 1, 0
    %v4218 = vsel %vm4090, 1, 0
    %v4219 = vsel %vm4091, 1, 0
    %v4220 = vsel %vm4092, 1, 0
    %v4221 = vsel %vm4093, 1, 0
    %v4222 = vsel %vm4094, 1, 0
    %v4223 = vsel %vm4095, 1, 0
    %v4224 = vsel %vm4096, 1, 0
    %v4225 = vsel %vm4097, 1, 0
    %v4226 = vsel %vm4098, 1, 0
    %v4227 = vsel %vm4099, 1, 0
    %v4228 = vsel %vm4100, 1, 0
    %v4229 = vsel %vm4101, 1, 0
    %v4230 = vsel %vm4102, 1, 0
    %v4231 = vsel %vm4103, 1, 0
    %v4232 = vsel %vm4104, 1, 0
    %v4233 = vsel %vm4105, 1, 0
    %v4234 = vsel %vm4106, 1, 0
    %v4235 = vsel %vm4107, 1, 0
    %v4236 = vsel %vm4108, 1, 0
    %v4237 = vsel %vm4109, 1, 0
    %v4238 = vsel %vm4110, 1, 0
    %v4239 = vsel %vm4111, 1, 0
    %v4240 = vsel %vm4112, 1, 0
    %v4241 = vsel %vm4113, 1, 0
    %v4242 = vsel %vm4114, 1, 0
    %v4243 = vsel %vm4115, 1, 0
    %v4244 = vsel %vm4116, 1, 0
    %v4245 = vsel %vm4117, 1, 0
    %v4246 = vsel %vm4118, 1, 0
    %v4247 = vsel %vm4119, 1, 0
    %v4248 = vsel %vm4120, 1, 0
    %v4249 = vsel %vm4121, 1, 0
    %v4250 = vsel %vm4122, 1, 0
    %v4251 = vsel %vm4123, 1, 0
    %v4252 = vsel %vm4124, 1, 0
    %v4253 = vsel %vm4125, 1, 0
    %v4254 = vsel %vm4126, 1, 0
    %v4255 = vsel %vm4127, 1, 0
    %v4256 = vsel %vm4128, 1, 0
    %v4257 = vsel %vm4129, 1, 0
    %v4258 = vsel %vm4130, 1, 0
    %v4259 = vsel %vm4131, 1, 0
    %v4260 = vsel %vm4132, 1, 0
    %v4261 = vsel %vm4133, 1, 0
    %v4262 = vsel %vm4134, 1, 0
    %v4263 = vsel %vm4135, 1, 0
    %v4264 = vsel %vm4136, 1, 0
    %v4265 = vsel %vm4137, 1, 0
    %v4266 = vsel %vm4138, 1, 0
    %v4267 = vsel %vm4139, 1, 0
    %v4268 = vsel %vm4140, 1, 0
    %v4269 = vsel %vm4141, 1, 0
    %v4270 = vsel %vm4142, 1, 0
    %v4271 = vsel %vm4143, 1, 0
    %v4272 = vsel %vm4144, 1, 0
    %v4273 = vsel %vm4145, 1, 0
    %v4274 = vsel %vm4146, 1, 0
    %v4275 = vsel %vm4147, 1, 0
    %v4276 = vsel %vm4148, 1, 0
    %v4277 = vsel %vm4149, 1, 0
    %v4278 = vsel %vm4150, 1, 0
    %v4279 = vsel %vm4151, 1, 0
    %v4280 = vsel %vm4152, 1, 0
    %v4281 = vsel %vm4153, 1, 0
    %v4282 = vsel %vm4154, 1, 0
    %v4283 = vsel %vm4155, 1, 0
    %v4284 = vsel %vm4156, 1, 0
    %v4285 = vsel %vm4157, 1, 0
    %v4286 = vsel %vm4158, 1, 0
    %v4287 = vsel %vm4159, 1, 0
    %v4288 = vsel %vm4160, 1, 0
    %v4289 = vsel %vm4161, 1, 0
    %v4290 = vsel %vm4162, 1, 0
    %v4291 = vsel %vm4163, 1, 0
    %v4292 = vsel %vm4164, 1, 0
    %v4293 = vsel %vm4165, 1, 0
    %v4294 = vsel %vm4166, 1, 0
    %v4295 = vsel %vm4167, 1, 0
    %v4296 = vsel %vm4168, 1, 0
    %v4297 = vsel %vm4169, 1, 0
    %v4298 = vsel %vm4170, 1, 0
    %v4299 = vsel %vm4171, 1, 0
    %v4300 = vsel %vm4172, 1, 0
    %v4301 = vsel %vm4173, 1, 0
    %v4302 = vsel %vm4174, 1, 0
    %v4303 = vsel %vm4175, 1, 0
    %v4304 = vsel %vm4176, 1, 0
    %v4305 = vsel %vm4177, 1, 0
    %v4306 = vsel %vm4178, 1, 0
    %v4307 = vsel %vm4179, 1, 0
    %v4308 = vsel %vm4180, 1, 0
    %v4309 = vsel %vm4181, 1, 0
    %v4310 = vsel %vm4182, 1, 0
    %v4311 = vsel %vm4183, 1, 0
    %v4312 = vsel %vm4184, 1, 0
    %v4313 = vsel %vm4185, 1, 0
    %v4314 = vsel %vm4186, 1, 0
    %v4315 = vsel %vm4187, 1, 0
    %v4316 = vsel %vm4188, 1, 0
    %v4317 = vsel %vm4189, 1, 0
    %v4318 = vsel %vm4190, 1, 0
    %v4319 = vsel %vm4191, 1, 0
    %v4320 = vsel %vm4192, 1, 0
    %v4321 = vsel %vm4193, 1, 0
    %v4322 = vsel %vm4194, 1, 0
    %v4323 = vsel %vm4195, 1, 0
    %v4324 = vsel %vm4196, 1, 0
    %v4325 = vsel %vm4197, 1, 0
    %v4326 = vsel %vm4198, 1, 0
    %v4327 = vsel %vm4199, 1, 0
    %v4328 = vsel %vm4200, 1, 0
    %v4329 = vsel %vm4201, 1, 0
    %v4330 = vsel %vm4202, 1, 0
    %v4331 = vsel %vm4203, 1, 0
    %v4332 = vsel %vm4204, 1, 0
    %v4333 = vsel %vm4205, 1, 0
    %v4334 = vsel %vm4206, 1, 0
    %v4335 = vsel %vm4207, 1, 0
    %v4336 = vsel %vm4208, 1, 0
    %v4337 = vsel %vm4209, 1, 0
    %v4338 = vsel %vm4210, 1, 0
    %v4339 = vsel %vm4211, 1, 0
    %v4340 = vsel %vm4212, 1, 0
    %v4341 = vcvt.s32.f32 %v4213
    %v4342 = vcvt.s32.f32 %v4214
    %v4343 = vcvt.s32.f32 %v4215
    %v4344 = vcvt.s32.f32 %v4216
    %v4345 = vcvt.s32.f32 %v4217
    %v4346 = vcvt.s32.f32 %v4218
    %v4347 = vcvt.s32.f32 %v4219
    %v4348 = vcvt.s32.f32 %v4220
    %v4349 = vcvt.s32.f32 %v4221
    %v4350 = vcvt.s32.f32 %v4222
    %v4351 = vcvt.s32.f32 %v4223
    %v4352 = vcvt.s32.f32 %v4224
    %v4353 = vcvt.s32.f32 %v4225
    %v4354 = vcvt.s32.f32 %v4226
    %v4355 = vcvt.s32.f32 %v4227
    %v4356 = vcvt.s32.f32 %v4228
    %v4357 = vcvt.s32.f32 %v4229
    %v4358 = vcvt.s32.f32 %v4230
    %v4359 = vcvt.s32.f32 %v4231
    %v4360 = vcvt.s32.f32 %v4232
    %v4361 = vcvt.s32.f32 %v4233
    %v4362 = vcvt.s32.f32 %v4234
    %v4363 = vcvt.s32.f32 %v4235
    %v4364 = vcvt.s32.f32 %v4236
    %v4365 = vcvt.s32.f32 %v4237
    %v4366 = vcvt.s32.f32 %v4238
    %v4367 = vcvt.s32.f32 %v4239
    %v4368 = vcvt.s32.f32 %v4240
    %v4369 = vcvt.s32.f32 %v4241
    %v4370 = vcvt.s32.f32 %v4242
    %v4371 = vcvt.s32.f32 %v4243
    %v4372 = vcvt.s32.f32 %v4244
    %v4373 = vcvt.s32.f32 %v4245
    %v4374 = vcvt.s32.f32 %v4246
    %v4375 = vcvt.s32.f32 %v4247
    %v4376 = vcvt.s32.f32 %v4248
    %v4377 = vcvt.s32.f32 %v4249
    %v4378 = vcvt.s32.f32 %v4250
    %v4379 = vcvt.s32.f32 %v4251
    %v4380 = vcvt.s32.f32 %v4252
    %v4381 = vcvt.s32.f32 %v4253
    %v4382 = vcvt.s32.f32 %v4254
    %v4383 = vcvt.s32.f32 %v4255
    %v4384 = vcvt.s32.f32 %v4256
    %v4385 = vcvt.s32.f32 %v4257
    %v4386 = vcvt.s32.f32 %v4258
    %v4387 = vcvt.s32.f32 %v4259
    %v4388 = vcvt.s32.f32 %v4260
    %v4389 = vcvt.s32.f32 %v4261
    %v4390 = vcvt.s32.f32 %v4262
    %v4391 = vcvt.s32.f32 %v4263
    %v4392 = vcvt.s32.f32 %v4264
    %v4393 = vcvt.s32.f32 %v4265
    %v4394 = vcvt.s32.f32 %v4266
    %v4395 = vcvt.s32.f32 %v4267
    %v4396 = vcvt.s32.f32 %v4268
    %v4397 = vcvt.s32.f32 %v4269
    %v4398 = vcvt.s32.f32 %v4270
    %v4399 = vcvt.s32.f32 %v4271
    %v4400 = vcvt.s32.f32 %v4272
    %v4401 = vcvt.s32.f32 %v4273
    %v4402 = vcvt.s32.f32 %v4274
    %v4403 = vcvt.s32.f32 %v4275
    %v4404 = vcvt.s32.f32 %v4276
    %v4405 = vcvt.s32.f32 %v4277
    %v4406 = vcvt.s32.f32 %v4278
    %v4407 = vcvt.s32.f32 %v4279
    %v4408 = vcvt.s32.f32 %v4280
    %v4409 = vcvt.s32.f32 %v4281
    %v4410 = vcvt.s32.f32 %v4282
    %v4411 = vcvt.s32.f32 %v4283
    %v4412 = vcvt.s32.f32 %v4284
    %v4413 = vcvt.s32.f32 %v4285
    %v4414 = vcvt.s32.f32 %v4286
    %v4415 = vcvt.s32.f32 %v4287
    %v4416 = vcvt.s32.f32 %v4288
    %v4417 = vcvt.s32.f32 %v4289
    %v4418 = vcvt.s32.f32 %v4290
    %v4419 = vcvt.s32.f32 %v4291
    %v4420 = vcvt.s32.f32 %v4292
    %v4421 = vcvt.s32.f32 %v4293
    %v4422 = vcvt.s32.f32 %v4294
    %v4423 = vcvt.s32.f32 %v4295
    %v4424 = vcvt.s32.f32 %v4296
    %v4425 = vcvt.s32.f32 %v4297
    %v4426 = vcvt.s32.f32 %v4298
    %v4427 = vcvt.s32.f32 %v4299
    %v4428 = vcvt.s32.f32 %v4300
    %v4429 = vcvt.s32.f32 %v4301
    %v4430 = vcvt.s32.f32 %v4302
    %v4431 = vcvt.s32.f32 %v4303
    %v4432 = vcvt.s32.f32 %v4304
    %v4433 = vcvt.s32.f32 %v4305
    %v4434 = vcvt.s32.f32 %v4306
    %v4435 = vcvt.s32.f32 %v4307
    %v4436 = vcvt.s32.f32 %v4308
    %v4437 = vcvt.s32.f32 %v4309
    %v4438 = vcvt.s32.f32 %v4310
    %v4439 = vcvt.s32.f32 %v4311
    %v4440 = vcvt.s32.f32 %v4312
    %v4441 = vcvt.s32.f32 %v4313
    %v4442 = vcvt.s32.f32 %v4314
    %v4443 = vcvt.s32.f32 %v4315
    %v4444 = vcvt.s32.f32 %v4316
    %v4445 = vcvt.s32.f32 %v4317
    %v4446 = vcvt.s32.f32 %v4318
    %v4447 = vcvt.s32.f32 %v4319
    %v4448 = vcvt.s32.f32 %v4320
    %v4449 = vcvt.s32.f32 %v4321
    %v4450 = vcvt.s32.f32 %v4322
    %v4451 = vcvt.s32.f32 %v4323
    %v4452 = vcvt.s32.f32 %v4324
    %v4453 = vcvt.s32.f32 %v4325
    %v4454 = vcvt.s32.f32 %v4326
    %v4455 = vcvt.s32.f32 %v4327
    %v4456 = vcvt.s32.f32 %v4328
    %v4457 = vcvt.s32.f32 %v4329
    %v4458 = vcvt.s32.f32 %v4330
    %v4459 = vcvt.s32.f32 %v4331
    %v4460 = vcvt.s32.f32 %v4332
    %v4461 = vcvt.s32.f32 %v4333
    %v4462 = vcvt.s32.f32 %v4334
    %v4463 = vcvt.s32.f32 %v4335
    %v4464 = vcvt.s32.f32 %v4336
    %v4465 = vcvt.s32.f32 %v4337
    %v4466 = vcvt.s32.f32 %v4338
    %v4467 = vcvt.s32.f32 %v4339
    %v4468 = vcvt.s32.f32 %v4340
    %v4469 = vadd.f32 %v3909, %v4341
    %v4470 = vadd.f32 %v3910, %v4342
    %v4471 = vadd.f32 %v3911, %v4343
    %v4472 = vadd.f32 %v3912, %v4344
    %v4473 = vadd.f32 %v3913, %v4345
    %v4474 = vadd.f32 %v3914, %v4346
    %v4475 = vadd.f32 %v3915, %v4347
    %v4476 = vadd.f32 %v3916, %v4348
    %v4477 = vadd.f32 %v3917, %v4349
    %v4478 = vadd.f32 %v3918, %v4350
    %v4479 = vadd.f32 %v3919, %v4351
    %v4480 = vadd.f32 %v3920, %v4352
    %v4481 = vadd.f32 %v3921, %v4353
    %v4482 = vadd.f32 %v3922, %v4354
    %v4483 = vadd.f32 %v3923, %v4355
    %v4484 = vadd.f32 %v3924, %v4356
    %v4485 = vadd.f32 %v3925, %v4357
    %v4486 = vadd.f32 %v3926, %v4358
    %v4487 = vadd.f32 %v3927, %v4359
    %v4488 = vadd.f32 %v3928, %v4360
    %v4489 = vadd.f32 %v3929, %v4361
    %v4490 = vadd.f32 %v3930, %v4362
    %v4491 = vadd.f32 %v3931, %v4363
    %v4492 = vadd.f32 %v3932, %v4364
    %v4493 = vadd.f32 %v3933, %v4365
    %v4494 = vadd.f32 %v3934, %v4366
    %v4495 = vadd.f32 %v3935, %v4367
    %v4496 = vadd.f32 %v3936, %v4368
    %v4497 = vadd.f32 %v3937, %v4369
    %v4498 = vadd.f32 %v3938, %v4370
    %v4499 = vadd.f32 %v3939, %v4371
    %v4500 = vadd.f32 %v3940, %v4372
    %v4501 = vadd.f32 %v3941, %v4373
    %v4502 = vadd.f32 %v3942, %v4374
    %v4503 = vadd.f32 %v3943, %v4375
    %v4504 = vadd.f32 %v3944, %v4376
    %v4505 = vadd.f32 %v3945, %v4377
    %v4506 = vadd.f32 %v3946, %v4378
    %v4507 = vadd.f32 %v3947, %v4379
    %v4508 = vadd.f32 %v3948, %v4380
    %v4509 = vadd.f32 %v3949, %v4381
    %v4510 = vadd.f32 %v3950, %v4382
    %v4511 = vadd.f32 %v3951, %v4383
    %v4512 = vadd.f32 %v3952, %v4384
    %v4513 = vadd.f32 %v3953, %v4385
    %v4514 = vadd.f32 %v3954, %v4386
    %v4515 = vadd.f32 %v3955, %v4387
    %v4516 = vadd.f32 %v3956, %v4388
    %v4517 = vadd.f32 %v3957, %v4389
    %v4518 = vadd.f32 %v3958, %v4390
    %v4519 = vadd.f32 %v3959, %v4391
    %v4520 = vadd.f32 %v3960, %v4392
    %v4521 = vadd.f32 %v3961, %v4393
    %v4522 = vadd.f32 %v3962, %v4394
    %v4523 = vadd.f32 %v3963, %v4395
    %v4524 = vadd.f32 %v3964, %v4396
    %v4525 = vadd.f32 %v3965, %v4397
    %v4526 = vadd.f32 %v3966, %v4398
    %v4527 = vadd.f32 %v3967, %v4399
    %v4528 = vadd.f32 %v3968, %v4400
    %v4529 = vadd.f32 %v3969, %v4401
    %v4530 = vadd.f32 %v3970, %v4402
    %v4531 = vadd.f32 %v3971, %v4403
    %v4532 = vadd.f32 %v3972, %v4404
    %v4533 = vadd.f32 %v3973, %v4405
    %v4534 = vadd.f32 %v3974, %v4406
    %v4535 = vadd.f32 %v3975, %v4407
    %v4536 = vadd.f32 %v3976, %v4408
    %v4537 = vadd.f32 %v3977, %v4409
    %v4538 = vadd.f32 %v3978, %v4410
    %v4539 = vadd.f32 %v3979, %v4411
    %v4540 = vadd.f32 %v3980, %v4412
    %v4541 = vadd.f32 %v3981, %v4413
    %v4542 = vadd.f32 %v3982, %v4414
    %v4543 = vadd.f32 %v3983, %v4415
    %v4544 = vadd.f32 %v3984, %v4416
    %v4545 = vadd.f32 %v3985, %v4417
    %v4546 = vadd.f32 %v3986, %v4418
    %v4547 = vadd.f32 %v3987, %v4419
    %v4548 = vadd.f32 %v3988, %v4420
    %v4549 = vadd.f32 %v3989, %v4421
    %v4550 = vadd.f32 %v3990, %v4422
    %v4551 = vadd.f32 %v3991, %v4423
    %v4552 = vadd.f32 %v3992, %v4424
    %v4553 = vadd.f32 %v3993, %v4425
    %v4554 = vadd.f32 %v3994, %v4426
    %v4555 = vadd.f32 %v3995, %v4427
    %v4556 = vadd.f32 %v3996, %v4428
    %v4557 = vadd.f32 %v3997, %v4429
    %v4558 = vadd.f32 %v3998, %v4430
    %v4559 = vadd.f32 %v3999, %v4431
    %v4560 = vadd.f32 %v4000, %v4432
    %v4561 = vadd.f32 %v4001, %v4433
    %v4562 = vadd.f32 %v4002, %v4434
    %v4563 = vadd.f32 %v4003, %v4435
    %v4564 = vadd.f32 %v4004, %v4436
    %v4565 = vadd.f32 %v4005, %v4437
    %v4566 = vadd.f32 %v4006, %v4438
    %v4567 = vadd.f32 %v4007, %v4439
    %v4568 = vadd.f32 %v4008, %v4440
    %v4569 = vadd.f32 %v4009, %v4441
    %v4570 = vadd.f32 %v4010, %v4442
    %v4571 = vadd.f32 %v4011, %v4443
    %v4572 = vadd.f32 %v4012, %v4444
    %v4573 = vadd.f32 %v4013, %v4445
    %v4574 = vadd.f32 %v4014, %v4446
    %v4575 = vadd.f32 %v4015, %v4447
    %v4576 = vadd.f32 %v4016, %v4448
    %v4577 = vadd.f32 %v4017, %v4449
    %v4578 = vadd.f32 %v4018, %v4450
    %v4579 = vadd.f32 %v4019, %v4451
    %v4580 = vadd.f32 %v4020, %v4452
    %v4581 = vadd.f32 %v4021, %v4453
    %v4582 = vadd.f32 %v4022, %v4454
    %v4583 = vadd.f32 %v4023, %v4455
    %v4584 = vadd.f32 %v4024, %v4456
    %v4585 = vadd.f32 %v4025, %v4457
    %v4586 = vadd.f32 %v4026, %v4458
    %v4587 = vadd.f32 %v4027, %v4459
    %v4588 = vadd.f32 %v4028, %v4460
    %v4589 = vadd.f32 %v4029, %v4461
    %v4590 = vadd.f32 %v4030, %v4462
    %v4591 = vadd.f32 %v4031, %v4463
    %v4592 = vadd.f32 %v4032, %v4464
    %v4593 = vadd.f32 %v4033, %v4465
    %v4594 = vadd.f32 %v4034, %v4466
    %v4595 = vadd.f32 %v4035, %v4467
    %v4596 = vadd.f32 %v4036, %v4468
    %v4597 = vpack.c.bf16 %v4477, %v4469
    %v4598 = vpack.c.bf16 %v4478, %v4470
    %v4599 = vpack.c.bf16 %v4479, %v4471
    %v4600 = vpack.c.bf16 %v4480, %v4472
    %v4601 = vpack.c.bf16 %v4481, %v4473
    %v4602 = vpack.c.bf16 %v4482, %v4474
    %v4603 = vpack.c.bf16 %v4483, %v4475
    %v4604 = vpack.c.bf16 %v4484, %v4476
    %v4605 = vpack.c.bf16 %v4493, %v4485
    %v4606 = vpack.c.bf16 %v4494, %v4486
    %v4607 = vpack.c.bf16 %v4495, %v4487
    %v4608 = vpack.c.bf16 %v4496, %v4488
    %v4609 = vpack.c.bf16 %v4497, %v4489
    %v4610 = vpack.c.bf16 %v4498, %v4490
    %v4611 = vpack.c.bf16 %v4499, %v4491
    %v4612 = vpack.c.bf16 %v4500, %v4492
    %v4613 = vpack.c.bf16 %v4509, %v4501
    %v4614 = vpack.c.bf16 %v4510, %v4502
    %v4615 = vpack.c.bf16 %v4511, %v4503
    %v4616 = vpack.c.bf16 %v4512, %v4504
    %v4617 = vpack.c.bf16 %v4513, %v4505
    %v4618 = vpack.c.bf16 %v4514, %v4506
    %v4619 = vpack.c.bf16 %v4515, %v4507
    %v4620 = vpack.c.bf16 %v4516, %v4508
    %v4621 = vpack.c.bf16 %v4525, %v4517
    %v4622 = vpack.c.bf16 %v4526, %v4518
    %v4623 = vpack.c.bf16 %v4527, %v4519
    %v4624 = vpack.c.bf16 %v4528, %v4520
    %v4625 = vpack.c.bf16 %v4529, %v4521
    %v4626 = vpack.c.bf16 %v4530, %v4522
    %v4627 = vpack.c.bf16 %v4531, %v4523
    %v4628 = vpack.c.bf16 %v4532, %v4524
    %v4629 = vpack.c.bf16 %v4541, %v4533
    %v4630 = vpack.c.bf16 %v4542, %v4534
    %v4631 = vpack.c.bf16 %v4543, %v4535
    %v4632 = vpack.c.bf16 %v4544, %v4536
    %v4633 = vpack.c.bf16 %v4545, %v4537
    %v4634 = vpack.c.bf16 %v4546, %v4538
    %v4635 = vpack.c.bf16 %v4547, %v4539
    %v4636 = vpack.c.bf16 %v4548, %v4540
    %v4637 = vpack.c.bf16 %v4557, %v4549
    %v4638 = vpack.c.bf16 %v4558, %v4550
    %v4639 = vpack.c.bf16 %v4559, %v4551
    %v4640 = vpack.c.bf16 %v4560, %v4552
    %v4641 = vpack.c.bf16 %v4561, %v4553
    %v4642 = vpack.c.bf16 %v4562, %v4554
    %v4643 = vpack.c.bf16 %v4563, %v4555
    %v4644 = vpack.c.bf16 %v4564, %v4556
    %v4645 = vpack.c.bf16 %v4573, %v4565
    %v4646 = vpack.c.bf16 %v4574, %v4566
    %v4647 = vpack.c.bf16 %v4575, %v4567
    %v4648 = vpack.c.bf16 %v4576, %v4568
    %v4649 = vpack.c.bf16 %v4577, %v4569
    %v4650 = vpack.c.bf16 %v4578, %v4570
    %v4651 = vpack.c.bf16 %v4579, %v4571
    %v4652 = vpack.c.bf16 %v4580, %v4572
    %v4653 = vpack.c.bf16 %v4589, %v4581
    %v4654 = vpack.c.bf16 %v4590, %v4582
    %v4655 = vpack.c.bf16 %v4591, %v4583
    %v4656 = vpack.c.bf16 %v4592, %v4584
    %v4657 = vpack.c.bf16 %v4593, %v4585
    %v4658 = vpack.c.bf16 %v4594, %v4586
    %v4659 = vpack.c.bf16 %v4595, %v4587
    %v4660 = vpack.c.bf16 %v4596, %v4588
    %v4661 = vld [vmem:[#allocation2] sm:$0xff]
    %v4662 = vld [vmem:[#allocation2 + $0x8] sm:$0xff]
    %v4663 = vld [vmem:[#allocation2 + $0x10] sm:$0xff]
    %v4664 = vld [vmem:[#allocation2 + $0x18] sm:$0xff]
    %v4665 = vld [vmem:[#allocation2 + $0x20] sm:$0xff]
    %v4666 = vld [vmem:[#allocation2 + $0x28] sm:$0xff]
    %v4667 = vld [vmem:[#allocation2 + $0x30] sm:$0xff]
    %v4668 = vld [vmem:[#allocation2 + $0x38] sm:$0xff]
    %v4669 = vld [vmem:[#allocation2 + $0x40] sm:$0xff]
    %v4670 = vld [vmem:[#allocation2 + $0x48] sm:$0xff]
    %v4671 = vld [vmem:[#allocation2 + $0x50] sm:$0xff]
    %v4672 = vld [vmem:[#allocation2 + $0x58] sm:$0xff]
    %v4673 = vld [vmem:[#allocation2 + $0x60] sm:$0xff]
    %v4674 = vld [vmem:[#allocation2 + $0x68] sm:$0xff]
    %v4675 = vld [vmem:[#allocation2 + $0x70] sm:$0xff]
    %v4676 = vld [vmem:[#allocation2 + $0x78] sm:$0xff]
    %v4677 = vld [vmem:[#allocation2 + $0x80] sm:$0xff]
    %v4678 = vld [vmem:[#allocation2 + $0x88] sm:$0xff]
    %v4679 = vld [vmem:[#allocation2 + $0x90] sm:$0xff]
    %v4680 = vld [vmem:[#allocation2 + $0x98] sm:$0xff]
    %v4681 = vld [vmem:[#allocation2 + $0xa0] sm:$0xff]
    %v4682 = vld [vmem:[#allocation2 + $0xa8] sm:$0xff]
    %v4683 = vld [vmem:[#allocation2 + $0xb0] sm:$0xff]
    %v4684 = vld [vmem:[#allocation2 + $0xb8] sm:$0xff]
    %v4685 = vld [vmem:[#allocation2 + $0xc0] sm:$0xff]
    %v4686 = vld [vmem:[#allocation2 + $0xc8] sm:$0xff]
    %v4687 = vld [vmem:[#allocation2 + $0xd0] sm:$0xff]
    %v4688 = vld [vmem:[#allocation2 + $0xd8] sm:$0xff]
    %v4689 = vld [vmem:[#allocation2 + $0xe0] sm:$0xff]
    %v4690 = vld [vmem:[#allocation2 + $0xe8] sm:$0xff]
    %v4691 = vld [vmem:[#allocation2 + $0xf0] sm:$0xff]
    %v4692 = vld [vmem:[#allocation2 + $0xf8] sm:$0xff]
    %v4693 = vld [vmem:[#allocation2 + $0x100] sm:$0xff]
    %v4694 = vld [vmem:[#allocation2 + $0x108] sm:$0xff]
    %v4695 = vld [vmem:[#allocation2 + $0x110] sm:$0xff]
    %v4696 = vld [vmem:[#allocation2 + $0x118] sm:$0xff]
    %v4697 = vld [vmem:[#allocation2 + $0x120] sm:$0xff]
    %v4698 = vld [vmem:[#allocation2 + $0x128] sm:$0xff]
    %v4699 = vld [vmem:[#allocation2 + $0x130] sm:$0xff]
    %v4700 = vld [vmem:[#allocation2 + $0x138] sm:$0xff]
    %v4701 = vld [vmem:[#allocation2 + $0x140] sm:$0xff]
    %v4702 = vld [vmem:[#allocation2 + $0x148] sm:$0xff]
    %v4703 = vld [vmem:[#allocation2 + $0x150] sm:$0xff]
    %v4704 = vld [vmem:[#allocation2 + $0x158] sm:$0xff]
    %v4705 = vld [vmem:[#allocation2 + $0x160] sm:$0xff]
    %v4706 = vld [vmem:[#allocation2 + $0x168] sm:$0xff]
    %v4707 = vld [vmem:[#allocation2 + $0x170] sm:$0xff]
    %v4708 = vld [vmem:[#allocation2 + $0x178] sm:$0xff]
    %v4709 = vld [vmem:[#allocation2 + $0x180] sm:$0xff]
    %v4710 = vld [vmem:[#allocation2 + $0x188] sm:$0xff]
    %v4711 = vld [vmem:[#allocation2 + $0x190] sm:$0xff]
    %v4712 = vld [vmem:[#allocation2 + $0x198] sm:$0xff]
    %v4713 = vld [vmem:[#allocation2 + $0x1a0] sm:$0xff]
    %v4714 = vld [vmem:[#allocation2 + $0x1a8] sm:$0xff]
    %v4715 = vld [vmem:[#allocation2 + $0x1b0] sm:$0xff]
    %v4716 = vld [vmem:[#allocation2 + $0x1b8] sm:$0xff]
    %v4717 = vld [vmem:[#allocation2 + $0x1c0] sm:$0xff]
    %v4718 = vld [vmem:[#allocation2 + $0x1c8] sm:$0xff]
    %v4719 = vld [vmem:[#allocation2 + $0x1d0] sm:$0xff]
    %v4720 = vld [vmem:[#allocation2 + $0x1d8] sm:$0xff]
    %v4721 = vld [vmem:[#allocation2 + $0x1e0] sm:$0xff]
    %v4722 = vld [vmem:[#allocation2 + $0x1e8] sm:$0xff]
    %v4723 = vld [vmem:[#allocation2 + $0x1f0] sm:$0xff]
    %v4724 = vld [vmem:[#allocation2 + $0x1f8] sm:$0xff]
    %v4725 = vld [vmem:[#allocation2 + $0x200] sm:$0xff]
    %v4726 = vld [vmem:[#allocation2 + $0x208] sm:$0xff]
    %v4727 = vld [vmem:[#allocation2 + $0x210] sm:$0xff]
    %v4728 = vld [vmem:[#allocation2 + $0x218] sm:$0xff]
    %v4729 = vld [vmem:[#allocation2 + $0x220] sm:$0xff]
    %v4730 = vld [vmem:[#allocation2 + $0x228] sm:$0xff]
    %v4731 = vld [vmem:[#allocation2 + $0x230] sm:$0xff]
    %v4732 = vld [vmem:[#allocation2 + $0x238] sm:$0xff]
    %v4733 = vld [vmem:[#allocation2 + $0x240] sm:$0xff]
    %v4734 = vld [vmem:[#allocation2 + $0x248] sm:$0xff]
    %v4735 = vld [vmem:[#allocation2 + $0x250] sm:$0xff]
    %v4736 = vld [vmem:[#allocation2 + $0x258] sm:$0xff]
    %v4737 = vld [vmem:[#allocation2 + $0x260] sm:$0xff]
    %v4738 = vld [vmem:[#allocation2 + $0x268] sm:$0xff]
    %v4739 = vld [vmem:[#allocation2 + $0x270] sm:$0xff]
    %v4740 = vld [vmem:[#allocation2 + $0x278] sm:$0xff]
    %v4741 = vld [vmem:[#allocation2 + $0x280] sm:$0xff]
    %v4742 = vld [vmem:[#allocation2 + $0x288] sm:$0xff]
    %v4743 = vld [vmem:[#allocation2 + $0x290] sm:$0xff]
    %v4744 = vld [vmem:[#allocation2 + $0x298] sm:$0xff]
    %v4745 = vld [vmem:[#allocation2 + $0x2a0] sm:$0xff]
    %v4746 = vld [vmem:[#allocation2 + $0x2a8] sm:$0xff]
    %v4747 = vld [vmem:[#allocation2 + $0x2b0] sm:$0xff]
    %v4748 = vld [vmem:[#allocation2 + $0x2b8] sm:$0xff]
    %v4749 = vld [vmem:[#allocation2 + $0x2c0] sm:$0xff]
    %v4750 = vld [vmem:[#allocation2 + $0x2c8] sm:$0xff]
    %v4751 = vld [vmem:[#allocation2 + $0x2d0] sm:$0xff]
    %v4752 = vld [vmem:[#allocation2 + $0x2d8] sm:$0xff]
    %v4753 = vld [vmem:[#allocation2 + $0x2e0] sm:$0xff]
    %v4754 = vld [vmem:[#allocation2 + $0x2e8] sm:$0xff]
    %v4755 = vld [vmem:[#allocation2 + $0x2f0] sm:$0xff]
    %v4756 = vld [vmem:[#allocation2 + $0x2f8] sm:$0xff]
    %v4757 = vld [vmem:[#allocation2 + $0x300] sm:$0xff]
    %v4758 = vld [vmem:[#allocation2 + $0x308] sm:$0xff]
    %v4759 = vld [vmem:[#allocation2 + $0x310] sm:$0xff]
    %v4760 = vld [vmem:[#allocation2 + $0x318] sm:$0xff]
    %v4761 = vld [vmem:[#allocation2 + $0x320] sm:$0xff]
    %v4762 = vld [vmem:[#allocation2 + $0x328] sm:$0xff]
    %v4763 = vld [vmem:[#allocation2 + $0x330] sm:$0xff]
    %v4764 = vld [vmem:[#allocation2 + $0x338] sm:$0xff]
    %v4765 = vld [vmem:[#allocation2 + $0x340] sm:$0xff]
    %v4766 = vld [vmem:[#allocation2 + $0x348] sm:$0xff]
    %v4767 = vld [vmem:[#allocation2 + $0x350] sm:$0xff]
    %v4768 = vld [vmem:[#allocation2 + $0x358] sm:$0xff]
    %v4769 = vld [vmem:[#allocation2 + $0x360] sm:$0xff]
    %v4770 = vld [vmem:[#allocation2 + $0x368] sm:$0xff]
    %v4771 = vld [vmem:[#allocation2 + $0x370] sm:$0xff]
    %v4772 = vld [vmem:[#allocation2 + $0x378] sm:$0xff]
    %v4773 = vld [vmem:[#allocation2 + $0x380] sm:$0xff]
    %v4774 = vld [vmem:[#allocation2 + $0x388] sm:$0xff]
    %v4775 = vld [vmem:[#allocation2 + $0x390] sm:$0xff]
    %v4776 = vld [vmem:[#allocation2 + $0x398] sm:$0xff]
    %v4777 = vld [vmem:[#allocation2 + $0x3a0] sm:$0xff]
    %v4778 = vld [vmem:[#allocation2 + $0x3a8] sm:$0xff]
    %v4779 = vld [vmem:[#allocation2 + $0x3b0] sm:$0xff]
    %v4780 = vld [vmem:[#allocation2 + $0x3b8] sm:$0xff]
    %v4781 = vld [vmem:[#allocation2 + $0x3c0] sm:$0xff]
    %v4782 = vld [vmem:[#allocation2 + $0x3c8] sm:$0xff]
    %v4783 = vld [vmem:[#allocation2 + $0x3d0] sm:$0xff]
    %v4784 = vld [vmem:[#allocation2 + $0x3d8] sm:$0xff]
    %v4785 = vld [vmem:[#allocation2 + $0x3e0] sm:$0xff]
    %v4786 = vld [vmem:[#allocation2 + $0x3e8] sm:$0xff]
    %v4787 = vld [vmem:[#allocation2 + $0x3f0] sm:$0xff]
    %v4788 = vld [vmem:[#allocation2 + $0x3f8] sm:$0xff]
    %v4789 = vld [vmem:[#allocation2 + $0x400] sm:$0xff]
    %v4790 = vld [vmem:[#allocation2 + $0x408] sm:$0xff]
    %v4791 = vld [vmem:[#allocation2 + $0x410] sm:$0xff]
    %v4792 = vld [vmem:[#allocation2 + $0x418] sm:$0xff]
    %v4793 = vld [vmem:[#allocation2 + $0x420] sm:$0xff]
    %v4794 = vld [vmem:[#allocation2 + $0x428] sm:$0xff]
    %v4795 = vld [vmem:[#allocation2 + $0x430] sm:$0xff]
    %v4796 = vld [vmem:[#allocation2 + $0x438] sm:$0xff]
    %v4797 = vld [vmem:[#allocation2 + $0x440] sm:$0xff]
    %v4798 = vld [vmem:[#allocation2 + $0x448] sm:$0xff]
    %v4799 = vld [vmem:[#allocation2 + $0x450] sm:$0xff]
    %v4800 = vld [vmem:[#allocation2 + $0x458] sm:$0xff]
    %v4801 = vld [vmem:[#allocation2 + $0x460] sm:$0xff]
    %v4802 = vld [vmem:[#allocation2 + $0x468] sm:$0xff]
    %v4803 = vld [vmem:[#allocation2 + $0x470] sm:$0xff]
    %v4804 = vld [vmem:[#allocation2 + $0x478] sm:$0xff]
    %v4805 = vld [vmem:[#allocation2 + $0x480] sm:$0xff]
    %v4806 = vld [vmem:[#allocation2 + $0x488] sm:$0xff]
    %v4807 = vld [vmem:[#allocation2 + $0x490] sm:$0xff]
    %v4808 = vld [vmem:[#allocation2 + $0x498] sm:$0xff]
    %v4809 = vld [vmem:[#allocation2 + $0x4a0] sm:$0xff]
    %v4810 = vld [vmem:[#allocation2 + $0x4a8] sm:$0xff]
    %v4811 = vld [vmem:[#allocation2 + $0x4b0] sm:$0xff]
    %v4812 = vld [vmem:[#allocation2 + $0x4b8] sm:$0xff]
    %v4813 = vld [vmem:[#allocation2 + $0x4c0] sm:$0xff]
    %v4814 = vld [vmem:[#allocation2 + $0x4c8] sm:$0xff]
    %v4815 = vld [vmem:[#allocation2 + $0x4d0] sm:$0xff]
    %v4816 = vld [vmem:[#allocation2 + $0x4d8] sm:$0xff]
    %v4817 = vld [vmem:[#allocation2 + $0x4e0] sm:$0xff]
    %v4818 = vld [vmem:[#allocation2 + $0x4e8] sm:$0xff]
    %v4819 = vld [vmem:[#allocation2 + $0x4f0] sm:$0xff]
    %v4820 = vld [vmem:[#allocation2 + $0x4f8] sm:$0xff]
    %v4821 = vld [vmem:[#allocation2 + $0x500] sm:$0xff]
    %v4822 = vld [vmem:[#allocation2 + $0x508] sm:$0xff]
    %v4823 = vld [vmem:[#allocation2 + $0x510] sm:$0xff]
    %v4824 = vld [vmem:[#allocation2 + $0x518] sm:$0xff]
    %v4825 = vld [vmem:[#allocation2 + $0x520] sm:$0xff]
    %v4826 = vld [vmem:[#allocation2 + $0x528] sm:$0xff]
    %v4827 = vld [vmem:[#allocation2 + $0x530] sm:$0xff]
    %v4828 = vld [vmem:[#allocation2 + $0x538] sm:$0xff]
    %v4829 = vld [vmem:[#allocation2 + $0x540] sm:$0xff]
    %v4830 = vld [vmem:[#allocation2 + $0x548] sm:$0xff]
    %v4831 = vld [vmem:[#allocation2 + $0x550] sm:$0xff]
    %v4832 = vld [vmem:[#allocation2 + $0x558] sm:$0xff]
    %v4833 = vld [vmem:[#allocation2 + $0x560] sm:$0xff]
    %v4834 = vld [vmem:[#allocation2 + $0x568] sm:$0xff]
    %v4835 = vld [vmem:[#allocation2 + $0x570] sm:$0xff]
    %v4836 = vld [vmem:[#allocation2 + $0x578] sm:$0xff]
    %v4837 = vld [vmem:[#allocation2 + $0x580] sm:$0xff]
    %v4838 = vld [vmem:[#allocation2 + $0x588] sm:$0xff]
    %v4839 = vld [vmem:[#allocation2 + $0x590] sm:$0xff]
    %v4840 = vld [vmem:[#allocation2 + $0x598] sm:$0xff]
    %v4841 = vld [vmem:[#allocation2 + $0x5a0] sm:$0xff]
    %v4842 = vld [vmem:[#allocation2 + $0x5a8] sm:$0xff]
    %v4843 = vld [vmem:[#allocation2 + $0x5b0] sm:$0xff]
    %v4844 = vld [vmem:[#allocation2 + $0x5b8] sm:$0xff]
    %v4845 = vld [vmem:[#allocation2 + $0x5c0] sm:$0xff]
    %v4846 = vld [vmem:[#allocation2 + $0x5c8] sm:$0xff]
    %v4847 = vld [vmem:[#allocation2 + $0x5d0] sm:$0xff]
    %v4848 = vld [vmem:[#allocation2 + $0x5d8] sm:$0xff]
    %v4849 = vld [vmem:[#allocation2 + $0x5e0] sm:$0xff]
    %v4850 = vld [vmem:[#allocation2 + $0x5e8] sm:$0xff]
    %v4851 = vld [vmem:[#allocation2 + $0x5f0] sm:$0xff]
    %v4852 = vld [vmem:[#allocation2 + $0x5f8] sm:$0xff]
    %v4853 = vld [vmem:[#allocation2 + $0x600] sm:$0xff]
    %v4854 = vld [vmem:[#allocation2 + $0x608] sm:$0xff]
    %v4855 = vld [vmem:[#allocation2 + $0x610] sm:$0xff]
    %v4856 = vld [vmem:[#allocation2 + $0x618] sm:$0xff]
    %v4857 = vld [vmem:[#allocation2 + $0x620] sm:$0xff]
    %v4858 = vld [vmem:[#allocation2 + $0x628] sm:$0xff]
    %v4859 = vld [vmem:[#allocation2 + $0x630] sm:$0xff]
    %v4860 = vld [vmem:[#allocation2 + $0x638] sm:$0xff]
    %v4861 = vld [vmem:[#allocation2 + $0x640] sm:$0xff]
    %v4862 = vld [vmem:[#allocation2 + $0x648] sm:$0xff]
    %v4863 = vld [vmem:[#allocation2 + $0x650] sm:$0xff]
    %v4864 = vld [vmem:[#allocation2 + $0x658] sm:$0xff]
    %v4865 = vld [vmem:[#allocation2 + $0x660] sm:$0xff]
    %v4866 = vld [vmem:[#allocation2 + $0x668] sm:$0xff]
    %v4867 = vld [vmem:[#allocation2 + $0x670] sm:$0xff]
    %v4868 = vld [vmem:[#allocation2 + $0x678] sm:$0xff]
    %v4869 = vld [vmem:[#allocation2 + $0x680] sm:$0xff]
    %v4870 = vld [vmem:[#allocation2 + $0x688] sm:$0xff]
    %v4871 = vld [vmem:[#allocation2 + $0x690] sm:$0xff]
    %v4872 = vld [vmem:[#allocation2 + $0x698] sm:$0xff]
    %v4873 = vld [vmem:[#allocation2 + $0x6a0] sm:$0xff]
    %v4874 = vld [vmem:[#allocation2 + $0x6a8] sm:$0xff]
    %v4875 = vld [vmem:[#allocation2 + $0x6b0] sm:$0xff]
    %v4876 = vld [vmem:[#allocation2 + $0x6b8] sm:$0xff]
    %v4877 = vld [vmem:[#allocation2 + $0x6c0] sm:$0xff]
    %v4878 = vld [vmem:[#allocation2 + $0x6c8] sm:$0xff]
    %v4879 = vld [vmem:[#allocation2 + $0x6d0] sm:$0xff]
    %v4880 = vld [vmem:[#allocation2 + $0x6d8] sm:$0xff]
    %v4881 = vld [vmem:[#allocation2 + $0x6e0] sm:$0xff]
    %v4882 = vld [vmem:[#allocation2 + $0x6e8] sm:$0xff]
    %v4883 = vld [vmem:[#allocation2 + $0x6f0] sm:$0xff]
    %v4884 = vld [vmem:[#allocation2 + $0x6f8] sm:$0xff]
    %v4885 = vld [vmem:[#allocation2 + $0x700] sm:$0xff]
    %v4886 = vld [vmem:[#allocation2 + $0x708] sm:$0xff]
    %v4887 = vld [vmem:[#allocation2 + $0x710] sm:$0xff]
    %v4888 = vld [vmem:[#allocation2 + $0x718] sm:$0xff]
    %v4889 = vld [vmem:[#allocation2 + $0x720] sm:$0xff]
    %v4890 = vld [vmem:[#allocation2 + $0x728] sm:$0xff]
    %v4891 = vld [vmem:[#allocation2 + $0x730] sm:$0xff]
    %v4892 = vld [vmem:[#allocation2 + $0x738] sm:$0xff]
    %v4893 = vld [vmem:[#allocation2 + $0x740] sm:$0xff]
    %v4894 = vld [vmem:[#allocation2 + $0x748] sm:$0xff]
    %v4895 = vld [vmem:[#allocation2 + $0x750] sm:$0xff]
    %v4896 = vld [vmem:[#allocation2 + $0x758] sm:$0xff]
    %v4897 = vld [vmem:[#allocation2 + $0x760] sm:$0xff]
    %v4898 = vld [vmem:[#allocation2 + $0x768] sm:$0xff]
    %v4899 = vld [vmem:[#allocation2 + $0x770] sm:$0xff]
    %v4900 = vld [vmem:[#allocation2 + $0x778] sm:$0xff]
    %v4901 = vld [vmem:[#allocation2 + $0x780] sm:$0xff]
    %v4902 = vld [vmem:[#allocation2 + $0x788] sm:$0xff]
    %v4903 = vld [vmem:[#allocation2 + $0x790] sm:$0xff]
    %v4904 = vld [vmem:[#allocation2 + $0x798] sm:$0xff]
    %v4905 = vld [vmem:[#allocation2 + $0x7a0] sm:$0xff]
    %v4906 = vld [vmem:[#allocation2 + $0x7a8] sm:$0xff]
    %v4907 = vld [vmem:[#allocation2 + $0x7b0] sm:$0xff]
    %v4908 = vld [vmem:[#allocation2 + $0x7b8] sm:$0xff]
    %v4909 = vld [vmem:[#allocation2 + $0x7c0] sm:$0xff]
    %v4910 = vld [vmem:[#allocation2 + $0x7c8] sm:$0xff]
    %v4911 = vld [vmem:[#allocation2 + $0x7d0] sm:$0xff]
    %v4912 = vld [vmem:[#allocation2 + $0x7d8] sm:$0xff]
    %v4913 = vld [vmem:[#allocation2 + $0x7e0] sm:$0xff]
    %v4914 = vld [vmem:[#allocation2 + $0x7e8] sm:$0xff]
    %v4915 = vld [vmem:[#allocation2 + $0x7f0] sm:$0xff]
    %v4916 = vld [vmem:[#allocation2 + $0x7f8] sm:$0xff]
    %v4917 = vld [vmem:[#allocation2 + $0x800] sm:$0xff]
    %v4918 = vld [vmem:[#allocation2 + $0x808] sm:$0xff]
    %v4919 = vld [vmem:[#allocation2 + $0x810] sm:$0xff]
    %v4920 = vld [vmem:[#allocation2 + $0x818] sm:$0xff]
    %v4921 = vld [vmem:[#allocation2 + $0x820] sm:$0xff]
    %v4922 = vld [vmem:[#allocation2 + $0x828] sm:$0xff]
    %v4923 = vld [vmem:[#allocation2 + $0x830] sm:$0xff]
    %v4924 = vld [vmem:[#allocation2 + $0x838] sm:$0xff]
    %v4925 = vld [vmem:[#allocation2 + $0x840] sm:$0xff]
    %v4926 = vld [vmem:[#allocation2 + $0x848] sm:$0xff]
    %v4927 = vld [vmem:[#allocation2 + $0x850] sm:$0xff]
    %v4928 = vld [vmem:[#allocation2 + $0x858] sm:$0xff]
    %v4929 = vld [vmem:[#allocation2 + $0x860] sm:$0xff]
    %v4930 = vld [vmem:[#allocation2 + $0x868] sm:$0xff]
    %v4931 = vld [vmem:[#allocation2 + $0x870] sm:$0xff]
    %v4932 = vld [vmem:[#allocation2 + $0x878] sm:$0xff]
    %v4933 = vld [vmem:[#allocation2 + $0x880] sm:$0xff]
    %v4934 = vld [vmem:[#allocation2 + $0x888] sm:$0xff]
    %v4935 = vld [vmem:[#allocation2 + $0x890] sm:$0xff]
    %v4936 = vld [vmem:[#allocation2 + $0x898] sm:$0xff]
    %v4937 = vld [vmem:[#allocation2 + $0x8a0] sm:$0xff]
    %v4938 = vld [vmem:[#allocation2 + $0x8a8] sm:$0xff]
    %v4939 = vld [vmem:[#allocation2 + $0x8b0] sm:$0xff]
    %v4940 = vld [vmem:[#allocation2 + $0x8b8] sm:$0xff]
    %v4941 = vld [vmem:[#allocation2 + $0x8c0] sm:$0xff]
    %v4942 = vld [vmem:[#allocation2 + $0x8c8] sm:$0xff]
    %v4943 = vld [vmem:[#allocation2 + $0x8d0] sm:$0xff]
    %v4944 = vld [vmem:[#allocation2 + $0x8d8] sm:$0xff]
    %v4945 = vld [vmem:[#allocation2 + $0x8e0] sm:$0xff]
    %v4946 = vld [vmem:[#allocation2 + $0x8e8] sm:$0xff]
    %v4947 = vld [vmem:[#allocation2 + $0x8f0] sm:$0xff]
    %v4948 = vld [vmem:[#allocation2 + $0x8f8] sm:$0xff]
    %v4949 = vld [vmem:[#allocation2 + $0x900] sm:$0xff]
    %v4950 = vld [vmem:[#allocation2 + $0x908] sm:$0xff]
    %v4951 = vld [vmem:[#allocation2 + $0x910] sm:$0xff]
    %v4952 = vld [vmem:[#allocation2 + $0x918] sm:$0xff]
    %v4953 = vld [vmem:[#allocation2 + $0x920] sm:$0xff]
    %v4954 = vld [vmem:[#allocation2 + $0x928] sm:$0xff]
    %v4955 = vld [vmem:[#allocation2 + $0x930] sm:$0xff]
    %v4956 = vld [vmem:[#allocation2 + $0x938] sm:$0xff]
    %v4957 = vld [vmem:[#allocation2 + $0x940] sm:$0xff]
    %v4958 = vld [vmem:[#allocation2 + $0x948] sm:$0xff]
    %v4959 = vld [vmem:[#allocation2 + $0x950] sm:$0xff]
    %v4960 = vld [vmem:[#allocation2 + $0x958] sm:$0xff]
    %v4961 = vld [vmem:[#allocation2 + $0x960] sm:$0xff]
    %v4962 = vld [vmem:[#allocation2 + $0x968] sm:$0xff]
    %v4963 = vld [vmem:[#allocation2 + $0x970] sm:$0xff]
    %v4964 = vld [vmem:[#allocation2 + $0x978] sm:$0xff]
    %v4965 = vld [vmem:[#allocation2 + $0x980] sm:$0xff]
    %v4966 = vld [vmem:[#allocation2 + $0x988] sm:$0xff]
    %v4967 = vld [vmem:[#allocation2 + $0x990] sm:$0xff]
    %v4968 = vld [vmem:[#allocation2 + $0x998] sm:$0xff]
    %v4969 = vld [vmem:[#allocation2 + $0x9a0] sm:$0xff]
    %v4970 = vld [vmem:[#allocation2 + $0x9a8] sm:$0xff]
    %v4971 = vld [vmem:[#allocation2 + $0x9b0] sm:$0xff]
    %v4972 = vld [vmem:[#allocation2 + $0x9b8] sm:$0xff]
    %v4973 = vld [vmem:[#allocation2 + $0x9c0] sm:$0xff]
    %v4974 = vld [vmem:[#allocation2 + $0x9c8] sm:$0xff]
    %v4975 = vld [vmem:[#allocation2 + $0x9d0] sm:$0xff]
    %v4976 = vld [vmem:[#allocation2 + $0x9d8] sm:$0xff]
    %v4977 = vld [vmem:[#allocation2 + $0x9e0] sm:$0xff]
    %v4978 = vld [vmem:[#allocation2 + $0x9e8] sm:$0xff]
    %v4979 = vld [vmem:[#allocation2 + $0x9f0] sm:$0xff]
    %v4980 = vld [vmem:[#allocation2 + $0x9f8] sm:$0xff]
    %v4981 = vld [vmem:[#allocation2 + $0xa00] sm:$0xff]
    %v4982 = vld [vmem:[#allocation2 + $0xa08] sm:$0xff]
    %v4983 = vld [vmem:[#allocation2 + $0xa10] sm:$0xff]
    %v4984 = vld [vmem:[#allocation2 + $0xa18] sm:$0xff]
    %v4985 = vld [vmem:[#allocation2 + $0xa20] sm:$0xff]
    %v4986 = vld [vmem:[#allocation2 + $0xa28] sm:$0xff]
    %v4987 = vld [vmem:[#allocation2 + $0xa30] sm:$0xff]
    %v4988 = vld [vmem:[#allocation2 + $0xa38] sm:$0xff]
    %v4989 = vld [vmem:[#allocation2 + $0xa40] sm:$0xff]
    %v4990 = vld [vmem:[#allocation2 + $0xa48] sm:$0xff]
    %v4991 = vld [vmem:[#allocation2 + $0xa50] sm:$0xff]
    %v4992 = vld [vmem:[#allocation2 + $0xa58] sm:$0xff]
    %v4993 = vld [vmem:[#allocation2 + $0xa60] sm:$0xff]
    %v4994 = vld [vmem:[#allocation2 + $0xa68] sm:$0xff]
    %v4995 = vld [vmem:[#allocation2 + $0xa70] sm:$0xff]
    %v4996 = vld [vmem:[#allocation2 + $0xa78] sm:$0xff]
    %v4997 = vld [vmem:[#allocation2 + $0xa80] sm:$0xff]
    %v4998 = vld [vmem:[#allocation2 + $0xa88] sm:$0xff]
    %v4999 = vld [vmem:[#allocation2 + $0xa90] sm:$0xff]
    %v5000 = vld [vmem:[#allocation2 + $0xa98] sm:$0xff]
    %v5001 = vld [vmem:[#allocation2 + $0xaa0] sm:$0xff]
    %v5002 = vld [vmem:[#allocation2 + $0xaa8] sm:$0xff]
    %v5003 = vld [vmem:[#allocation2 + $0xab0] sm:$0xff]
    %v5004 = vld [vmem:[#allocation2 + $0xab8] sm:$0xff]
    %v5005 = vld [vmem:[#allocation2 + $0xac0] sm:$0xff]
    %v5006 = vld [vmem:[#allocation2 + $0xac8] sm:$0xff]
    %v5007 = vld [vmem:[#allocation2 + $0xad0] sm:$0xff]
    %v5008 = vld [vmem:[#allocation2 + $0xad8] sm:$0xff]
    %v5009 = vld [vmem:[#allocation2 + $0xae0] sm:$0xff]
    %v5010 = vld [vmem:[#allocation2 + $0xae8] sm:$0xff]
    %v5011 = vld [vmem:[#allocation2 + $0xaf0] sm:$0xff]
    %v5012 = vld [vmem:[#allocation2 + $0xaf8] sm:$0xff]
    %v5013 = vld [vmem:[#allocation2 + $0xb00] sm:$0xff]
    %v5014 = vld [vmem:[#allocation2 + $0xb08] sm:$0xff]
    %v5015 = vld [vmem:[#allocation2 + $0xb10] sm:$0xff]
    %v5016 = vld [vmem:[#allocation2 + $0xb18] sm:$0xff]
    %v5017 = vld [vmem:[#allocation2 + $0xb20] sm:$0xff]
    %v5018 = vld [vmem:[#allocation2 + $0xb28] sm:$0xff]
    %v5019 = vld [vmem:[#allocation2 + $0xb30] sm:$0xff]
    %v5020 = vld [vmem:[#allocation2 + $0xb38] sm:$0xff]
    %v5021 = vld [vmem:[#allocation2 + $0xb40] sm:$0xff]
    %v5022 = vld [vmem:[#allocation2 + $0xb48] sm:$0xff]
    %v5023 = vld [vmem:[#allocation2 + $0xb50] sm:$0xff]
    %v5024 = vld [vmem:[#allocation2 + $0xb58] sm:$0xff]
    %v5025 = vld [vmem:[#allocation2 + $0xb60] sm:$0xff]
    %v5026 = vld [vmem:[#allocation2 + $0xb68] sm:$0xff]
    %v5027 = vld [vmem:[#allocation2 + $0xb70] sm:$0xff]
    %v5028 = vld [vmem:[#allocation2 + $0xb78] sm:$0xff]
    %v5029 = vld [vmem:[#allocation2 + $0xb80] sm:$0xff]
    %v5030 = vld [vmem:[#allocation2 + $0xb88] sm:$0xff]
    %v5031 = vld [vmem:[#allocation2 + $0xb90] sm:$0xff]
    %v5032 = vld [vmem:[#allocation2 + $0xb98] sm:$0xff]
    %v5033 = vld [vmem:[#allocation2 + $0xba0] sm:$0xff]
    %v5034 = vld [vmem:[#allocation2 + $0xba8] sm:$0xff]
    %v5035 = vld [vmem:[#allocation2 + $0xbb0] sm:$0xff]
    %v5036 = vld [vmem:[#allocation2 + $0xbb8] sm:$0xff]
    %v5037 = vld [vmem:[#allocation2 + $0xbc0] sm:$0xff]
    %v5038 = vld [vmem:[#allocation2 + $0xbc8] sm:$0xff]
    %v5039 = vld [vmem:[#allocation2 + $0xbd0] sm:$0xff]
    %v5040 = vld [vmem:[#allocation2 + $0xbd8] sm:$0xff]
    %v5041 = vld [vmem:[#allocation2 + $0xbe0] sm:$0xff]
    %v5042 = vld [vmem:[#allocation2 + $0xbe8] sm:$0xff]
    %v5043 = vld [vmem:[#allocation2 + $0xbf0] sm:$0xff]
    %v5044 = vld [vmem:[#allocation2 + $0xbf8] sm:$0xff]
    %v5429 = vunpack.c.l.b16 %v4661
    %v5430 = vunpack.c.h.b16 %v4661
    %v5431 = vunpack.c.l.b16 %v4662
    %v5432 = vunpack.c.h.b16 %v4662
    %v5433 = vunpack.c.l.b16 %v4663
    %v5434 = vunpack.c.h.b16 %v4663
    %v5435 = vunpack.c.l.b16 %v4664
    %v5436 = vunpack.c.h.b16 %v4664
    %v5437 = vunpack.c.l.b16 %v4665
    %v5438 = vunpack.c.h.b16 %v4665
    %v5439 = vunpack.c.l.b16 %v4666
    %v5440 = vunpack.c.h.b16 %v4666
    %v5441 = vunpack.c.l.b16 %v4667
    %v5442 = vunpack.c.h.b16 %v4667
    %v5443 = vunpack.c.l.b16 %v4668
    %v5444 = vunpack.c.h.b16 %v4668
    %v5445 = vunpack.c.l.b16 %v4669
    %v5446 = vunpack.c.h.b16 %v4669
    %v5447 = vunpack.c.l.b16 %v4670
    %v5448 = vunpack.c.h.b16 %v4670
    %v5449 = vunpack.c.l.b16 %v4671
    %v5450 = vunpack.c.h.b16 %v4671
    %v5451 = vunpack.c.l.b16 %v4672
    %v5452 = vunpack.c.h.b16 %v4672
    %v5453 = vunpack.c.l.b16 %v4673
    %v5454 = vunpack.c.h.b16 %v4673
    %v5455 = vunpack.c.l.b16 %v4674
    %v5456 = vunpack.c.h.b16 %v4674
    %v5457 = vunpack.c.l.b16 %v4675
    %v5458 = vunpack.c.h.b16 %v4675
    %v5459 = vunpack.c.l.b16 %v4676
    %v5460 = vunpack.c.h.b16 %v4676
    %v5461 = vunpack.c.l.b16 %v4677
    %v5462 = vunpack.c.h.b16 %v4677
    %v5463 = vunpack.c.l.b16 %v4678
    %v5464 = vunpack.c.h.b16 %v4678
    %v5465 = vunpack.c.l.b16 %v4679
    %v5466 = vunpack.c.h.b16 %v4679
    %v5467 = vunpack.c.l.b16 %v4680
    %v5468 = vunpack.c.h.b16 %v4680
    %v5469 = vunpack.c.l.b16 %v4681
    %v5470 = vunpack.c.h.b16 %v4681
    %v5471 = vunpack.c.l.b16 %v4682
    %v5472 = vunpack.c.h.b16 %v4682
    %v5473 = vunpack.c.l.b16 %v4683
    %v5474 = vunpack.c.h.b16 %v4683
    %v5475 = vunpack.c.l.b16 %v4684
    %v5476 = vunpack.c.h.b16 %v4684
    %v5477 = vunpack.c.l.b16 %v4685
    %v5478 = vunpack.c.h.b16 %v4685
    %v5479 = vunpack.c.l.b16 %v4686
    %v5480 = vunpack.c.h.b16 %v4686
    %v5481 = vunpack.c.l.b16 %v4687
    %v5482 = vunpack.c.h.b16 %v4687
    %v5483 = vunpack.c.l.b16 %v4688
    %v5484 = vunpack.c.h.b16 %v4688
    %v5485 = vunpack.c.l.b16 %v4689
    %v5486 = vunpack.c.h.b16 %v4689
    %v5487 = vunpack.c.l.b16 %v4690
    %v5488 = vunpack.c.h.b16 %v4690
    %v5489 = vunpack.c.l.b16 %v4691
    %v5490 = vunpack.c.h.b16 %v4691
    %v5491 = vunpack.c.l.b16 %v4692
    %v5492 = vunpack.c.h.b16 %v4692
    %v5493 = vunpack.c.l.b16 %v4693
    %v5494 = vunpack.c.h.b16 %v4693
    %v5495 = vunpack.c.l.b16 %v4694
    %v5496 = vunpack.c.h.b16 %v4694
    %v5497 = vunpack.c.l.b16 %v4695
    %v5498 = vunpack.c.h.b16 %v4695
    %v5499 = vunpack.c.l.b16 %v4696
    %v5500 = vunpack.c.h.b16 %v4696
    %v5501 = vunpack.c.l.b16 %v4697
    %v5502 = vunpack.c.h.b16 %v4697
    %v5503 = vunpack.c.l.b16 %v4698
    %v5504 = vunpack.c.h.b16 %v4698
    %v5505 = vunpack.c.l.b16 %v4699
    %v5506 = vunpack.c.h.b16 %v4699
    %v5507 = vunpack.c.l.b16 %v4700
    %v5508 = vunpack.c.h.b16 %v4700
    %v5509 = vunpack.c.l.b16 %v4701
    %v5510 = vunpack.c.h.b16 %v4701
    %v5511 = vunpack.c.l.b16 %v4702
    %v5512 = vunpack.c.h.b16 %v4702
    %v5513 = vunpack.c.l.b16 %v4703
    %v5514 = vunpack.c.h.b16 %v4703
    %v5515 = vunpack.c.l.b16 %v4704
    %v5516 = vunpack.c.h.b16 %v4704
    %v5517 = vunpack.c.l.b16 %v4705
    %v5518 = vunpack.c.h.b16 %v4705
    %v5519 = vunpack.c.l.b16 %v4706
    %v5520 = vunpack.c.h.b16 %v4706
    %v5521 = vunpack.c.l.b16 %v4707
    %v5522 = vunpack.c.h.b16 %v4707
    %v5523 = vunpack.c.l.b16 %v4708
    %v5524 = vunpack.c.h.b16 %v4708
    %v5525 = vunpack.c.l.b16 %v4709
    %v5526 = vunpack.c.h.b16 %v4709
    %v5527 = vunpack.c.l.b16 %v4710
    %v5528 = vunpack.c.h.b16 %v4710
    %v5529 = vunpack.c.l.b16 %v4711
    %v5530 = vunpack.c.h.b16 %v4711
    %v5531 = vunpack.c.l.b16 %v4712
    %v5532 = vunpack.c.h.b16 %v4712
    %v5533 = vunpack.c.l.b16 %v4713
    %v5534 = vunpack.c.h.b16 %v4713
    %v5535 = vunpack.c.l.b16 %v4714
    %v5536 = vunpack.c.h.b16 %v4714
    %v5537 = vunpack.c.l.b16 %v4715
    %v5538 = vunpack.c.h.b16 %v4715
    %v5539 = vunpack.c.l.b16 %v4716
    %v5540 = vunpack.c.h.b16 %v4716
    %v5541 = vunpack.c.l.b16 %v4717
    %v5542 = vunpack.c.h.b16 %v4717
    %v5543 = vunpack.c.l.b16 %v4718
    %v5544 = vunpack.c.h.b16 %v4718
    %v5545 = vunpack.c.l.b16 %v4719
    %v5546 = vunpack.c.h.b16 %v4719
    %v5547 = vunpack.c.l.b16 %v4720
    %v5548 = vunpack.c.h.b16 %v4720
    %v5549 = vunpack.c.l.b16 %v4721
    %v5550 = vunpack.c.h.b16 %v4721
    %v5551 = vunpack.c.l.b16 %v4722
    %v5552 = vunpack.c.h.b16 %v4722
    %v5553 = vunpack.c.l.b16 %v4723
    %v5554 = vunpack.c.h.b16 %v4723
    %v5555 = vunpack.c.l.b16 %v4724
    %v5556 = vunpack.c.h.b16 %v4724
    %v5557 = vunpack.c.l.b16 %v4725
    %v5558 = vunpack.c.h.b16 %v4725
    %v5559 = vunpack.c.l.b16 %v4726
    %v5560 = vunpack.c.h.b16 %v4726
    %v5561 = vunpack.c.l.b16 %v4727
    %v5562 = vunpack.c.h.b16 %v4727
    %v5563 = vunpack.c.l.b16 %v4728
    %v5564 = vunpack.c.h.b16 %v4728
    %v5565 = vunpack.c.l.b16 %v4729
    %v5566 = vunpack.c.h.b16 %v4729
    %v5567 = vunpack.c.l.b16 %v4730
    %v5568 = vunpack.c.h.b16 %v4730
    %v5569 = vunpack.c.l.b16 %v4731
    %v5570 = vunpack.c.h.b16 %v4731
    %v5571 = vunpack.c.l.b16 %v4732
    %v5572 = vunpack.c.h.b16 %v4732
    %v5573 = vunpack.c.l.b16 %v4733
    %v5574 = vunpack.c.h.b16 %v4733
    %v5575 = vunpack.c.l.b16 %v4734
    %v5576 = vunpack.c.h.b16 %v4734
    %v5577 = vunpack.c.l.b16 %v4735
    %v5578 = vunpack.c.h.b16 %v4735
    %v5579 = vunpack.c.l.b16 %v4736
    %v5580 = vunpack.c.h.b16 %v4736
    %v5581 = vunpack.c.l.b16 %v4737
    %v5582 = vunpack.c.h.b16 %v4737
    %v5583 = vunpack.c.l.b16 %v4738
    %v5584 = vunpack.c.h.b16 %v4738
    %v5585 = vunpack.c.l.b16 %v4739
    %v5586 = vunpack.c.h.b16 %v4739
    %v5587 = vunpack.c.l.b16 %v4740
    %v5588 = vunpack.c.h.b16 %v4740
    %v5589 = vunpack.c.l.b16 %v4741
    %v5590 = vunpack.c.h.b16 %v4741
    %v5591 = vunpack.c.l.b16 %v4742
    %v5592 = vunpack.c.h.b16 %v4742
    %v5593 = vunpack.c.l.b16 %v4743
    %v5594 = vunpack.c.h.b16 %v4743
    %v5595 = vunpack.c.l.b16 %v4744
    %v5596 = vunpack.c.h.b16 %v4744
    %v5597 = vunpack.c.l.b16 %v4745
    %v5598 = vunpack.c.h.b16 %v4745
    %v5599 = vunpack.c.l.b16 %v4746
    %v5600 = vunpack.c.h.b16 %v4746
    %v5601 = vunpack.c.l.b16 %v4747
    %v5602 = vunpack.c.h.b16 %v4747
    %v5603 = vunpack.c.l.b16 %v4748
    %v5604 = vunpack.c.h.b16 %v4748
    %v5605 = vunpack.c.l.b16 %v4749
    %v5606 = vunpack.c.h.b16 %v4749
    %v5607 = vunpack.c.l.b16 %v4750
    %v5608 = vunpack.c.h.b16 %v4750
    %v5609 = vunpack.c.l.b16 %v4751
    %v5610 = vunpack.c.h.b16 %v4751
    %v5611 = vunpack.c.l.b16 %v4752
    %v5612 = vunpack.c.h.b16 %v4752
    %v5613 = vunpack.c.l.b16 %v4753
    %v5614 = vunpack.c.h.b16 %v4753
    %v5615 = vunpack.c.l.b16 %v4754
    %v5616 = vunpack.c.h.b16 %v4754
    %v5617 = vunpack.c.l.b16 %v4755
    %v5618 = vunpack.c.h.b16 %v4755
    %v5619 = vunpack.c.l.b16 %v4756
    %v5620 = vunpack.c.h.b16 %v4756
    %v5621 = vunpack.c.l.b16 %v4757
    %v5622 = vunpack.c.h.b16 %v4757
    %v5623 = vunpack.c.l.b16 %v4758
    %v5624 = vunpack.c.h.b16 %v4758
    %v5625 = vunpack.c.l.b16 %v4759
    %v5626 = vunpack.c.h.b16 %v4759
    %v5627 = vunpack.c.l.b16 %v4760
    %v5628 = vunpack.c.h.b16 %v4760
    %v5629 = vunpack.c.l.b16 %v4761
    %v5630 = vunpack.c.h.b16 %v4761
    %v5631 = vunpack.c.l.b16 %v4762
    %v5632 = vunpack.c.h.b16 %v4762
    %v5633 = vunpack.c.l.b16 %v4763
    %v5634 = vunpack.c.h.b16 %v4763
    %v5635 = vunpack.c.l.b16 %v4764
    %v5636 = vunpack.c.h.b16 %v4764
    %v5637 = vunpack.c.l.b16 %v4765
    %v5638 = vunpack.c.h.b16 %v4765
    %v5639 = vunpack.c.l.b16 %v4766
    %v5640 = vunpack.c.h.b16 %v4766
    %v5641 = vunpack.c.l.b16 %v4767
    %v5642 = vunpack.c.h.b16 %v4767
    %v5643 = vunpack.c.l.b16 %v4768
    %v5644 = vunpack.c.h.b16 %v4768
    %v5645 = vunpack.c.l.b16 %v4769
    %v5646 = vunpack.c.h.b16 %v4769
    %v5647 = vunpack.c.l.b16 %v4770
    %v5648 = vunpack.c.h.b16 %v4770
    %v5649 = vunpack.c.l.b16 %v4771
    %v5650 = vunpack.c.h.b16 %v4771
    %v5651 = vunpack.c.l.b16 %v4772
    %v5652 = vunpack.c.h.b16 %v4772
    %v5653 = vunpack.c.l.b16 %v4773
    %v5654 = vunpack.c.h.b16 %v4773
    %v5655 = vunpack.c.l.b16 %v4774
    %v5656 = vunpack.c.h.b16 %v4774
    %v5657 = vunpack.c.l.b16 %v4775
    %v5658 = vunpack.c.h.b16 %v4775
    %v5659 = vunpack.c.l.b16 %v4776
    %v5660 = vunpack.c.h.b16 %v4776
    %v5661 = vunpack.c.l.b16 %v4777
    %v5662 = vunpack.c.h.b16 %v4777
    %v5663 = vunpack.c.l.b16 %v4778
    %v5664 = vunpack.c.h.b16 %v4778
    %v5665 = vunpack.c.l.b16 %v4779
    %v5666 = vunpack.c.h.b16 %v4779
    %v5667 = vunpack.c.l.b16 %v4780
    %v5668 = vunpack.c.h.b16 %v4780
    %v5669 = vunpack.c.l.b16 %v4781
    %v5670 = vunpack.c.h.b16 %v4781
    %v5671 = vunpack.c.l.b16 %v4782
    %v5672 = vunpack.c.h.b16 %v4782
    %v5673 = vunpack.c.l.b16 %v4783
    %v5674 = vunpack.c.h.b16 %v4783
    %v5675 = vunpack.c.l.b16 %v4784
    %v5676 = vunpack.c.h.b16 %v4784
    %v5677 = vunpack.c.l.b16 %v4785
    %v5678 = vunpack.c.h.b16 %v4785
    %v5679 = vunpack.c.l.b16 %v4786
    %v5680 = vunpack.c.h.b16 %v4786
    %v5681 = vunpack.c.l.b16 %v4787
    %v5682 = vunpack.c.h.b16 %v4787
    %v5683 = vunpack.c.l.b16 %v4788
    %v5684 = vunpack.c.h.b16 %v4788
    %v5685 = vunpack.c.l.b16 %v4789
    %v5686 = vunpack.c.h.b16 %v4789
    %v5687 = vunpack.c.l.b16 %v4790
    %v5688 = vunpack.c.h.b16 %v4790
    %v5689 = vunpack.c.l.b16 %v4791
    %v5690 = vunpack.c.h.b16 %v4791
    %v5691 = vunpack.c.l.b16 %v4792
    %v5692 = vunpack.c.h.b16 %v4792
    %v5693 = vunpack.c.l.b16 %v4793
    %v5694 = vunpack.c.h.b16 %v4793
    %v5695 = vunpack.c.l.b16 %v4794
    %v5696 = vunpack.c.h.b16 %v4794
    %v5697 = vunpack.c.l.b16 %v4795
    %v5698 = vunpack.c.h.b16 %v4795
    %v5699 = vunpack.c.l.b16 %v4796
    %v5700 = vunpack.c.h.b16 %v4796
    %v5701 = vunpack.c.l.b16 %v4797
    %v5702 = vunpack.c.h.b16 %v4797
    %v5703 = vunpack.c.l.b16 %v4798
    %v5704 = vunpack.c.h.b16 %v4798
    %v5705 = vunpack.c.l.b16 %v4799
    %v5706 = vunpack.c.h.b16 %v4799
    %v5707 = vunpack.c.l.b16 %v4800
    %v5708 = vunpack.c.h.b16 %v4800
    %v5709 = vunpack.c.l.b16 %v4801
    %v5710 = vunpack.c.h.b16 %v4801
    %v5711 = vunpack.c.l.b16 %v4802
    %v5712 = vunpack.c.h.b16 %v4802
    %v5713 = vunpack.c.l.b16 %v4803
    %v5714 = vunpack.c.h.b16 %v4803
    %v5715 = vunpack.c.l.b16 %v4804
    %v5716 = vunpack.c.h.b16 %v4804
    %v5717 = vunpack.c.l.b16 %v4805
    %v5718 = vunpack.c.h.b16 %v4805
    %v5719 = vunpack.c.l.b16 %v4806
    %v5720 = vunpack.c.h.b16 %v4806
    %v5721 = vunpack.c.l.b16 %v4807
    %v5722 = vunpack.c.h.b16 %v4807
    %v5723 = vunpack.c.l.b16 %v4808
    %v5724 = vunpack.c.h.b16 %v4808
    %v5725 = vunpack.c.l.b16 %v4809
    %v5726 = vunpack.c.h.b16 %v4809
    %v5727 = vunpack.c.l.b16 %v4810
    %v5728 = vunpack.c.h.b16 %v4810
    %v5729 = vunpack.c.l.b16 %v4811
    %v5730 = vunpack.c.h.b16 %v4811
    %v5731 = vunpack.c.l.b16 %v4812
    %v5732 = vunpack.c.h.b16 %v4812
    %v5733 = vunpack.c.l.b16 %v4813
    %v5734 = vunpack.c.h.b16 %v4813
    %v5735 = vunpack.c.l.b16 %v4814
    %v5736 = vunpack.c.h.b16 %v4814
    %v5737 = vunpack.c.l.b16 %v4815
    %v5738 = vunpack.c.h.b16 %v4815
    %v5739 = vunpack.c.l.b16 %v4816
    %v5740 = vunpack.c.h.b16 %v4816
    %v5741 = vunpack.c.l.b16 %v4817
    %v5742 = vunpack.c.h.b16 %v4817
    %v5743 = vunpack.c.l.b16 %v4818
    %v5744 = vunpack.c.h.b16 %v4818
    %v5745 = vunpack.c.l.b16 %v4819
    %v5746 = vunpack.c.h.b16 %v4819
    %v5747 = vunpack.c.l.b16 %v4820
    %v5748 = vunpack.c.h.b16 %v4820
    %v5749 = vunpack.c.l.b16 %v4821
    %v5750 = vunpack.c.h.b16 %v4821
    %v5751 = vunpack.c.l.b16 %v4822
    %v5752 = vunpack.c.h.b16 %v4822
    %v5753 = vunpack.c.l.b16 %v4823
    %v5754 = vunpack.c.h.b16 %v4823
    %v5755 = vunpack.c.l.b16 %v4824
    %v5756 = vunpack.c.h.b16 %v4824
    %v5757 = vunpack.c.l.b16 %v4825
    %v5758 = vunpack.c.h.b16 %v4825
    %v5759 = vunpack.c.l.b16 %v4826
    %v5760 = vunpack.c.h.b16 %v4826
    %v5761 = vunpack.c.l.b16 %v4827
    %v5762 = vunpack.c.h.b16 %v4827
    %v5763 = vunpack.c.l.b16 %v4828
    %v5764 = vunpack.c.h.b16 %v4828
    %v5765 = vunpack.c.l.b16 %v4829
    %v5766 = vunpack.c.h.b16 %v4829
    %v5767 = vunpack.c.l.b16 %v4830
    %v5768 = vunpack.c.h.b16 %v4830
    %v5769 = vunpack.c.l.b16 %v4831
    %v5770 = vunpack.c.h.b16 %v4831
    %v5771 = vunpack.c.l.b16 %v4832
    %v5772 = vunpack.c.h.b16 %v4832
    %v5773 = vunpack.c.l.b16 %v4833
    %v5774 = vunpack.c.h.b16 %v4833
    %v5775 = vunpack.c.l.b16 %v4834
    %v5776 = vunpack.c.h.b16 %v4834
    %v5777 = vunpack.c.l.b16 %v4835
    %v5778 = vunpack.c.h.b16 %v4835
    %v5779 = vunpack.c.l.b16 %v4836
    %v5780 = vunpack.c.h.b16 %v4836
    %v5781 = vunpack.c.l.b16 %v4837
    %v5782 = vunpack.c.h.b16 %v4837
    %v5783 = vunpack.c.l.b16 %v4838
    %v5784 = vunpack.c.h.b16 %v4838
    %v5785 = vunpack.c.l.b16 %v4839
    %v5786 = vunpack.c.h.b16 %v4839
    %v5787 = vunpack.c.l.b16 %v4840
    %v5788 = vunpack.c.h.b16 %v4840
    %v5789 = vunpack.c.l.b16 %v4841
    %v5790 = vunpack.c.h.b16 %v4841
    %v5791 = vunpack.c.l.b16 %v4842
    %v5792 = vunpack.c.h.b16 %v4842
    %v5793 = vunpack.c.l.b16 %v4843
    %v5794 = vunpack.c.h.b16 %v4843
    %v5795 = vunpack.c.l.b16 %v4844
    %v5796 = vunpack.c.h.b16 %v4844
    %v5797 = vunpack.c.l.b16 %v4845
    %v5798 = vunpack.c.h.b16 %v4845
    %v5799 = vunpack.c.l.b16 %v4846
    %v5800 = vunpack.c.h.b16 %v4846
    %v5801 = vunpack.c.l.b16 %v4847
    %v5802 = vunpack.c.h.b16 %v4847
    %v5803 = vunpack.c.l.b16 %v4848
    %v5804 = vunpack.c.h.b16 %v4848
    %v5805 = vunpack.c.l.b16 %v4849
    %v5806 = vunpack.c.h.b16 %v4849
    %v5807 = vunpack.c.l.b16 %v4850
    %v5808 = vunpack.c.h.b16 %v4850
    %v5809 = vunpack.c.l.b16 %v4851
    %v5810 = vunpack.c.h.b16 %v4851
    %v5811 = vunpack.c.l.b16 %v4852
    %v5812 = vunpack.c.h.b16 %v4852
    %v5813 = vunpack.c.l.b16 %v4853
    %v5814 = vunpack.c.h.b16 %v4853
    %v5815 = vunpack.c.l.b16 %v4854
    %v5816 = vunpack.c.h.b16 %v4854
    %v5817 = vunpack.c.l.b16 %v4855
    %v5818 = vunpack.c.h.b16 %v4855
    %v5819 = vunpack.c.l.b16 %v4856
    %v5820 = vunpack.c.h.b16 %v4856
    %v5821 = vunpack.c.l.b16 %v4857
    %v5822 = vunpack.c.h.b16 %v4857
    %v5823 = vunpack.c.l.b16 %v4858
    %v5824 = vunpack.c.h.b16 %v4858
    %v5825 = vunpack.c.l.b16 %v4859
    %v5826 = vunpack.c.h.b16 %v4859
    %v5827 = vunpack.c.l.b16 %v4860
    %v5828 = vunpack.c.h.b16 %v4860
    %v5829 = vunpack.c.l.b16 %v4861
    %v5830 = vunpack.c.h.b16 %v4861
    %v5831 = vunpack.c.l.b16 %v4862
    %v5832 = vunpack.c.h.b16 %v4862
    %v5833 = vunpack.c.l.b16 %v4863
    %v5834 = vunpack.c.h.b16 %v4863
    %v5835 = vunpack.c.l.b16 %v4864
    %v5836 = vunpack.c.h.b16 %v4864
    %v5837 = vunpack.c.l.b16 %v4865
    %v5838 = vunpack.c.h.b16 %v4865
    %v5839 = vunpack.c.l.b16 %v4866
    %v5840 = vunpack.c.h.b16 %v4866
    %v5841 = vunpack.c.l.b16 %v4867
    %v5842 = vunpack.c.h.b16 %v4867
    %v5843 = vunpack.c.l.b16 %v4868
    %v5844 = vunpack.c.h.b16 %v4868
    %v5845 = vunpack.c.l.b16 %v4869
    %v5846 = vunpack.c.h.b16 %v4869
    %v5847 = vunpack.c.l.b16 %v4870
    %v5848 = vunpack.c.h.b16 %v4870
    %v5849 = vunpack.c.l.b16 %v4871
    %v5850 = vunpack.c.h.b16 %v4871
    %v5851 = vunpack.c.l.b16 %v4872
    %v5852 = vunpack.c.h.b16 %v4872
    %v5853 = vunpack.c.l.b16 %v4873
    %v5854 = vunpack.c.h.b16 %v4873
    %v5855 = vunpack.c.l.b16 %v4874
    %v5856 = vunpack.c.h.b16 %v4874
    %v5857 = vunpack.c.l.b16 %v4875
    %v5858 = vunpack.c.h.b16 %v4875
    %v5859 = vunpack.c.l.b16 %v4876
    %v5860 = vunpack.c.h.b16 %v4876
    %v5861 = vunpack.c.l.b16 %v4877
    %v5862 = vunpack.c.h.b16 %v4877
    %v5863 = vunpack.c.l.b16 %v4878
    %v5864 = vunpack.c.h.b16 %v4878
    %v5865 = vunpack.c.l.b16 %v4879
    %v5866 = vunpack.c.h.b16 %v4879
    %v5867 = vunpack.c.l.b16 %v4880
    %v5868 = vunpack.c.h.b16 %v4880
    %v5869 = vunpack.c.l.b16 %v4881
    %v5870 = vunpack.c.h.b16 %v4881
    %v5871 = vunpack.c.l.b16 %v4882
    %v5872 = vunpack.c.h.b16 %v4882
    %v5873 = vunpack.c.l.b16 %v4883
    %v5874 = vunpack.c.h.b16 %v4883
    %v5875 = vunpack.c.l.b16 %v4884
    %v5876 = vunpack.c.h.b16 %v4884
    %v5877 = vunpack.c.l.b16 %v4885
    %v5878 = vunpack.c.h.b16 %v4885
    %v5879 = vunpack.c.l.b16 %v4886
    %v5880 = vunpack.c.h.b16 %v4886
    %v5881 = vunpack.c.l.b16 %v4887
    %v5882 = vunpack.c.h.b16 %v4887
    %v5883 = vunpack.c.l.b16 %v4888
    %v5884 = vunpack.c.h.b16 %v4888
    %v5885 = vunpack.c.l.b16 %v4889
    %v5886 = vunpack.c.h.b16 %v4889
    %v5887 = vunpack.c.l.b16 %v4890
    %v5888 = vunpack.c.h.b16 %v4890
    %v5889 = vunpack.c.l.b16 %v4891
    %v5890 = vunpack.c.h.b16 %v4891
    %v5891 = vunpack.c.l.b16 %v4892
    %v5892 = vunpack.c.h.b16 %v4892
    %v5893 = vunpack.c.l.b16 %v4893
    %v5894 = vunpack.c.h.b16 %v4893
    %v5895 = vunpack.c.l.b16 %v4894
    %v5896 = vunpack.c.h.b16 %v4894
    %v5897 = vunpack.c.l.b16 %v4895
    %v5898 = vunpack.c.h.b16 %v4895
    %v5899 = vunpack.c.l.b16 %v4896
    %v5900 = vunpack.c.h.b16 %v4896
    %v5901 = vunpack.c.l.b16 %v4897
    %v5902 = vunpack.c.h.b16 %v4897
    %v5903 = vunpack.c.l.b16 %v4898
    %v5904 = vunpack.c.h.b16 %v4898
    %v5905 = vunpack.c.l.b16 %v4899
    %v5906 = vunpack.c.h.b16 %v4899
    %v5907 = vunpack.c.l.b16 %v4900
    %v5908 = vunpack.c.h.b16 %v4900
    %v5909 = vunpack.c.l.b16 %v4901
    %v5910 = vunpack.c.h.b16 %v4901
    %v5911 = vunpack.c.l.b16 %v4902
    %v5912 = vunpack.c.h.b16 %v4902
    %v5913 = vunpack.c.l.b16 %v4903
    %v5914 = vunpack.c.h.b16 %v4903
    %v5915 = vunpack.c.l.b16 %v4904
    %v5916 = vunpack.c.h.b16 %v4904
    %v5917 = vunpack.c.l.b16 %v4905
    %v5918 = vunpack.c.h.b16 %v4905
    %v5919 = vunpack.c.l.b16 %v4906
    %v5920 = vunpack.c.h.b16 %v4906
    %v5921 = vunpack.c.l.b16 %v4907
    %v5922 = vunpack.c.h.b16 %v4907
    %v5923 = vunpack.c.l.b16 %v4908
    %v5924 = vunpack.c.h.b16 %v4908
    %v5925 = vunpack.c.l.b16 %v4909
    %v5926 = vunpack.c.h.b16 %v4909
    %v5927 = vunpack.c.l.b16 %v4910
    %v5928 = vunpack.c.h.b16 %v4910
    %v5929 = vunpack.c.l.b16 %v4911
    %v5930 = vunpack.c.h.b16 %v4911
    %v5931 = vunpack.c.l.b16 %v4912
    %v5932 = vunpack.c.h.b16 %v4912
    %v5933 = vunpack.c.l.b16 %v4913
    %v5934 = vunpack.c.h.b16 %v4913
    %v5935 = vunpack.c.l.b16 %v4914
    %v5936 = vunpack.c.h.b16 %v4914
    %v5937 = vunpack.c.l.b16 %v4915
    %v5938 = vunpack.c.h.b16 %v4915
    %v5939 = vunpack.c.l.b16 %v4916
    %v5940 = vunpack.c.h.b16 %v4916
    %v5941 = vunpack.c.l.b16 %v4917
    %v5942 = vunpack.c.h.b16 %v4917
    %v5943 = vunpack.c.l.b16 %v4918
    %v5944 = vunpack.c.h.b16 %v4918
    %v5945 = vunpack.c.l.b16 %v4919
    %v5946 = vunpack.c.h.b16 %v4919
    %v5947 = vunpack.c.l.b16 %v4920
    %v5948 = vunpack.c.h.b16 %v4920
    %v5949 = vunpack.c.l.b16 %v4921
    %v5950 = vunpack.c.h.b16 %v4921
    %v5951 = vunpack.c.l.b16 %v4922
    %v5952 = vunpack.c.h.b16 %v4922
    %v5953 = vunpack.c.l.b16 %v4923
    %v5954 = vunpack.c.h.b16 %v4923
    %v5955 = vunpack.c.l.b16 %v4924
    %v5956 = vunpack.c.h.b16 %v4924
    %v5957 = vunpack.c.l.b16 %v4925
    %v5958 = vunpack.c.h.b16 %v4925
    %v5959 = vunpack.c.l.b16 %v4926
    %v5960 = vunpack.c.h.b16 %v4926
    %v5961 = vunpack.c.l.b16 %v4927
    %v5962 = vunpack.c.h.b16 %v4927
    %v5963 = vunpack.c.l.b16 %v4928
    %v5964 = vunpack.c.h.b16 %v4928
    %v5965 = vunpack.c.l.b16 %v4929
    %v5966 = vunpack.c.h.b16 %v4929
    %v5967 = vunpack.c.l.b16 %v4930
    %v5968 = vunpack.c.h.b16 %v4930
    %v5969 = vunpack.c.l.b16 %v4931
    %v5970 = vunpack.c.h.b16 %v4931
    %v5971 = vunpack.c.l.b16 %v4932
    %v5972 = vunpack.c.h.b16 %v4932
    %v5973 = vunpack.c.l.b16 %v4933
    %v5974 = vunpack.c.h.b16 %v4933
    %v5975 = vunpack.c.l.b16 %v4934
    %v5976 = vunpack.c.h.b16 %v4934
    %v5977 = vunpack.c.l.b16 %v4935
    %v5978 = vunpack.c.h.b16 %v4935
    %v5979 = vunpack.c.l.b16 %v4936
    %v5980 = vunpack.c.h.b16 %v4936
    %v5981 = vunpack.c.l.b16 %v4937
    %v5982 = vunpack.c.h.b16 %v4937
    %v5983 = vunpack.c.l.b16 %v4938
    %v5984 = vunpack.c.h.b16 %v4938
    %v5985 = vunpack.c.l.b16 %v4939
    %v5986 = vunpack.c.h.b16 %v4939
    %v5987 = vunpack.c.l.b16 %v4940
    %v5988 = vunpack.c.h.b16 %v4940
    %v5989 = vunpack.c.l.b16 %v4941
    %v5990 = vunpack.c.h.b16 %v4941
    %v5991 = vunpack.c.l.b16 %v4942
    %v5992 = vunpack.c.h.b16 %v4942
    %v5993 = vunpack.c.l.b16 %v4943
    %v5994 = vunpack.c.h.b16 %v4943
    %v5995 = vunpack.c.l.b16 %v4944
    %v5996 = vunpack.c.h.b16 %v4944
    %v5997 = vunpack.c.l.b16 %v4945
    %v5998 = vunpack.c.h.b16 %v4945
    %v5999 = vunpack.c.l.b16 %v4946
    %v6000 = vunpack.c.h.b16 %v4946
    %v6001 = vunpack.c.l.b16 %v4947
    %v6002 = vunpack.c.h.b16 %v4947
    %v6003 = vunpack.c.l.b16 %v4948
    %v6004 = vunpack.c.h.b16 %v4948
    %v6005 = vunpack.c.l.b16 %v4949
    %v6006 = vunpack.c.h.b16 %v4949
    %v6007 = vunpack.c.l.b16 %v4950
    %v6008 = vunpack.c.h.b16 %v4950
    %v6009 = vunpack.c.l.b16 %v4951
    %v6010 = vunpack.c.h.b16 %v4951
    %v6011 = vunpack.c.l.b16 %v4952
    %v6012 = vunpack.c.h.b16 %v4952
    %v6013 = vunpack.c.l.b16 %v4953
    %v6014 = vunpack.c.h.b16 %v4953
    %v6015 = vunpack.c.l.b16 %v4954
    %v6016 = vunpack.c.h.b16 %v4954
    %v6017 = vunpack.c.l.b16 %v4955
    %v6018 = vunpack.c.h.b16 %v4955
    %v6019 = vunpack.c.l.b16 %v4956
    %v6020 = vunpack.c.h.b16 %v4956
    %v6021 = vunpack.c.l.b16 %v4957
    %v6022 = vunpack.c.h.b16 %v4957
    %v6023 = vunpack.c.l.b16 %v4958
    %v6024 = vunpack.c.h.b16 %v4958
    %v6025 = vunpack.c.l.b16 %v4959
    %v6026 = vunpack.c.h.b16 %v4959
    %v6027 = vunpack.c.l.b16 %v4960
    %v6028 = vunpack.c.h.b16 %v4960
    %v6029 = vunpack.c.l.b16 %v4961
    %v6030 = vunpack.c.h.b16 %v4961
    %v6031 = vunpack.c.l.b16 %v4962
    %v6032 = vunpack.c.h.b16 %v4962
    %v6033 = vunpack.c.l.b16 %v4963
    %v6034 = vunpack.c.h.b16 %v4963
    %v6035 = vunpack.c.l.b16 %v4964
    %v6036 = vunpack.c.h.b16 %v4964
    %v6037 = vunpack.c.l.b16 %v4965
    %v6038 = vunpack.c.h.b16 %v4965
    %v6039 = vunpack.c.l.b16 %v4966
    %v6040 = vunpack.c.h.b16 %v4966
    %v6041 = vunpack.c.l.b16 %v4967
    %v6042 = vunpack.c.h.b16 %v4967
    %v6043 = vunpack.c.l.b16 %v4968
    %v6044 = vunpack.c.h.b16 %v4968
    %v6045 = vunpack.c.l.b16 %v4969
    %v6046 = vunpack.c.h.b16 %v4969
    %v6047 = vunpack.c.l.b16 %v4970
    %v6048 = vunpack.c.h.b16 %v4970
    %v6049 = vunpack.c.l.b16 %v4971
    %v6050 = vunpack.c.h.b16 %v4971
    %v6051 = vunpack.c.l.b16 %v4972
    %v6052 = vunpack.c.h.b16 %v4972
    %v6053 = vunpack.c.l.b16 %v4973
    %v6054 = vunpack.c.h.b16 %v4973
    %v6055 = vunpack.c.l.b16 %v4974
    %v6056 = vunpack.c.h.b16 %v4974
    %v6057 = vunpack.c.l.b16 %v4975
    %v6058 = vunpack.c.h.b16 %v4975
    %v6059 = vunpack.c.l.b16 %v4976
    %v6060 = vunpack.c.h.b16 %v4976
    %v6061 = vunpack.c.l.b16 %v4977
    %v6062 = vunpack.c.h.b16 %v4977
    %v6063 = vunpack.c.l.b16 %v4978
    %v6064 = vunpack.c.h.b16 %v4978
    %v6065 = vunpack.c.l.b16 %v4979
    %v6066 = vunpack.c.h.b16 %v4979
    %v6067 = vunpack.c.l.b16 %v4980
    %v6068 = vunpack.c.h.b16 %v4980
    %v6069 = vunpack.c.l.b16 %v4981
    %v6070 = vunpack.c.h.b16 %v4981
    %v6071 = vunpack.c.l.b16 %v4982
    %v6072 = vunpack.c.h.b16 %v4982
    %v6073 = vunpack.c.l.b16 %v4983
    %v6074 = vunpack.c.h.b16 %v4983
    %v6075 = vunpack.c.l.b16 %v4984
    %v6076 = vunpack.c.h.b16 %v4984
    %v6077 = vunpack.c.l.b16 %v4985
    %v6078 = vunpack.c.h.b16 %v4985
    %v6079 = vunpack.c.l.b16 %v4986
    %v6080 = vunpack.c.h.b16 %v4986
    %v6081 = vunpack.c.l.b16 %v4987
    %v6082 = vunpack.c.h.b16 %v4987
    %v6083 = vunpack.c.l.b16 %v4988
    %v6084 = vunpack.c.h.b16 %v4988
    %v6085 = vunpack.c.l.b16 %v4989
    %v6086 = vunpack.c.h.b16 %v4989
    %v6087 = vunpack.c.l.b16 %v4990
    %v6088 = vunpack.c.h.b16 %v4990
    %v6089 = vunpack.c.l.b16 %v4991
    %v6090 = vunpack.c.h.b16 %v4991
    %v6091 = vunpack.c.l.b16 %v4992
    %v6092 = vunpack.c.h.b16 %v4992
    %v6093 = vunpack.c.l.b16 %v4993
    %v6094 = vunpack.c.h.b16 %v4993
    %v6095 = vunpack.c.l.b16 %v4994
    %v6096 = vunpack.c.h.b16 %v4994
    %v6097 = vunpack.c.l.b16 %v4995
    %v6098 = vunpack.c.h.b16 %v4995
    %v6099 = vunpack.c.l.b16 %v4996
    %v6100 = vunpack.c.h.b16 %v4996
    %v6101 = vunpack.c.l.b16 %v4997
    %v6102 = vunpack.c.h.b16 %v4997
    %v6103 = vunpack.c.l.b16 %v4998
    %v6104 = vunpack.c.h.b16 %v4998
    %v6105 = vunpack.c.l.b16 %v4999
    %v6106 = vunpack.c.h.b16 %v4999
    %v6107 = vunpack.c.l.b16 %v5000
    %v6108 = vunpack.c.h.b16 %v5000
    %v6109 = vunpack.c.l.b16 %v5001
    %v6110 = vunpack.c.h.b16 %v5001
    %v6111 = vunpack.c.l.b16 %v5002
    %v6112 = vunpack.c.h.b16 %v5002
    %v6113 = vunpack.c.l.b16 %v5003
    %v6114 = vunpack.c.h.b16 %v5003
    %v6115 = vunpack.c.l.b16 %v5004
    %v6116 = vunpack.c.h.b16 %v5004
    %v6117 = vunpack.c.l.b16 %v5005
    %v6118 = vunpack.c.h.b16 %v5005
    %v6119 = vunpack.c.l.b16 %v5006
    %v6120 = vunpack.c.h.b16 %v5006
    %v6121 = vunpack.c.l.b16 %v5007
    %v6122 = vunpack.c.h.b16 %v5007
    %v6123 = vunpack.c.l.b16 %v5008
    %v6124 = vunpack.c.h.b16 %v5008
    %v6125 = vunpack.c.l.b16 %v5009
    %v6126 = vunpack.c.h.b16 %v5009
    %v6127 = vunpack.c.l.b16 %v5010
    %v6128 = vunpack.c.h.b16 %v5010
    %v6129 = vunpack.c.l.b16 %v5011
    %v6130 = vunpack.c.h.b16 %v5011
    %v6131 = vunpack.c.l.b16 %v5012
    %v6132 = vunpack.c.h.b16 %v5012
    %v6133 = vunpack.c.l.b16 %v5013
    %v6134 = vunpack.c.h.b16 %v5013
    %v6135 = vunpack.c.l.b16 %v5014
    %v6136 = vunpack.c.h.b16 %v5014
    %v6137 = vunpack.c.l.b16 %v5015
    %v6138 = vunpack.c.h.b16 %v5015
    %v6139 = vunpack.c.l.b16 %v5016
    %v6140 = vunpack.c.h.b16 %v5016
    %v6141 = vunpack.c.l.b16 %v5017
    %v6142 = vunpack.c.h.b16 %v5017
    %v6143 = vunpack.c.l.b16 %v5018
    %v6144 = vunpack.c.h.b16 %v5018
    %v6145 = vunpack.c.l.b16 %v5019
    %v6146 = vunpack.c.h.b16 %v5019
    %v6147 = vunpack.c.l.b16 %v5020
    %v6148 = vunpack.c.h.b16 %v5020
    %v6149 = vunpack.c.l.b16 %v5021
    %v6150 = vunpack.c.h.b16 %v5021
    %v6151 = vunpack.c.l.b16 %v5022
    %v6152 = vunpack.c.h.b16 %v5022
    %v6153 = vunpack.c.l.b16 %v5023
    %v6154 = vunpack.c.h.b16 %v5023
    %v6155 = vunpack.c.l.b16 %v5024
    %v6156 = vunpack.c.h.b16 %v5024
    %v6157 = vunpack.c.l.b16 %v5025
    %v6158 = vunpack.c.h.b16 %v5025
    %v6159 = vunpack.c.l.b16 %v5026
    %v6160 = vunpack.c.h.b16 %v5026
    %v6161 = vunpack.c.l.b16 %v5027
    %v6162 = vunpack.c.h.b16 %v5027
    %v6163 = vunpack.c.l.b16 %v5028
    %v6164 = vunpack.c.h.b16 %v5028
    %v6165 = vunpack.c.l.b16 %v5029
    %v6166 = vunpack.c.h.b16 %v5029
    %v6167 = vunpack.c.l.b16 %v5030
    %v6168 = vunpack.c.h.b16 %v5030
    %v6169 = vunpack.c.l.b16 %v5031
    %v6170 = vunpack.c.h.b16 %v5031
    %v6171 = vunpack.c.l.b16 %v5032
    %v6172 = vunpack.c.h.b16 %v5032
    %v6173 = vunpack.c.l.b16 %v5033
    %v6174 = vunpack.c.h.b16 %v5033
    %v6175 = vunpack.c.l.b16 %v5034
    %v6176 = vunpack.c.h.b16 %v5034
    %v6177 = vunpack.c.l.b16 %v5035
    %v6178 = vunpack.c.h.b16 %v5035
    %v6179 = vunpack.c.l.b16 %v5036
    %v6180 = vunpack.c.h.b16 %v5036
    %v6181 = vunpack.c.l.b16 %v5037
    %v6182 = vunpack.c.h.b16 %v5037
    %v6183 = vunpack.c.l.b16 %v5038
    %v6184 = vunpack.c.h.b16 %v5038
    %v6185 = vunpack.c.l.b16 %v5039
    %v6186 = vunpack.c.h.b16 %v5039
    %v6187 = vunpack.c.l.b16 %v5040
    %v6188 = vunpack.c.h.b16 %v5040
    %v6189 = vunpack.c.l.b16 %v5041
    %v6190 = vunpack.c.h.b16 %v5041
    %v6191 = vunpack.c.l.b16 %v5042
    %v6192 = vunpack.c.h.b16 %v5042
    %v6193 = vunpack.c.l.b16 %v5043
    %v6194 = vunpack.c.h.b16 %v5043
    %v6195 = vunpack.c.l.b16 %v5044
    %v6196 = vunpack.c.h.b16 %v5044
    %v6197 = vpack.c.b16 %v5435, %v5429
    %v6198 = vpack.c.b16 %v5436, %v5430
    %v6199 = vpack.c.b16 %v5437, %v5431
    %v6200 = vpack.c.b16 %v5438, %v5432
    %v6201 = vpack.c.b16 %v5439, %v5433
    %v6202 = vpack.c.b16 %v5440, %v5434
    %v6203 = vpack.c.b16 %v5447, %v5441
    %v6204 = vpack.c.b16 %v5448, %v5442
    %v6205 = vpack.c.b16 %v5449, %v5443
    %v6206 = vpack.c.b16 %v5450, %v5444
    %v6207 = vpack.c.b16 %v5451, %v5445
    %v6208 = vpack.c.b16 %v5452, %v5446
    %v6209 = vpack.c.b16 %v5459, %v5453
    %v6210 = vpack.c.b16 %v5460, %v5454
    %v6211 = vpack.c.b16 %v5461, %v5455
    %v6212 = vpack.c.b16 %v5462, %v5456
    %v6213 = vpack.c.b16 %v5463, %v5457
    %v6214 = vpack.c.b16 %v5464, %v5458
    %v6215 = vpack.c.b16 %v5471, %v5465
    %v6216 = vpack.c.b16 %v5472, %v5466
    %v6217 = vpack.c.b16 %v5473, %v5467
    %v6218 = vpack.c.b16 %v5474, %v5468
    %v6219 = vpack.c.b16 %v5475, %v5469
    %v6220 = vpack.c.b16 %v5476, %v5470
    %v6221 = vpack.c.b16 %v5483, %v5477
    %v6222 = vpack.c.b16 %v5484, %v5478
    %v6223 = vpack.c.b16 %v5485, %v5479
    %v6224 = vpack.c.b16 %v5486, %v5480
    %v6225 = vpack.c.b16 %v5487, %v5481
    %v6226 = vpack.c.b16 %v5488, %v5482
    %v6227 = vpack.c.b16 %v5495, %v5489
    %v6228 = vpack.c.b16 %v5496, %v5490
    %v6229 = vpack.c.b16 %v5497, %v5491
    %v6230 = vpack.c.b16 %v5498, %v5492
    %v6231 = vpack.c.b16 %v5499, %v5493
    %v6232 = vpack.c.b16 %v5500, %v5494
    %v6233 = vpack.c.b16 %v5507, %v5501
    %v6234 = vpack.c.b16 %v5508, %v5502
    %v6235 = vpack.c.b16 %v5509, %v5503
    %v6236 = vpack.c.b16 %v5510, %v5504
    %v6237 = vpack.c.b16 %v5511, %v5505
    %v6238 = vpack.c.b16 %v5512, %v5506
    %v6239 = vpack.c.b16 %v5519, %v5513
    %v6240 = vpack.c.b16 %v5520, %v5514
    %v6241 = vpack.c.b16 %v5521, %v5515
    %v6242 = vpack.c.b16 %v5522, %v5516
    %v6243 = vpack.c.b16 %v5523, %v5517
    %v6244 = vpack.c.b16 %v5524, %v5518
    %v6245 = vpack.c.b16 %v5531, %v5525
    %v6246 = vpack.c.b16 %v5532, %v5526
    %v6247 = vpack.c.b16 %v5533, %v5527
    %v6248 = vpack.c.b16 %v5534, %v5528
    %v6249 = vpack.c.b16 %v5535, %v5529
    %v6250 = vpack.c.b16 %v5536, %v5530
    %v6251 = vpack.c.b16 %v5543, %v5537
    %v6252 = vpack.c.b16 %v5544, %v5538
    %v6253 = vpack.c.b16 %v5545, %v5539
    %v6254 = vpack.c.b16 %v5546, %v5540
    %v6255 = vpack.c.b16 %v5547, %v5541
    %v6256 = vpack.c.b16 %v5548, %v5542
    %v6257 = vpack.c.b16 %v5555, %v5549
    %v6258 = vpack.c.b16 %v5556, %v5550
    %v6259 = vpack.c.b16 %v5557, %v5551
    %v6260 = vpack.c.b16 %v5558, %v5552
    %v6261 = vpack.c.b16 %v5559, %v5553
    %v6262 = vpack.c.b16 %v5560, %v5554
    %v6263 = vpack.c.b16 %v5567, %v5561
    %v6264 = vpack.c.b16 %v5568, %v5562
    %v6265 = vpack.c.b16 %v5569, %v5563
    %v6266 = vpack.c.b16 %v5570, %v5564
    %v6267 = vpack.c.b16 %v5571, %v5565
    %v6268 = vpack.c.b16 %v5572, %v5566
    %v6269 = vpack.c.b16 %v5579, %v5573
    %v6270 = vpack.c.b16 %v5580, %v5574
    %v6271 = vpack.c.b16 %v5581, %v5575
    %v6272 = vpack.c.b16 %v5582, %v5576
    %v6273 = vpack.c.b16 %v5583, %v5577
    %v6274 = vpack.c.b16 %v5584, %v5578
    %v6275 = vpack.c.b16 %v5591, %v5585
    %v6276 = vpack.c.b16 %v5592, %v5586
    %v6277 = vpack.c.b16 %v5593, %v5587
    %v6278 = vpack.c.b16 %v5594, %v5588
    %v6279 = vpack.c.b16 %v5595, %v5589
    %v6280 = vpack.c.b16 %v5596, %v5590
    %v6281 = vpack.c.b16 %v5603, %v5597
    %v6282 = vpack.c.b16 %v5604, %v5598
    %v6283 = vpack.c.b16 %v5605, %v5599
    %v6284 = vpack.c.b16 %v5606, %v5600
    %v6285 = vpack.c.b16 %v5607, %v5601
    %v6286 = vpack.c.b16 %v5608, %v5602
    %v6287 = vpack.c.b16 %v5615, %v5609
    %v6288 = vpack.c.b16 %v5616, %v5610
    %v6289 = vpack.c.b16 %v5617, %v5611
    %v6290 = vpack.c.b16 %v5618, %v5612
    %v6291 = vpack.c.b16 %v5619, %v5613
    %v6292 = vpack.c.b16 %v5620, %v5614
    %v6293 = vpack.c.b16 %v5627, %v5621
    %v6294 = vpack.c.b16 %v5628, %v5622
    %v6295 = vpack.c.b16 %v5629, %v5623
    %v6296 = vpack.c.b16 %v5630, %v5624
    %v6297 = vpack.c.b16 %v5631, %v5625
    %v6298 = vpack.c.b16 %v5632, %v5626
    %v6299 = vpack.c.b16 %v5639, %v5633
    %v6300 = vpack.c.b16 %v5640, %v5634
    %v6301 = vpack.c.b16 %v5641, %v5635
    %v6302 = vpack.c.b16 %v5642, %v5636
    %v6303 = vpack.c.b16 %v5643, %v5637
    %v6304 = vpack.c.b16 %v5644, %v5638
    %v6305 = vpack.c.b16 %v5651, %v5645
    %v6306 = vpack.c.b16 %v5652, %v5646
    %v6307 = vpack.c.b16 %v5653, %v5647
    %v6308 = vpack.c.b16 %v5654, %v5648
    %v6309 = vpack.c.b16 %v5655, %v5649
    %v6310 = vpack.c.b16 %v5656, %v5650
    %v6311 = vpack.c.b16 %v5663, %v5657
    %v6312 = vpack.c.b16 %v5664, %v5658
    %v6313 = vpack.c.b16 %v5665, %v5659
    %v6314 = vpack.c.b16 %v5666, %v5660
    %v6315 = vpack.c.b16 %v5667, %v5661
    %v6316 = vpack.c.b16 %v5668, %v5662
    %v6317 = vpack.c.b16 %v5675, %v5669
    %v6318 = vpack.c.b16 %v5676, %v5670
    %v6319 = vpack.c.b16 %v5677, %v5671
    %v6320 = vpack.c.b16 %v5678, %v5672
    %v6321 = vpack.c.b16 %v5679, %v5673
    %v6322 = vpack.c.b16 %v5680, %v5674
    %v6323 = vpack.c.b16 %v5687, %v5681
    %v6324 = vpack.c.b16 %v5688, %v5682
    %v6325 = vpack.c.b16 %v5689, %v5683
    %v6326 = vpack.c.b16 %v5690, %v5684
    %v6327 = vpack.c.b16 %v5691, %v5685
    %v6328 = vpack.c.b16 %v5692, %v5686
    %v6329 = vpack.c.b16 %v5699, %v5693
    %v6330 = vpack.c.b16 %v5700, %v5694
    %v6331 = vpack.c.b16 %v5701, %v5695
    %v6332 = vpack.c.b16 %v5702, %v5696
    %v6333 = vpack.c.b16 %v5703, %v5697
    %v6334 = vpack.c.b16 %v5704, %v5698
    %v6335 = vpack.c.b16 %v5711, %v5705
    %v6336 = vpack.c.b16 %v5712, %v5706
    %v6337 = vpack.c.b16 %v5713, %v5707
    %v6338 = vpack.c.b16 %v5714, %v5708
    %v6339 = vpack.c.b16 %v5715, %v5709
    %v6340 = vpack.c.b16 %v5716, %v5710
    %v6341 = vpack.c.b16 %v5723, %v5717
    %v6342 = vpack.c.b16 %v5724, %v5718
    %v6343 = vpack.c.b16 %v5725, %v5719
    %v6344 = vpack.c.b16 %v5726, %v5720
    %v6345 = vpack.c.b16 %v5727, %v5721
    %v6346 = vpack.c.b16 %v5728, %v5722
    %v6347 = vpack.c.b16 %v5735, %v5729
    %v6348 = vpack.c.b16 %v5736, %v5730
    %v6349 = vpack.c.b16 %v5737, %v5731
    %v6350 = vpack.c.b16 %v5738, %v5732
    %v6351 = vpack.c.b16 %v5739, %v5733
    %v6352 = vpack.c.b16 %v5740, %v5734
    %v6353 = vpack.c.b16 %v5747, %v5741
    %v6354 = vpack.c.b16 %v5748, %v5742
    %v6355 = vpack.c.b16 %v5749, %v5743
    %v6356 = vpack.c.b16 %v5750, %v5744
    %v6357 = vpack.c.b16 %v5751, %v5745
    %v6358 = vpack.c.b16 %v5752, %v5746
    %v6359 = vpack.c.b16 %v5759, %v5753
    %v6360 = vpack.c.b16 %v5760, %v5754
    %v6361 = vpack.c.b16 %v5761, %v5755
    %v6362 = vpack.c.b16 %v5762, %v5756
    %v6363 = vpack.c.b16 %v5763, %v5757
    %v6364 = vpack.c.b16 %v5764, %v5758
    %v6365 = vpack.c.b16 %v5771, %v5765
    %v6366 = vpack.c.b16 %v5772, %v5766
    %v6367 = vpack.c.b16 %v5773, %v5767
    %v6368 = vpack.c.b16 %v5774, %v5768
    %v6369 = vpack.c.b16 %v5775, %v5769
    %v6370 = vpack.c.b16 %v5776, %v5770
    %v6371 = vpack.c.b16 %v5783, %v5777
    %v6372 = vpack.c.b16 %v5784, %v5778
    %v6373 = vpack.c.b16 %v5785, %v5779
    %v6374 = vpack.c.b16 %v5786, %v5780
    %v6375 = vpack.c.b16 %v5787, %v5781
    %v6376 = vpack.c.b16 %v5788, %v5782
    %v6377 = vpack.c.b16 %v5795, %v5789
    %v6378 = vpack.c.b16 %v5796, %v5790
    %v6379 = vpack.c.b16 %v5797, %v5791
    %v6380 = vpack.c.b16 %v5798, %v5792
    %v6381 = vpack.c.b16 %v5799, %v5793
    %v6382 = vpack.c.b16 %v5800, %v5794
    %v6383 = vpack.c.b16 %v5807, %v5801
    %v6384 = vpack.c.b16 %v5808, %v5802
    %v6385 = vpack.c.b16 %v5809, %v5803
    %v6386 = vpack.c.b16 %v5810, %v5804
    %v6387 = vpack.c.b16 %v5811, %v5805
    %v6388 = vpack.c.b16 %v5812, %v5806
    %v6389 = vpack.c.b16 %v5819, %v5813
    %v6390 = vpack.c.b16 %v5820, %v5814
    %v6391 = vpack.c.b16 %v5821, %v5815
    %v6392 = vpack.c.b16 %v5822, %v5816
    %v6393 = vpack.c.b16 %v5823, %v5817
    %v6394 = vpack.c.b16 %v5824, %v5818
    %v6395 = vpack.c.b16 %v5831, %v5825
    %v6396 = vpack.c.b16 %v5832, %v5826
    %v6397 = vpack.c.b16 %v5833, %v5827
    %v6398 = vpack.c.b16 %v5834, %v5828
    %v6399 = vpack.c.b16 %v5835, %v5829
    %v6400 = vpack.c.b16 %v5836, %v5830
    %v6401 = vpack.c.b16 %v5843, %v5837
    %v6402 = vpack.c.b16 %v5844, %v5838
    %v6403 = vpack.c.b16 %v5845, %v5839
    %v6404 = vpack.c.b16 %v5846, %v5840
    %v6405 = vpack.c.b16 %v5847, %v5841
    %v6406 = vpack.c.b16 %v5848, %v5842
    %v6407 = vpack.c.b16 %v5855, %v5849
    %v6408 = vpack.c.b16 %v5856, %v5850
    %v6409 = vpack.c.b16 %v5857, %v5851
    %v6410 = vpack.c.b16 %v5858, %v5852
    %v6411 = vpack.c.b16 %v5859, %v5853
    %v6412 = vpack.c.b16 %v5860, %v5854
    %v6413 = vpack.c.b16 %v5867, %v5861
    %v6414 = vpack.c.b16 %v5868, %v5862
    %v6415 = vpack.c.b16 %v5869, %v5863
    %v6416 = vpack.c.b16 %v5870, %v5864
    %v6417 = vpack.c.b16 %v5871, %v5865
    %v6418 = vpack.c.b16 %v5872, %v5866
    %v6419 = vpack.c.b16 %v5879, %v5873
    %v6420 = vpack.c.b16 %v5880, %v5874
    %v6421 = vpack.c.b16 %v5881, %v5875
    %v6422 = vpack.c.b16 %v5882, %v5876
    %v6423 = vpack.c.b16 %v5883, %v5877
    %v6424 = vpack.c.b16 %v5884, %v5878
    %v6425 = vpack.c.b16 %v5891, %v5885
    %v6426 = vpack.c.b16 %v5892, %v5886
    %v6427 = vpack.c.b16 %v5893, %v5887
    %v6428 = vpack.c.b16 %v5894, %v5888
    %v6429 = vpack.c.b16 %v5895, %v5889
    %v6430 = vpack.c.b16 %v5896, %v5890
    %v6431 = vpack.c.b16 %v5903, %v5897
    %v6432 = vpack.c.b16 %v5904, %v5898
    %v6433 = vpack.c.b16 %v5905, %v5899
    %v6434 = vpack.c.b16 %v5906, %v5900
    %v6435 = vpack.c.b16 %v5907, %v5901
    %v6436 = vpack.c.b16 %v5908, %v5902
    %v6437 = vpack.c.b16 %v5915, %v5909
    %v6438 = vpack.c.b16 %v5916, %v5910
    %v6439 = vpack.c.b16 %v5917, %v5911
    %v6440 = vpack.c.b16 %v5918, %v5912
    %v6441 = vpack.c.b16 %v5919, %v5913
    %v6442 = vpack.c.b16 %v5920, %v5914
    %v6443 = vpack.c.b16 %v5927, %v5921
    %v6444 = vpack.c.b16 %v5928, %v5922
    %v6445 = vpack.c.b16 %v5929, %v5923
    %v6446 = vpack.c.b16 %v5930, %v5924
    %v6447 = vpack.c.b16 %v5931, %v5925
    %v6448 = vpack.c.b16 %v5932, %v5926
    %v6449 = vpack.c.b16 %v5939, %v5933
    %v6450 = vpack.c.b16 %v5940, %v5934
    %v6451 = vpack.c.b16 %v5941, %v5935
    %v6452 = vpack.c.b16 %v5942, %v5936
    %v6453 = vpack.c.b16 %v5943, %v5937
    %v6454 = vpack.c.b16 %v5944, %v5938
    %v6455 = vpack.c.b16 %v5951, %v5945
    %v6456 = vpack.c.b16 %v5952, %v5946
    %v6457 = vpack.c.b16 %v5953, %v5947
    %v6458 = vpack.c.b16 %v5954, %v5948
    %v6459 = vpack.c.b16 %v5955, %v5949
    %v6460 = vpack.c.b16 %v5956, %v5950
    %v6461 = vpack.c.b16 %v5963, %v5957
    %v6462 = vpack.c.b16 %v5964, %v5958
    %v6463 = vpack.c.b16 %v5965, %v5959
    %v6464 = vpack.c.b16 %v5966, %v5960
    %v6465 = vpack.c.b16 %v5967, %v5961
    %v6466 = vpack.c.b16 %v5968, %v5962
    %v6467 = vpack.c.b16 %v5975, %v5969
    %v6468 = vpack.c.b16 %v5976, %v5970
    %v6469 = vpack.c.b16 %v5977, %v5971
    %v6470 = vpack.c.b16 %v5978, %v5972
    %v6471 = vpack.c.b16 %v5979, %v5973
    %v6472 = vpack.c.b16 %v5980, %v5974
    %v6473 = vpack.c.b16 %v5987, %v5981
    %v6474 = vpack.c.b16 %v5988, %v5982
    %v6475 = vpack.c.b16 %v5989, %v5983
    %v6476 = vpack.c.b16 %v5990, %v5984
    %v6477 = vpack.c.b16 %v5991, %v5985
    %v6478 = vpack.c.b16 %v5992, %v5986
    %v6479 = vpack.c.b16 %v5999, %v5993
    %v6480 = vpack.c.b16 %v6000, %v5994
    %v6481 = vpack.c.b16 %v6001, %v5995
    %v6482 = vpack.c.b16 %v6002, %v5996
    %v6483 = vpack.c.b16 %v6003, %v5997
    %v6484 = vpack.c.b16 %v6004, %v5998
    %v6485 = vpack.c.b16 %v6011, %v6005
    %v6486 = vpack.c.b16 %v6012, %v6006
    %v6487 = vpack.c.b16 %v6013, %v6007
    %v6488 = vpack.c.b16 %v6014, %v6008
    %v6489 = vpack.c.b16 %v6015, %v6009
    %v6490 = vpack.c.b16 %v6016, %v6010
    %v6491 = vpack.c.b16 %v6023, %v6017
    %v6492 = vpack.c.b16 %v6024, %v6018
    %v6493 = vpack.c.b16 %v6025, %v6019
    %v6494 = vpack.c.b16 %v6026, %v6020
    %v6495 = vpack.c.b16 %v6027, %v6021
    %v6496 = vpack.c.b16 %v6028, %v6022
    %v6497 = vpack.c.b16 %v6035, %v6029
    %v6498 = vpack.c.b16 %v6036, %v6030
    %v6499 = vpack.c.b16 %v6037, %v6031
    %v6500 = vpack.c.b16 %v6038, %v6032
    %v6501 = vpack.c.b16 %v6039, %v6033
    %v6502 = vpack.c.b16 %v6040, %v6034
    %v6503 = vpack.c.b16 %v6047, %v6041
    %v6504 = vpack.c.b16 %v6048, %v6042
    %v6505 = vpack.c.b16 %v6049, %v6043
    %v6506 = vpack.c.b16 %v6050, %v6044
    %v6507 = vpack.c.b16 %v6051, %v6045
    %v6508 = vpack.c.b16 %v6052, %v6046
    %v6509 = vpack.c.b16 %v6059, %v6053
    %v6510 = vpack.c.b16 %v6060, %v6054
    %v6511 = vpack.c.b16 %v6061, %v6055
    %v6512 = vpack.c.b16 %v6062, %v6056
    %v6513 = vpack.c.b16 %v6063, %v6057
    %v6514 = vpack.c.b16 %v6064, %v6058
    %v6515 = vpack.c.b16 %v6071, %v6065
    %v6516 = vpack.c.b16 %v6072, %v6066
    %v6517 = vpack.c.b16 %v6073, %v6067
    %v6518 = vpack.c.b16 %v6074, %v6068
    %v6519 = vpack.c.b16 %v6075, %v6069
    %v6520 = vpack.c.b16 %v6076, %v6070
    %v6521 = vpack.c.b16 %v6083, %v6077
    %v6522 = vpack.c.b16 %v6084, %v6078
    %v6523 = vpack.c.b16 %v6085, %v6079
    %v6524 = vpack.c.b16 %v6086, %v6080
    %v6525 = vpack.c.b16 %v6087, %v6081
    %v6526 = vpack.c.b16 %v6088, %v6082
    %v6527 = vpack.c.b16 %v6095, %v6089
    %v6528 = vpack.c.b16 %v6096, %v6090
    %v6529 = vpack.c.b16 %v6097, %v6091
    %v6530 = vpack.c.b16 %v6098, %v6092
    %v6531 = vpack.c.b16 %v6099, %v6093
    %v6532 = vpack.c.b16 %v6100, %v6094
    %v6533 = vpack.c.b16 %v6107, %v6101
    %v6534 = vpack.c.b16 %v6108, %v6102
    %v6535 = vpack.c.b16 %v6109, %v6103
    %v6536 = vpack.c.b16 %v6110, %v6104
    %v6537 = vpack.c.b16 %v6111, %v6105
    %v6538 = vpack.c.b16 %v6112, %v6106
    %v6539 = vpack.c.b16 %v6119, %v6113
    %v6540 = vpack.c.b16 %v6120, %v6114
    %v6541 = vpack.c.b16 %v6121, %v6115
    %v6542 = vpack.c.b16 %v6122, %v6116
    %v6543 = vpack.c.b16 %v6123, %v6117
    %v6544 = vpack.c.b16 %v6124, %v6118
    %v6545 = vpack.c.b16 %v6131, %v6125
    %v6546 = vpack.c.b16 %v6132, %v6126
    %v6547 = vpack.c.b16 %v6133, %v6127
    %v6548 = vpack.c.b16 %v6134, %v6128
    %v6549 = vpack.c.b16 %v6135, %v6129
    %v6550 = vpack.c.b16 %v6136, %v6130
    %v6551 = vpack.c.b16 %v6143, %v6137
    %v6552 = vpack.c.b16 %v6144, %v6138
    %v6553 = vpack.c.b16 %v6145, %v6139
    %v6554 = vpack.c.b16 %v6146, %v6140
    %v6555 = vpack.c.b16 %v6147, %v6141
    %v6556 = vpack.c.b16 %v6148, %v6142
    %v6557 = vpack.c.b16 %v6155, %v6149
    %v6558 = vpack.c.b16 %v6156, %v6150
    %v6559 = vpack.c.b16 %v6157, %v6151
    %v6560 = vpack.c.b16 %v6158, %v6152
    %v6561 = vpack.c.b16 %v6159, %v6153
    %v6562 = vpack.c.b16 %v6160, %v6154
    %v6563 = vpack.c.b16 %v6167, %v6161
    %v6564 = vpack.c.b16 %v6168, %v6162
    %v6565 = vpack.c.b16 %v6169, %v6163
    %v6566 = vpack.c.b16 %v6170, %v6164
    %v6567 = vpack.c.b16 %v6171, %v6165
    %v6568 = vpack.c.b16 %v6172, %v6166
    %v6569 = vpack.c.b16 %v6179, %v6173
    %v6570 = vpack.c.b16 %v6180, %v6174
    %v6571 = vpack.c.b16 %v6181, %v6175
    %v6572 = vpack.c.b16 %v6182, %v6176
    %v6573 = vpack.c.b16 %v6183, %v6177
    %v6574 = vpack.c.b16 %v6184, %v6178
    %v6575 = vpack.c.b16 %v6191, %v6185
    %v6576 = vpack.c.b16 %v6192, %v6186
    %v6577 = vpack.c.b16 %v6193, %v6187
    %v6578 = vpack.c.b16 %v6194, %v6188
    %v6579 = vpack.c.b16 %v6195, %v6189
    %v6580 = vpack.c.b16 %v6196, %v6190
    %6965 = vmatprep.subr.bf16.mxu0 %v6198
    %6966 = vmatpush1.bf16.msra.mxu0 %v6197
    %6967 = vmatprep.subr.bf16.mxu0 %v6204
    %6968 = vmatpush1.bf16.msra.mxu0 %v6203
    %6969 = vmatprep.subr.bf16.mxu0 %v6210
    %6970 = vmatpush1.bf16.msra.mxu0 %v6209
    %6971 = vmatprep.subr.bf16.mxu0 %v6216
    %6972 = vmatpush1.bf16.msra.mxu0 %v6215
    %6973 = vmatprep.subr.bf16.mxu0 %v6222
    %6974 = vmatpush1.bf16.msra.mxu0 %v6221
    %6975 = vmatprep.subr.bf16.mxu0 %v6228
    %6976 = vmatpush1.bf16.msra.mxu0 %v6227
    %6977 = vmatprep.subr.bf16.mxu0 %v6234
    %6978 = vmatpush1.bf16.msra.mxu0 %v6233
    %6979 = vmatprep.subr.bf16.mxu0 %v6240
    %6980 = vmatpush1.bf16.msra.mxu0 %v6239
    %6981 = vmatprep.subr.bf16.mxu0 %v6246
    %6982 = vmatpush1.bf16.msra.mxu0 %v6245
    %6983 = vmatprep.subr.bf16.mxu0 %v6252
    %6984 = vmatpush1.bf16.msra.mxu0 %v6251
    %6985 = vmatprep.subr.bf16.mxu0 %v6258
    %6986 = vmatpush1.bf16.msra.mxu0 %v6257
    %6987 = vmatprep.subr.bf16.mxu0 %v6264
    %6988 = vmatpush1.bf16.msra.mxu0 %v6263
    %6989 = vmatprep.subr.bf16.mxu0 %v6270
    %6990 = vmatpush1.bf16.msra.mxu0 %v6269
    %6991 = vmatprep.subr.bf16.mxu0 %v6276
    %6992 = vmatpush1.bf16.msra.mxu0 %v6275
    %6993 = vmatprep.subr.bf16.mxu0 %v6282
    %6994 = vmatpush1.bf16.msra.mxu0 %v6281
    %6995 = vmatprep.subr.bf16.mxu0 %v6288
    %6996 = vmatpush1.bf16.msra.mxu0 %v6287
    %6997 = vmatprep.mubr.bf16.mxu0 %v4598
    %6998 = vmatmul.mubr.bf16.gmra.mrb[0].mxu0 %v4597
    %v6999 = vpop.f32.mrb[0].mxu0
    %v7000 = vadd.f32 0.0, %v6999
    %v7001 = vpop.f32.mrb[0].mxu0
    %v7002 = vadd.f32 0.0, %v7001
    %v7003 = vpop.f32.mrb[0].mxu0
    %v7004 = vadd.f32 0.0, %v7003
    %v7005 = vpop.f32.mrb[0].mxu0
    %v7006 = vadd.f32 0.0, %v7005
    %7007 = vmatprep.mubr.bf16.mxu0 %v4606
    %7008 = vmatmul.mubr.bf16.gmra.mrb[0].mxu0 %v4605
    %v7009 = vpop.f32.mrb[0].mxu0
    %v7010 = vadd.f32 0.0, %v7009
    %v7011 = vpop.f32.mrb[0].mxu0
    %v7012 = vadd.f32 0.0, %v7011
    %v7013 = vpop.f32.mrb[0].mxu0
    %v7014 = vadd.f32 0.0, %v7013
    %v7015 = vpop.f32.mrb[0].mxu0
    %v7016 = vadd.f32 0.0, %v7015
    %7017 = vmatprep.mubr.bf16.mxu0 %v4614
    %7018 = vmatmul.mubr.bf16.gmra.mrb[0].mxu0 %v4613
    %v7019 = vpop.f32.mrb[0].mxu0
    %v7020 = vadd.f32 0.0, %v7019
    %v7021 = vpop.f32.mrb[0].mxu0
    %v7022 = vadd.f32 0.0, %v7021
    %v7023 = vpop.f32.mrb[0].mxu0
    %v7024 = vadd.f32 0.0, %v7023
    %v7025 = vpop.f32.mrb[0].mxu0
    %v7026 = vadd.f32 0.0, %v7025
    %7027 = vmatprep.mubr.bf16.mxu0 %v4622
    %7028 = vmatmul.mubr.bf16.gmra.mrb[0].mxu0 %v4621
    %v7029 = vpop.f32.mrb[0].mxu0
    %v7030 = vadd.f32 0.0, %v7029
    %v7031 = vpop.f32.mrb[0].mxu0
    %v7032 = vadd.f32 0.0, %v7031
    %v7033 = vpop.f32.mrb[0].mxu0
    %v7034 = vadd.f32 0.0, %v7033
    %v7035 = vpop.f32.mrb[0].mxu0
    %v7036 = vadd.f32 0.0, %v7035
    %7037 = vmatprep.mubr.bf16.mxu0 %v4630
    %7038 = vmatmul.mubr.bf16.gmra.mrb[0].mxu0 %v4629
    %v7039 = vpop.f32.mrb[0].mxu0
    %v7040 = vadd.f32 0.0, %v7039
    %v7041 = vpop.f32.mrb[0].mxu0
    %v7042 = vadd.f32 0.0, %v7041
    %v7043 = vpop.f32.mrb[0].mxu0
    %v7044 = vadd.f32 0.0, %v7043
    %v7045 = vpop.f32.mrb[0].mxu0
    %v7046 = vadd.f32 0.0, %v7045
    %7047 = vmatprep.mubr.bf16.mxu0 %v4638
    %7048 = vmatmul.mubr.bf16.gmra.mrb[0].mxu0 %v4637
    %v7049 = vpop.f32.mrb[0].mxu0
    %v7050 = vadd.f32 0.0, %v7049
    %v7051 = vpop.f32.mrb[0].mxu0
    %v7052 = vadd.f32 0.0, %v7051
    %v7053 = vpop.f32.mrb[0].mxu0
    %v7054 = vadd.f32 0.0, %v7053
    %v7055 = vpop.f32.mrb[0].mxu0
    %v7056 = vadd.f32 0.0, %v7055
    %7057 = vmatprep.mubr.bf16.mxu0 %v4646
    %7058 = vmatmul.mubr.bf16.gmra.mrb[0].mxu0 %v4645
    %v7059 = vpop.f32.mrb[0].mxu0
    %v7060 = vadd.f32 0.0, %v7059
    %v7061 = vpop.f32.mrb[0].mxu0
    %v7062 = vadd.f32 0.0, %v7061
    %v7063 = vpop.f32.mrb[0].mxu0
    %v7064 = vadd.f32 0.0, %v7063
    %v7065 = vpop.f32.mrb[0].mxu0
    %v7066 = vadd.f32 0.0, %v7065
    %7067 = vmatprep.mubr.bf16.mxu0 %v4654
    %7068 = vmatmul.mubr.bf16.gmra.mrb[0].mxu0 %v4653
    %v7069 = vpop.f32.mrb[0].mxu0
    %v7070 = vadd.f32 0.0, %v7069
    %v7071 = vpop.f32.mrb[0].mxu0
    %v7072 = vadd.f32 0.0, %v7071
    %v7073 = vpop.f32.mrb[0].mxu0
    %v7074 = vadd.f32 0.0, %v7073
    %v7075 = vpop.f32.mrb[0].mxu0
    %v7076 = vadd.f32 0.0, %v7075
    %7077 = vdwg.mxu0
    %7078 = vmatprep.subr.bf16.mxu0 %v6294
    %7079 = vmatpush1.bf16.msra.mxu0 %v6293
    %7080 = vmatprep.subr.bf16.mxu0 %v6300
    %7081 = vmatpush1.bf16.msra.mxu0 %v6299
    %7082 = vmatprep.subr.bf16.mxu0 %v6306
    %7083 = vmatpush1.bf16.msra.mxu0 %v6305
    %7084 = vmatprep.subr.bf16.mxu0 %v6312
    %7085 = vmatpush1.bf16.msra.mxu0 %v6311
    %7086 = vmatprep.subr.bf16.mxu0 %v6318
    %7087 = vmatpush1.bf16.msra.mxu0 %v6317
    %7088 = vmatprep.subr.bf16.mxu0 %v6324
    %7089 = vmatpush1.bf16.msra.mxu0 %v6323
    %7090 = vmatprep.subr.bf16.mxu0 %v6330
    %7091 = vmatpush1.bf16.msra.mxu0 %v6329
    %7092 = vmatprep.subr.bf16.mxu0 %v6336
    %7093 = vmatpush1.bf16.msra.mxu0 %v6335
    %7094 = vmatprep.subr.bf16.mxu0 %v6342
    %7095 = vmatpush1.bf16.msra.mxu0 %v6341
    %7096 = vmatprep.subr.bf16.mxu0 %v6348
    %7097 = vmatpush1.bf16.msra.mxu0 %v6347
    %7098 = vmatprep.subr.bf16.mxu0 %v6354
    %7099 = vmatpush1.bf16.msra.mxu0 %v6353
    %7100 = vmatprep.subr.bf16.mxu0 %v6360
    %7101 = vmatpush1.bf16.msra.mxu0 %v6359
    %7102 = vmatprep.subr.bf16.mxu0 %v6366
    %7103 = vmatpush1.bf16.msra.mxu0 %v6365
    %7104 = vmatprep.subr.bf16.mxu0 %v6372
    %7105 = vmatpush1.bf16.msra.mxu0 %v6371
    %7106 = vmatprep.subr.bf16.mxu0 %v6378
    %7107 = vmatpush1.bf16.msra.mxu0 %v6377
    %7108 = vmatprep.subr.bf16.mxu0 %v6384
    %7109 = vmatpush1.bf16.msra.mxu0 %v6383
    %7110 = vmatprep.mubr.bf16.mxu0 %v4600
    %7111 = vmatmul.mubr.bf16.gmra.mrb[0].mxu0 %v4599
    %v7112 = vpop.f32.mrb[0].mxu0
    %v7113 = vadd.f32 %v7000, %v7112
    %v7114 = vpop.f32.mrb[0].mxu0
    %v7115 = vadd.f32 %v7002, %v7114
    %v7116 = vpop.f32.mrb[0].mxu0
    %v7117 = vadd.f32 %v7004, %v7116
    %v7118 = vpop.f32.mrb[0].mxu0
    %v7119 = vadd.f32 %v7006, %v7118
    %7120 = vmatprep.mubr.bf16.mxu0 %v4608
    %7121 = vmatmul.mubr.bf16.gmra.mrb[0].mxu0 %v4607
    %v7122 = vpop.f32.mrb[0].mxu0
    %v7123 = vadd.f32 %v7010, %v7122
    %v7124 = vpop.f32.mrb[0].mxu0
    %v7125 = vadd.f32 %v7012, %v7124
    %v7126 = vpop.f32.mrb[0].mxu0
    %v7127 = vadd.f32 %v7014, %v7126
    %v7128 = vpop.f32.mrb[0].mxu0
    %v7129 = vadd.f32 %v7016, %v7128
    %7130 = vmatprep.mubr.bf16.mxu0 %v4616
    %7131 = vmatmul.mubr.bf16.gmra.mrb[0].mxu0 %v4615
    %v7132 = vpop.f32.mrb[0].mxu0
    %v7133 = vadd.f32 %v7020, %v7132
    %v7134 = vpop.f32.mrb[0].mxu0
    %v7135 = vadd.f32 %v7022, %v7134
    %v7136 = vpop.f32.mrb[0].mxu0
    %v7137 = vadd.f32 %v7024, %v7136
    %v7138 = vpop.f32.mrb[0].mxu0
    %v7139 = vadd.f32 %v7026, %v7138
    %7140 = vmatprep.mubr.bf16.mxu0 %v4624
    %7141 = vmatmul.mubr.bf16.gmra.mrb[0].mxu0 %v4623
    %v7142 = vpop.f32.mrb[0].mxu0
    %v7143 = vadd.f32 %v7030, %v7142
    %v7144 = vpop.f32.mrb[0].mxu0
    %v7145 = vadd.f32 %v7032, %v7144
    %v7146 = vpop.f32.mrb[0].mxu0
    %v7147 = vadd.f32 %v7034, %v7146
    %v7148 = vpop.f32.mrb[0].mxu0
    %v7149 = vadd.f32 %v7036, %v7148
    %7150 = vmatprep.mubr.bf16.mxu0 %v4632
    %7151 = vmatmul.mubr.bf16.gmra.mrb[0].mxu0 %v4631
    %v7152 = vpop.f32.mrb[0].mxu0
    %v7153 = vadd.f32 %v7040, %v7152
    %v7154 = vpop.f32.mrb[0].mxu0
    %v7155 = vadd.f32 %v7042, %v7154
    %v7156 = vpop.f32.mrb[0].mxu0
    %v7157 = vadd.f32 %v7044, %v7156
    %v7158 = vpop.f32.mrb[0].mxu0
    %v7159 = vadd.f32 %v7046, %v7158
    %7160 = vmatprep.mubr.bf16.mxu0 %v4640
    %7161 = vmatmul.mubr.bf16.gmra.mrb[0].mxu0 %v4639
    %v7162 = vpop.f32.mrb[0].mxu0
    %v7163 = vadd.f32 %v7050, %v7162
    %v7164 = vpop.f32.mrb[0].mxu0
    %v7165 = vadd.f32 %v7052, %v7164
    %v7166 = vpop.f32.mrb[0].mxu0
    %v7167 = vadd.f32 %v7054, %v7166
    %v7168 = vpop.f32.mrb[0].mxu0
    %v7169 = vadd.f32 %v7056, %v7168
    %7170 = vmatprep.mubr.bf16.mxu0 %v4648
    %7171 = vmatmul.mubr.bf16.gmra.mrb[0].mxu0 %v4647
    %v7172 = vpop.f32.mrb[0].mxu0
    %v7173 = vadd.f32 %v7060, %v7172
    %v7174 = vpop.f32.mrb[0].mxu0
    %v7175 = vadd.f32 %v7062, %v7174
    %v7176 = vpop.f32.mrb[0].mxu0
    %v7177 = vadd.f32 %v7064, %v7176
    %v7178 = vpop.f32.mrb[0].mxu0
    %v7179 = vadd.f32 %v7066, %v7178
    %7180 = vmatprep.mubr.bf16.mxu0 %v4656
    %7181 = vmatmul.mubr.bf16.gmra.mrb[0].mxu0 %v4655
    %v7182 = vpop.f32.mrb[0].mxu0
    %v7183 = vadd.f32 %v7070, %v7182
    %v7184 = vpop.f32.mrb[0].mxu0
    %v7185 = vadd.f32 %v7072, %v7184
    %v7186 = vpop.f32.mrb[0].mxu0
    %v7187 = vadd.f32 %v7074, %v7186
    %v7188 = vpop.f32.mrb[0].mxu0
    %v7189 = vadd.f32 %v7076, %v7188
    %7190 = vdwg.mxu0
    %7191 = vmatprep.subr.bf16.mxu0 %v6390
    %7192 = vmatpush1.bf16.msra.mxu0 %v6389
    %7193 = vmatprep.subr.bf16.mxu0 %v6396
    %7194 = vmatpush1.bf16.msra.mxu0 %v6395
    %7195 = vmatprep.subr.bf16.mxu0 %v6402
    %7196 = vmatpush1.bf16.msra.mxu0 %v6401
    %7197 = vmatprep.subr.bf16.mxu0 %v6408
    %7198 = vmatpush1.bf16.msra.mxu0 %v6407
    %7199 = vmatprep.subr.bf16.mxu0 %v6414
    %7200 = vmatpush1.bf16.msra.mxu0 %v6413
    %7201 = vmatprep.subr.bf16.mxu0 %v6420
    %7202 = vmatpush1.bf16.msra.mxu0 %v6419
    %7203 = vmatprep.subr.bf16.mxu0 %v6426
    %7204 = vmatpush1.bf16.msra.mxu0 %v6425
    %7205 = vmatprep.subr.bf16.mxu0 %v6432
    %7206 = vmatpush1.bf16.msra.mxu0 %v6431
    %7207 = vmatprep.subr.bf16.mxu0 %v6438
    %7208 = vmatpush1.bf16.msra.mxu0 %v6437
    %7209 = vmatprep.subr.bf16.mxu0 %v6444
    %7210 = vmatpush1.bf16.msra.mxu0 %v6443
    %7211 = vmatprep.subr.bf16.mxu0 %v6450
    %7212 = vmatpush1.bf16.msra.mxu0 %v6449
    %7213 = vmatprep.subr.bf16.mxu0 %v6456
    %7214 = vmatpush1.bf16.msra.mxu0 %v6455
    %7215 = vmatprep.subr.bf16.mxu0 %v6462
    %7216 = vmatpush1.bf16.msra.mxu0 %v6461
    %7217 = vmatprep.subr.bf16.mxu0 %v6468
    %7218 = vmatpush1.bf16.msra.mxu0 %v6467
    %7219 = vmatprep.subr.bf16.mxu0 %v6474
    %7220 = vmatpush1.bf16.msra.mxu0 %v6473
    %7221 = vmatprep.subr.bf16.mxu0 %v6480
    %7222 = vmatpush1.bf16.msra.mxu0 %v6479
    %7223 = vmatprep.mubr.bf16.mxu0 %v4602
    %7224 = vmatmul.mubr.bf16.gmra.mrb[0].mxu0 %v4601
    %v7225 = vpop.f32.mrb[0].mxu0
    %v7226 = vadd.f32 %v7113, %v7225
    %v7227 = vpop.f32.mrb[0].mxu0
    %v7228 = vadd.f32 %v7115, %v7227
    %v7229 = vpop.f32.mrb[0].mxu0
    %v7230 = vadd.f32 %v7117, %v7229
    %v7231 = vpop.f32.mrb[0].mxu0
    %v7232 = vadd.f32 %v7119, %v7231
    %7233 = vmatprep.mubr.bf16.mxu0 %v4610
    %7234 = vmatmul.mubr.bf16.gmra.mrb[0].mxu0 %v4609
    %v7235 = vpop.f32.mrb[0].mxu0
    %v7236 = vadd.f32 %v7123, %v7235
    %v7237 = vpop.f32.mrb[0].mxu0
    %v7238 = vadd.f32 %v7125, %v7237
    %v7239 = vpop.f32.mrb[0].mxu0
    %v7240 = vadd.f32 %v7127, %v7239
    %v7241 = vpop.f32.mrb[0].mxu0
    %v7242 = vadd.f32 %v7129, %v7241
    %7243 = vmatprep.mubr.bf16.mxu0 %v4618
    %7244 = vmatmul.mubr.bf16.gmra.mrb[0].mxu0 %v4617
    %v7245 = vpop.f32.mrb[0].mxu0
    %v7246 = vadd.f32 %v7133, %v7245
    %v7247 = vpop.f32.mrb[0].mxu0
    %v7248 = vadd.f32 %v7135, %v7247
    %v7249 = vpop.f32.mrb[0].mxu0
    %v7250 = vadd.f32 %v7137, %v7249
    %v7251 = vpop.f32.mrb[0].mxu0
    %v7252 = vadd.f32 %v7139, %v7251
    %7253 = vmatprep.mubr.bf16.mxu0 %v4626
    %7254 = vmatmul.mubr.bf16.gmra.mrb[0].mxu0 %v4625
    %v7255 = vpop.f32.mrb[0].mxu0
    %v7256 = vadd.f32 %v7143, %v7255
    %v7257 = vpop.f32.mrb[0].mxu0
    %v7258 = vadd.f32 %v7145, %v7257
    %v7259 = vpop.f32.mrb[0].mxu0
    %v7260 = vadd.f32 %v7147, %v7259
    %v7261 = vpop.f32.mrb[0].mxu0
    %v7262 = vadd.f32 %v7149, %v7261
    %7263 = vmatprep.mubr.bf16.mxu0 %v4634
    %7264 = vmatmul.mubr.bf16.gmra.mrb[0].mxu0 %v4633
    %v7265 = vpop.f32.mrb[0].mxu0
    %v7266 = vadd.f32 %v7153, %v7265
    %v7267 = vpop.f32.mrb[0].mxu0
    %v7268 = vadd.f32 %v7155, %v7267
    %v7269 = vpop.f32.mrb[0].mxu0
    %v7270 = vadd.f32 %v7157, %v7269
    %v7271 = vpop.f32.mrb[0].mxu0
    %v7272 = vadd.f32 %v7159, %v7271
    %7273 = vmatprep.mubr.bf16.mxu0 %v4642
    %7274 = vmatmul.mubr.bf16.gmra.mrb[0].mxu0 %v4641
    %v7275 = vpop.f32.mrb[0].mxu0
    %v7276 = vadd.f32 %v7163, %v7275
    %v7277 = vpop.f32.mrb[0].mxu0
    %v7278 = vadd.f32 %v7165, %v7277
    %v7279 = vpop.f32.mrb[0].mxu0
    %v7280 = vadd.f32 %v7167, %v7279
    %v7281 = vpop.f32.mrb[0].mxu0
    %v7282 = vadd.f32 %v7169, %v7281
    %7283 = vmatprep.mubr.bf16.mxu0 %v4650
    %7284 = vmatmul.mubr.bf16.gmra.mrb[0].mxu0 %v4649
    %v7285 = vpop.f32.mrb[0].mxu0
    %v7286 = vadd.f32 %v7173, %v7285
    %v7287 = vpop.f32.mrb[0].mxu0
    %v7288 = vadd.f32 %v7175, %v7287
    %v7289 = vpop.f32.mrb[0].mxu0
    %v7290 = vadd.f32 %v7177, %v7289
    %v7291 = vpop.f32.mrb[0].mxu0
    %v7292 = vadd.f32 %v7179, %v7291
    %7293 = vmatprep.mubr.bf16.mxu0 %v4658
    %7294 = vmatmul.mubr.bf16.gmra.mrb[0].mxu0 %v4657
    %v7295 = vpop.f32.mrb[0].mxu0
    %v7296 = vadd.f32 %v7183, %v7295
    %v7297 = vpop.f32.mrb[0].mxu0
    %v7298 = vadd.f32 %v7185, %v7297
    %v7299 = vpop.f32.mrb[0].mxu0
    %v7300 = vadd.f32 %v7187, %v7299
    %v7301 = vpop.f32.mrb[0].mxu0
    %v7302 = vadd.f32 %v7189, %v7301
    %7303 = vdwg.mxu0
    %7304 = vmatprep.subr.bf16.mxu0 %v6486
    %7305 = vmatpush1.bf16.msra.mxu0 %v6485
    %7306 = vmatprep.subr.bf16.mxu0 %v6492
    %7307 = vmatpush1.bf16.msra.mxu0 %v6491
    %7308 = vmatprep.subr.bf16.mxu0 %v6498
    %7309 = vmatpush1.bf16.msra.mxu0 %v6497
    %7310 = vmatprep.subr.bf16.mxu0 %v6504
    %7311 = vmatpush1.bf16.msra.mxu0 %v6503
    %7312 = vmatprep.subr.bf16.mxu0 %v6510
    %7313 = vmatpush1.bf16.msra.mxu0 %v6509
    %7314 = vmatprep.subr.bf16.mxu0 %v6516
    %7315 = vmatpush1.bf16.msra.mxu0 %v6515
    %7316 = vmatprep.subr.bf16.mxu0 %v6522
    %7317 = vmatpush1.bf16.msra.mxu0 %v6521
    %7318 = vmatprep.subr.bf16.mxu0 %v6528
    %7319 = vmatpush1.bf16.msra.mxu0 %v6527
    %7320 = vmatprep.subr.bf16.mxu0 %v6534
    %7321 = vmatpush1.bf16.msra.mxu0 %v6533
    %7322 = vmatprep.subr.bf16.mxu0 %v6540
    %7323 = vmatpush1.bf16.msra.mxu0 %v6539
    %7324 = vmatprep.subr.bf16.mxu0 %v6546
    %7325 = vmatpush1.bf16.msra.mxu0 %v6545
    %7326 = vmatprep.subr.bf16.mxu0 %v6552
    %7327 = vmatpush1.bf16.msra.mxu0 %v6551
    %7328 = vmatprep.subr.bf16.mxu0 %v6558
    %7329 = vmatpush1.bf16.msra.mxu0 %v6557
    %7330 = vmatprep.subr.bf16.mxu0 %v6564
    %7331 = vmatpush1.bf16.msra.mxu0 %v6563
    %7332 = vmatprep.subr.bf16.mxu0 %v6570
    %7333 = vmatpush1.bf16.msra.mxu0 %v6569
    %7334 = vmatprep.subr.bf16.mxu0 %v6576
    %7335 = vmatpush1.bf16.msra.mxu0 %v6575
    %7336 = vmatprep.mubr.bf16.mxu0 %v4604
    %7337 = vmatmul.mubr.bf16.gmra.mrb[0].mxu0 %v4603
    %v7338 = vpop.f32.mrb[0].mxu0
    %v7339 = vadd.f32 %v7226, %v7338
    %v7340 = vpop.f32.mrb[0].mxu0
    %v7341 = vadd.f32 %v7228, %v7340
    %v7342 = vpop.f32.mrb[0].mxu0
    %v7343 = vadd.f32 %v7230, %v7342
    %v7344 = vpop.f32.mrb[0].mxu0
    %v7345 = vadd.f32 %v7232, %v7344
    %7346 = vmatprep.mubr.bf16.mxu0 %v4612
    %7347 = vmatmul.mubr.bf16.gmra.mrb[0].mxu0 %v4611
    %v7348 = vpop.f32.mrb[0].mxu0
    %v7349 = vadd.f32 %v7236, %v7348
    %v7350 = vpop.f32.mrb[0].mxu0
    %v7351 = vadd.f32 %v7238, %v7350
    %v7352 = vpop.f32.mrb[0].mxu0
    %v7353 = vadd.f32 %v7240, %v7352
    %v7354 = vpop.f32.mrb[0].mxu0
    %v7355 = vadd.f32 %v7242, %v7354
    %7356 = vmatprep.mubr.bf16.mxu0 %v4620
    %7357 = vmatmul.mubr.bf16.gmra.mrb[0].mxu0 %v4619
    %v7358 = vpop.f32.mrb[0].mxu0
    %v7359 = vadd.f32 %v7246, %v7358
    %v7360 = vpop.f32.mrb[0].mxu0
    %v7361 = vadd.f32 %v7248, %v7360
    %v7362 = vpop.f32.mrb[0].mxu0
    %v7363 = vadd.f32 %v7250, %v7362
    %v7364 = vpop.f32.mrb[0].mxu0
    %v7365 = vadd.f32 %v7252, %v7364
    %7366 = vmatprep.mubr.bf16.mxu0 %v4628
    %7367 = vmatmul.mubr.bf16.gmra.mrb[0].mxu0 %v4627
    %v7368 = vpop.f32.mrb[0].mxu0
    %v7369 = vadd.f32 %v7256, %v7368
    %v7370 = vpop.f32.mrb[0].mxu0
    %v7371 = vadd.f32 %v7258, %v7370
    %v7372 = vpop.f32.mrb[0].mxu0
    %v7373 = vadd.f32 %v7260, %v7372
    %v7374 = vpop.f32.mrb[0].mxu0
    %v7375 = vadd.f32 %v7262, %v7374
    %7376 = vmatprep.mubr.bf16.mxu0 %v4636
    %7377 = vmatmul.mubr.bf16.gmra.mrb[0].mxu0 %v4635
    %v7378 = vpop.f32.mrb[0].mxu0
    %v7379 = vadd.f32 %v7266, %v7378
    %v7380 = vpop.f32.mrb[0].mxu0
    %v7381 = vadd.f32 %v7268, %v7380
    %v7382 = vpop.f32.mrb[0].mxu0
    %v7383 = vadd.f32 %v7270, %v7382
    %v7384 = vpop.f32.mrb[0].mxu0
    %v7385 = vadd.f32 %v7272, %v7384
    %7386 = vmatprep.mubr.bf16.mxu0 %v4644
    %7387 = vmatmul.mubr.bf16.gmra.mrb[0].mxu0 %v4643
    %v7388 = vpop.f32.mrb[0].mxu0
    %v7389 = vadd.f32 %v7276, %v7388
    %v7390 = vpop.f32.mrb[0].mxu0
    %v7391 = vadd.f32 %v7278, %v7390
    %v7392 = vpop.f32.mrb[0].mxu0
    %v7393 = vadd.f32 %v7280, %v7392
    %v7394 = vpop.f32.mrb[0].mxu0
    %v7395 = vadd.f32 %v7282, %v7394
    %7396 = vmatprep.mubr.bf16.mxu0 %v4652
    %7397 = vmatmul.mubr.bf16.gmra.mrb[0].mxu0 %v4651
    %v7398 = vpop.f32.mrb[0].mxu0
    %v7399 = vadd.f32 %v7286, %v7398
    %v7400 = vpop.f32.mrb[0].mxu0
    %v7401 = vadd.f32 %v7288, %v7400
    %v7402 = vpop.f32.mrb[0].mxu0
    %v7403 = vadd.f32 %v7290, %v7402
    %v7404 = vpop.f32.mrb[0].mxu0
    %v7405 = vadd.f32 %v7292, %v7404
    %7406 = vmatprep.mubr.bf16.mxu0 %v4660
    %7407 = vmatmul.mubr.bf16.gmra.mrb[0].mxu0 %v4659
    %v7408 = vpop.f32.mrb[0].mxu0
    %v7409 = vadd.f32 %v7296, %v7408
    %v7410 = vpop.f32.mrb[0].mxu0
    %v7411 = vadd.f32 %v7298, %v7410
    %v7412 = vpop.f32.mrb[0].mxu0
    %v7413 = vadd.f32 %v7300, %v7412
    %v7414 = vpop.f32.mrb[0].mxu0
    %v7415 = vadd.f32 %v7302, %v7414
    %7416 = vdwg.mxu0
    %7417 = vmatprep.subr.bf16.mxu0 %v6200
    %7418 = vmatpush1.bf16.msra.mxu0 %v6199
    %7419 = vmatprep.subr.bf16.mxu0 %v6206
    %7420 = vmatpush1.bf16.msra.mxu0 %v6205
    %7421 = vmatprep.subr.bf16.mxu0 %v6212
    %7422 = vmatpush1.bf16.msra.mxu0 %v6211
    %7423 = vmatprep.subr.bf16.mxu0 %v6218
    %7424 = vmatpush1.bf16.msra.mxu0 %v6217
    %7425 = vmatprep.subr.bf16.mxu0 %v6224
    %7426 = vmatpush1.bf16.msra.mxu0 %v6223
    %7427 = vmatprep.subr.bf16.mxu0 %v6230
    %7428 = vmatpush1.bf16.msra.mxu0 %v6229
    %7429 = vmatprep.subr.bf16.mxu0 %v6236
    %7430 = vmatpush1.bf16.msra.mxu0 %v6235
    %7431 = vmatprep.subr.bf16.mxu0 %v6242
    %7432 = vmatpush1.bf16.msra.mxu0 %v6241
    %7433 = vmatprep.subr.bf16.mxu0 %v6248
    %7434 = vmatpush1.bf16.msra.mxu0 %v6247
    %7435 = vmatprep.subr.bf16.mxu0 %v6254
    %7436 = vmatpush1.bf16.msra.mxu0 %v6253
    %7437 = vmatprep.subr.bf16.mxu0 %v6260
    %7438 = vmatpush1.bf16.msra.mxu0 %v6259
    %7439 = vmatprep.subr.bf16.mxu0 %v6266
    %7440 = vmatpush1.bf16.msra.mxu0 %v6265
    %7441 = vmatprep.subr.bf16.mxu0 %v6272
    %7442 = vmatpush1.bf16.msra.mxu0 %v6271
    %7443 = vmatprep.subr.bf16.mxu0 %v6278
    %7444 = vmatpush1.bf16.msra.mxu0 %v6277
    %7445 = vmatprep.subr.bf16.mxu0 %v6284
    %7446 = vmatpush1.bf16.msra.mxu0 %v6283
    %7447 = vmatprep.subr.bf16.mxu0 %v6290
    %7448 = vmatpush1.bf16.msra.mxu0 %v6289
    %7449 = vmatprep.mubr.bf16.mxu0 %v4598
    %7450 = vmatmul.mubr.bf16.gmra.mrb[0].mxu0 %v4597
    %v7451 = vpop.f32.mrb[0].mxu0
    %v7452 = vadd.f32 0.0, %v7451
    %v7453 = vpop.f32.mrb[0].mxu0
    %v7454 = vadd.f32 0.0, %v7453
    %v7455 = vpop.f32.mrb[0].mxu0
    %v7456 = vadd.f32 0.0, %v7455
    %v7457 = vpop.f32.mrb[0].mxu0
    %v7458 = vadd.f32 0.0, %v7457
    %7459 = vmatprep.mubr.bf16.mxu0 %v4606
    %7460 = vmatmul.mubr.bf16.gmra.mrb[0].mxu0 %v4605
    %v7461 = vpop.f32.mrb[0].mxu0
    %v7462 = vadd.f32 0.0, %v7461
    %v7463 = vpop.f32.mrb[0].mxu0
    %v7464 = vadd.f32 0.0, %v7463
    %v7465 = vpop.f32.mrb[0].mxu0
    %v7466 = vadd.f32 0.0, %v7465
    %v7467 = vpop.f32.mrb[0].mxu0
    %v7468 = vadd.f32 0.0, %v7467
    %7469 = vmatprep.mubr.bf16.mxu0 %v4614
    %7470 = vmatmul.mubr.bf16.gmra.mrb[0].mxu0 %v4613
    %v7471 = vpop.f32.mrb[0].mxu0
    %v7472 = vadd.f32 0.0, %v7471
    %v7473 = vpop.f32.mrb[0].mxu0
    %v7474 = vadd.f32 0.0, %v7473
    %v7475 = vpop.f32.mrb[0].mxu0
    %v7476 = vadd.f32 0.0, %v7475
    %v7477 = vpop.f32.mrb[0].mxu0
    %v7478 = vadd.f32 0.0, %v7477
    %7479 = vmatprep.mubr.bf16.mxu0 %v4622
    %7480 = vmatmul.mubr.bf16.gmra.mrb[0].mxu0 %v4621
    %v7481 = vpop.f32.mrb[0].mxu0
    %v7482 = vadd.f32 0.0, %v7481
    %v7483 = vpop.f32.mrb[0].mxu0
    %v7484 = vadd.f32 0.0, %v7483
    %v7485 = vpop.f32.mrb[0].mxu0
    %v7486 = vadd.f32 0.0, %v7485
    %v7487 = vpop.f32.mrb[0].mxu0
    %v7488 = vadd.f32 0.0, %v7487
    %7489 = vmatprep.mubr.bf16.mxu0 %v4630
    %7490 = vmatmul.mubr.bf16.gmra.mrb[0].mxu0 %v4629
    %v7491 = vpop.f32.mrb[0].mxu0
    %v7492 = vadd.f32 0.0, %v7491
    %v7493 = vpop.f32.mrb[0].mxu0
    %v7494 = vadd.f32 0.0, %v7493
    %v7495 = vpop.f32.mrb[0].mxu0
    %v7496 = vadd.f32 0.0, %v7495
    %v7497 = vpop.f32.mrb[0].mxu0
    %v7498 = vadd.f32 0.0, %v7497
    %7499 = vmatprep.mubr.bf16.mxu0 %v4638
    %7500 = vmatmul.mubr.bf16.gmra.mrb[0].mxu0 %v4637
    %v7501 = vpop.f32.mrb[0].mxu0
    %v7502 = vadd.f32 0.0, %v7501
    %v7503 = vpop.f32.mrb[0].mxu0
    %v7504 = vadd.f32 0.0, %v7503
    %v7505 = vpop.f32.mrb[0].mxu0
    %v7506 = vadd.f32 0.0, %v7505
    %v7507 = vpop.f32.mrb[0].mxu0
    %v7508 = vadd.f32 0.0, %v7507
    %7509 = vmatprep.mubr.bf16.mxu0 %v4646
    %7510 = vmatmul.mubr.bf16.gmra.mrb[0].mxu0 %v4645
    %v7511 = vpop.f32.mrb[0].mxu0
    %v7512 = vadd.f32 0.0, %v7511
    %v7513 = vpop.f32.mrb[0].mxu0
    %v7514 = vadd.f32 0.0, %v7513
    %v7515 = vpop.f32.mrb[0].mxu0
    %v7516 = vadd.f32 0.0, %v7515
    %v7517 = vpop.f32.mrb[0].mxu0
    %v7518 = vadd.f32 0.0, %v7517
    %7519 = vmatprep.mubr.bf16.mxu0 %v4654
    %7520 = vmatmul.mubr.bf16.gmra.mrb[0].mxu0 %v4653
    %v7521 = vpop.f32.mrb[0].mxu0
    %v7522 = vadd.f32 0.0, %v7521
    %v7523 = vpop.f32.mrb[0].mxu0
    %v7524 = vadd.f32 0.0, %v7523
    %v7525 = vpop.f32.mrb[0].mxu0
    %v7526 = vadd.f32 0.0, %v7525
    %v7527 = vpop.f32.mrb[0].mxu0
    %v7528 = vadd.f32 0.0, %v7527
    %7529 = vdwg.mxu0
    %7530 = vmatprep.subr.bf16.mxu0 %v6296
    %7531 = vmatpush1.bf16.msra.mxu0 %v6295
    %7532 = vmatprep.subr.bf16.mxu0 %v6302
    %7533 = vmatpush1.bf16.msra.mxu0 %v6301
    %7534 = vmatprep.subr.bf16.mxu0 %v6308
    %7535 = vmatpush1.bf16.msra.mxu0 %v6307
    %7536 = vmatprep.subr.bf16.mxu0 %v6314
    %7537 = vmatpush1.bf16.msra.mxu0 %v6313
    %7538 = vmatprep.subr.bf16.mxu0 %v6320
    %7539 = vmatpush1.bf16.msra.mxu0 %v6319
    %7540 = vmatprep.subr.bf16.mxu0 %v6326
    %7541 = vmatpush1.bf16.msra.mxu0 %v6325
    %7542 = vmatprep.subr.bf16.mxu0 %v6332
    %7543 = vmatpush1.bf16.msra.mxu0 %v6331
    %7544 = vmatprep.subr.bf16.mxu0 %v6338
    %7545 = vmatpush1.bf16.msra.mxu0 %v6337
    %7546 = vmatprep.subr.bf16.mxu0 %v6344
    %7547 = vmatpush1.bf16.msra.mxu0 %v6343
    %7548 = vmatprep.subr.bf16.mxu0 %v6350
    %7549 = vmatpush1.bf16.msra.mxu0 %v6349
    %7550 = vmatprep.subr.bf16.mxu0 %v6356
    %7551 = vmatpush1.bf16.msra.mxu0 %v6355
    %7552 = vmatprep.subr.bf16.mxu0 %v6362
    %7553 = vmatpush1.bf16.msra.mxu0 %v6361
    %7554 = vmatprep.subr.bf16.mxu0 %v6368
    %7555 = vmatpush1.bf16.msra.mxu0 %v6367
    %7556 = vmatprep.subr.bf16.mxu0 %v6374
    %7557 = vmatpush1.bf16.msra.mxu0 %v6373
    %7558 = vmatprep.subr.bf16.mxu0 %v6380
    %7559 = vmatpush1.bf16.msra.mxu0 %v6379
    %7560 = vmatprep.subr.bf16.mxu0 %v6386
    %7561 = vmatpush1.bf16.msra.mxu0 %v6385
    %7562 = vmatprep.mubr.bf16.mxu0 %v4600
    %7563 = vmatmul.mubr.bf16.gmra.mrb[0].mxu0 %v4599
    %v7564 = vpop.f32.mrb[0].mxu0
    %v7565 = vadd.f32 %v7452, %v7564
    %v7566 = vpop.f32.mrb[0].mxu0
    %v7567 = vadd.f32 %v7454, %v7566
    %v7568 = vpop.f32.mrb[0].mxu0
    %v7569 = vadd.f32 %v7456, %v7568
    %v7570 = vpop.f32.mrb[0].mxu0
    %v7571 = vadd.f32 %v7458, %v7570
    %7572 = vmatprep.mubr.bf16.mxu0 %v4608
    %7573 = vmatmul.mubr.bf16.gmra.mrb[0].mxu0 %v4607
    %v7574 = vpop.f32.mrb[0].mxu0
    %v7575 = vadd.f32 %v7462, %v7574
    %v7576 = vpop.f32.mrb[0].mxu0
    %v7577 = vadd.f32 %v7464, %v7576
    %v7578 = vpop.f32.mrb[0].mxu0
    %v7579 = vadd.f32 %v7466, %v7578
    %v7580 = vpop.f32.mrb[0].mxu0
    %v7581 = vadd.f32 %v7468, %v7580
    %7582 = vmatprep.mubr.bf16.mxu0 %v4616
    %7583 = vmatmul.mubr.bf16.gmra.mrb[0].mxu0 %v4615
    %v7584 = vpop.f32.mrb[0].mxu0
    %v7585 = vadd.f32 %v7472, %v7584
    %v7586 = vpop.f32.mrb[0].mxu0
    %v7587 = vadd.f32 %v7474, %v7586
    %v7588 = vpop.f32.mrb[0].mxu0
    %v7589 = vadd.f32 %v7476, %v7588
    %v7590 = vpop.f32.mrb[0].mxu0
    %v7591 = vadd.f32 %v7478, %v7590
    %7592 = vmatprep.mubr.bf16.mxu0 %v4624
    %7593 = vmatmul.mubr.bf16.gmra.mrb[0].mxu0 %v4623
    %v7594 = vpop.f32.mrb[0].mxu0
    %v7595 = vadd.f32 %v7482, %v7594
    %v7596 = vpop.f32.mrb[0].mxu0
    %v7597 = vadd.f32 %v7484, %v7596
    %v7598 = vpop.f32.mrb[0].mxu0
    %v7599 = vadd.f32 %v7486, %v7598
    %v7600 = vpop.f32.mrb[0].mxu0
    %v7601 = vadd.f32 %v7488, %v7600
    %7602 = vmatprep.mubr.bf16.mxu0 %v4632
    %7603 = vmatmul.mubr.bf16.gmra.mrb[0].mxu0 %v4631
    %v7604 = vpop.f32.mrb[0].mxu0
    %v7605 = vadd.f32 %v7492, %v7604
    %v7606 = vpop.f32.mrb[0].mxu0
    %v7607 = vadd.f32 %v7494, %v7606
    %v7608 = vpop.f32.mrb[0].mxu0
    %v7609 = vadd.f32 %v7496, %v7608
    %v7610 = vpop.f32.mrb[0].mxu0
    %v7611 = vadd.f32 %v7498, %v7610
    %7612 = vmatprep.mubr.bf16.mxu0 %v4640
    %7613 = vmatmul.mubr.bf16.gmra.mrb[0].mxu0 %v4639
    %v7614 = vpop.f32.mrb[0].mxu0
    %v7615 = vadd.f32 %v7502, %v7614
    %v7616 = vpop.f32.mrb[0].mxu0
    %v7617 = vadd.f32 %v7504, %v7616
    %v7618 = vpop.f32.mrb[0].mxu0
    %v7619 = vadd.f32 %v7506, %v7618
    %v7620 = vpop.f32.mrb[0].mxu0
    %v7621 = vadd.f32 %v7508, %v7620
    %7622 = vmatprep.mubr.bf16.mxu0 %v4648
    %7623 = vmatmul.mubr.bf16.gmra.mrb[0].mxu0 %v4647
    %v7624 = vpop.f32.mrb[0].mxu0
    %v7625 = vadd.f32 %v7512, %v7624
    %v7626 = vpop.f32.mrb[0].mxu0
    %v7627 = vadd.f32 %v7514, %v7626
    %v7628 = vpop.f32.mrb[0].mxu0
    %v7629 = vadd.f32 %v7516, %v7628
    %v7630 = vpop.f32.mrb[0].mxu0
    %v7631 = vadd.f32 %v7518, %v7630
    %7632 = vmatprep.mubr.bf16.mxu0 %v4656
    %7633 = vmatmul.mubr.bf16.gmra.mrb[0].mxu0 %v4655
    %v7634 = vpop.f32.mrb[0].mxu0
    %v7635 = vadd.f32 %v7522, %v7634
    %v7636 = vpop.f32.mrb[0].mxu0
    %v7637 = vadd.f32 %v7524, %v7636
    %v7638 = vpop.f32.mrb[0].mxu0
    %v7639 = vadd.f32 %v7526, %v7638
    %v7640 = vpop.f32.mrb[0].mxu0
    %v7641 = vadd.f32 %v7528, %v7640
    %7642 = vdwg.mxu0
    %7643 = vmatprep.subr.bf16.mxu0 %v6392
    %7644 = vmatpush1.bf16.msra.mxu0 %v6391
    %7645 = vmatprep.subr.bf16.mxu0 %v6398
    %7646 = vmatpush1.bf16.msra.mxu0 %v6397
    %7647 = vmatprep.subr.bf16.mxu0 %v6404
    %7648 = vmatpush1.bf16.msra.mxu0 %v6403
    %7649 = vmatprep.subr.bf16.mxu0 %v6410
    %7650 = vmatpush1.bf16.msra.mxu0 %v6409
    %7651 = vmatprep.subr.bf16.mxu0 %v6416
    %7652 = vmatpush1.bf16.msra.mxu0 %v6415
    %7653 = vmatprep.subr.bf16.mxu0 %v6422
    %7654 = vmatpush1.bf16.msra.mxu0 %v6421
    %7655 = vmatprep.subr.bf16.mxu0 %v6428
    %7656 = vmatpush1.bf16.msra.mxu0 %v6427
    %7657 = vmatprep.subr.bf16.mxu0 %v6434
    %7658 = vmatpush1.bf16.msra.mxu0 %v6433
    %7659 = vmatprep.subr.bf16.mxu0 %v6440
    %7660 = vmatpush1.bf16.msra.mxu0 %v6439
    %7661 = vmatprep.subr.bf16.mxu0 %v6446
    %7662 = vmatpush1.bf16.msra.mxu0 %v6445
    %7663 = vmatprep.subr.bf16.mxu0 %v6452
    %7664 = vmatpush1.bf16.msra.mxu0 %v6451
    %7665 = vmatprep.subr.bf16.mxu0 %v6458
    %7666 = vmatpush1.bf16.msra.mxu0 %v6457
    %7667 = vmatprep.subr.bf16.mxu0 %v6464
    %7668 = vmatpush1.bf16.msra.mxu0 %v6463
    %7669 = vmatprep.subr.bf16.mxu0 %v6470
    %7670 = vmatpush1.bf16.msra.mxu0 %v6469
    %7671 = vmatprep.subr.bf16.mxu0 %v6476
    %7672 = vmatpush1.bf16.msra.mxu0 %v6475
    %7673 = vmatprep.subr.bf16.mxu0 %v6482
    %7674 = vmatpush1.bf16.msra.mxu0 %v6481
    %7675 = vmatprep.mubr.bf16.mxu0 %v4602
    %7676 = vmatmul.mubr.bf16.gmra.mrb[0].mxu0 %v4601
    %v7677 = vpop.f32.mrb[0].mxu0
    %v7678 = vadd.f32 %v7565, %v7677
    %v7679 = vpop.f32.mrb[0].mxu0
    %v7680 = vadd.f32 %v7567, %v7679
    %v7681 = vpop.f32.mrb[0].mxu0
    %v7682 = vadd.f32 %v7569, %v7681
    %v7683 = vpop.f32.mrb[0].mxu0
    %v7684 = vadd.f32 %v7571, %v7683
    %7685 = vmatprep.mubr.bf16.mxu0 %v4610
    %7686 = vmatmul.mubr.bf16.gmra.mrb[0].mxu0 %v4609
    %v7687 = vpop.f32.mrb[0].mxu0
    %v7688 = vadd.f32 %v7575, %v7687
    %v7689 = vpop.f32.mrb[0].mxu0
    %v7690 = vadd.f32 %v7577, %v7689
    %v7691 = vpop.f32.mrb[0].mxu0
    %v7692 = vadd.f32 %v7579, %v7691
    %v7693 = vpop.f32.mrb[0].mxu0
    %v7694 = vadd.f32 %v7581, %v7693
    %7695 = vmatprep.mubr.bf16.mxu0 %v4618
    %7696 = vmatmul.mubr.bf16.gmra.mrb[0].mxu0 %v4617
    %v7697 = vpop.f32.mrb[0].mxu0
    %v7698 = vadd.f32 %v7585, %v7697
    %v7699 = vpop.f32.mrb[0].mxu0
    %v7700 = vadd.f32 %v7587, %v7699
    %v7701 = vpop.f32.mrb[0].mxu0
    %v7702 = vadd.f32 %v7589, %v7701
    %v7703 = vpop.f32.mrb[0].mxu0
    %v7704 = vadd.f32 %v7591, %v7703
    %7705 = vmatprep.mubr.bf16.mxu0 %v4626
    %7706 = vmatmul.mubr.bf16.gmra.mrb[0].mxu0 %v4625
    %v7707 = vpop.f32.mrb[0].mxu0
    %v7708 = vadd.f32 %v7595, %v7707
    %v7709 = vpop.f32.mrb[0].mxu0
    %v7710 = vadd.f32 %v7597, %v7709
    %v7711 = vpop.f32.mrb[0].mxu0
    %v7712 = vadd.f32 %v7599, %v7711
    %v7713 = vpop.f32.mrb[0].mxu0
    %v7714 = vadd.f32 %v7601, %v7713
    %7715 = vmatprep.mubr.bf16.mxu0 %v4634
    %7716 = vmatmul.mubr.bf16.gmra.mrb[0].mxu0 %v4633
    %v7717 = vpop.f32.mrb[0].mxu0
    %v7718 = vadd.f32 %v7605, %v7717
    %v7719 = vpop.f32.mrb[0].mxu0
    %v7720 = vadd.f32 %v7607, %v7719
    %v7721 = vpop.f32.mrb[0].mxu0
    %v7722 = vadd.f32 %v7609, %v7721
    %v7723 = vpop.f32.mrb[0].mxu0
    %v7724 = vadd.f32 %v7611, %v7723
    %7725 = vmatprep.mubr.bf16.mxu0 %v4642
    %7726 = vmatmul.mubr.bf16.gmra.mrb[0].mxu0 %v4641
    %v7727 = vpop.f32.mrb[0].mxu0
    %v7728 = vadd.f32 %v7615, %v7727
    %v7729 = vpop.f32.mrb[0].mxu0
    %v7730 = vadd.f32 %v7617, %v7729
    %v7731 = vpop.f32.mrb[0].mxu0
    %v7732 = vadd.f32 %v7619, %v7731
    %v7733 = vpop.f32.mrb[0].mxu0
    %v7734 = vadd.f32 %v7621, %v7733
    %7735 = vmatprep.mubr.bf16.mxu0 %v4650
    %7736 = vmatmul.mubr.bf16.gmra.mrb[0].mxu0 %v4649
    %v7737 = vpop.f32.mrb[0].mxu0
    %v7738 = vadd.f32 %v7625, %v7737
    %v7739 = vpop.f32.mrb[0].mxu0
    %v7740 = vadd.f32 %v7627, %v7739
    %v7741 = vpop.f32.mrb[0].mxu0
    %v7742 = vadd.f32 %v7629, %v7741
    %v7743 = vpop.f32.mrb[0].mxu0
    %v7744 = vadd.f32 %v7631, %v7743
    %7745 = vmatprep.mubr.bf16.mxu0 %v4658
    %7746 = vmatmul.mubr.bf16.gmra.mrb[0].mxu0 %v4657
    %v7747 = vpop.f32.mrb[0].mxu0
    %v7748 = vadd.f32 %v7635, %v7747
    %v7749 = vpop.f32.mrb[0].mxu0
    %v7750 = vadd.f32 %v7637, %v7749
    %v7751 = vpop.f32.mrb[0].mxu0
    %v7752 = vadd.f32 %v7639, %v7751
    %v7753 = vpop.f32.mrb[0].mxu0
    %v7754 = vadd.f32 %v7641, %v7753
    %7755 = vdwg.mxu0
    %7756 = vmatprep.subr.bf16.mxu0 %v6488
    %7757 = vmatpush1.bf16.msra.mxu0 %v6487
    %7758 = vmatprep.subr.bf16.mxu0 %v6494
    %7759 = vmatpush1.bf16.msra.mxu0 %v6493
    %7760 = vmatprep.subr.bf16.mxu0 %v6500
    %7761 = vmatpush1.bf16.msra.mxu0 %v6499
    %7762 = vmatprep.subr.bf16.mxu0 %v6506
    %7763 = vmatpush1.bf16.msra.mxu0 %v6505
    %7764 = vmatprep.subr.bf16.mxu0 %v6512
    %7765 = vmatpush1.bf16.msra.mxu0 %v6511
    %7766 = vmatprep.subr.bf16.mxu0 %v6518
    %7767 = vmatpush1.bf16.msra.mxu0 %v6517
    %7768 = vmatprep.subr.bf16.mxu0 %v6524
    %7769 = vmatpush1.bf16.msra.mxu0 %v6523
    %7770 = vmatprep.subr.bf16.mxu0 %v6530
    %7771 = vmatpush1.bf16.msra.mxu0 %v6529
    %7772 = vmatprep.subr.bf16.mxu0 %v6536
    %7773 = vmatpush1.bf16.msra.mxu0 %v6535
    %7774 = vmatprep.subr.bf16.mxu0 %v6542
    %7775 = vmatpush1.bf16.msra.mxu0 %v6541
    %7776 = vmatprep.subr.bf16.mxu0 %v6548
    %7777 = vmatpush1.bf16.msra.mxu0 %v6547
    %7778 = vmatprep.subr.bf16.mxu0 %v6554
    %7779 = vmatpush1.bf16.msra.mxu0 %v6553
    %7780 = vmatprep.subr.bf16.mxu0 %v6560
    %7781 = vmatpush1.bf16.msra.mxu0 %v6559
    %7782 = vmatprep.subr.bf16.mxu0 %v6566
    %7783 = vmatpush1.bf16.msra.mxu0 %v6565
    %7784 = vmatprep.subr.bf16.mxu0 %v6572
    %7785 = vmatpush1.bf16.msra.mxu0 %v6571
    %7786 = vmatprep.subr.bf16.mxu0 %v6578
    %7787 = vmatpush1.bf16.msra.mxu0 %v6577
    %7788 = vmatprep.mubr.bf16.mxu0 %v4604
    %7789 = vmatmul.mubr.bf16.gmra.mrb[0].mxu0 %v4603
    %v7790 = vpop.f32.mrb[0].mxu0
    %v7791 = vadd.f32 %v7678, %v7790
    %v7792 = vpop.f32.mrb[0].mxu0
    %v7793 = vadd.f32 %v7680, %v7792
    %v7794 = vpop.f32.mrb[0].mxu0
    %v7795 = vadd.f32 %v7682, %v7794
    %v7796 = vpop.f32.mrb[0].mxu0
    %v7797 = vadd.f32 %v7684, %v7796
    %7798 = vmatprep.mubr.bf16.mxu0 %v4612
    %7799 = vmatmul.mubr.bf16.gmra.mrb[0].mxu0 %v4611
    %v7800 = vpop.f32.mrb[0].mxu0
    %v7801 = vadd.f32 %v7688, %v7800
    %v7802 = vpop.f32.mrb[0].mxu0
    %v7803 = vadd.f32 %v7690, %v7802
    %v7804 = vpop.f32.mrb[0].mxu0
    %v7805 = vadd.f32 %v7692, %v7804
    %v7806 = vpop.f32.mrb[0].mxu0
    %v7807 = vadd.f32 %v7694, %v7806
    %7808 = vmatprep.mubr.bf16.mxu0 %v4620
    %7809 = vmatmul.mubr.bf16.gmra.mrb[0].mxu0 %v4619
    %v7810 = vpop.f32.mrb[0].mxu0
    %v7811 = vadd.f32 %v7698, %v7810
    %v7812 = vpop.f32.mrb[0].mxu0
    %v7813 = vadd.f32 %v7700, %v7812
    %v7814 = vpop.f32.mrb[0].mxu0
    %v7815 = vadd.f32 %v7702, %v7814
    %v7816 = vpop.f32.mrb[0].mxu0
    %v7817 = vadd.f32 %v7704, %v7816
    %7818 = vmatprep.mubr.bf16.mxu0 %v4628
    %7819 = vmatmul.mubr.bf16.gmra.mrb[0].mxu0 %v4627
    %v7820 = vpop.f32.mrb[0].mxu0
    %v7821 = vadd.f32 %v7708, %v7820
    %v7822 = vpop.f32.mrb[0].mxu0
    %v7823 = vadd.f32 %v7710, %v7822
    %v7824 = vpop.f32.mrb[0].mxu0
    %v7825 = vadd.f32 %v7712, %v7824
    %v7826 = vpop.f32.mrb[0].mxu0
    %v7827 = vadd.f32 %v7714, %v7826
    %7828 = vmatprep.mubr.bf16.mxu0 %v4636
    %7829 = vmatmul.mubr.bf16.gmra.mrb[0].mxu0 %v4635
    %v7830 = vpop.f32.mrb[0].mxu0
    %v7831 = vadd.f32 %v7718, %v7830
    %v7832 = vpop.f32.mrb[0].mxu0
    %v7833 = vadd.f32 %v7720, %v7832
    %v7834 = vpop.f32.mrb[0].mxu0
    %v7835 = vadd.f32 %v7722, %v7834
    %v7836 = vpop.f32.mrb[0].mxu0
    %v7837 = vadd.f32 %v7724, %v7836
    %7838 = vmatprep.mubr.bf16.mxu0 %v4644
    %7839 = vmatmul.mubr.bf16.gmra.mrb[0].mxu0 %v4643
    %v7840 = vpop.f32.mrb[0].mxu0
    %v7841 = vadd.f32 %v7728, %v7840
    %v7842 = vpop.f32.mrb[0].mxu0
    %v7843 = vadd.f32 %v7730, %v7842
    %v7844 = vpop.f32.mrb[0].mxu0
    %v7845 = vadd.f32 %v7732, %v7844
    %v7846 = vpop.f32.mrb[0].mxu0
    %v7847 = vadd.f32 %v7734, %v7846
    %7848 = vmatprep.mubr.bf16.mxu0 %v4652
    %7849 = vmatmul.mubr.bf16.gmra.mrb[0].mxu0 %v4651
    %v7850 = vpop.f32.mrb[0].mxu0
    %v7851 = vadd.f32 %v7738, %v7850
    %v7852 = vpop.f32.mrb[0].mxu0
    %v7853 = vadd.f32 %v7740, %v7852
    %v7854 = vpop.f32.mrb[0].mxu0
    %v7855 = vadd.f32 %v7742, %v7854
    %v7856 = vpop.f32.mrb[0].mxu0
    %v7857 = vadd.f32 %v7744, %v7856
    %7858 = vmatprep.mubr.bf16.mxu0 %v4660
    %7859 = vmatmul.mubr.bf16.gmra.mrb[0].mxu0 %v4659
    %v7860 = vpop.f32.mrb[0].mxu0
    %v7861 = vadd.f32 %v7748, %v7860
    %v7862 = vpop.f32.mrb[0].mxu0
    %v7863 = vadd.f32 %v7750, %v7862
    %v7864 = vpop.f32.mrb[0].mxu0
    %v7865 = vadd.f32 %v7752, %v7864
    %v7866 = vpop.f32.mrb[0].mxu0
    %v7867 = vadd.f32 %v7754, %v7866
    %7868 = vdwg.mxu0
    %7869 = vmatprep.subr.bf16.mxu0 %v6202
    %7870 = vmatpush1.bf16.msra.mxu0 %v6201
    %7871 = vmatprep.subr.bf16.mxu0 %v6208
    %7872 = vmatpush1.bf16.msra.mxu0 %v6207
    %7873 = vmatprep.subr.bf16.mxu0 %v6214
    %7874 = vmatpush1.bf16.msra.mxu0 %v6213
    %7875 = vmatprep.subr.bf16.mxu0 %v6220
    %7876 = vmatpush1.bf16.msra.mxu0 %v6219
    %7877 = vmatprep.subr.bf16.mxu0 %v6226
    %7878 = vmatpush1.bf16.msra.mxu0 %v6225
    %7879 = vmatprep.subr.bf16.mxu0 %v6232
    %7880 = vmatpush1.bf16.msra.mxu0 %v6231
    %7881 = vmatprep.subr.bf16.mxu0 %v6238
    %7882 = vmatpush1.bf16.msra.mxu0 %v6237
    %7883 = vmatprep.subr.bf16.mxu0 %v6244
    %7884 = vmatpush1.bf16.msra.mxu0 %v6243
    %7885 = vmatprep.subr.bf16.mxu0 %v6250
    %7886 = vmatpush1.bf16.msra.mxu0 %v6249
    %7887 = vmatprep.subr.bf16.mxu0 %v6256
    %7888 = vmatpush1.bf16.msra.mxu0 %v6255
    %7889 = vmatprep.subr.bf16.mxu0 %v6262
    %7890 = vmatpush1.bf16.msra.mxu0 %v6261
    %7891 = vmatprep.subr.bf16.mxu0 %v6268
    %7892 = vmatpush1.bf16.msra.mxu0 %v6267
    %7893 = vmatprep.subr.bf16.mxu0 %v6274
    %7894 = vmatpush1.bf16.msra.mxu0 %v6273
    %7895 = vmatprep.subr.bf16.mxu0 %v6280
    %7896 = vmatpush1.bf16.msra.mxu0 %v6279
    %7897 = vmatprep.subr.bf16.mxu0 %v6286
    %7898 = vmatpush1.bf16.msra.mxu0 %v6285
    %7899 = vmatprep.subr.bf16.mxu0 %v6292
    %7900 = vmatpush1.bf16.msra.mxu0 %v6291
    %7901 = vmatprep.mubr.bf16.mxu0 %v4598
    %7902 = vmatmul.mubr.bf16.gmra.mrb[0].mxu0 %v4597
    %v7903 = vpop.f32.mrb[0].mxu0
    %v7904 = vadd.f32 0.0, %v7903
    %v7905 = vpop.f32.mrb[0].mxu0
    %v7906 = vadd.f32 0.0, %v7905
    %v7907 = vpop.f32.mrb[0].mxu0
    %v7908 = vadd.f32 0.0, %v7907
    %v7909 = vpop.f32.mrb[0].mxu0
    %v7910 = vadd.f32 0.0, %v7909
    %7911 = vmatprep.mubr.bf16.mxu0 %v4606
    %7912 = vmatmul.mubr.bf16.gmra.mrb[0].mxu0 %v4605
    %v7913 = vpop.f32.mrb[0].mxu0
    %v7914 = vadd.f32 0.0, %v7913
    %v7915 = vpop.f32.mrb[0].mxu0
    %v7916 = vadd.f32 0.0, %v7915
    %v7917 = vpop.f32.mrb[0].mxu0
    %v7918 = vadd.f32 0.0, %v7917
    %v7919 = vpop.f32.mrb[0].mxu0
    %v7920 = vadd.f32 0.0, %v7919
    %7921 = vmatprep.mubr.bf16.mxu0 %v4614
    %7922 = vmatmul.mubr.bf16.gmra.mrb[0].mxu0 %v4613
    %v7923 = vpop.f32.mrb[0].mxu0
    %v7924 = vadd.f32 0.0, %v7923
    %v7925 = vpop.f32.mrb[0].mxu0
    %v7926 = vadd.f32 0.0, %v7925
    %v7927 = vpop.f32.mrb[0].mxu0
    %v7928 = vadd.f32 0.0, %v7927
    %v7929 = vpop.f32.mrb[0].mxu0
    %v7930 = vadd.f32 0.0, %v7929
    %7931 = vmatprep.mubr.bf16.mxu0 %v4622
    %7932 = vmatmul.mubr.bf16.gmra.mrb[0].mxu0 %v4621
    %v7933 = vpop.f32.mrb[0].mxu0
    %v7934 = vadd.f32 0.0, %v7933
    %v7935 = vpop.f32.mrb[0].mxu0
    %v7936 = vadd.f32 0.0, %v7935
    %v7937 = vpop.f32.mrb[0].mxu0
    %v7938 = vadd.f32 0.0, %v7937
    %v7939 = vpop.f32.mrb[0].mxu0
    %v7940 = vadd.f32 0.0, %v7939
    %7941 = vmatprep.mubr.bf16.mxu0 %v4630
    %7942 = vmatmul.mubr.bf16.gmra.mrb[0].mxu0 %v4629
    %v7943 = vpop.f32.mrb[0].mxu0
    %v7944 = vadd.f32 0.0, %v7943
    %v7945 = vpop.f32.mrb[0].mxu0
    %v7946 = vadd.f32 0.0, %v7945
    %v7947 = vpop.f32.mrb[0].mxu0
    %v7948 = vadd.f32 0.0, %v7947
    %v7949 = vpop.f32.mrb[0].mxu0
    %v7950 = vadd.f32 0.0, %v7949
    %7951 = vmatprep.mubr.bf16.mxu0 %v4638
    %7952 = vmatmul.mubr.bf16.gmra.mrb[0].mxu0 %v4637
    %v7953 = vpop.f32.mrb[0].mxu0
    %v7954 = vadd.f32 0.0, %v7953
    %v7955 = vpop.f32.mrb[0].mxu0
    %v7956 = vadd.f32 0.0, %v7955
    %v7957 = vpop.f32.mrb[0].mxu0
    %v7958 = vadd.f32 0.0, %v7957
    %v7959 = vpop.f32.mrb[0].mxu0
    %v7960 = vadd.f32 0.0, %v7959
    %7961 = vmatprep.mubr.bf16.mxu0 %v4646
    %7962 = vmatmul.mubr.bf16.gmra.mrb[0].mxu0 %v4645
    %v7963 = vpop.f32.mrb[0].mxu0
    %v7964 = vadd.f32 0.0, %v7963
    %v7965 = vpop.f32.mrb[0].mxu0
    %v7966 = vadd.f32 0.0, %v7965
    %v7967 = vpop.f32.mrb[0].mxu0
    %v7968 = vadd.f32 0.0, %v7967
    %v7969 = vpop.f32.mrb[0].mxu0
    %v7970 = vadd.f32 0.0, %v7969
    %7971 = vmatprep.mubr.bf16.mxu0 %v4654
    %7972 = vmatmul.mubr.bf16.gmra.mrb[0].mxu0 %v4653
    %v7973 = vpop.f32.mrb[0].mxu0
    %v7974 = vadd.f32 0.0, %v7973
    %v7975 = vpop.f32.mrb[0].mxu0
    %v7976 = vadd.f32 0.0, %v7975
    %v7977 = vpop.f32.mrb[0].mxu0
    %v7978 = vadd.f32 0.0, %v7977
    %v7979 = vpop.f32.mrb[0].mxu0
    %v7980 = vadd.f32 0.0, %v7979
    %7981 = vdwg.mxu0
    %7982 = vmatprep.subr.bf16.mxu0 %v6298
    %7983 = vmatpush1.bf16.msra.mxu0 %v6297
    %7984 = vmatprep.subr.bf16.mxu0 %v6304
    %7985 = vmatpush1.bf16.msra.mxu0 %v6303
    %7986 = vmatprep.subr.bf16.mxu0 %v6310
    %7987 = vmatpush1.bf16.msra.mxu0 %v6309
    %7988 = vmatprep.subr.bf16.mxu0 %v6316
    %7989 = vmatpush1.bf16.msra.mxu0 %v6315
    %7990 = vmatprep.subr.bf16.mxu0 %v6322
    %7991 = vmatpush1.bf16.msra.mxu0 %v6321
    %7992 = vmatprep.subr.bf16.mxu0 %v6328
    %7993 = vmatpush1.bf16.msra.mxu0 %v6327
    %7994 = vmatprep.subr.bf16.mxu0 %v6334
    %7995 = vmatpush1.bf16.msra.mxu0 %v6333
    %7996 = vmatprep.subr.bf16.mxu0 %v6340
    %7997 = vmatpush1.bf16.msra.mxu0 %v6339
    %7998 = vmatprep.subr.bf16.mxu0 %v6346
    %7999 = vmatpush1.bf16.msra.mxu0 %v6345
    %8000 = vmatprep.subr.bf16.mxu0 %v6352
    %8001 = vmatpush1.bf16.msra.mxu0 %v6351
    %8002 = vmatprep.subr.bf16.mxu0 %v6358
    %8003 = vmatpush1.bf16.msra.mxu0 %v6357
    %8004 = vmatprep.subr.bf16.mxu0 %v6364
    %8005 = vmatpush1.bf16.msra.mxu0 %v6363
    %8006 = vmatprep.subr.bf16.mxu0 %v6370
    %8007 = vmatpush1.bf16.msra.mxu0 %v6369
    %8008 = vmatprep.subr.bf16.mxu0 %v6376
    %8009 = vmatpush1.bf16.msra.mxu0 %v6375
    %8010 = vmatprep.subr.bf16.mxu0 %v6382
    %8011 = vmatpush1.bf16.msra.mxu0 %v6381
    %8012 = vmatprep.subr.bf16.mxu0 %v6388
    %8013 = vmatpush1.bf16.msra.mxu0 %v6387
    %8014 = vmatprep.mubr.bf16.mxu0 %v4600
    %8015 = vmatmul.mubr.bf16.gmra.mrb[0].mxu0 %v4599
    %v8016 = vpop.f32.mrb[0].mxu0
    %v8017 = vadd.f32 %v7904, %v8016
    %v8018 = vpop.f32.mrb[0].mxu0
    %v8019 = vadd.f32 %v7906, %v8018
    %v8020 = vpop.f32.mrb[0].mxu0
    %v8021 = vadd.f32 %v7908, %v8020
    %v8022 = vpop.f32.mrb[0].mxu0
    %v8023 = vadd.f32 %v7910, %v8022
    %8024 = vmatprep.mubr.bf16.mxu0 %v4608
    %8025 = vmatmul.mubr.bf16.gmra.mrb[0].mxu0 %v4607
    %v8026 = vpop.f32.mrb[0].mxu0
    %v8027 = vadd.f32 %v7914, %v8026
    %v8028 = vpop.f32.mrb[0].mxu0
    %v8029 = vadd.f32 %v7916, %v8028
    %v8030 = vpop.f32.mrb[0].mxu0
    %v8031 = vadd.f32 %v7918, %v8030
    %v8032 = vpop.f32.mrb[0].mxu0
    %v8033 = vadd.f32 %v7920, %v8032
    %8034 = vmatprep.mubr.bf16.mxu0 %v4616
    %8035 = vmatmul.mubr.bf16.gmra.mrb[0].mxu0 %v4615
    %v8036 = vpop.f32.mrb[0].mxu0
    %v8037 = vadd.f32 %v7924, %v8036
    %v8038 = vpop.f32.mrb[0].mxu0
    %v8039 = vadd.f32 %v7926, %v8038
    %v8040 = vpop.f32.mrb[0].mxu0
    %v8041 = vadd.f32 %v7928, %v8040
    %v8042 = vpop.f32.mrb[0].mxu0
    %v8043 = vadd.f32 %v7930, %v8042
    %8044 = vmatprep.mubr.bf16.mxu0 %v4624
    %8045 = vmatmul.mubr.bf16.gmra.mrb[0].mxu0 %v4623
    %v8046 = vpop.f32.mrb[0].mxu0
    %v8047 = vadd.f32 %v7934, %v8046
    %v8048 = vpop.f32.mrb[0].mxu0
    %v8049 = vadd.f32 %v7936, %v8048
    %v8050 = vpop.f32.mrb[0].mxu0
    %v8051 = vadd.f32 %v7938, %v8050
    %v8052 = vpop.f32.mrb[0].mxu0
    %v8053 = vadd.f32 %v7940, %v8052
    %8054 = vmatprep.mubr.bf16.mxu0 %v4632
    %8055 = vmatmul.mubr.bf16.gmra.mrb[0].mxu0 %v4631
    %v8056 = vpop.f32.mrb[0].mxu0
    %v8057 = vadd.f32 %v7944, %v8056
    %v8058 = vpop.f32.mrb[0].mxu0
    %v8059 = vadd.f32 %v7946, %v8058
    %v8060 = vpop.f32.mrb[0].mxu0
    %v8061 = vadd.f32 %v7948, %v8060
    %v8062 = vpop.f32.mrb[0].mxu0
    %v8063 = vadd.f32 %v7950, %v8062
    %8064 = vmatprep.mubr.bf16.mxu0 %v4640
    %8065 = vmatmul.mubr.bf16.gmra.mrb[0].mxu0 %v4639
    %v8066 = vpop.f32.mrb[0].mxu0
    %v8067 = vadd.f32 %v7954, %v8066
    %v8068 = vpop.f32.mrb[0].mxu0
    %v8069 = vadd.f32 %v7956, %v8068
    %v8070 = vpop.f32.mrb[0].mxu0
    %v8071 = vadd.f32 %v7958, %v8070
    %v8072 = vpop.f32.mrb[0].mxu0
    %v8073 = vadd.f32 %v7960, %v8072
    %8074 = vmatprep.mubr.bf16.mxu0 %v4648
    %8075 = vmatmul.mubr.bf16.gmra.mrb[0].mxu0 %v4647
    %v8076 = vpop.f32.mrb[0].mxu0
    %v8077 = vadd.f32 %v7964, %v8076
    %v8078 = vpop.f32.mrb[0].mxu0
    %v8079 = vadd.f32 %v7966, %v8078
    %v8080 = vpop.f32.mrb[0].mxu0
    %v8081 = vadd.f32 %v7968, %v8080
    %v8082 = vpop.f32.mrb[0].mxu0
    %v8083 = vadd.f32 %v7970, %v8082
    %8084 = vmatprep.mubr.bf16.mxu0 %v4656
    %8085 = vmatmul.mubr.bf16.gmra.mrb[0].mxu0 %v4655
    %v8086 = vpop.f32.mrb[0].mxu0
    %v8087 = vadd.f32 %v7974, %v8086
    %v8088 = vpop.f32.mrb[0].mxu0
    %v8089 = vadd.f32 %v7976, %v8088
    %v8090 = vpop.f32.mrb[0].mxu0
    %v8091 = vadd.f32 %v7978, %v8090
    %v8092 = vpop.f32.mrb[0].mxu0
    %v8093 = vadd.f32 %v7980, %v8092
    %8094 = vdwg.mxu0
    %8095 = vmatprep.subr.bf16.mxu0 %v6394
    %8096 = vmatpush1.bf16.msra.mxu0 %v6393
    %8097 = vmatprep.subr.bf16.mxu0 %v6400
    %8098 = vmatpush1.bf16.msra.mxu0 %v6399
    %8099 = vmatprep.subr.bf16.mxu0 %v6406
    %8100 = vmatpush1.bf16.msra.mxu0 %v6405
    %8101 = vmatprep.subr.bf16.mxu0 %v6412
    %8102 = vmatpush1.bf16.msra.mxu0 %v6411
    %8103 = vmatprep.subr.bf16.mxu0 %v6418
    %8104 = vmatpush1.bf16.msra.mxu0 %v6417
    %8105 = vmatprep.subr.bf16.mxu0 %v6424
    %8106 = vmatpush1.bf16.msra.mxu0 %v6423
    %8107 = vmatprep.subr.bf16.mxu0 %v6430
    %8108 = vmatpush1.bf16.msra.mxu0 %v6429
    %8109 = vmatprep.subr.bf16.mxu0 %v6436
    %8110 = vmatpush1.bf16.msra.mxu0 %v6435
    %8111 = vmatprep.subr.bf16.mxu0 %v6442
    %8112 = vmatpush1.bf16.msra.mxu0 %v6441
    %8113 = vmatprep.subr.bf16.mxu0 %v6448
    %8114 = vmatpush1.bf16.msra.mxu0 %v6447
    %8115 = vmatprep.subr.bf16.mxu0 %v6454
    %8116 = vmatpush1.bf16.msra.mxu0 %v6453
    %8117 = vmatprep.subr.bf16.mxu0 %v6460
    %8118 = vmatpush1.bf16.msra.mxu0 %v6459
    %8119 = vmatprep.subr.bf16.mxu0 %v6466
    %8120 = vmatpush1.bf16.msra.mxu0 %v6465
    %8121 = vmatprep.subr.bf16.mxu0 %v6472
    %8122 = vmatpush1.bf16.msra.mxu0 %v6471
    %8123 = vmatprep.subr.bf16.mxu0 %v6478
    %8124 = vmatpush1.bf16.msra.mxu0 %v6477
    %8125 = vmatprep.subr.bf16.mxu0 %v6484
    %8126 = vmatpush1.bf16.msra.mxu0 %v6483
    %8127 = vmatprep.mubr.bf16.mxu0 %v4602
    %8128 = vmatmul.mubr.bf16.gmra.mrb[0].mxu0 %v4601
    %v8129 = vpop.f32.mrb[0].mxu0
    %v8130 = vadd.f32 %v8017, %v8129
    %v8131 = vpop.f32.mrb[0].mxu0
    %v8132 = vadd.f32 %v8019, %v8131
    %v8133 = vpop.f32.mrb[0].mxu0
    %v8134 = vadd.f32 %v8021, %v8133
    %v8135 = vpop.f32.mrb[0].mxu0
    %v8136 = vadd.f32 %v8023, %v8135
    %8137 = vmatprep.mubr.bf16.mxu0 %v4610
    %8138 = vmatmul.mubr.bf16.gmra.mrb[0].mxu0 %v4609
    %v8139 = vpop.f32.mrb[0].mxu0
    %v8140 = vadd.f32 %v8027, %v8139
    %v8141 = vpop.f32.mrb[0].mxu0
    %v8142 = vadd.f32 %v8029, %v8141
    %v8143 = vpop.f32.mrb[0].mxu0
    %v8144 = vadd.f32 %v8031, %v8143
    %v8145 = vpop.f32.mrb[0].mxu0
    %v8146 = vadd.f32 %v8033, %v8145
    %8147 = vmatprep.mubr.bf16.mxu0 %v4618
    %8148 = vmatmul.mubr.bf16.gmra.mrb[0].mxu0 %v4617
    %v8149 = vpop.f32.mrb[0].mxu0
    %v8150 = vadd.f32 %v8037, %v8149
    %v8151 = vpop.f32.mrb[0].mxu0
    %v8152 = vadd.f32 %v8039, %v8151
    %v8153 = vpop.f32.mrb[0].mxu0
    %v8154 = vadd.f32 %v8041, %v8153
    %v8155 = vpop.f32.mrb[0].mxu0
    %v8156 = vadd.f32 %v8043, %v8155
    %8157 = vmatprep.mubr.bf16.mxu0 %v4626
    %8158 = vmatmul.mubr.bf16.gmra.mrb[0].mxu0 %v4625
    %v8159 = vpop.f32.mrb[0].mxu0
    %v8160 = vadd.f32 %v8047, %v8159
    %v8161 = vpop.f32.mrb[0].mxu0
    %v8162 = vadd.f32 %v8049, %v8161
    %v8163 = vpop.f32.mrb[0].mxu0
    %v8164 = vadd.f32 %v8051, %v8163
    %v8165 = vpop.f32.mrb[0].mxu0
    %v8166 = vadd.f32 %v8053, %v8165
    %8167 = vmatprep.mubr.bf16.mxu0 %v4634
    %8168 = vmatmul.mubr.bf16.gmra.mrb[0].mxu0 %v4633
    %v8169 = vpop.f32.mrb[0].mxu0
    %v8170 = vadd.f32 %v8057, %v8169
    %v8171 = vpop.f32.mrb[0].mxu0
    %v8172 = vadd.f32 %v8059, %v8171
    %v8173 = vpop.f32.mrb[0].mxu0
    %v8174 = vadd.f32 %v8061, %v8173
    %v8175 = vpop.f32.mrb[0].mxu0
    %v8176 = vadd.f32 %v8063, %v8175
    %8177 = vmatprep.mubr.bf16.mxu0 %v4642
    %8178 = vmatmul.mubr.bf16.gmra.mrb[0].mxu0 %v4641
    %v8179 = vpop.f32.mrb[0].mxu0
    %v8180 = vadd.f32 %v8067, %v8179
    %v8181 = vpop.f32.mrb[0].mxu0
    %v8182 = vadd.f32 %v8069, %v8181
    %v8183 = vpop.f32.mrb[0].mxu0
    %v8184 = vadd.f32 %v8071, %v8183
    %v8185 = vpop.f32.mrb[0].mxu0
    %v8186 = vadd.f32 %v8073, %v8185
    %8187 = vmatprep.mubr.bf16.mxu0 %v4650
    %8188 = vmatmul.mubr.bf16.gmra.mrb[0].mxu0 %v4649
    %v8189 = vpop.f32.mrb[0].mxu0
    %v8190 = vadd.f32 %v8077, %v8189
    %v8191 = vpop.f32.mrb[0].mxu0
    %v8192 = vadd.f32 %v8079, %v8191
    %v8193 = vpop.f32.mrb[0].mxu0
    %v8194 = vadd.f32 %v8081, %v8193
    %v8195 = vpop.f32.mrb[0].mxu0
    %v8196 = vadd.f32 %v8083, %v8195
    %8197 = vmatprep.mubr.bf16.mxu0 %v4658
    %8198 = vmatmul.mubr.bf16.gmra.mrb[0].mxu0 %v4657
    %v8199 = vpop.f32.mrb[0].mxu0
    %v8200 = vadd.f32 %v8087, %v8199
    %v8201 = vpop.f32.mrb[0].mxu0
    %v8202 = vadd.f32 %v8089, %v8201
    %v8203 = vpop.f32.mrb[0].mxu0
    %v8204 = vadd.f32 %v8091, %v8203
    %v8205 = vpop.f32.mrb[0].mxu0
    %v8206 = vadd.f32 %v8093, %v8205
    %8207 = vdwg.mxu0
    %8208 = vmatprep.subr.bf16.mxu0 %v6490
    %8209 = vmatpush1.bf16.msra.mxu0 %v6489
    %8210 = vmatprep.subr.bf16.mxu0 %v6496
    %8211 = vmatpush1.bf16.msra.mxu0 %v6495
    %8212 = vmatprep.subr.bf16.mxu0 %v6502
    %8213 = vmatpush1.bf16.msra.mxu0 %v6501
    %8214 = vmatprep.subr.bf16.mxu0 %v6508
    %8215 = vmatpush1.bf16.msra.mxu0 %v6507
    %8216 = vmatprep.subr.bf16.mxu0 %v6514
    %8217 = vmatpush1.bf16.msra.mxu0 %v6513
    %8218 = vmatprep.subr.bf16.mxu0 %v6520
    %8219 = vmatpush1.bf16.msra.mxu0 %v6519
    %8220 = vmatprep.subr.bf16.mxu0 %v6526
    %8221 = vmatpush1.bf16.msra.mxu0 %v6525
    %8222 = vmatprep.subr.bf16.mxu0 %v6532
    %8223 = vmatpush1.bf16.msra.mxu0 %v6531
    %8224 = vmatprep.subr.bf16.mxu0 %v6538
    %8225 = vmatpush1.bf16.msra.mxu0 %v6537
    %8226 = vmatprep.subr.bf16.mxu0 %v6544
    %8227 = vmatpush1.bf16.msra.mxu0 %v6543
    %8228 = vmatprep.subr.bf16.mxu0 %v6550
    %8229 = vmatpush1.bf16.msra.mxu0 %v6549
    %8230 = vmatprep.subr.bf16.mxu0 %v6556
    %8231 = vmatpush1.bf16.msra.mxu0 %v6555
    %8232 = vmatprep.subr.bf16.mxu0 %v6562
    %8233 = vmatpush1.bf16.msra.mxu0 %v6561
    %8234 = vmatprep.subr.bf16.mxu0 %v6568
    %8235 = vmatpush1.bf16.msra.mxu0 %v6567
    %8236 = vmatprep.subr.bf16.mxu0 %v6574
    %8237 = vmatpush1.bf16.msra.mxu0 %v6573
    %8238 = vmatprep.subr.bf16.mxu0 %v6580
    %8239 = vmatpush1.bf16.msra.mxu0 %v6579
    %8240 = vmatprep.mubr.bf16.mxu0 %v4604
    %8241 = vmatmul.mubr.bf16.gmra.mrb[0].mxu0 %v4603
    %v8242 = vpop.f32.mrb[0].mxu0
    %v8243 = vadd.f32 %v8130, %v8242
    %v8244 = vpop.f32.mrb[0].mxu0
    %v8245 = vadd.f32 %v8132, %v8244
    %v8246 = vpop.f32.mrb[0].mxu0
    %v8247 = vadd.f32 %v8134, %v8246
    %v8248 = vpop.f32.mrb[0].mxu0
    %v8249 = vadd.f32 %v8136, %v8248
    %8250 = vmatprep.mubr.bf16.mxu0 %v4612
    %8251 = vmatmul.mubr.bf16.gmra.mrb[0].mxu0 %v4611
    %v8252 = vpop.f32.mrb[0].mxu0
    %v8253 = vadd.f32 %v8140, %v8252
    %v8254 = vpop.f32.mrb[0].mxu0
    %v8255 = vadd.f32 %v8142, %v8254
    %v8256 = vpop.f32.mrb[0].mxu0
    %v8257 = vadd.f32 %v8144, %v8256
    %v8258 = vpop.f32.mrb[0].mxu0
    %v8259 = vadd.f32 %v8146, %v8258
    %8260 = vmatprep.mubr.bf16.mxu0 %v4620
    %8261 = vmatmul.mubr.bf16.gmra.mrb[0].mxu0 %v4619
    %v8262 = vpop.f32.mrb[0].mxu0
    %v8263 = vadd.f32 %v8150, %v8262
    %v8264 = vpop.f32.mrb[0].mxu0
    %v8265 = vadd.f32 %v8152, %v8264
    %v8266 = vpop.f32.mrb[0].mxu0
    %v8267 = vadd.f32 %v8154, %v8266
    %v8268 = vpop.f32.mrb[0].mxu0
    %v8269 = vadd.f32 %v8156, %v8268
    %8270 = vmatprep.mubr.bf16.mxu0 %v4628
    %8271 = vmatmul.mubr.bf16.gmra.mrb[0].mxu0 %v4627
    %v8272 = vpop.f32.mrb[0].mxu0
    %v8273 = vadd.f32 %v8160, %v8272
    %v8274 = vpop.f32.mrb[0].mxu0
    %v8275 = vadd.f32 %v8162, %v8274
    %v8276 = vpop.f32.mrb[0].mxu0
    %v8277 = vadd.f32 %v8164, %v8276
    %v8278 = vpop.f32.mrb[0].mxu0
    %v8279 = vadd.f32 %v8166, %v8278
    %8280 = vmatprep.mubr.bf16.mxu0 %v4636
    %8281 = vmatmul.mubr.bf16.gmra.mrb[0].mxu0 %v4635
    %v8282 = vpop.f32.mrb[0].mxu0
    %v8283 = vadd.f32 %v8170, %v8282
    %v8284 = vpop.f32.mrb[0].mxu0
    %v8285 = vadd.f32 %v8172, %v8284
    %v8286 = vpop.f32.mrb[0].mxu0
    %v8287 = vadd.f32 %v8174, %v8286
    %v8288 = vpop.f32.mrb[0].mxu0
    %v8289 = vadd.f32 %v8176, %v8288
    %8290 = vmatprep.mubr.bf16.mxu0 %v4644
    %8291 = vmatmul.mubr.bf16.gmra.mrb[0].mxu0 %v4643
    %v8292 = vpop.f32.mrb[0].mxu0
    %v8293 = vadd.f32 %v8180, %v8292
    %v8294 = vpop.f32.mrb[0].mxu0
    %v8295 = vadd.f32 %v8182, %v8294
    %v8296 = vpop.f32.mrb[0].mxu0
    %v8297 = vadd.f32 %v8184, %v8296
    %v8298 = vpop.f32.mrb[0].mxu0
    %v8299 = vadd.f32 %v8186, %v8298
    %8300 = vmatprep.mubr.bf16.mxu0 %v4652
    %8301 = vmatmul.mubr.bf16.gmra.mrb[0].mxu0 %v4651
    %v8302 = vpop.f32.mrb[0].mxu0
    %v8303 = vadd.f32 %v8190, %v8302
    %v8304 = vpop.f32.mrb[0].mxu0
    %v8305 = vadd.f32 %v8192, %v8304
    %v8306 = vpop.f32.mrb[0].mxu0
    %v8307 = vadd.f32 %v8194, %v8306
    %v8308 = vpop.f32.mrb[0].mxu0
    %v8309 = vadd.f32 %v8196, %v8308
    %8310 = vmatprep.mubr.bf16.mxu0 %v4660
    %8311 = vmatmul.mubr.bf16.gmra.mrb[0].mxu0 %v4659
    %v8312 = vpop.f32.mrb[0].mxu0
    %v8313 = vadd.f32 %v8200, %v8312
    %v8314 = vpop.f32.mrb[0].mxu0
    %v8315 = vadd.f32 %v8202, %v8314
    %v8316 = vpop.f32.mrb[0].mxu0
    %v8317 = vadd.f32 %v8204, %v8316
    %v8318 = vpop.f32.mrb[0].mxu0
    %v8319 = vadd.f32 %v8206, %v8318
    %8320 = vdwg.mxu0
    %v8321 = vld [vmem:[%s1] sm:$0xff]
    %v8322 = vld [vmem:[%s1 + $0x8] sm:$0xff]
    %v8323 = vld [vmem:[%s1 + $0x10] sm:$0xff]
    %v8324 = vld [vmem:[%s1 + $0x18] sm:$0xff]
    %v8325 = vld [vmem:[%s1 + $0x20] sm:$0xff]
    %v8326 = vld [vmem:[%s1 + $0x28] sm:$0xff]
    %v8327 = vld [vmem:[%s1 + $0x30] sm:$0xff]
    %v8328 = vld [vmem:[%s1 + $0x38] sm:$0xff]
    %v8329 = vld [vmem:[%s1 + $0x40] sm:$0xff]
    %v8330 = vld [vmem:[%s1 + $0x48] sm:$0xff]
    %v8331 = vld [vmem:[%s1 + $0x50] sm:$0xff]
    %v8332 = vld [vmem:[%s1 + $0x58] sm:$0xff]
    %v8333 = vld [vmem:[%s1 + $0x60] sm:$0xff]
    %v8334 = vld [vmem:[%s1 + $0x68] sm:$0xff]
    %v8335 = vld [vmem:[%s1 + $0x70] sm:$0xff]
    %v8336 = vld [vmem:[%s1 + $0x78] sm:$0xff]
    %8338 = vset.pattern.permute.xlu0 0
    %8339 = vperm.xlu0 %8338, %v8321
    %v8340 = vpop.permute.xlu0 %8339
    %8343 = vset.pattern.permute.xlu0 0
    %8344 = vperm.xlu0 %8343, %v8322
    %v8345 = vpop.permute.xlu0 %8344
    %8348 = vset.pattern.permute.xlu0 0
    %8349 = vperm.xlu0 %8348, %v8323
    %v8350 = vpop.permute.xlu0 %8349
    %8353 = vset.pattern.permute.xlu0 0
    %8354 = vperm.xlu0 %8353, %v8324
    %v8355 = vpop.permute.xlu0 %8354
    %8358 = vset.pattern.permute.xlu0 0
    %8359 = vperm.xlu0 %8358, %v8325
    %v8360 = vpop.permute.xlu0 %8359
    %8363 = vset.pattern.permute.xlu0 0
    %8364 = vperm.xlu0 %8363, %v8326
    %v8365 = vpop.permute.xlu0 %8364
    %8368 = vset.pattern.permute.xlu0 0
    %8369 = vperm.xlu0 %8368, %v8327
    %v8370 = vpop.permute.xlu0 %8369
    %8373 = vset.pattern.permute.xlu0 0
    %8374 = vperm.xlu0 %8373, %v8328
    %v8375 = vpop.permute.xlu0 %8374
    %8378 = vset.pattern.permute.xlu0 0
    %8379 = vperm.xlu0 %8378, %v8329
    %v8380 = vpop.permute.xlu0 %8379
    %8383 = vset.pattern.permute.xlu0 0
    %8384 = vperm.xlu0 %8383, %v8330
    %v8385 = vpop.permute.xlu0 %8384
    %8388 = vset.pattern.permute.xlu0 0
    %8389 = vperm.xlu0 %8388, %v8331
    %v8390 = vpop.permute.xlu0 %8389
    %8393 = vset.pattern.permute.xlu0 0
    %8394 = vperm.xlu0 %8393, %v8332
    %v8395 = vpop.permute.xlu0 %8394
    %8398 = vset.pattern.permute.xlu0 0
    %8399 = vperm.xlu0 %8398, %v8333
    %v8400 = vpop.permute.xlu0 %8399
    %8403 = vset.pattern.permute.xlu0 0
    %8404 = vperm.xlu0 %8403, %v8334
    %v8405 = vpop.permute.xlu0 %8404
    %8408 = vset.pattern.permute.xlu0 0
    %8409 = vperm.xlu0 %8408, %v8335
    %v8410 = vpop.permute.xlu0 %8409
    %8413 = vset.pattern.permute.xlu0 0
    %8414 = vperm.xlu0 %8413, %v8336
    %v8415 = vpop.permute.xlu0 %8414
    %v8417 = vmul.f32 %v7339, %v8340
    %v8418 = vmul.f32 %v7341, %v8340
    %v8419 = vmul.f32 %v7791, %v8340
    %v8420 = vmul.f32 %v7793, %v8340
    %v8421 = vmul.f32 %v8243, %v8340
    %v8422 = vmul.f32 %v8245, %v8340
    %v8423 = vmul.f32 %v7343, %v8345
    %v8424 = vmul.f32 %v7345, %v8345
    %v8425 = vmul.f32 %v7795, %v8345
    %v8426 = vmul.f32 %v7797, %v8345
    %v8427 = vmul.f32 %v8247, %v8345
    %v8428 = vmul.f32 %v8249, %v8345
    %v8429 = vmul.f32 %v7349, %v8350
    %v8430 = vmul.f32 %v7351, %v8350
    %v8431 = vmul.f32 %v7801, %v8350
    %v8432 = vmul.f32 %v7803, %v8350
    %v8433 = vmul.f32 %v8253, %v8350
    %v8434 = vmul.f32 %v8255, %v8350
    %v8435 = vmul.f32 %v7353, %v8355
    %v8436 = vmul.f32 %v7355, %v8355
    %v8437 = vmul.f32 %v7805, %v8355
    %v8438 = vmul.f32 %v7807, %v8355
    %v8439 = vmul.f32 %v8257, %v8355
    %v8440 = vmul.f32 %v8259, %v8355
    %v8441 = vmul.f32 %v7359, %v8360
    %v8442 = vmul.f32 %v7361, %v8360
    %v8443 = vmul.f32 %v7811, %v8360
    %v8444 = vmul.f32 %v7813, %v8360
    %v8445 = vmul.f32 %v8263, %v8360
    %v8446 = vmul.f32 %v8265, %v8360
    %v8447 = vmul.f32 %v7363, %v8365
    %v8448 = vmul.f32 %v7365, %v8365
    %v8449 = vmul.f32 %v7815, %v8365
    %v8450 = vmul.f32 %v7817, %v8365
    %v8451 = vmul.f32 %v8267, %v8365
    %v8452 = vmul.f32 %v8269, %v8365
    %v8453 = vmul.f32 %v7369, %v8370
    %v8454 = vmul.f32 %v7371, %v8370
    %v8455 = vmul.f32 %v7821, %v8370
    %v8456 = vmul.f32 %v7823, %v8370
    %v8457 = vmul.f32 %v8273, %v8370
    %v8458 = vmul.f32 %v8275, %v8370
    %v8459 = vmul.f32 %v7373, %v8375
    %v8460 = vmul.f32 %v7375, %v8375
    %v8461 = vmul.f32 %v7825, %v8375
    %v8462 = vmul.f32 %v7827, %v8375
    %v8463 = vmul.f32 %v8277, %v8375
    %v8464 = vmul.f32 %v8279, %v8375
    %v8465 = vmul.f32 %v7379, %v8380
    %v8466 = vmul.f32 %v7381, %v8380
    %v8467 = vmul.f32 %v7831, %v8380
    %v8468 = vmul.f32 %v7833, %v8380
    %v8469 = vmul.f32 %v8283, %v8380
    %v8470 = vmul.f32 %v8285, %v8380
    %v8471 = vmul.f32 %v7383, %v8385
    %v8472 = vmul.f32 %v7385, %v8385
    %v8473 = vmul.f32 %v7835, %v8385
    %v8474 = vmul.f32 %v7837, %v8385
    %v8475 = vmul.f32 %v8287, %v8385
    %v8476 = vmul.f32 %v8289, %v8385
    %v8477 = vmul.f32 %v7389, %v8390
    %v8478 = vmul.f32 %v7391, %v8390
    %v8479 = vmul.f32 %v7841, %v8390
    %v8480 = vmul.f32 %v7843, %v8390
    %v8481 = vmul.f32 %v8293, %v8390
    %v8482 = vmul.f32 %v8295, %v8390
    %v8483 = vmul.f32 %v7393, %v8395
    %v8484 = vmul.f32 %v7395, %v8395
    %v8485 = vmul.f32 %v7845, %v8395
    %v8486 = vmul.f32 %v7847, %v8395
    %v8487 = vmul.f32 %v8297, %v8395
    %v8488 = vmul.f32 %v8299, %v8395
    %v8489 = vmul.f32 %v7399, %v8400
    %v8490 = vmul.f32 %v7401, %v8400
    %v8491 = vmul.f32 %v7851, %v8400
    %v8492 = vmul.f32 %v7853, %v8400
    %v8493 = vmul.f32 %v8303, %v8400
    %v8494 = vmul.f32 %v8305, %v8400
    %v8495 = vmul.f32 %v7403, %v8405
    %v8496 = vmul.f32 %v7405, %v8405
    %v8497 = vmul.f32 %v7855, %v8405
    %v8498 = vmul.f32 %v7857, %v8405
    %v8499 = vmul.f32 %v8307, %v8405
    %v8500 = vmul.f32 %v8309, %v8405
    %v8501 = vmul.f32 %v7409, %v8410
    %v8502 = vmul.f32 %v7411, %v8410
    %v8503 = vmul.f32 %v7861, %v8410
    %v8504 = vmul.f32 %v7863, %v8410
    %v8505 = vmul.f32 %v8313, %v8410
    %v8506 = vmul.f32 %v8315, %v8410
    %v8507 = vmul.f32 %v7413, %v8415
    %v8508 = vmul.f32 %v7415, %v8415
    %v8509 = vmul.f32 %v7865, %v8415
    %v8510 = vmul.f32 %v7867, %v8415
    %v8511 = vmul.f32 %v8317, %v8415
    %v8512 = vmul.f32 %v8319, %v8415
    %v8513 = vpack.c.bf16 %v8423, %v8417
    %v8514 = vpack.c.bf16 %v8424, %v8418
    %v8515 = vpack.c.bf16 %v8425, %v8419
    %v8516 = vpack.c.bf16 %v8426, %v8420
    %v8517 = vpack.c.bf16 %v8427, %v8421
    %v8518 = vpack.c.bf16 %v8428, %v8422
    %v8519 = vpack.c.bf16 %v8435, %v8429
    %v8520 = vpack.c.bf16 %v8436, %v8430
    %v8521 = vpack.c.bf16 %v8437, %v8431
    %v8522 = vpack.c.bf16 %v8438, %v8432
    %v8523 = vpack.c.bf16 %v8439, %v8433
    %v8524 = vpack.c.bf16 %v8440, %v8434
    %v8525 = vpack.c.bf16 %v8447, %v8441
    %v8526 = vpack.c.bf16 %v8448, %v8442
    %v8527 = vpack.c.bf16 %v8449, %v8443
    %v8528 = vpack.c.bf16 %v8450, %v8444
    %v8529 = vpack.c.bf16 %v8451, %v8445
    %v8530 = vpack.c.bf16 %v8452, %v8446
    %v8531 = vpack.c.bf16 %v8459, %v8453
    %v8532 = vpack.c.bf16 %v8460, %v8454
    %v8533 = vpack.c.bf16 %v8461, %v8455
    %v8534 = vpack.c.bf16 %v8462, %v8456
    %v8535 = vpack.c.bf16 %v8463, %v8457
    %v8536 = vpack.c.bf16 %v8464, %v8458
    %v8537 = vpack.c.bf16 %v8471, %v8465
    %v8538 = vpack.c.bf16 %v8472, %v8466
    %v8539 = vpack.c.bf16 %v8473, %v8467
    %v8540 = vpack.c.bf16 %v8474, %v8468
    %v8541 = vpack.c.bf16 %v8475, %v8469
    %v8542 = vpack.c.bf16 %v8476, %v8470
    %v8543 = vpack.c.bf16 %v8483, %v8477
    %v8544 = vpack.c.bf16 %v8484, %v8478
    %v8545 = vpack.c.bf16 %v8485, %v8479
    %v8546 = vpack.c.bf16 %v8486, %v8480
    %v8547 = vpack.c.bf16 %v8487, %v8481
    %v8548 = vpack.c.bf16 %v8488, %v8482
    %v8549 = vpack.c.bf16 %v8495, %v8489
    %v8550 = vpack.c.bf16 %v8496, %v8490
    %v8551 = vpack.c.bf16 %v8497, %v8491
    %v8552 = vpack.c.bf16 %v8498, %v8492
    %v8553 = vpack.c.bf16 %v8499, %v8493
    %v8554 = vpack.c.bf16 %v8500, %v8494
    %v8555 = vpack.c.bf16 %v8507, %v8501
    %v8556 = vpack.c.bf16 %v8508, %v8502
    %v8557 = vpack.c.bf16 %v8509, %v8503
    %v8558 = vpack.c.bf16 %v8510, %v8504
    %v8559 = vpack.c.bf16 %v8511, %v8505
    %v8560 = vpack.c.bf16 %v8512, %v8506
    %v8561 = vld [vmem:[#allocation5] sm:$0xff]
    %v8562 = vld [vmem:[#allocation5 + $0x8] sm:$0xff]
    %v8563 = vld [vmem:[#allocation5 + $0x10] sm:$0xff]
    %v8564 = vld [vmem:[#allocation5 + $0x18] sm:$0xff]
    %v8565 = vld [vmem:[#allocation5 + $0x20] sm:$0xff]
    %v8566 = vld [vmem:[#allocation5 + $0x28] sm:$0xff]
    %v8567 = vld [vmem:[#allocation5 + $0x30] sm:$0xff]
    %v8568 = vld [vmem:[#allocation5 + $0x38] sm:$0xff]
    %v8569 = vld [vmem:[#allocation5 + $0x40] sm:$0xff]
    %v8570 = vld [vmem:[#allocation5 + $0x48] sm:$0xff]
    %v8571 = vld [vmem:[#allocation5 + $0x50] sm:$0xff]
    %v8572 = vld [vmem:[#allocation5 + $0x58] sm:$0xff]
    %v8573 = vld [vmem:[#allocation5 + $0x60] sm:$0xff]
    %v8574 = vld [vmem:[#allocation5 + $0x68] sm:$0xff]
    %v8575 = vld [vmem:[#allocation5 + $0x70] sm:$0xff]
    %v8576 = vld [vmem:[#allocation5 + $0x78] sm:$0xff]
    %v8577 = vld [vmem:[#allocation5 + $0x80] sm:$0xff]
    %v8578 = vld [vmem:[#allocation5 + $0x88] sm:$0xff]
    %v8579 = vld [vmem:[#allocation5 + $0x90] sm:$0xff]
    %v8580 = vld [vmem:[#allocation5 + $0x98] sm:$0xff]
    %v8581 = vld [vmem:[#allocation5 + $0xa0] sm:$0xff]
    %v8582 = vld [vmem:[#allocation5 + $0xa8] sm:$0xff]
    %v8583 = vld [vmem:[#allocation5 + $0xb0] sm:$0xff]
    %v8584 = vld [vmem:[#allocation5 + $0xb8] sm:$0xff]
    %v8585 = vld [vmem:[#allocation5 + $0xc0] sm:$0xff]
    %v8586 = vld [vmem:[#allocation5 + $0xc8] sm:$0xff]
    %v8587 = vld [vmem:[#allocation5 + $0xd0] sm:$0xff]
    %v8588 = vld [vmem:[#allocation5 + $0xd8] sm:$0xff]
    %v8589 = vld [vmem:[#allocation5 + $0xe0] sm:$0xff]
    %v8590 = vld [vmem:[#allocation5 + $0xe8] sm:$0xff]
    %v8591 = vld [vmem:[#allocation5 + $0xf0] sm:$0xff]
    %v8592 = vld [vmem:[#allocation5 + $0xf8] sm:$0xff]
    %v8593 = vld [vmem:[#allocation5 + $0x100] sm:$0xff]
    %v8594 = vld [vmem:[#allocation5 + $0x108] sm:$0xff]
    %v8595 = vld [vmem:[#allocation5 + $0x110] sm:$0xff]
    %v8596 = vld [vmem:[#allocation5 + $0x118] sm:$0xff]
    %v8597 = vld [vmem:[#allocation5 + $0x120] sm:$0xff]
    %v8598 = vld [vmem:[#allocation5 + $0x128] sm:$0xff]
    %v8599 = vld [vmem:[#allocation5 + $0x130] sm:$0xff]
    %v8600 = vld [vmem:[#allocation5 + $0x138] sm:$0xff]
    %v8601 = vld [vmem:[#allocation5 + $0x140] sm:$0xff]
    %v8602 = vld [vmem:[#allocation5 + $0x148] sm:$0xff]
    %v8603 = vld [vmem:[#allocation5 + $0x150] sm:$0xff]
    %v8604 = vld [vmem:[#allocation5 + $0x158] sm:$0xff]
    %v8605 = vld [vmem:[#allocation5 + $0x160] sm:$0xff]
    %v8606 = vld [vmem:[#allocation5 + $0x168] sm:$0xff]
    %v8607 = vld [vmem:[#allocation5 + $0x170] sm:$0xff]
    %v8608 = vld [vmem:[#allocation5 + $0x178] sm:$0xff]
    %v8609 = vld [vmem:[#allocation5 + $0x180] sm:$0xff]
    %v8610 = vld [vmem:[#allocation5 + $0x188] sm:$0xff]
    %v8611 = vld [vmem:[#allocation5 + $0x190] sm:$0xff]
    %v8612 = vld [vmem:[#allocation5 + $0x198] sm:$0xff]
    %v8613 = vld [vmem:[#allocation5 + $0x1a0] sm:$0xff]
    %v8614 = vld [vmem:[#allocation5 + $0x1a8] sm:$0xff]
    %v8615 = vld [vmem:[#allocation5 + $0x1b0] sm:$0xff]
    %v8616 = vld [vmem:[#allocation5 + $0x1b8] sm:$0xff]
    %v8617 = vld [vmem:[#allocation5 + $0x1c0] sm:$0xff]
    %v8618 = vld [vmem:[#allocation5 + $0x1c8] sm:$0xff]
    %v8619 = vld [vmem:[#allocation5 + $0x1d0] sm:$0xff]
    %v8620 = vld [vmem:[#allocation5 + $0x1d8] sm:$0xff]
    %v8621 = vld [vmem:[#allocation5 + $0x1e0] sm:$0xff]
    %v8622 = vld [vmem:[#allocation5 + $0x1e8] sm:$0xff]
    %v8623 = vld [vmem:[#allocation5 + $0x1f0] sm:$0xff]
    %v8624 = vld [vmem:[#allocation5 + $0x1f8] sm:$0xff]
    %v8625 = vld [vmem:[#allocation5 + $0x200] sm:$0xff]
    %v8626 = vld [vmem:[#allocation5 + $0x208] sm:$0xff]
    %v8627 = vld [vmem:[#allocation5 + $0x210] sm:$0xff]
    %v8628 = vld [vmem:[#allocation5 + $0x218] sm:$0xff]
    %v8629 = vld [vmem:[#allocation5 + $0x220] sm:$0xff]
    %v8630 = vld [vmem:[#allocation5 + $0x228] sm:$0xff]
    %v8631 = vld [vmem:[#allocation5 + $0x230] sm:$0xff]
    %v8632 = vld [vmem:[#allocation5 + $0x238] sm:$0xff]
    %v8633 = vld [vmem:[#allocation5 + $0x240] sm:$0xff]
    %v8634 = vld [vmem:[#allocation5 + $0x248] sm:$0xff]
    %v8635 = vld [vmem:[#allocation5 + $0x250] sm:$0xff]
    %v8636 = vld [vmem:[#allocation5 + $0x258] sm:$0xff]
    %v8637 = vld [vmem:[#allocation5 + $0x260] sm:$0xff]
    %v8638 = vld [vmem:[#allocation5 + $0x268] sm:$0xff]
    %v8639 = vld [vmem:[#allocation5 + $0x270] sm:$0xff]
    %v8640 = vld [vmem:[#allocation5 + $0x278] sm:$0xff]
    %v8641 = vld [vmem:[#allocation5 + $0x280] sm:$0xff]
    %v8642 = vld [vmem:[#allocation5 + $0x288] sm:$0xff]
    %v8643 = vld [vmem:[#allocation5 + $0x290] sm:$0xff]
    %v8644 = vld [vmem:[#allocation5 + $0x298] sm:$0xff]
    %v8645 = vld [vmem:[#allocation5 + $0x2a0] sm:$0xff]
    %v8646 = vld [vmem:[#allocation5 + $0x2a8] sm:$0xff]
    %v8647 = vld [vmem:[#allocation5 + $0x2b0] sm:$0xff]
    %v8648 = vld [vmem:[#allocation5 + $0x2b8] sm:$0xff]
    %v8649 = vld [vmem:[#allocation5 + $0x2c0] sm:$0xff]
    %v8650 = vld [vmem:[#allocation5 + $0x2c8] sm:$0xff]
    %v8651 = vld [vmem:[#allocation5 + $0x2d0] sm:$0xff]
    %v8652 = vld [vmem:[#allocation5 + $0x2d8] sm:$0xff]
    %v8653 = vld [vmem:[#allocation5 + $0x2e0] sm:$0xff]
    %v8654 = vld [vmem:[#allocation5 + $0x2e8] sm:$0xff]
    %v8655 = vld [vmem:[#allocation5 + $0x2f0] sm:$0xff]
    %v8656 = vld [vmem:[#allocation5 + $0x2f8] sm:$0xff]
    %v8657 = vld [vmem:[#allocation5 + $0x300] sm:$0xff]
    %v8658 = vld [vmem:[#allocation5 + $0x308] sm:$0xff]
    %v8659 = vld [vmem:[#allocation5 + $0x310] sm:$0xff]
    %v8660 = vld [vmem:[#allocation5 + $0x318] sm:$0xff]
    %v8661 = vld [vmem:[#allocation5 + $0x320] sm:$0xff]
    %v8662 = vld [vmem:[#allocation5 + $0x328] sm:$0xff]
    %v8663 = vld [vmem:[#allocation5 + $0x330] sm:$0xff]
    %v8664 = vld [vmem:[#allocation5 + $0x338] sm:$0xff]
    %v8665 = vld [vmem:[#allocation5 + $0x340] sm:$0xff]
    %v8666 = vld [vmem:[#allocation5 + $0x348] sm:$0xff]
    %v8667 = vld [vmem:[#allocation5 + $0x350] sm:$0xff]
    %v8668 = vld [vmem:[#allocation5 + $0x358] sm:$0xff]
    %v8669 = vld [vmem:[#allocation5 + $0x360] sm:$0xff]
    %v8670 = vld [vmem:[#allocation5 + $0x368] sm:$0xff]
    %v8671 = vld [vmem:[#allocation5 + $0x370] sm:$0xff]
    %v8672 = vld [vmem:[#allocation5 + $0x378] sm:$0xff]
    %v8673 = vld [vmem:[#allocation5 + $0x380] sm:$0xff]
    %v8674 = vld [vmem:[#allocation5 + $0x388] sm:$0xff]
    %v8675 = vld [vmem:[#allocation5 + $0x390] sm:$0xff]
    %v8676 = vld [vmem:[#allocation5 + $0x398] sm:$0xff]
    %v8677 = vld [vmem:[#allocation5 + $0x3a0] sm:$0xff]
    %v8678 = vld [vmem:[#allocation5 + $0x3a8] sm:$0xff]
    %v8679 = vld [vmem:[#allocation5 + $0x3b0] sm:$0xff]
    %v8680 = vld [vmem:[#allocation5 + $0x3b8] sm:$0xff]
    %v8681 = vld [vmem:[#allocation5 + $0x3c0] sm:$0xff]
    %v8682 = vld [vmem:[#allocation5 + $0x3c8] sm:$0xff]
    %v8683 = vld [vmem:[#allocation5 + $0x3d0] sm:$0xff]
    %v8684 = vld [vmem:[#allocation5 + $0x3d8] sm:$0xff]
    %v8685 = vld [vmem:[#allocation5 + $0x3e0] sm:$0xff]
    %v8686 = vld [vmem:[#allocation5 + $0x3e8] sm:$0xff]
    %v8687 = vld [vmem:[#allocation5 + $0x3f0] sm:$0xff]
    %v8688 = vld [vmem:[#allocation5 + $0x3f8] sm:$0xff]
    %v8689 = vld [vmem:[#allocation5 + $0x400] sm:$0xff]
    %v8690 = vld [vmem:[#allocation5 + $0x408] sm:$0xff]
    %v8691 = vld [vmem:[#allocation5 + $0x410] sm:$0xff]
    %v8692 = vld [vmem:[#allocation5 + $0x418] sm:$0xff]
    %v8693 = vld [vmem:[#allocation5 + $0x420] sm:$0xff]
    %v8694 = vld [vmem:[#allocation5 + $0x428] sm:$0xff]
    %v8695 = vld [vmem:[#allocation5 + $0x430] sm:$0xff]
    %v8696 = vld [vmem:[#allocation5 + $0x438] sm:$0xff]
    %v8697 = vld [vmem:[#allocation5 + $0x440] sm:$0xff]
    %v8698 = vld [vmem:[#allocation5 + $0x448] sm:$0xff]
    %v8699 = vld [vmem:[#allocation5 + $0x450] sm:$0xff]
    %v8700 = vld [vmem:[#allocation5 + $0x458] sm:$0xff]
    %v8701 = vld [vmem:[#allocation5 + $0x460] sm:$0xff]
    %v8702 = vld [vmem:[#allocation5 + $0x468] sm:$0xff]
    %v8703 = vld [vmem:[#allocation5 + $0x470] sm:$0xff]
    %v8704 = vld [vmem:[#allocation5 + $0x478] sm:$0xff]
    %v8705 = vld [vmem:[#allocation5 + $0x480] sm:$0xff]
    %v8706 = vld [vmem:[#allocation5 + $0x488] sm:$0xff]
    %v8707 = vld [vmem:[#allocation5 + $0x490] sm:$0xff]
    %v8708 = vld [vmem:[#allocation5 + $0x498] sm:$0xff]
    %v8709 = vld [vmem:[#allocation5 + $0x4a0] sm:$0xff]
    %v8710 = vld [vmem:[#allocation5 + $0x4a8] sm:$0xff]
    %v8711 = vld [vmem:[#allocation5 + $0x4b0] sm:$0xff]
    %v8712 = vld [vmem:[#allocation5 + $0x4b8] sm:$0xff]
    %v8713 = vld [vmem:[#allocation5 + $0x4c0] sm:$0xff]
    %v8714 = vld [vmem:[#allocation5 + $0x4c8] sm:$0xff]
    %v8715 = vld [vmem:[#allocation5 + $0x4d0] sm:$0xff]
    %v8716 = vld [vmem:[#allocation5 + $0x4d8] sm:$0xff]
    %v8717 = vld [vmem:[#allocation5 + $0x4e0] sm:$0xff]
    %v8718 = vld [vmem:[#allocation5 + $0x4e8] sm:$0xff]
    %v8719 = vld [vmem:[#allocation5 + $0x4f0] sm:$0xff]
    %v8720 = vld [vmem:[#allocation5 + $0x4f8] sm:$0xff]
    %v8721 = vld [vmem:[#allocation5 + $0x500] sm:$0xff]
    %v8722 = vld [vmem:[#allocation5 + $0x508] sm:$0xff]
    %v8723 = vld [vmem:[#allocation5 + $0x510] sm:$0xff]
    %v8724 = vld [vmem:[#allocation5 + $0x518] sm:$0xff]
    %v8725 = vld [vmem:[#allocation5 + $0x520] sm:$0xff]
    %v8726 = vld [vmem:[#allocation5 + $0x528] sm:$0xff]
    %v8727 = vld [vmem:[#allocation5 + $0x530] sm:$0xff]
    %v8728 = vld [vmem:[#allocation5 + $0x538] sm:$0xff]
    %v8729 = vld [vmem:[#allocation5 + $0x540] sm:$0xff]
    %v8730 = vld [vmem:[#allocation5 + $0x548] sm:$0xff]
    %v8731 = vld [vmem:[#allocation5 + $0x550] sm:$0xff]
    %v8732 = vld [vmem:[#allocation5 + $0x558] sm:$0xff]
    %v8733 = vld [vmem:[#allocation5 + $0x560] sm:$0xff]
    %v8734 = vld [vmem:[#allocation5 + $0x568] sm:$0xff]
    %v8735 = vld [vmem:[#allocation5 + $0x570] sm:$0xff]
    %v8736 = vld [vmem:[#allocation5 + $0x578] sm:$0xff]
    %v8737 = vld [vmem:[#allocation5 + $0x580] sm:$0xff]
    %v8738 = vld [vmem:[#allocation5 + $0x588] sm:$0xff]
    %v8739 = vld [vmem:[#allocation5 + $0x590] sm:$0xff]
    %v8740 = vld [vmem:[#allocation5 + $0x598] sm:$0xff]
    %v8741 = vld [vmem:[#allocation5 + $0x5a0] sm:$0xff]
    %v8742 = vld [vmem:[#allocation5 + $0x5a8] sm:$0xff]
    %v8743 = vld [vmem:[#allocation5 + $0x5b0] sm:$0xff]
    %v8744 = vld [vmem:[#allocation5 + $0x5b8] sm:$0xff]
    %v8745 = vld [vmem:[#allocation5 + $0x5c0] sm:$0xff]
    %v8746 = vld [vmem:[#allocation5 + $0x5c8] sm:$0xff]
    %v8747 = vld [vmem:[#allocation5 + $0x5d0] sm:$0xff]
    %v8748 = vld [vmem:[#allocation5 + $0x5d8] sm:$0xff]
    %v8749 = vld [vmem:[#allocation5 + $0x5e0] sm:$0xff]
    %v8750 = vld [vmem:[#allocation5 + $0x5e8] sm:$0xff]
    %v8751 = vld [vmem:[#allocation5 + $0x5f0] sm:$0xff]
    %v8752 = vld [vmem:[#allocation5 + $0x5f8] sm:$0xff]
    %v8753 = vld [vmem:[#allocation5 + $0x600] sm:$0xff]
    %v8754 = vld [vmem:[#allocation5 + $0x608] sm:$0xff]
    %v8755 = vld [vmem:[#allocation5 + $0x610] sm:$0xff]
    %v8756 = vld [vmem:[#allocation5 + $0x618] sm:$0xff]
    %v8757 = vld [vmem:[#allocation5 + $0x620] sm:$0xff]
    %v8758 = vld [vmem:[#allocation5 + $0x628] sm:$0xff]
    %v8759 = vld [vmem:[#allocation5 + $0x630] sm:$0xff]
    %v8760 = vld [vmem:[#allocation5 + $0x638] sm:$0xff]
    %v8761 = vld [vmem:[#allocation5 + $0x640] sm:$0xff]
    %v8762 = vld [vmem:[#allocation5 + $0x648] sm:$0xff]
    %v8763 = vld [vmem:[#allocation5 + $0x650] sm:$0xff]
    %v8764 = vld [vmem:[#allocation5 + $0x658] sm:$0xff]
    %v8765 = vld [vmem:[#allocation5 + $0x660] sm:$0xff]
    %v8766 = vld [vmem:[#allocation5 + $0x668] sm:$0xff]
    %v8767 = vld [vmem:[#allocation5 + $0x670] sm:$0xff]
    %v8768 = vld [vmem:[#allocation5 + $0x678] sm:$0xff]
    %v8769 = vld [vmem:[#allocation5 + $0x680] sm:$0xff]
    %v8770 = vld [vmem:[#allocation5 + $0x688] sm:$0xff]
    %v8771 = vld [vmem:[#allocation5 + $0x690] sm:$0xff]
    %v8772 = vld [vmem:[#allocation5 + $0x698] sm:$0xff]
    %v8773 = vld [vmem:[#allocation5 + $0x6a0] sm:$0xff]
    %v8774 = vld [vmem:[#allocation5 + $0x6a8] sm:$0xff]
    %v8775 = vld [vmem:[#allocation5 + $0x6b0] sm:$0xff]
    %v8776 = vld [vmem:[#allocation5 + $0x6b8] sm:$0xff]
    %v8777 = vld [vmem:[#allocation5 + $0x6c0] sm:$0xff]
    %v8778 = vld [vmem:[#allocation5 + $0x6c8] sm:$0xff]
    %v8779 = vld [vmem:[#allocation5 + $0x6d0] sm:$0xff]
    %v8780 = vld [vmem:[#allocation5 + $0x6d8] sm:$0xff]
    %v8781 = vld [vmem:[#allocation5 + $0x6e0] sm:$0xff]
    %v8782 = vld [vmem:[#allocation5 + $0x6e8] sm:$0xff]
    %v8783 = vld [vmem:[#allocation5 + $0x6f0] sm:$0xff]
    %v8784 = vld [vmem:[#allocation5 + $0x6f8] sm:$0xff]
    %v8785 = vld [vmem:[#allocation5 + $0x700] sm:$0xff]
    %v8786 = vld [vmem:[#allocation5 + $0x708] sm:$0xff]
    %v8787 = vld [vmem:[#allocation5 + $0x710] sm:$0xff]
    %v8788 = vld [vmem:[#allocation5 + $0x718] sm:$0xff]
    %v8789 = vld [vmem:[#allocation5 + $0x720] sm:$0xff]
    %v8790 = vld [vmem:[#allocation5 + $0x728] sm:$0xff]
    %v8791 = vld [vmem:[#allocation5 + $0x730] sm:$0xff]
    %v8792 = vld [vmem:[#allocation5 + $0x738] sm:$0xff]
    %v8793 = vld [vmem:[#allocation5 + $0x740] sm:$0xff]
    %v8794 = vld [vmem:[#allocation5 + $0x748] sm:$0xff]
    %v8795 = vld [vmem:[#allocation5 + $0x750] sm:$0xff]
    %v8796 = vld [vmem:[#allocation5 + $0x758] sm:$0xff]
    %v8797 = vld [vmem:[#allocation5 + $0x760] sm:$0xff]
    %v8798 = vld [vmem:[#allocation5 + $0x768] sm:$0xff]
    %v8799 = vld [vmem:[#allocation5 + $0x770] sm:$0xff]
    %v8800 = vld [vmem:[#allocation5 + $0x778] sm:$0xff]
    %v8801 = vld [vmem:[#allocation5 + $0x780] sm:$0xff]
    %v8802 = vld [vmem:[#allocation5 + $0x788] sm:$0xff]
    %v8803 = vld [vmem:[#allocation5 + $0x790] sm:$0xff]
    %v8804 = vld [vmem:[#allocation5 + $0x798] sm:$0xff]
    %v8805 = vld [vmem:[#allocation5 + $0x7a0] sm:$0xff]
    %v8806 = vld [vmem:[#allocation5 + $0x7a8] sm:$0xff]
    %v8807 = vld [vmem:[#allocation5 + $0x7b0] sm:$0xff]
    %v8808 = vld [vmem:[#allocation5 + $0x7b8] sm:$0xff]
    %v8809 = vld [vmem:[#allocation5 + $0x7c0] sm:$0xff]
    %v8810 = vld [vmem:[#allocation5 + $0x7c8] sm:$0xff]
    %v8811 = vld [vmem:[#allocation5 + $0x7d0] sm:$0xff]
    %v8812 = vld [vmem:[#allocation5 + $0x7d8] sm:$0xff]
    %v8813 = vld [vmem:[#allocation5 + $0x7e0] sm:$0xff]
    %v8814 = vld [vmem:[#allocation5 + $0x7e8] sm:$0xff]
    %v8815 = vld [vmem:[#allocation5 + $0x7f0] sm:$0xff]
    %v8816 = vld [vmem:[#allocation5 + $0x7f8] sm:$0xff]
    %v8817 = vld [vmem:[#allocation5 + $0x800] sm:$0xff]
    %v8818 = vld [vmem:[#allocation5 + $0x808] sm:$0xff]
    %v8819 = vld [vmem:[#allocation5 + $0x810] sm:$0xff]
    %v8820 = vld [vmem:[#allocation5 + $0x818] sm:$0xff]
    %v8821 = vld [vmem:[#allocation5 + $0x820] sm:$0xff]
    %v8822 = vld [vmem:[#allocation5 + $0x828] sm:$0xff]
    %v8823 = vld [vmem:[#allocation5 + $0x830] sm:$0xff]
    %v8824 = vld [vmem:[#allocation5 + $0x838] sm:$0xff]
    %v8825 = vld [vmem:[#allocation5 + $0x840] sm:$0xff]
    %v8826 = vld [vmem:[#allocation5 + $0x848] sm:$0xff]
    %v8827 = vld [vmem:[#allocation5 + $0x850] sm:$0xff]
    %v8828 = vld [vmem:[#allocation5 + $0x858] sm:$0xff]
    %v8829 = vld [vmem:[#allocation5 + $0x860] sm:$0xff]
    %v8830 = vld [vmem:[#allocation5 + $0x868] sm:$0xff]
    %v8831 = vld [vmem:[#allocation5 + $0x870] sm:$0xff]
    %v8832 = vld [vmem:[#allocation5 + $0x878] sm:$0xff]
    %v8833 = vld [vmem:[#allocation5 + $0x880] sm:$0xff]
    %v8834 = vld [vmem:[#allocation5 + $0x888] sm:$0xff]
    %v8835 = vld [vmem:[#allocation5 + $0x890] sm:$0xff]
    %v8836 = vld [vmem:[#allocation5 + $0x898] sm:$0xff]
    %v8837 = vld [vmem:[#allocation5 + $0x8a0] sm:$0xff]
    %v8838 = vld [vmem:[#allocation5 + $0x8a8] sm:$0xff]
    %v8839 = vld [vmem:[#allocation5 + $0x8b0] sm:$0xff]
    %v8840 = vld [vmem:[#allocation5 + $0x8b8] sm:$0xff]
    %v8841 = vld [vmem:[#allocation5 + $0x8c0] sm:$0xff]
    %v8842 = vld [vmem:[#allocation5 + $0x8c8] sm:$0xff]
    %v8843 = vld [vmem:[#allocation5 + $0x8d0] sm:$0xff]
    %v8844 = vld [vmem:[#allocation5 + $0x8d8] sm:$0xff]
    %v8845 = vld [vmem:[#allocation5 + $0x8e0] sm:$0xff]
    %v8846 = vld [vmem:[#allocation5 + $0x8e8] sm:$0xff]
    %v8847 = vld [vmem:[#allocation5 + $0x8f0] sm:$0xff]
    %v8848 = vld [vmem:[#allocation5 + $0x8f8] sm:$0xff]
    %v8849 = vld [vmem:[#allocation7] sm:$0x3f]
    %v8851 = vlaneseq
    %v8852 = vshrl.u32 %v8851, 7
    %v8853 = vsub.s32 0, %v8852
    %v8854 = vrot.slane %v8849, %v8853
    %v8855 = vlaneseq
    %v8856 = vshrl.u32 %v8855, 7
    %v8857 = vsub.s32 1, %v8856
    %v8858 = vrot.slane %v8849, %v8857
    %v8859 = vlaneseq
    %v8860 = vshrl.u32 %v8859, 7
    %v8861 = vsub.s32 2, %v8860
    %v8862 = vrot.slane %v8849, %v8861
    %v8863 = vlaneseq
    %v8864 = vshrl.u32 %v8863, 7
    %v8865 = vsub.s32 3, %v8864
    %v8866 = vrot.slane %v8849, %v8865
    %v8867 = vlaneseq
    %v8868 = vshrl.u32 %v8867, 7
    %v8869 = vsub.s32 4, %v8868
    %v8870 = vrot.slane %v8849, %v8869
    %v8871 = vlaneseq
    %v8872 = vshrl.u32 %v8871, 7
    %v8873 = vsub.s32 5, %v8872
    %v8874 = vrot.slane %v8849, %v8873
    %v9169 = vunpack.c.l.b16 %v8561
    %v9170 = vunpack.c.h.b16 %v8561
    %v9171 = vunpack.c.l.b16 %v8562
    %v9172 = vunpack.c.h.b16 %v8562
    %v9173 = vunpack.c.l.b16 %v8563
    %v9174 = vunpack.c.h.b16 %v8563
    %v9175 = vunpack.c.l.b16 %v8564
    %v9176 = vunpack.c.h.b16 %v8564
    %v9177 = vunpack.c.l.b16 %v8565
    %v9178 = vunpack.c.h.b16 %v8565
    %v9179 = vunpack.c.l.b16 %v8566
    %v9180 = vunpack.c.h.b16 %v8566
    %v9181 = vunpack.c.l.b16 %v8567
    %v9182 = vunpack.c.h.b16 %v8567
    %v9183 = vunpack.c.l.b16 %v8568
    %v9184 = vunpack.c.h.b16 %v8568
    %v9185 = vunpack.c.l.b16 %v8569
    %v9186 = vunpack.c.h.b16 %v8569
    %v9187 = vunpack.c.l.b16 %v8570
    %v9188 = vunpack.c.h.b16 %v8570
    %v9189 = vunpack.c.l.b16 %v8571
    %v9190 = vunpack.c.h.b16 %v8571
    %v9191 = vunpack.c.l.b16 %v8572
    %v9192 = vunpack.c.h.b16 %v8572
    %v9193 = vunpack.c.l.b16 %v8573
    %v9194 = vunpack.c.h.b16 %v8573
    %v9195 = vunpack.c.l.b16 %v8574
    %v9196 = vunpack.c.h.b16 %v8574
    %v9197 = vunpack.c.l.b16 %v8575
    %v9198 = vunpack.c.h.b16 %v8575
    %v9199 = vunpack.c.l.b16 %v8576
    %v9200 = vunpack.c.h.b16 %v8576
    %v9201 = vunpack.c.l.b16 %v8577
    %v9202 = vunpack.c.h.b16 %v8577
    %v9203 = vunpack.c.l.b16 %v8578
    %v9204 = vunpack.c.h.b16 %v8578
    %v9205 = vunpack.c.l.b16 %v8579
    %v9206 = vunpack.c.h.b16 %v8579
    %v9207 = vunpack.c.l.b16 %v8580
    %v9208 = vunpack.c.h.b16 %v8580
    %v9209 = vunpack.c.l.b16 %v8581
    %v9210 = vunpack.c.h.b16 %v8581
    %v9211 = vunpack.c.l.b16 %v8582
    %v9212 = vunpack.c.h.b16 %v8582
    %v9213 = vunpack.c.l.b16 %v8583
    %v9214 = vunpack.c.h.b16 %v8583
    %v9215 = vunpack.c.l.b16 %v8584
    %v9216 = vunpack.c.h.b16 %v8584
    %v9217 = vunpack.c.l.b16 %v8585
    %v9218 = vunpack.c.h.b16 %v8585
    %v9219 = vunpack.c.l.b16 %v8586
    %v9220 = vunpack.c.h.b16 %v8586
    %v9221 = vunpack.c.l.b16 %v8587
    %v9222 = vunpack.c.h.b16 %v8587
    %v9223 = vunpack.c.l.b16 %v8588
    %v9224 = vunpack.c.h.b16 %v8588
    %v9225 = vunpack.c.l.b16 %v8589
    %v9226 = vunpack.c.h.b16 %v8589
    %v9227 = vunpack.c.l.b16 %v8590
    %v9228 = vunpack.c.h.b16 %v8590
    %v9229 = vunpack.c.l.b16 %v8591
    %v9230 = vunpack.c.h.b16 %v8591
    %v9231 = vunpack.c.l.b16 %v8592
    %v9232 = vunpack.c.h.b16 %v8592
    %v9233 = vunpack.c.l.b16 %v8593
    %v9234 = vunpack.c.h.b16 %v8593
    %v9235 = vunpack.c.l.b16 %v8594
    %v9236 = vunpack.c.h.b16 %v8594
    %v9237 = vunpack.c.l.b16 %v8595
    %v9238 = vunpack.c.h.b16 %v8595
    %v9239 = vunpack.c.l.b16 %v8596
    %v9240 = vunpack.c.h.b16 %v8596
    %v9241 = vunpack.c.l.b16 %v8597
    %v9242 = vunpack.c.h.b16 %v8597
    %v9243 = vunpack.c.l.b16 %v8598
    %v9244 = vunpack.c.h.b16 %v8598
    %v9245 = vunpack.c.l.b16 %v8599
    %v9246 = vunpack.c.h.b16 %v8599
    %v9247 = vunpack.c.l.b16 %v8600
    %v9248 = vunpack.c.h.b16 %v8600
    %v9249 = vunpack.c.l.b16 %v8601
    %v9250 = vunpack.c.h.b16 %v8601
    %v9251 = vunpack.c.l.b16 %v8602
    %v9252 = vunpack.c.h.b16 %v8602
    %v9253 = vunpack.c.l.b16 %v8603
    %v9254 = vunpack.c.h.b16 %v8603
    %v9255 = vunpack.c.l.b16 %v8604
    %v9256 = vunpack.c.h.b16 %v8604
    %v9257 = vunpack.c.l.b16 %v8605
    %v9258 = vunpack.c.h.b16 %v8605
    %v9259 = vunpack.c.l.b16 %v8606
    %v9260 = vunpack.c.h.b16 %v8606
    %v9261 = vunpack.c.l.b16 %v8607
    %v9262 = vunpack.c.h.b16 %v8607
    %v9263 = vunpack.c.l.b16 %v8608
    %v9264 = vunpack.c.h.b16 %v8608
    %v9265 = vunpack.c.l.b16 %v8609
    %v9266 = vunpack.c.h.b16 %v8609
    %v9267 = vunpack.c.l.b16 %v8610
    %v9268 = vunpack.c.h.b16 %v8610
    %v9269 = vunpack.c.l.b16 %v8611
    %v9270 = vunpack.c.h.b16 %v8611
    %v9271 = vunpack.c.l.b16 %v8612
    %v9272 = vunpack.c.h.b16 %v8612
    %v9273 = vunpack.c.l.b16 %v8613
    %v9274 = vunpack.c.h.b16 %v8613
    %v9275 = vunpack.c.l.b16 %v8614
    %v9276 = vunpack.c.h.b16 %v8614
    %v9277 = vunpack.c.l.b16 %v8615
    %v9278 = vunpack.c.h.b16 %v8615
    %v9279 = vunpack.c.l.b16 %v8616
    %v9280 = vunpack.c.h.b16 %v8616
    %v9281 = vunpack.c.l.b16 %v8617
    %v9282 = vunpack.c.h.b16 %v8617
    %v9283 = vunpack.c.l.b16 %v8618
    %v9284 = vunpack.c.h.b16 %v8618
    %v9285 = vunpack.c.l.b16 %v8619
    %v9286 = vunpack.c.h.b16 %v8619
    %v9287 = vunpack.c.l.b16 %v8620
    %v9288 = vunpack.c.h.b16 %v8620
    %v9289 = vunpack.c.l.b16 %v8621
    %v9290 = vunpack.c.h.b16 %v8621
    %v9291 = vunpack.c.l.b16 %v8622
    %v9292 = vunpack.c.h.b16 %v8622
    %v9293 = vunpack.c.l.b16 %v8623
    %v9294 = vunpack.c.h.b16 %v8623
    %v9295 = vunpack.c.l.b16 %v8624
    %v9296 = vunpack.c.h.b16 %v8624
    %v9297 = vunpack.c.l.b16 %v8625
    %v9298 = vunpack.c.h.b16 %v8625
    %v9299 = vunpack.c.l.b16 %v8626
    %v9300 = vunpack.c.h.b16 %v8626
    %v9301 = vunpack.c.l.b16 %v8627
    %v9302 = vunpack.c.h.b16 %v8627
    %v9303 = vunpack.c.l.b16 %v8628
    %v9304 = vunpack.c.h.b16 %v8628
    %v9305 = vunpack.c.l.b16 %v8629
    %v9306 = vunpack.c.h.b16 %v8629
    %v9307 = vunpack.c.l.b16 %v8630
    %v9308 = vunpack.c.h.b16 %v8630
    %v9309 = vunpack.c.l.b16 %v8631
    %v9310 = vunpack.c.h.b16 %v8631
    %v9311 = vunpack.c.l.b16 %v8632
    %v9312 = vunpack.c.h.b16 %v8632
    %v9313 = vunpack.c.l.b16 %v8633
    %v9314 = vunpack.c.h.b16 %v8633
    %v9315 = vunpack.c.l.b16 %v8634
    %v9316 = vunpack.c.h.b16 %v8634
    %v9317 = vunpack.c.l.b16 %v8635
    %v9318 = vunpack.c.h.b16 %v8635
    %v9319 = vunpack.c.l.b16 %v8636
    %v9320 = vunpack.c.h.b16 %v8636
    %v9321 = vunpack.c.l.b16 %v8637
    %v9322 = vunpack.c.h.b16 %v8637
    %v9323 = vunpack.c.l.b16 %v8638
    %v9324 = vunpack.c.h.b16 %v8638
    %v9325 = vunpack.c.l.b16 %v8639
    %v9326 = vunpack.c.h.b16 %v8639
    %v9327 = vunpack.c.l.b16 %v8640
    %v9328 = vunpack.c.h.b16 %v8640
    %v9329 = vunpack.c.l.b16 %v8641
    %v9330 = vunpack.c.h.b16 %v8641
    %v9331 = vunpack.c.l.b16 %v8642
    %v9332 = vunpack.c.h.b16 %v8642
    %v9333 = vunpack.c.l.b16 %v8643
    %v9334 = vunpack.c.h.b16 %v8643
    %v9335 = vunpack.c.l.b16 %v8644
    %v9336 = vunpack.c.h.b16 %v8644
    %v9337 = vunpack.c.l.b16 %v8645
    %v9338 = vunpack.c.h.b16 %v8645
    %v9339 = vunpack.c.l.b16 %v8646
    %v9340 = vunpack.c.h.b16 %v8646
    %v9341 = vunpack.c.l.b16 %v8647
    %v9342 = vunpack.c.h.b16 %v8647
    %v9343 = vunpack.c.l.b16 %v8648
    %v9344 = vunpack.c.h.b16 %v8648
    %v9345 = vunpack.c.l.b16 %v8649
    %v9346 = vunpack.c.h.b16 %v8649
    %v9347 = vunpack.c.l.b16 %v8650
    %v9348 = vunpack.c.h.b16 %v8650
    %v9349 = vunpack.c.l.b16 %v8651
    %v9350 = vunpack.c.h.b16 %v8651
    %v9351 = vunpack.c.l.b16 %v8652
    %v9352 = vunpack.c.h.b16 %v8652
    %v9353 = vunpack.c.l.b16 %v8653
    %v9354 = vunpack.c.h.b16 %v8653
    %v9355 = vunpack.c.l.b16 %v8654
    %v9356 = vunpack.c.h.b16 %v8654
    %v9357 = vunpack.c.l.b16 %v8655
    %v9358 = vunpack.c.h.b16 %v8655
    %v9359 = vunpack.c.l.b16 %v8656
    %v9360 = vunpack.c.h.b16 %v8656
    %v9361 = vunpack.c.l.b16 %v8657
    %v9362 = vunpack.c.h.b16 %v8657
    %v9363 = vunpack.c.l.b16 %v8658
    %v9364 = vunpack.c.h.b16 %v8658
    %v9365 = vunpack.c.l.b16 %v8659
    %v9366 = vunpack.c.h.b16 %v8659
    %v9367 = vunpack.c.l.b16 %v8660
    %v9368 = vunpack.c.h.b16 %v8660
    %v9369 = vunpack.c.l.b16 %v8661
    %v9370 = vunpack.c.h.b16 %v8661
    %v9371 = vunpack.c.l.b16 %v8662
    %v9372 = vunpack.c.h.b16 %v8662
    %v9373 = vunpack.c.l.b16 %v8663
    %v9374 = vunpack.c.h.b16 %v8663
    %v9375 = vunpack.c.l.b16 %v8664
    %v9376 = vunpack.c.h.b16 %v8664
    %v9377 = vunpack.c.l.b16 %v8665
    %v9378 = vunpack.c.h.b16 %v8665
    %v9379 = vunpack.c.l.b16 %v8666
    %v9380 = vunpack.c.h.b16 %v8666
    %v9381 = vunpack.c.l.b16 %v8667
    %v9382 = vunpack.c.h.b16 %v8667
    %v9383 = vunpack.c.l.b16 %v8668
    %v9384 = vunpack.c.h.b16 %v8668
    %v9385 = vunpack.c.l.b16 %v8669
    %v9386 = vunpack.c.h.b16 %v8669
    %v9387 = vunpack.c.l.b16 %v8670
    %v9388 = vunpack.c.h.b16 %v8670
    %v9389 = vunpack.c.l.b16 %v8671
    %v9390 = vunpack.c.h.b16 %v8671
    %v9391 = vunpack.c.l.b16 %v8672
    %v9392 = vunpack.c.h.b16 %v8672
    %v9393 = vunpack.c.l.b16 %v8673
    %v9394 = vunpack.c.h.b16 %v8673
    %v9395 = vunpack.c.l.b16 %v8674
    %v9396 = vunpack.c.h.b16 %v8674
    %v9397 = vunpack.c.l.b16 %v8675
    %v9398 = vunpack.c.h.b16 %v8675
    %v9399 = vunpack.c.l.b16 %v8676
    %v9400 = vunpack.c.h.b16 %v8676
    %v9401 = vunpack.c.l.b16 %v8677
    %v9402 = vunpack.c.h.b16 %v8677
    %v9403 = vunpack.c.l.b16 %v8678
    %v9404 = vunpack.c.h.b16 %v8678
    %v9405 = vunpack.c.l.b16 %v8679
    %v9406 = vunpack.c.h.b16 %v8679
    %v9407 = vunpack.c.l.b16 %v8680
    %v9408 = vunpack.c.h.b16 %v8680
    %v9409 = vunpack.c.l.b16 %v8681
    %v9410 = vunpack.c.h.b16 %v8681
    %v9411 = vunpack.c.l.b16 %v8682
    %v9412 = vunpack.c.h.b16 %v8682
    %v9413 = vunpack.c.l.b16 %v8683
    %v9414 = vunpack.c.h.b16 %v8683
    %v9415 = vunpack.c.l.b16 %v8684
    %v9416 = vunpack.c.h.b16 %v8684
    %v9417 = vunpack.c.l.b16 %v8685
    %v9418 = vunpack.c.h.b16 %v8685
    %v9419 = vunpack.c.l.b16 %v8686
    %v9420 = vunpack.c.h.b16 %v8686
    %v9421 = vunpack.c.l.b16 %v8687
    %v9422 = vunpack.c.h.b16 %v8687
    %v9423 = vunpack.c.l.b16 %v8688
    %v9424 = vunpack.c.h.b16 %v8688
    %v9425 = vunpack.c.l.b16 %v8689
    %v9426 = vunpack.c.h.b16 %v8689
    %v9427 = vunpack.c.l.b16 %v8690
    %v9428 = vunpack.c.h.b16 %v8690
    %v9429 = vunpack.c.l.b16 %v8691
    %v9430 = vunpack.c.h.b16 %v8691
    %v9431 = vunpack.c.l.b16 %v8692
    %v9432 = vunpack.c.h.b16 %v8692
    %v9433 = vunpack.c.l.b16 %v8693
    %v9434 = vunpack.c.h.b16 %v8693
    %v9435 = vunpack.c.l.b16 %v8694
    %v9436 = vunpack.c.h.b16 %v8694
    %v9437 = vunpack.c.l.b16 %v8695
    %v9438 = vunpack.c.h.b16 %v8695
    %v9439 = vunpack.c.l.b16 %v8696
    %v9440 = vunpack.c.h.b16 %v8696
    %v9441 = vunpack.c.l.b16 %v8697
    %v9442 = vunpack.c.h.b16 %v8697
    %v9443 = vunpack.c.l.b16 %v8698
    %v9444 = vunpack.c.h.b16 %v8698
    %v9445 = vunpack.c.l.b16 %v8699
    %v9446 = vunpack.c.h.b16 %v8699
    %v9447 = vunpack.c.l.b16 %v8700
    %v9448 = vunpack.c.h.b16 %v8700
    %v9449 = vunpack.c.l.b16 %v8701
    %v9450 = vunpack.c.h.b16 %v8701
    %v9451 = vunpack.c.l.b16 %v8702
    %v9452 = vunpack.c.h.b16 %v8702
    %v9453 = vunpack.c.l.b16 %v8703
    %v9454 = vunpack.c.h.b16 %v8703
    %v9455 = vunpack.c.l.b16 %v8704
    %v9456 = vunpack.c.h.b16 %v8704
    %v9457 = vunpack.c.l.b16 %v8705
    %v9458 = vunpack.c.h.b16 %v8705
    %v9459 = vunpack.c.l.b16 %v8706
    %v9460 = vunpack.c.h.b16 %v8706
    %v9461 = vunpack.c.l.b16 %v8707
    %v9462 = vunpack.c.h.b16 %v8707
    %v9463 = vunpack.c.l.b16 %v8708
    %v9464 = vunpack.c.h.b16 %v8708
    %v9465 = vunpack.c.l.b16 %v8709
    %v9466 = vunpack.c.h.b16 %v8709
    %v9467 = vunpack.c.l.b16 %v8710
    %v9468 = vunpack.c.h.b16 %v8710
    %v9469 = vunpack.c.l.b16 %v8711
    %v9470 = vunpack.c.h.b16 %v8711
    %v9471 = vunpack.c.l.b16 %v8712
    %v9472 = vunpack.c.h.b16 %v8712
    %v9473 = vunpack.c.l.b16 %v8713
    %v9474 = vunpack.c.h.b16 %v8713
    %v9475 = vunpack.c.l.b16 %v8714
    %v9476 = vunpack.c.h.b16 %v8714
    %v9477 = vunpack.c.l.b16 %v8715
    %v9478 = vunpack.c.h.b16 %v8715
    %v9479 = vunpack.c.l.b16 %v8716
    %v9480 = vunpack.c.h.b16 %v8716
    %v9481 = vunpack.c.l.b16 %v8717
    %v9482 = vunpack.c.h.b16 %v8717
    %v9483 = vunpack.c.l.b16 %v8718
    %v9484 = vunpack.c.h.b16 %v8718
    %v9485 = vunpack.c.l.b16 %v8719
    %v9486 = vunpack.c.h.b16 %v8719
    %v9487 = vunpack.c.l.b16 %v8720
    %v9488 = vunpack.c.h.b16 %v8720
    %v9489 = vunpack.c.l.b16 %v8721
    %v9490 = vunpack.c.h.b16 %v8721
    %v9491 = vunpack.c.l.b16 %v8722
    %v9492 = vunpack.c.h.b16 %v8722
    %v9493 = vunpack.c.l.b16 %v8723
    %v9494 = vunpack.c.h.b16 %v8723
    %v9495 = vunpack.c.l.b16 %v8724
    %v9496 = vunpack.c.h.b16 %v8724
    %v9497 = vunpack.c.l.b16 %v8725
    %v9498 = vunpack.c.h.b16 %v8725
    %v9499 = vunpack.c.l.b16 %v8726
    %v9500 = vunpack.c.h.b16 %v8726
    %v9501 = vunpack.c.l.b16 %v8727
    %v9502 = vunpack.c.h.b16 %v8727
    %v9503 = vunpack.c.l.b16 %v8728
    %v9504 = vunpack.c.h.b16 %v8728
    %v9505 = vunpack.c.l.b16 %v8729
    %v9506 = vunpack.c.h.b16 %v8729
    %v9507 = vunpack.c.l.b16 %v8730
    %v9508 = vunpack.c.h.b16 %v8730
    %v9509 = vunpack.c.l.b16 %v8731
    %v9510 = vunpack.c.h.b16 %v8731
    %v9511 = vunpack.c.l.b16 %v8732
    %v9512 = vunpack.c.h.b16 %v8732
    %v9513 = vunpack.c.l.b16 %v8733
    %v9514 = vunpack.c.h.b16 %v8733
    %v9515 = vunpack.c.l.b16 %v8734
    %v9516 = vunpack.c.h.b16 %v8734
    %v9517 = vunpack.c.l.b16 %v8735
    %v9518 = vunpack.c.h.b16 %v8735
    %v9519 = vunpack.c.l.b16 %v8736
    %v9520 = vunpack.c.h.b16 %v8736
    %v9521 = vunpack.c.l.b16 %v8737
    %v9522 = vunpack.c.h.b16 %v8737
    %v9523 = vunpack.c.l.b16 %v8738
    %v9524 = vunpack.c.h.b16 %v8738
    %v9525 = vunpack.c.l.b16 %v8739
    %v9526 = vunpack.c.h.b16 %v8739
    %v9527 = vunpack.c.l.b16 %v8740
    %v9528 = vunpack.c.h.b16 %v8740
    %v9529 = vunpack.c.l.b16 %v8741
    %v9530 = vunpack.c.h.b16 %v8741
    %v9531 = vunpack.c.l.b16 %v8742
    %v9532 = vunpack.c.h.b16 %v8742
    %v9533 = vunpack.c.l.b16 %v8743
    %v9534 = vunpack.c.h.b16 %v8743
    %v9535 = vunpack.c.l.b16 %v8744
    %v9536 = vunpack.c.h.b16 %v8744
    %v9537 = vunpack.c.l.b16 %v8745
    %v9538 = vunpack.c.h.b16 %v8745
    %v9539 = vunpack.c.l.b16 %v8746
    %v9540 = vunpack.c.h.b16 %v8746
    %v9541 = vunpack.c.l.b16 %v8747
    %v9542 = vunpack.c.h.b16 %v8747
    %v9543 = vunpack.c.l.b16 %v8748
    %v9544 = vunpack.c.h.b16 %v8748
    %v9545 = vunpack.c.l.b16 %v8749
    %v9546 = vunpack.c.h.b16 %v8749
    %v9547 = vunpack.c.l.b16 %v8750
    %v9548 = vunpack.c.h.b16 %v8750
    %v9549 = vunpack.c.l.b16 %v8751
    %v9550 = vunpack.c.h.b16 %v8751
    %v9551 = vunpack.c.l.b16 %v8752
    %v9552 = vunpack.c.h.b16 %v8752
    %v9553 = vunpack.c.l.b16 %v8753
    %v9554 = vunpack.c.h.b16 %v8753
    %v9555 = vunpack.c.l.b16 %v8754
    %v9556 = vunpack.c.h.b16 %v8754
    %v9557 = vunpack.c.l.b16 %v8755
    %v9558 = vunpack.c.h.b16 %v8755
    %v9559 = vunpack.c.l.b16 %v8756
    %v9560 = vunpack.c.h.b16 %v8756
    %v9561 = vunpack.c.l.b16 %v8757
    %v9562 = vunpack.c.h.b16 %v8757
    %v9563 = vunpack.c.l.b16 %v8758
    %v9564 = vunpack.c.h.b16 %v8758
    %v9565 = vunpack.c.l.b16 %v8759
    %v9566 = vunpack.c.h.b16 %v8759
    %v9567 = vunpack.c.l.b16 %v8760
    %v9568 = vunpack.c.h.b16 %v8760
    %v9569 = vunpack.c.l.b16 %v8761
    %v9570 = vunpack.c.h.b16 %v8761
    %v9571 = vunpack.c.l.b16 %v8762
    %v9572 = vunpack.c.h.b16 %v8762
    %v9573 = vunpack.c.l.b16 %v8763
    %v9574 = vunpack.c.h.b16 %v8763
    %v9575 = vunpack.c.l.b16 %v8764
    %v9576 = vunpack.c.h.b16 %v8764
    %v9577 = vunpack.c.l.b16 %v8765
    %v9578 = vunpack.c.h.b16 %v8765
    %v9579 = vunpack.c.l.b16 %v8766
    %v9580 = vunpack.c.h.b16 %v8766
    %v9581 = vunpack.c.l.b16 %v8767
    %v9582 = vunpack.c.h.b16 %v8767
    %v9583 = vunpack.c.l.b16 %v8768
    %v9584 = vunpack.c.h.b16 %v8768
    %v9585 = vunpack.c.l.b16 %v8769
    %v9586 = vunpack.c.h.b16 %v8769
    %v9587 = vunpack.c.l.b16 %v8770
    %v9588 = vunpack.c.h.b16 %v8770
    %v9589 = vunpack.c.l.b16 %v8771
    %v9590 = vunpack.c.h.b16 %v8771
    %v9591 = vunpack.c.l.b16 %v8772
    %v9592 = vunpack.c.h.b16 %v8772
    %v9593 = vunpack.c.l.b16 %v8773
    %v9594 = vunpack.c.h.b16 %v8773
    %v9595 = vunpack.c.l.b16 %v8774
    %v9596 = vunpack.c.h.b16 %v8774
    %v9597 = vunpack.c.l.b16 %v8775
    %v9598 = vunpack.c.h.b16 %v8775
    %v9599 = vunpack.c.l.b16 %v8776
    %v9600 = vunpack.c.h.b16 %v8776
    %v9601 = vunpack.c.l.b16 %v8777
    %v9602 = vunpack.c.h.b16 %v8777
    %v9603 = vunpack.c.l.b16 %v8778
    %v9604 = vunpack.c.h.b16 %v8778
    %v9605 = vunpack.c.l.b16 %v8779
    %v9606 = vunpack.c.h.b16 %v8779
    %v9607 = vunpack.c.l.b16 %v8780
    %v9608 = vunpack.c.h.b16 %v8780
    %v9609 = vunpack.c.l.b16 %v8781
    %v9610 = vunpack.c.h.b16 %v8781
    %v9611 = vunpack.c.l.b16 %v8782
    %v9612 = vunpack.c.h.b16 %v8782
    %v9613 = vunpack.c.l.b16 %v8783
    %v9614 = vunpack.c.h.b16 %v8783
    %v9615 = vunpack.c.l.b16 %v8784
    %v9616 = vunpack.c.h.b16 %v8784
    %v9617 = vunpack.c.l.b16 %v8785
    %v9618 = vunpack.c.h.b16 %v8785
    %v9619 = vunpack.c.l.b16 %v8786
    %v9620 = vunpack.c.h.b16 %v8786
    %v9621 = vunpack.c.l.b16 %v8787
    %v9622 = vunpack.c.h.b16 %v8787
    %v9623 = vunpack.c.l.b16 %v8788
    %v9624 = vunpack.c.h.b16 %v8788
    %v9625 = vunpack.c.l.b16 %v8789
    %v9626 = vunpack.c.h.b16 %v8789
    %v9627 = vunpack.c.l.b16 %v8790
    %v9628 = vunpack.c.h.b16 %v8790
    %v9629 = vunpack.c.l.b16 %v8791
    %v9630 = vunpack.c.h.b16 %v8791
    %v9631 = vunpack.c.l.b16 %v8792
    %v9632 = vunpack.c.h.b16 %v8792
    %v9633 = vunpack.c.l.b16 %v8793
    %v9634 = vunpack.c.h.b16 %v8793
    %v9635 = vunpack.c.l.b16 %v8794
    %v9636 = vunpack.c.h.b16 %v8794
    %v9637 = vunpack.c.l.b16 %v8795
    %v9638 = vunpack.c.h.b16 %v8795
    %v9639 = vunpack.c.l.b16 %v8796
    %v9640 = vunpack.c.h.b16 %v8796
    %v9641 = vunpack.c.l.b16 %v8797
    %v9642 = vunpack.c.h.b16 %v8797
    %v9643 = vunpack.c.l.b16 %v8798
    %v9644 = vunpack.c.h.b16 %v8798
    %v9645 = vunpack.c.l.b16 %v8799
    %v9646 = vunpack.c.h.b16 %v8799
    %v9647 = vunpack.c.l.b16 %v8800
    %v9648 = vunpack.c.h.b16 %v8800
    %v9649 = vunpack.c.l.b16 %v8801
    %v9650 = vunpack.c.h.b16 %v8801
    %v9651 = vunpack.c.l.b16 %v8802
    %v9652 = vunpack.c.h.b16 %v8802
    %v9653 = vunpack.c.l.b16 %v8803
    %v9654 = vunpack.c.h.b16 %v8803
    %v9655 = vunpack.c.l.b16 %v8804
    %v9656 = vunpack.c.h.b16 %v8804
    %v9657 = vunpack.c.l.b16 %v8805
    %v9658 = vunpack.c.h.b16 %v8805
    %v9659 = vunpack.c.l.b16 %v8806
    %v9660 = vunpack.c.h.b16 %v8806
    %v9661 = vunpack.c.l.b16 %v8807
    %v9662 = vunpack.c.h.b16 %v8807
    %v9663 = vunpack.c.l.b16 %v8808
    %v9664 = vunpack.c.h.b16 %v8808
    %v9665 = vunpack.c.l.b16 %v8809
    %v9666 = vunpack.c.h.b16 %v8809
    %v9667 = vunpack.c.l.b16 %v8810
    %v9668 = vunpack.c.h.b16 %v8810
    %v9669 = vunpack.c.l.b16 %v8811
    %v9670 = vunpack.c.h.b16 %v8811
    %v9671 = vunpack.c.l.b16 %v8812
    %v9672 = vunpack.c.h.b16 %v8812
    %v9673 = vunpack.c.l.b16 %v8813
    %v9674 = vunpack.c.h.b16 %v8813
    %v9675 = vunpack.c.l.b16 %v8814
    %v9676 = vunpack.c.h.b16 %v8814
    %v9677 = vunpack.c.l.b16 %v8815
    %v9678 = vunpack.c.h.b16 %v8815
    %v9679 = vunpack.c.l.b16 %v8816
    %v9680 = vunpack.c.h.b16 %v8816
    %v9681 = vunpack.c.l.b16 %v8817
    %v9682 = vunpack.c.h.b16 %v8817
    %v9683 = vunpack.c.l.b16 %v8818
    %v9684 = vunpack.c.h.b16 %v8818
    %v9685 = vunpack.c.l.b16 %v8819
    %v9686 = vunpack.c.h.b16 %v8819
    %v9687 = vunpack.c.l.b16 %v8820
    %v9688 = vunpack.c.h.b16 %v8820
    %v9689 = vunpack.c.l.b16 %v8821
    %v9690 = vunpack.c.h.b16 %v8821
    %v9691 = vunpack.c.l.b16 %v8822
    %v9692 = vunpack.c.h.b16 %v8822
    %v9693 = vunpack.c.l.b16 %v8823
    %v9694 = vunpack.c.h.b16 %v8823
    %v9695 = vunpack.c.l.b16 %v8824
    %v9696 = vunpack.c.h.b16 %v8824
    %v9697 = vunpack.c.l.b16 %v8825
    %v9698 = vunpack.c.h.b16 %v8825
    %v9699 = vunpack.c.l.b16 %v8826
    %v9700 = vunpack.c.h.b16 %v8826
    %v9701 = vunpack.c.l.b16 %v8827
    %v9702 = vunpack.c.h.b16 %v8827
    %v9703 = vunpack.c.l.b16 %v8828
    %v9704 = vunpack.c.h.b16 %v8828
    %v9705 = vunpack.c.l.b16 %v8829
    %v9706 = vunpack.c.h.b16 %v8829
    %v9707 = vunpack.c.l.b16 %v8830
    %v9708 = vunpack.c.h.b16 %v8830
    %v9709 = vunpack.c.l.b16 %v8831
    %v9710 = vunpack.c.h.b16 %v8831
    %v9711 = vunpack.c.l.b16 %v8832
    %v9712 = vunpack.c.h.b16 %v8832
    %v9713 = vunpack.c.l.b16 %v8833
    %v9714 = vunpack.c.h.b16 %v8833
    %v9715 = vunpack.c.l.b16 %v8834
    %v9716 = vunpack.c.h.b16 %v8834
    %v9717 = vunpack.c.l.b16 %v8835
    %v9718 = vunpack.c.h.b16 %v8835
    %v9719 = vunpack.c.l.b16 %v8836
    %v9720 = vunpack.c.h.b16 %v8836
    %v9721 = vunpack.c.l.b16 %v8837
    %v9722 = vunpack.c.h.b16 %v8837
    %v9723 = vunpack.c.l.b16 %v8838
    %v9724 = vunpack.c.h.b16 %v8838
    %v9725 = vunpack.c.l.b16 %v8839
    %v9726 = vunpack.c.h.b16 %v8839
    %v9727 = vunpack.c.l.b16 %v8840
    %v9728 = vunpack.c.h.b16 %v8840
    %v9729 = vunpack.c.l.b16 %v8841
    %v9730 = vunpack.c.h.b16 %v8841
    %v9731 = vunpack.c.l.b16 %v8842
    %v9732 = vunpack.c.h.b16 %v8842
    %v9733 = vunpack.c.l.b16 %v8843
    %v9734 = vunpack.c.h.b16 %v8843
    %v9735 = vunpack.c.l.b16 %v8844
    %v9736 = vunpack.c.h.b16 %v8844
    %v9737 = vunpack.c.l.b16 %v8845
    %v9738 = vunpack.c.h.b16 %v8845
    %v9739 = vunpack.c.l.b16 %v8846
    %v9740 = vunpack.c.h.b16 %v8846
    %v9741 = vunpack.c.l.b16 %v8847
    %v9742 = vunpack.c.h.b16 %v8847
    %v9743 = vunpack.c.l.b16 %v8848
    %v9744 = vunpack.c.h.b16 %v8848
    %v9745 = vpack.c.b16 %v9175, %v9169
    %v9746 = vpack.c.b16 %v9176, %v9170
    %v9747 = vpack.c.b16 %v9177, %v9171
    %v9748 = vpack.c.b16 %v9178, %v9172
    %v9749 = vpack.c.b16 %v9179, %v9173
    %v9750 = vpack.c.b16 %v9180, %v9174
    %v9751 = vpack.c.b16 %v9187, %v9181
    %v9752 = vpack.c.b16 %v9188, %v9182
    %v9753 = vpack.c.b16 %v9189, %v9183
    %v9754 = vpack.c.b16 %v9190, %v9184
    %v9755 = vpack.c.b16 %v9191, %v9185
    %v9756 = vpack.c.b16 %v9192, %v9186
    %v9757 = vpack.c.b16 %v9199, %v9193
    %v9758 = vpack.c.b16 %v9200, %v9194
    %v9759 = vpack.c.b16 %v9201, %v9195
    %v9760 = vpack.c.b16 %v9202, %v9196
    %v9761 = vpack.c.b16 %v9203, %v9197
    %v9762 = vpack.c.b16 %v9204, %v9198
    %v9763 = vpack.c.b16 %v9211, %v9205
    %v9764 = vpack.c.b16 %v9212, %v9206
    %v9765 = vpack.c.b16 %v9213, %v9207
    %v9766 = vpack.c.b16 %v9214, %v9208
    %v9767 = vpack.c.b16 %v9215, %v9209
    %v9768 = vpack.c.b16 %v9216, %v9210
    %v9769 = vpack.c.b16 %v9223, %v9217
    %v9770 = vpack.c.b16 %v9224, %v9218
    %v9771 = vpack.c.b16 %v9225, %v9219
    %v9772 = vpack.c.b16 %v9226, %v9220
    %v9773 = vpack.c.b16 %v9227, %v9221
    %v9774 = vpack.c.b16 %v9228, %v9222
    %v9775 = vpack.c.b16 %v9235, %v9229
    %v9776 = vpack.c.b16 %v9236, %v9230
    %v9777 = vpack.c.b16 %v9237, %v9231
    %v9778 = vpack.c.b16 %v9238, %v9232
    %v9779 = vpack.c.b16 %v9239, %v9233
    %v9780 = vpack.c.b16 %v9240, %v9234
    %v9781 = vpack.c.b16 %v9247, %v9241
    %v9782 = vpack.c.b16 %v9248, %v9242
    %v9783 = vpack.c.b16 %v9249, %v9243
    %v9784 = vpack.c.b16 %v9250, %v9244
    %v9785 = vpack.c.b16 %v9251, %v9245
    %v9786 = vpack.c.b16 %v9252, %v9246
    %v9787 = vpack.c.b16 %v9259, %v9253
    %v9788 = vpack.c.b16 %v9260, %v9254
    %v9789 = vpack.c.b16 %v9261, %v9255
    %v9790 = vpack.c.b16 %v9262, %v9256
    %v9791 = vpack.c.b16 %v9263, %v9257
    %v9792 = vpack.c.b16 %v9264, %v9258
    %v9793 = vpack.c.b16 %v9271, %v9265
    %v9794 = vpack.c.b16 %v9272, %v9266
    %v9795 = vpack.c.b16 %v9273, %v9267
    %v9796 = vpack.c.b16 %v9274, %v9268
    %v9797 = vpack.c.b16 %v9275, %v9269
    %v9798 = vpack.c.b16 %v9276, %v9270
    %v9799 = vpack.c.b16 %v9283, %v9277
    %v9800 = vpack.c.b16 %v9284, %v9278
    %v9801 = vpack.c.b16 %v9285, %v9279
    %v9802 = vpack.c.b16 %v9286, %v9280
    %v9803 = vpack.c.b16 %v9287, %v9281
    %v9804 = vpack.c.b16 %v9288, %v9282
    %v9805 = vpack.c.b16 %v9295, %v9289
    %v9806 = vpack.c.b16 %v9296, %v9290
    %v9807 = vpack.c.b16 %v9297, %v9291
    %v9808 = vpack.c.b16 %v9298, %v9292
    %v9809 = vpack.c.b16 %v9299, %v9293
    %v9810 = vpack.c.b16 %v9300, %v9294
    %v9811 = vpack.c.b16 %v9307, %v9301
    %v9812 = vpack.c.b16 %v9308, %v9302
    %v9813 = vpack.c.b16 %v9309, %v9303
    %v9814 = vpack.c.b16 %v9310, %v9304
    %v9815 = vpack.c.b16 %v9311, %v9305
    %v9816 = vpack.c.b16 %v9312, %v9306
    %v9817 = vpack.c.b16 %v9319, %v9313
    %v9818 = vpack.c.b16 %v9320, %v9314
    %v9819 = vpack.c.b16 %v9321, %v9315
    %v9820 = vpack.c.b16 %v9322, %v9316
    %v9821 = vpack.c.b16 %v9323, %v9317
    %v9822 = vpack.c.b16 %v9324, %v9318
    %v9823 = vpack.c.b16 %v9331, %v9325
    %v9824 = vpack.c.b16 %v9332, %v9326
    %v9825 = vpack.c.b16 %v9333, %v9327
    %v9826 = vpack.c.b16 %v9334, %v9328
    %v9827 = vpack.c.b16 %v9335, %v9329
    %v9828 = vpack.c.b16 %v9336, %v9330
    %v9829 = vpack.c.b16 %v9343, %v9337
    %v9830 = vpack.c.b16 %v9344, %v9338
    %v9831 = vpack.c.b16 %v9345, %v9339
    %v9832 = vpack.c.b16 %v9346, %v9340
    %v9833 = vpack.c.b16 %v9347, %v9341
    %v9834 = vpack.c.b16 %v9348, %v9342
    %v9835 = vpack.c.b16 %v9355, %v9349
    %v9836 = vpack.c.b16 %v9356, %v9350
    %v9837 = vpack.c.b16 %v9357, %v9351
    %v9838 = vpack.c.b16 %v9358, %v9352
    %v9839 = vpack.c.b16 %v9359, %v9353
    %v9840 = vpack.c.b16 %v9360, %v9354
    %v9841 = vpack.c.b16 %v9367, %v9361
    %v9842 = vpack.c.b16 %v9368, %v9362
    %v9843 = vpack.c.b16 %v9369, %v9363
    %v9844 = vpack.c.b16 %v9370, %v9364
    %v9845 = vpack.c.b16 %v9371, %v9365
    %v9846 = vpack.c.b16 %v9372, %v9366
    %v9847 = vpack.c.b16 %v9379, %v9373
    %v9848 = vpack.c.b16 %v9380, %v9374
    %v9849 = vpack.c.b16 %v9381, %v9375
    %v9850 = vpack.c.b16 %v9382, %v9376
    %v9851 = vpack.c.b16 %v9383, %v9377
    %v9852 = vpack.c.b16 %v9384, %v9378
    %v9853 = vpack.c.b16 %v9391, %v9385
    %v9854 = vpack.c.b16 %v9392, %v9386
    %v9855 = vpack.c.b16 %v9393, %v9387
    %v9856 = vpack.c.b16 %v9394, %v9388
    %v9857 = vpack.c.b16 %v9395, %v9389
    %v9858 = vpack.c.b16 %v9396, %v9390
    %v9859 = vpack.c.b16 %v9403, %v9397
    %v9860 = vpack.c.b16 %v9404, %v9398
    %v9861 = vpack.c.b16 %v9405, %v9399
    %v9862 = vpack.c.b16 %v9406, %v9400
    %v9863 = vpack.c.b16 %v9407, %v9401
    %v9864 = vpack.c.b16 %v9408, %v9402
    %v9865 = vpack.c.b16 %v9415, %v9409
    %v9866 = vpack.c.b16 %v9416, %v9410
    %v9867 = vpack.c.b16 %v9417, %v9411
    %v9868 = vpack.c.b16 %v9418, %v9412
    %v9869 = vpack.c.b16 %v9419, %v9413
    %v9870 = vpack.c.b16 %v9420, %v9414
    %v9871 = vpack.c.b16 %v9427, %v9421
    %v9872 = vpack.c.b16 %v9428, %v9422
    %v9873 = vpack.c.b16 %v9429, %v9423
    %v9874 = vpack.c.b16 %v9430, %v9424
    %v9875 = vpack.c.b16 %v9431, %v9425
    %v9876 = vpack.c.b16 %v9432, %v9426
    %v9877 = vpack.c.b16 %v9439, %v9433
    %v9878 = vpack.c.b16 %v9440, %v9434
    %v9879 = vpack.c.b16 %v9441, %v9435
    %v9880 = vpack.c.b16 %v9442, %v9436
    %v9881 = vpack.c.b16 %v9443, %v9437
    %v9882 = vpack.c.b16 %v9444, %v9438
    %v9883 = vpack.c.b16 %v9451, %v9445
    %v9884 = vpack.c.b16 %v9452, %v9446
    %v9885 = vpack.c.b16 %v9453, %v9447
    %v9886 = vpack.c.b16 %v9454, %v9448
    %v9887 = vpack.c.b16 %v9455, %v9449
    %v9888 = vpack.c.b16 %v9456, %v9450
    %v9889 = vpack.c.b16 %v9463, %v9457
    %v9890 = vpack.c.b16 %v9464, %v9458
    %v9891 = vpack.c.b16 %v9465, %v9459
    %v9892 = vpack.c.b16 %v9466, %v9460
    %v9893 = vpack.c.b16 %v9467, %v9461
    %v9894 = vpack.c.b16 %v9468, %v9462
    %v9895 = vpack.c.b16 %v9475, %v9469
    %v9896 = vpack.c.b16 %v9476, %v9470
    %v9897 = vpack.c.b16 %v9477, %v9471
    %v9898 = vpack.c.b16 %v9478, %v9472
    %v9899 = vpack.c.b16 %v9479, %v9473
    %v9900 = vpack.c.b16 %v9480, %v9474
    %v9901 = vpack.c.b16 %v9487, %v9481
    %v9902 = vpack.c.b16 %v9488, %v9482
    %v9903 = vpack.c.b16 %v9489, %v9483
    %v9904 = vpack.c.b16 %v9490, %v9484
    %v9905 = vpack.c.b16 %v9491, %v9485
    %v9906 = vpack.c.b16 %v9492, %v9486
    %v9907 = vpack.c.b16 %v9499, %v9493
    %v9908 = vpack.c.b16 %v9500, %v9494
    %v9909 = vpack.c.b16 %v9501, %v9495
    %v9910 = vpack.c.b16 %v9502, %v9496
    %v9911 = vpack.c.b16 %v9503, %v9497
    %v9912 = vpack.c.b16 %v9504, %v9498
    %v9913 = vpack.c.b16 %v9511, %v9505
    %v9914 = vpack.c.b16 %v9512, %v9506
    %v9915 = vpack.c.b16 %v9513, %v9507
    %v9916 = vpack.c.b16 %v9514, %v9508
    %v9917 = vpack.c.b16 %v9515, %v9509
    %v9918 = vpack.c.b16 %v9516, %v9510
    %v9919 = vpack.c.b16 %v9523, %v9517
    %v9920 = vpack.c.b16 %v9524, %v9518
    %v9921 = vpack.c.b16 %v9525, %v9519
    %v9922 = vpack.c.b16 %v9526, %v9520
    %v9923 = vpack.c.b16 %v9527, %v9521
    %v9924 = vpack.c.b16 %v9528, %v9522
    %v9925 = vpack.c.b16 %v9535, %v9529
    %v9926 = vpack.c.b16 %v9536, %v9530
    %v9927 = vpack.c.b16 %v9537, %v9531
    %v9928 = vpack.c.b16 %v9538, %v9532
    %v9929 = vpack.c.b16 %v9539, %v9533
    %v9930 = vpack.c.b16 %v9540, %v9534
    %v9931 = vpack.c.b16 %v9547, %v9541
    %v9932 = vpack.c.b16 %v9548, %v9542
    %v9933 = vpack.c.b16 %v9549, %v9543
    %v9934 = vpack.c.b16 %v9550, %v9544
    %v9935 = vpack.c.b16 %v9551, %v9545
    %v9936 = vpack.c.b16 %v9552, %v9546
    %v9937 = vpack.c.b16 %v9559, %v9553
    %v9938 = vpack.c.b16 %v9560, %v9554
    %v9939 = vpack.c.b16 %v9561, %v9555
    %v9940 = vpack.c.b16 %v9562, %v9556
    %v9941 = vpack.c.b16 %v9563, %v9557
    %v9942 = vpack.c.b16 %v9564, %v9558
    %v9943 = vpack.c.b16 %v9571, %v9565
    %v9944 = vpack.c.b16 %v9572, %v9566
    %v9945 = vpack.c.b16 %v9573, %v9567
    %v9946 = vpack.c.b16 %v9574, %v9568
    %v9947 = vpack.c.b16 %v9575, %v9569
    %v9948 = vpack.c.b16 %v9576, %v9570
    %v9949 = vpack.c.b16 %v9583, %v9577
    %v9950 = vpack.c.b16 %v9584, %v9578
    %v9951 = vpack.c.b16 %v9585, %v9579
    %v9952 = vpack.c.b16 %v9586, %v9580
    %v9953 = vpack.c.b16 %v9587, %v9581
    %v9954 = vpack.c.b16 %v9588, %v9582
    %v9955 = vpack.c.b16 %v9595, %v9589
    %v9956 = vpack.c.b16 %v9596, %v9590
    %v9957 = vpack.c.b16 %v9597, %v9591
    %v9958 = vpack.c.b16 %v9598, %v9592
    %v9959 = vpack.c.b16 %v9599, %v9593
    %v9960 = vpack.c.b16 %v9600, %v9594
    %v9961 = vpack.c.b16 %v9607, %v9601
    %v9962 = vpack.c.b16 %v9608, %v9602
    %v9963 = vpack.c.b16 %v9609, %v9603
    %v9964 = vpack.c.b16 %v9610, %v9604
    %v9965 = vpack.c.b16 %v9611, %v9605
    %v9966 = vpack.c.b16 %v9612, %v9606
    %v9967 = vpack.c.b16 %v9619, %v9613
    %v9968 = vpack.c.b16 %v9620, %v9614
    %v9969 = vpack.c.b16 %v9621, %v9615
    %v9970 = vpack.c.b16 %v9622, %v9616
    %v9971 = vpack.c.b16 %v9623, %v9617
    %v9972 = vpack.c.b16 %v9624, %v9618
    %v9973 = vpack.c.b16 %v9631, %v9625
    %v9974 = vpack.c.b16 %v9632, %v9626
    %v9975 = vpack.c.b16 %v9633, %v9627
    %v9976 = vpack.c.b16 %v9634, %v9628
    %v9977 = vpack.c.b16 %v9635, %v9629
    %v9978 = vpack.c.b16 %v9636, %v9630
    %v9979 = vpack.c.b16 %v9643, %v9637
    %v9980 = vpack.c.b16 %v9644, %v9638
    %v9981 = vpack.c.b16 %v9645, %v9639
    %v9982 = vpack.c.b16 %v9646, %v9640
    %v9983 = vpack.c.b16 %v9647, %v9641
    %v9984 = vpack.c.b16 %v9648, %v9642
    %v9985 = vpack.c.b16 %v9655, %v9649
    %v9986 = vpack.c.b16 %v9656, %v9650
    %v9987 = vpack.c.b16 %v9657, %v9651
    %v9988 = vpack.c.b16 %v9658, %v9652
    %v9989 = vpack.c.b16 %v9659, %v9653
    %v9990 = vpack.c.b16 %v9660, %v9654
    %v9991 = vpack.c.b16 %v9667, %v9661
    %v9992 = vpack.c.b16 %v9668, %v9662
    %v9993 = vpack.c.b16 %v9669, %v9663
    %v9994 = vpack.c.b16 %v9670, %v9664
    %v9995 = vpack.c.b16 %v9671, %v9665
    %v9996 = vpack.c.b16 %v9672, %v9666
    %v9997 = vpack.c.b16 %v9679, %v9673
    %v9998 = vpack.c.b16 %v9680, %v9674
    %v9999 = vpack.c.b16 %v9681, %v9675
    %v10000 = vpack.c.b16 %v9682, %v9676
    %v10001 = vpack.c.b16 %v9683, %v9677
    %v10002 = vpack.c.b16 %v9684, %v9678
    %v10003 = vpack.c.b16 %v9691, %v9685
    %v10004 = vpack.c.b16 %v9692, %v9686
    %v10005 = vpack.c.b16 %v9693, %v9687
    %v10006 = vpack.c.b16 %v9694, %v9688
    %v10007 = vpack.c.b16 %v9695, %v9689
    %v10008 = vpack.c.b16 %v9696, %v9690
    %v10009 = vpack.c.b16 %v9703, %v9697
    %v10010 = vpack.c.b16 %v9704, %v9698
    %v10011 = vpack.c.b16 %v9705, %v9699
    %v10012 = vpack.c.b16 %v9706, %v9700
    %v10013 = vpack.c.b16 %v9707, %v9701
    %v10014 = vpack.c.b16 %v9708, %v9702
    %v10015 = vpack.c.b16 %v9715, %v9709
    %v10016 = vpack.c.b16 %v9716, %v9710
    %v10017 = vpack.c.b16 %v9717, %v9711
    %v10018 = vpack.c.b16 %v9718, %v9712
    %v10019 = vpack.c.b16 %v9719, %v9713
    %v10020 = vpack.c.b16 %v9720, %v9714
    %v10021 = vpack.c.b16 %v9727, %v9721
    %v10022 = vpack.c.b16 %v9728, %v9722
    %v10023 = vpack.c.b16 %v9729, %v9723
    %v10024 = vpack.c.b16 %v9730, %v9724
    %v10025 = vpack.c.b16 %v9731, %v9725
    %v10026 = vpack.c.b16 %v9732, %v9726
    %v10027 = vpack.c.b16 %v9739, %v9733
    %v10028 = vpack.c.b16 %v9740, %v9734
    %v10029 = vpack.c.b16 %v9741, %v9735
    %v10030 = vpack.c.b16 %v9742, %v9736
    %v10031 = vpack.c.b16 %v9743, %v9737
    %v10032 = vpack.c.b16 %v9744, %v9738
    %10321 = vmatprep.subr.bf16.mxu0 %v9746
    %10322 = vmatpush1.bf16.msra.mxu0 %v9745
    %10323 = vmatprep.subr.bf16.mxu0 %v9752
    %10324 = vmatpush1.bf16.msra.mxu0 %v9751
    %10325 = vmatprep.subr.bf16.mxu0 %v9758
    %10326 = vmatpush1.bf16.msra.mxu0 %v9757
    %10327 = vmatprep.subr.bf16.mxu0 %v9764
    %10328 = vmatpush1.bf16.msra.mxu0 %v9763
    %10329 = vmatprep.subr.bf16.mxu0 %v9770
    %10330 = vmatpush1.bf16.msra.mxu0 %v9769
    %10331 = vmatprep.subr.bf16.mxu0 %v9776
    %10332 = vmatpush1.bf16.msra.mxu0 %v9775
    %10333 = vmatprep.subr.bf16.mxu0 %v9782
    %10334 = vmatpush1.bf16.msra.mxu0 %v9781
    %10335 = vmatprep.subr.bf16.mxu0 %v9788
    %10336 = vmatpush1.bf16.msra.mxu0 %v9787
    %10337 = vmatprep.subr.bf16.mxu0 %v9794
    %10338 = vmatpush1.bf16.msra.mxu0 %v9793
    %10339 = vmatprep.subr.bf16.mxu0 %v9800
    %10340 = vmatpush1.bf16.msra.mxu0 %v9799
    %10341 = vmatprep.subr.bf16.mxu0 %v9806
    %10342 = vmatpush1.bf16.msra.mxu0 %v9805
    %10343 = vmatprep.subr.bf16.mxu0 %v9812
    %10344 = vmatpush1.bf16.msra.mxu0 %v9811
    %10345 = vmatprep.subr.bf16.mxu0 %v9818
    %10346 = vmatpush1.bf16.msra.mxu0 %v9817
    %10347 = vmatprep.subr.bf16.mxu0 %v9824
    %10348 = vmatpush1.bf16.msra.mxu0 %v9823
    %10349 = vmatprep.subr.bf16.mxu0 %v9830
    %10350 = vmatpush1.bf16.msra.mxu0 %v9829
    %10351 = vmatprep.subr.bf16.mxu0 %v9836
    %10352 = vmatpush1.bf16.msra.mxu0 %v9835
    %10353 = vmatprep.mubr.bf16.mxu0 %v8514
    %10354 = vmatmul.mubr.bf16.gmra.mrb[0].mxu0 %v8513
    %v10355 = vpop.f32.mrb[0].mxu0
    %v10356 = vadd.f32 %v8854, %v10355
    %v10357 = vpop.f32.mrb[0].mxu0
    %v10358 = vadd.f32 %v8858, %v10357
    %v10359 = vpop.f32.mrb[0].mxu0
    %v10360 = vadd.f32 %v8854, %v10359
    %v10361 = vpop.f32.mrb[0].mxu0
    %v10362 = vadd.f32 %v8858, %v10361
    %10363 = vmatprep.mubr.bf16.mxu0 %v8520
    %10364 = vmatmul.mubr.bf16.gmra.mrb[0].mxu0 %v8519
    %v10365 = vpop.f32.mrb[0].mxu0
    %v10366 = vadd.f32 %v8854, %v10365
    %v10367 = vpop.f32.mrb[0].mxu0
    %v10368 = vadd.f32 %v8858, %v10367
    %v10369 = vpop.f32.mrb[0].mxu0
    %v10370 = vadd.f32 %v8854, %v10369
    %v10371 = vpop.f32.mrb[0].mxu0
    %v10372 = vadd.f32 %v8858, %v10371
    %10373 = vmatprep.mubr.bf16.mxu0 %v8526
    %10374 = vmatmul.mubr.bf16.gmra.mrb[0].mxu0 %v8525
    %v10375 = vpop.f32.mrb[0].mxu0
    %v10376 = vadd.f32 %v8854, %v10375
    %v10377 = vpop.f32.mrb[0].mxu0
    %v10378 = vadd.f32 %v8858, %v10377
    %v10379 = vpop.f32.mrb[0].mxu0
    %v10380 = vadd.f32 %v8854, %v10379
    %v10381 = vpop.f32.mrb[0].mxu0
    %v10382 = vadd.f32 %v8858, %v10381
    %10383 = vmatprep.mubr.bf16.mxu0 %v8532
    %10384 = vmatmul.mubr.bf16.gmra.mrb[0].mxu0 %v8531
    %v10385 = vpop.f32.mrb[0].mxu0
    %v10386 = vadd.f32 %v8854, %v10385
    %v10387 = vpop.f32.mrb[0].mxu0
    %v10388 = vadd.f32 %v8858, %v10387
    %v10389 = vpop.f32.mrb[0].mxu0
    %v10390 = vadd.f32 %v8854, %v10389
    %v10391 = vpop.f32.mrb[0].mxu0
    %v10392 = vadd.f32 %v8858, %v10391
    %10393 = vmatprep.mubr.bf16.mxu0 %v8538
    %10394 = vmatmul.mubr.bf16.gmra.mrb[0].mxu0 %v8537
    %v10395 = vpop.f32.mrb[0].mxu0
    %v10396 = vadd.f32 %v8854, %v10395
    %v10397 = vpop.f32.mrb[0].mxu0
    %v10398 = vadd.f32 %v8858, %v10397
    %v10399 = vpop.f32.mrb[0].mxu0
    %v10400 = vadd.f32 %v8854, %v10399
    %v10401 = vpop.f32.mrb[0].mxu0
    %v10402 = vadd.f32 %v8858, %v10401
    %10403 = vmatprep.mubr.bf16.mxu0 %v8544
    %10404 = vmatmul.mubr.bf16.gmra.mrb[0].mxu0 %v8543
    %v10405 = vpop.f32.mrb[0].mxu0
    %v10406 = vadd.f32 %v8854, %v10405
    %v10407 = vpop.f32.mrb[0].mxu0
    %v10408 = vadd.f32 %v8858, %v10407
    %v10409 = vpop.f32.mrb[0].mxu0
    %v10410 = vadd.f32 %v8854, %v10409
    %v10411 = vpop.f32.mrb[0].mxu0
    %v10412 = vadd.f32 %v8858, %v10411
    %10413 = vmatprep.mubr.bf16.mxu0 %v8550
    %10414 = vmatmul.mubr.bf16.gmra.mrb[0].mxu0 %v8549
    %v10415 = vpop.f32.mrb[0].mxu0
    %v10416 = vadd.f32 %v8854, %v10415
    %v10417 = vpop.f32.mrb[0].mxu0
    %v10418 = vadd.f32 %v8858, %v10417
    %v10419 = vpop.f32.mrb[0].mxu0
    %v10420 = vadd.f32 %v8854, %v10419
    %v10421 = vpop.f32.mrb[0].mxu0
    %v10422 = vadd.f32 %v8858, %v10421
    %10423 = vmatprep.mubr.bf16.mxu0 %v8556
    %10424 = vmatmul.mubr.bf16.gmra.mrb[0].mxu0 %v8555
    %v10425 = vpop.f32.mrb[0].mxu0
    %v10426 = vadd.f32 %v8854, %v10425
    %v10427 = vpop.f32.mrb[0].mxu0
    %v10428 = vadd.f32 %v8858, %v10427
    %v10429 = vpop.f32.mrb[0].mxu0
    %v10430 = vadd.f32 %v8854, %v10429
    %v10431 = vpop.f32.mrb[0].mxu0
    %v10432 = vadd.f32 %v8858, %v10431
    %10433 = vdwg.mxu0
    %10434 = vmatprep.subr.bf16.mxu0 %v9842
    %10435 = vmatpush1.bf16.msra.mxu0 %v9841
    %10436 = vmatprep.subr.bf16.mxu0 %v9848
    %10437 = vmatpush1.bf16.msra.mxu0 %v9847
    %10438 = vmatprep.subr.bf16.mxu0 %v9854
    %10439 = vmatpush1.bf16.msra.mxu0 %v9853
    %10440 = vmatprep.subr.bf16.mxu0 %v9860
    %10441 = vmatpush1.bf16.msra.mxu0 %v9859
    %10442 = vmatprep.subr.bf16.mxu0 %v9866
    %10443 = vmatpush1.bf16.msra.mxu0 %v9865
    %10444 = vmatprep.subr.bf16.mxu0 %v9872
    %10445 = vmatpush1.bf16.msra.mxu0 %v9871
    %10446 = vmatprep.subr.bf16.mxu0 %v9878
    %10447 = vmatpush1.bf16.msra.mxu0 %v9877
    %10448 = vmatprep.subr.bf16.mxu0 %v9884
    %10449 = vmatpush1.bf16.msra.mxu0 %v9883
    %10450 = vmatprep.subr.bf16.mxu0 %v9890
    %10451 = vmatpush1.bf16.msra.mxu0 %v9889
    %10452 = vmatprep.subr.bf16.mxu0 %v9896
    %10453 = vmatpush1.bf16.msra.mxu0 %v9895
    %10454 = vmatprep.subr.bf16.mxu0 %v9902
    %10455 = vmatpush1.bf16.msra.mxu0 %v9901
    %10456 = vmatprep.subr.bf16.mxu0 %v9908
    %10457 = vmatpush1.bf16.msra.mxu0 %v9907
    %10458 = vmatprep.subr.bf16.mxu0 %v9914
    %10459 = vmatpush1.bf16.msra.mxu0 %v9913
    %10460 = vmatprep.subr.bf16.mxu0 %v9920
    %10461 = vmatpush1.bf16.msra.mxu0 %v9919
    %10462 = vmatprep.subr.bf16.mxu0 %v9926
    %10463 = vmatpush1.bf16.msra.mxu0 %v9925
    %10464 = vmatprep.subr.bf16.mxu0 %v9932
    %10465 = vmatpush1.bf16.msra.mxu0 %v9931
    %10466 = vmatprep.mubr.bf16.mxu0 %v8516
    %10467 = vmatmul.mubr.bf16.gmra.mrb[0].mxu0 %v8515
    %v10468 = vpop.f32.mrb[0].mxu0
    %v10469 = vadd.f32 %v10356, %v10468
    %v10470 = vpop.f32.mrb[0].mxu0
    %v10471 = vadd.f32 %v10358, %v10470
    %v10472 = vpop.f32.mrb[0].mxu0
    %v10473 = vadd.f32 %v10360, %v10472
    %v10474 = vpop.f32.mrb[0].mxu0
    %v10475 = vadd.f32 %v10362, %v10474
    %10476 = vmatprep.mubr.bf16.mxu0 %v8522
    %10477 = vmatmul.mubr.bf16.gmra.mrb[0].mxu0 %v8521
    %v10478 = vpop.f32.mrb[0].mxu0
    %v10479 = vadd.f32 %v10366, %v10478
    %v10480 = vpop.f32.mrb[0].mxu0
    %v10481 = vadd.f32 %v10368, %v10480
    %v10482 = vpop.f32.mrb[0].mxu0
    %v10483 = vadd.f32 %v10370, %v10482
    %v10484 = vpop.f32.mrb[0].mxu0
    %v10485 = vadd.f32 %v10372, %v10484
    %10486 = vmatprep.mubr.bf16.mxu0 %v8528
    %10487 = vmatmul.mubr.bf16.gmra.mrb[0].mxu0 %v8527
    %v10488 = vpop.f32.mrb[0].mxu0
    %v10489 = vadd.f32 %v10376, %v10488
    %v10490 = vpop.f32.mrb[0].mxu0
    %v10491 = vadd.f32 %v10378, %v10490
    %v10492 = vpop.f32.mrb[0].mxu0
    %v10493 = vadd.f32 %v10380, %v10492
    %v10494 = vpop.f32.mrb[0].mxu0
    %v10495 = vadd.f32 %v10382, %v10494
    %10496 = vmatprep.mubr.bf16.mxu0 %v8534
    %10497 = vmatmul.mubr.bf16.gmra.mrb[0].mxu0 %v8533
    %v10498 = vpop.f32.mrb[0].mxu0
    %v10499 = vadd.f32 %v10386, %v10498
    %v10500 = vpop.f32.mrb[0].mxu0
    %v10501 = vadd.f32 %v10388, %v10500
    %v10502 = vpop.f32.mrb[0].mxu0
    %v10503 = vadd.f32 %v10390, %v10502
    %v10504 = vpop.f32.mrb[0].mxu0
    %v10505 = vadd.f32 %v10392, %v10504
    %10506 = vmatprep.mubr.bf16.mxu0 %v8540
    %10507 = vmatmul.mubr.bf16.gmra.mrb[0].mxu0 %v8539
    %v10508 = vpop.f32.mrb[0].mxu0
    %v10509 = vadd.f32 %v10396, %v10508
    %v10510 = vpop.f32.mrb[0].mxu0
    %v10511 = vadd.f32 %v10398, %v10510
    %v10512 = vpop.f32.mrb[0].mxu0
    %v10513 = vadd.f32 %v10400, %v10512
    %v10514 = vpop.f32.mrb[0].mxu0
    %v10515 = vadd.f32 %v10402, %v10514
    %10516 = vmatprep.mubr.bf16.mxu0 %v8546
    %10517 = vmatmul.mubr.bf16.gmra.mrb[0].mxu0 %v8545
    %v10518 = vpop.f32.mrb[0].mxu0
    %v10519 = vadd.f32 %v10406, %v10518
    %v10520 = vpop.f32.mrb[0].mxu0
    %v10521 = vadd.f32 %v10408, %v10520
    %v10522 = vpop.f32.mrb[0].mxu0
    %v10523 = vadd.f32 %v10410, %v10522
    %v10524 = vpop.f32.mrb[0].mxu0
    %v10525 = vadd.f32 %v10412, %v10524
    %10526 = vmatprep.mubr.bf16.mxu0 %v8552
    %10527 = vmatmul.mubr.bf16.gmra.mrb[0].mxu0 %v8551
    %v10528 = vpop.f32.mrb[0].mxu0
    %v10529 = vadd.f32 %v10416, %v10528
    %v10530 = vpop.f32.mrb[0].mxu0
    %v10531 = vadd.f32 %v10418, %v10530
    %v10532 = vpop.f32.mrb[0].mxu0
    %v10533 = vadd.f32 %v10420, %v10532
    %v10534 = vpop.f32.mrb[0].mxu0
    %v10535 = vadd.f32 %v10422, %v10534
    %10536 = vmatprep.mubr.bf16.mxu0 %v8558
    %10537 = vmatmul.mubr.bf16.gmra.mrb[0].mxu0 %v8557
    %v10538 = vpop.f32.mrb[0].mxu0
    %v10539 = vadd.f32 %v10426, %v10538
    %v10540 = vpop.f32.mrb[0].mxu0
    %v10541 = vadd.f32 %v10428, %v10540
    %v10542 = vpop.f32.mrb[0].mxu0
    %v10543 = vadd.f32 %v10430, %v10542
    %v10544 = vpop.f32.mrb[0].mxu0
    %v10545 = vadd.f32 %v10432, %v10544
    %10546 = vdwg.mxu0
    %10547 = vmatprep.subr.bf16.mxu0 %v9938
    %10548 = vmatpush1.bf16.msra.mxu0 %v9937
    %10549 = vmatprep.subr.bf16.mxu0 %v9944
    %10550 = vmatpush1.bf16.msra.mxu0 %v9943
    %10551 = vmatprep.subr.bf16.mxu0 %v9950
    %10552 = vmatpush1.bf16.msra.mxu0 %v9949
    %10553 = vmatprep.subr.bf16.mxu0 %v9956
    %10554 = vmatpush1.bf16.msra.mxu0 %v9955
    %10555 = vmatprep.subr.bf16.mxu0 %v9962
    %10556 = vmatpush1.bf16.msra.mxu0 %v9961
    %10557 = vmatprep.subr.bf16.mxu0 %v9968
    %10558 = vmatpush1.bf16.msra.mxu0 %v9967
    %10559 = vmatprep.subr.bf16.mxu0 %v9974
    %10560 = vmatpush1.bf16.msra.mxu0 %v9973
    %10561 = vmatprep.subr.bf16.mxu0 %v9980
    %10562 = vmatpush1.bf16.msra.mxu0 %v9979
    %10563 = vmatprep.subr.bf16.mxu0 %v9986
    %10564 = vmatpush1.bf16.msra.mxu0 %v9985
    %10565 = vmatprep.subr.bf16.mxu0 %v9992
    %10566 = vmatpush1.bf16.msra.mxu0 %v9991
    %10567 = vmatprep.subr.bf16.mxu0 %v9998
    %10568 = vmatpush1.bf16.msra.mxu0 %v9997
    %10569 = vmatprep.subr.bf16.mxu0 %v10004
    %10570 = vmatpush1.bf16.msra.mxu0 %v10003
    %10571 = vmatprep.subr.bf16.mxu0 %v10010
    %10572 = vmatpush1.bf16.msra.mxu0 %v10009
    %10573 = vmatprep.subr.bf16.mxu0 %v10016
    %10574 = vmatpush1.bf16.msra.mxu0 %v10015
    %10575 = vmatprep.subr.bf16.mxu0 %v10022
    %10576 = vmatpush1.bf16.msra.mxu0 %v10021
    %10577 = vmatprep.subr.bf16.mxu0 %v10028
    %10578 = vmatpush1.bf16.msra.mxu0 %v10027
    %10579 = vmatprep.mubr.bf16.mxu0 %v8518
    %10580 = vmatmul.mubr.bf16.gmra.mrb[0].mxu0 %v8517
    %v10581 = vpop.f32.mrb[0].mxu0
    %v10582 = vadd.f32 %v10469, %v10581
    %v10583 = vpop.f32.mrb[0].mxu0
    %v10584 = vadd.f32 %v10471, %v10583
    %v10585 = vpop.f32.mrb[0].mxu0
    %v10586 = vadd.f32 %v10473, %v10585
    %v10587 = vpop.f32.mrb[0].mxu0
    %v10588 = vadd.f32 %v10475, %v10587
    %10589 = vmatprep.mubr.bf16.mxu0 %v8524
    %10590 = vmatmul.mubr.bf16.gmra.mrb[0].mxu0 %v8523
    %v10591 = vpop.f32.mrb[0].mxu0
    %v10592 = vadd.f32 %v10479, %v10591
    %v10593 = vpop.f32.mrb[0].mxu0
    %v10594 = vadd.f32 %v10481, %v10593
    %v10595 = vpop.f32.mrb[0].mxu0
    %v10596 = vadd.f32 %v10483, %v10595
    %v10597 = vpop.f32.mrb[0].mxu0
    %v10598 = vadd.f32 %v10485, %v10597
    %10599 = vmatprep.mubr.bf16.mxu0 %v8530
    %10600 = vmatmul.mubr.bf16.gmra.mrb[0].mxu0 %v8529
    %v10601 = vpop.f32.mrb[0].mxu0
    %v10602 = vadd.f32 %v10489, %v10601
    %v10603 = vpop.f32.mrb[0].mxu0
    %v10604 = vadd.f32 %v10491, %v10603
    %v10605 = vpop.f32.mrb[0].mxu0
    %v10606 = vadd.f32 %v10493, %v10605
    %v10607 = vpop.f32.mrb[0].mxu0
    %v10608 = vadd.f32 %v10495, %v10607
    %10609 = vmatprep.mubr.bf16.mxu0 %v8536
    %10610 = vmatmul.mubr.bf16.gmra.mrb[0].mxu0 %v8535
    %v10611 = vpop.f32.mrb[0].mxu0
    %v10612 = vadd.f32 %v10499, %v10611
    %v10613 = vpop.f32.mrb[0].mxu0
    %v10614 = vadd.f32 %v10501, %v10613
    %v10615 = vpop.f32.mrb[0].mxu0
    %v10616 = vadd.f32 %v10503, %v10615
    %v10617 = vpop.f32.mrb[0].mxu0
    %v10618 = vadd.f32 %v10505, %v10617
    %10619 = vmatprep.mubr.bf16.mxu0 %v8542
    %10620 = vmatmul.mubr.bf16.gmra.mrb[0].mxu0 %v8541
    %v10621 = vpop.f32.mrb[0].mxu0
    %v10622 = vadd.f32 %v10509, %v10621
    %v10623 = vpop.f32.mrb[0].mxu0
    %v10624 = vadd.f32 %v10511, %v10623
    %v10625 = vpop.f32.mrb[0].mxu0
    %v10626 = vadd.f32 %v10513, %v10625
    %v10627 = vpop.f32.mrb[0].mxu0
    %v10628 = vadd.f32 %v10515, %v10627
    %10629 = vmatprep.mubr.bf16.mxu0 %v8548
    %10630 = vmatmul.mubr.bf16.gmra.mrb[0].mxu0 %v8547
    %v10631 = vpop.f32.mrb[0].mxu0
    %v10632 = vadd.f32 %v10519, %v10631
    %v10633 = vpop.f32.mrb[0].mxu0
    %v10634 = vadd.f32 %v10521, %v10633
    %v10635 = vpop.f32.mrb[0].mxu0
    %v10636 = vadd.f32 %v10523, %v10635
    %v10637 = vpop.f32.mrb[0].mxu0
    %v10638 = vadd.f32 %v10525, %v10637
    %10639 = vmatprep.mubr.bf16.mxu0 %v8554
    %10640 = vmatmul.mubr.bf16.gmra.mrb[0].mxu0 %v8553
    %v10641 = vpop.f32.mrb[0].mxu0
    %v10642 = vadd.f32 %v10529, %v10641
    %v10643 = vpop.f32.mrb[0].mxu0
    %v10644 = vadd.f32 %v10531, %v10643
    %v10645 = vpop.f32.mrb[0].mxu0
    %v10646 = vadd.f32 %v10533, %v10645
    %v10647 = vpop.f32.mrb[0].mxu0
    %v10648 = vadd.f32 %v10535, %v10647
    %10649 = vmatprep.mubr.bf16.mxu0 %v8560
    %10650 = vmatmul.mubr.bf16.gmra.mrb[0].mxu0 %v8559
    %v10651 = vpop.f32.mrb[0].mxu0
    %v10652 = vadd.f32 %v10539, %v10651
    %v10653 = vpop.f32.mrb[0].mxu0
    %v10654 = vadd.f32 %v10541, %v10653
    %v10655 = vpop.f32.mrb[0].mxu0
    %v10656 = vadd.f32 %v10543, %v10655
    %v10657 = vpop.f32.mrb[0].mxu0
    %v10658 = vadd.f32 %v10545, %v10657
    %10659 = vdwg.mxu0
    %10660 = vmatprep.subr.bf16.mxu0 %v9748
    %10661 = vmatpush1.bf16.msra.mxu0 %v9747
    %10662 = vmatprep.subr.bf16.mxu0 %v9754
    %10663 = vmatpush1.bf16.msra.mxu0 %v9753
    %10664 = vmatprep.subr.bf16.mxu0 %v9760
    %10665 = vmatpush1.bf16.msra.mxu0 %v9759
    %10666 = vmatprep.subr.bf16.mxu0 %v9766
    %10667 = vmatpush1.bf16.msra.mxu0 %v9765
    %10668 = vmatprep.subr.bf16.mxu0 %v9772
    %10669 = vmatpush1.bf16.msra.mxu0 %v9771
    %10670 = vmatprep.subr.bf16.mxu0 %v9778
    %10671 = vmatpush1.bf16.msra.mxu0 %v9777
    %10672 = vmatprep.subr.bf16.mxu0 %v9784
    %10673 = vmatpush1.bf16.msra.mxu0 %v9783
    %10674 = vmatprep.subr.bf16.mxu0 %v9790
    %10675 = vmatpush1.bf16.msra.mxu0 %v9789
    %10676 = vmatprep.subr.bf16.mxu0 %v9796
    %10677 = vmatpush1.bf16.msra.mxu0 %v9795
    %10678 = vmatprep.subr.bf16.mxu0 %v9802
    %10679 = vmatpush1.bf16.msra.mxu0 %v9801
    %10680 = vmatprep.subr.bf16.mxu0 %v9808
    %10681 = vmatpush1.bf16.msra.mxu0 %v9807
    %10682 = vmatprep.subr.bf16.mxu0 %v9814
    %10683 = vmatpush1.bf16.msra.mxu0 %v9813
    %10684 = vmatprep.subr.bf16.mxu0 %v9820
    %10685 = vmatpush1.bf16.msra.mxu0 %v9819
    %10686 = vmatprep.subr.bf16.mxu0 %v9826
    %10687 = vmatpush1.bf16.msra.mxu0 %v9825
    %10688 = vmatprep.subr.bf16.mxu0 %v9832
    %10689 = vmatpush1.bf16.msra.mxu0 %v9831
    %10690 = vmatprep.subr.bf16.mxu0 %v9838
    %10691 = vmatpush1.bf16.msra.mxu0 %v9837
    %10692 = vmatprep.mubr.bf16.mxu0 %v8514
    %10693 = vmatmul.mubr.bf16.gmra.mrb[0].mxu0 %v8513
    %v10694 = vpop.f32.mrb[0].mxu0
    %v10695 = vadd.f32 %v8862, %v10694
    %v10696 = vpop.f32.mrb[0].mxu0
    %v10697 = vadd.f32 %v8866, %v10696
    %v10698 = vpop.f32.mrb[0].mxu0
    %v10699 = vadd.f32 %v8862, %v10698
    %v10700 = vpop.f32.mrb[0].mxu0
    %v10701 = vadd.f32 %v8866, %v10700
    %10702 = vmatprep.mubr.bf16.mxu0 %v8520
    %10703 = vmatmul.mubr.bf16.gmra.mrb[0].mxu0 %v8519
    %v10704 = vpop.f32.mrb[0].mxu0
    %v10705 = vadd.f32 %v8862, %v10704
    %v10706 = vpop.f32.mrb[0].mxu0
    %v10707 = vadd.f32 %v8866, %v10706
    %v10708 = vpop.f32.mrb[0].mxu0
    %v10709 = vadd.f32 %v8862, %v10708
    %v10710 = vpop.f32.mrb[0].mxu0
    %v10711 = vadd.f32 %v8866, %v10710
    %10712 = vmatprep.mubr.bf16.mxu0 %v8526
    %10713 = vmatmul.mubr.bf16.gmra.mrb[0].mxu0 %v8525
    %v10714 = vpop.f32.mrb[0].mxu0
    %v10715 = vadd.f32 %v8862, %v10714
    %v10716 = vpop.f32.mrb[0].mxu0
    %v10717 = vadd.f32 %v8866, %v10716
    %v10718 = vpop.f32.mrb[0].mxu0
    %v10719 = vadd.f32 %v8862, %v10718
    %v10720 = vpop.f32.mrb[0].mxu0
    %v10721 = vadd.f32 %v8866, %v10720
    %10722 = vmatprep.mubr.bf16.mxu0 %v8532
    %10723 = vmatmul.mubr.bf16.gmra.mrb[0].mxu0 %v8531
    %v10724 = vpop.f32.mrb[0].mxu0
    %v10725 = vadd.f32 %v8862, %v10724
    %v10726 = vpop.f32.mrb[0].mxu0
    %v10727 = vadd.f32 %v8866, %v10726
    %v10728 = vpop.f32.mrb[0].mxu0
    %v10729 = vadd.f32 %v8862, %v10728
    %v10730 = vpop.f32.mrb[0].mxu0
    %v10731 = vadd.f32 %v8866, %v10730
    %10732 = vmatprep.mubr.bf16.mxu0 %v8538
    %10733 = vmatmul.mubr.bf16.gmra.mrb[0].mxu0 %v8537
    %v10734 = vpop.f32.mrb[0].mxu0
    %v10735 = vadd.f32 %v8862, %v10734
    %v10736 = vpop.f32.mrb[0].mxu0
    %v10737 = vadd.f32 %v8866, %v10736
    %v10738 = vpop.f32.mrb[0].mxu0
    %v10739 = vadd.f32 %v8862, %v10738
    %v10740 = vpop.f32.mrb[0].mxu0
    %v10741 = vadd.f32 %v8866, %v10740
    %10742 = vmatprep.mubr.bf16.mxu0 %v8544
    %10743 = vmatmul.mubr.bf16.gmra.mrb[0].mxu0 %v8543
    %v10744 = vpop.f32.mrb[0].mxu0
    %v10745 = vadd.f32 %v8862, %v10744
    %v10746 = vpop.f32.mrb[0].mxu0
    %v10747 = vadd.f32 %v8866, %v10746
    %v10748 = vpop.f32.mrb[0].mxu0
    %v10749 = vadd.f32 %v8862, %v10748
    %v10750 = vpop.f32.mrb[0].mxu0
    %v10751 = vadd.f32 %v8866, %v10750
    %10752 = vmatprep.mubr.bf16.mxu0 %v8550
    %10753 = vmatmul.mubr.bf16.gmra.mrb[0].mxu0 %v8549
    %v10754 = vpop.f32.mrb[0].mxu0
    %v10755 = vadd.f32 %v8862, %v10754
    %v10756 = vpop.f32.mrb[0].mxu0
    %v10757 = vadd.f32 %v8866, %v10756
    %v10758 = vpop.f32.mrb[0].mxu0
    %v10759 = vadd.f32 %v8862, %v10758
    %v10760 = vpop.f32.mrb[0].mxu0
    %v10761 = vadd.f32 %v8866, %v10760
    %10762 = vmatprep.mubr.bf16.mxu0 %v8556
    %10763 = vmatmul.mubr.bf16.gmra.mrb[0].mxu0 %v8555
    %v10764 = vpop.f32.mrb[0].mxu0
    %v10765 = vadd.f32 %v8862, %v10764
    %v10766 = vpop.f32.mrb[0].mxu0
    %v10767 = vadd.f32 %v8866, %v10766
    %v10768 = vpop.f32.mrb[0].mxu0
    %v10769 = vadd.f32 %v8862, %v10768
    %v10770 = vpop.f32.mrb[0].mxu0
    %v10771 = vadd.f32 %v8866, %v10770
    %10772 = vdwg.mxu0
    %10773 = vmatprep.subr.bf16.mxu0 %v9844
    %10774 = vmatpush1.bf16.msra.mxu0 %v9843
    %10775 = vmatprep.subr.bf16.mxu0 %v9850
    %10776 = vmatpush1.bf16.msra.mxu0 %v9849
    %10777 = vmatprep.subr.bf16.mxu0 %v9856
    %10778 = vmatpush1.bf16.msra.mxu0 %v9855
    %10779 = vmatprep.subr.bf16.mxu0 %v9862
    %10780 = vmatpush1.bf16.msra.mxu0 %v9861
    %10781 = vmatprep.subr.bf16.mxu0 %v9868
    %10782 = vmatpush1.bf16.msra.mxu0 %v9867
    %10783 = vmatprep.subr.bf16.mxu0 %v9874
    %10784 = vmatpush1.bf16.msra.mxu0 %v9873
    %10785 = vmatprep.subr.bf16.mxu0 %v9880
    %10786 = vmatpush1.bf16.msra.mxu0 %v9879
    %10787 = vmatprep.subr.bf16.mxu0 %v9886
    %10788 = vmatpush1.bf16.msra.mxu0 %v9885
    %10789 = vmatprep.subr.bf16.mxu0 %v9892
    %10790 = vmatpush1.bf16.msra.mxu0 %v9891
    %10791 = vmatprep.subr.bf16.mxu0 %v9898
    %10792 = vmatpush1.bf16.msra.mxu0 %v9897
    %10793 = vmatprep.subr.bf16.mxu0 %v9904
    %10794 = vmatpush1.bf16.msra.mxu0 %v9903
    %10795 = vmatprep.subr.bf16.mxu0 %v9910
    %10796 = vmatpush1.bf16.msra.mxu0 %v9909
    %10797 = vmatprep.subr.bf16.mxu0 %v9916
    %10798 = vmatpush1.bf16.msra.mxu0 %v9915
    %10799 = vmatprep.subr.bf16.mxu0 %v9922
    %10800 = vmatpush1.bf16.msra.mxu0 %v9921
    %10801 = vmatprep.subr.bf16.mxu0 %v9928
    %10802 = vmatpush1.bf16.msra.mxu0 %v9927
    %10803 = vmatprep.subr.bf16.mxu0 %v9934
    %10804 = vmatpush1.bf16.msra.mxu0 %v9933
    %10805 = vmatprep.mubr.bf16.mxu0 %v8516
    %10806 = vmatmul.mubr.bf16.gmra.mrb[0].mxu0 %v8515
    %v10807 = vpop.f32.mrb[0].mxu0
    %v10808 = vadd.f32 %v10695, %v10807
    %v10809 = vpop.f32.mrb[0].mxu0
    %v10810 = vadd.f32 %v10697, %v10809
    %v10811 = vpop.f32.mrb[0].mxu0
    %v10812 = vadd.f32 %v10699, %v10811
    %v10813 = vpop.f32.mrb[0].mxu0
    %v10814 = vadd.f32 %v10701, %v10813
    %10815 = vmatprep.mubr.bf16.mxu0 %v8522
    %10816 = vmatmul.mubr.bf16.gmra.mrb[0].mxu0 %v8521
    %v10817 = vpop.f32.mrb[0].mxu0
    %v10818 = vadd.f32 %v10705, %v10817
    %v10819 = vpop.f32.mrb[0].mxu0
    %v10820 = vadd.f32 %v10707, %v10819
    %v10821 = vpop.f32.mrb[0].mxu0
    %v10822 = vadd.f32 %v10709, %v10821
    %v10823 = vpop.f32.mrb[0].mxu0
    %v10824 = vadd.f32 %v10711, %v10823
    %10825 = vmatprep.mubr.bf16.mxu0 %v8528
    %10826 = vmatmul.mubr.bf16.gmra.mrb[0].mxu0 %v8527
    %v10827 = vpop.f32.mrb[0].mxu0
    %v10828 = vadd.f32 %v10715, %v10827
    %v10829 = vpop.f32.mrb[0].mxu0
    %v10830 = vadd.f32 %v10717, %v10829
    %v10831 = vpop.f32.mrb[0].mxu0
    %v10832 = vadd.f32 %v10719, %v10831
    %v10833 = vpop.f32.mrb[0].mxu0
    %v10834 = vadd.f32 %v10721, %v10833
    %10835 = vmatprep.mubr.bf16.mxu0 %v8534
    %10836 = vmatmul.mubr.bf16.gmra.mrb[0].mxu0 %v8533
    %v10837 = vpop.f32.mrb[0].mxu0
    %v10838 = vadd.f32 %v10725, %v10837
    %v10839 = vpop.f32.mrb[0].mxu0
    %v10840 = vadd.f32 %v10727, %v10839
    %v10841 = vpop.f32.mrb[0].mxu0
    %v10842 = vadd.f32 %v10729, %v10841
    %v10843 = vpop.f32.mrb[0].mxu0
    %v10844 = vadd.f32 %v10731, %v10843
    %10845 = vmatprep.mubr.bf16.mxu0 %v8540
    %10846 = vmatmul.mubr.bf16.gmra.mrb[0].mxu0 %v8539
    %v10847 = vpop.f32.mrb[0].mxu0
    %v10848 = vadd.f32 %v10735, %v10847
    %v10849 = vpop.f32.mrb[0].mxu0
    %v10850 = vadd.f32 %v10737, %v10849
    %v10851 = vpop.f32.mrb[0].mxu0
    %v10852 = vadd.f32 %v10739, %v10851
    %v10853 = vpop.f32.mrb[0].mxu0
    %v10854 = vadd.f32 %v10741, %v10853
    %10855 = vmatprep.mubr.bf16.mxu0 %v8546
    %10856 = vmatmul.mubr.bf16.gmra.mrb[0].mxu0 %v8545
    %v10857 = vpop.f32.mrb[0].mxu0
    %v10858 = vadd.f32 %v10745, %v10857
    %v10859 = vpop.f32.mrb[0].mxu0
    %v10860 = vadd.f32 %v10747, %v10859
    %v10861 = vpop.f32.mrb[0].mxu0
    %v10862 = vadd.f32 %v10749, %v10861
    %v10863 = vpop.f32.mrb[0].mxu0
    %v10864 = vadd.f32 %v10751, %v10863
    %10865 = vmatprep.mubr.bf16.mxu0 %v8552
    %10866 = vmatmul.mubr.bf16.gmra.mrb[0].mxu0 %v8551
    %v10867 = vpop.f32.mrb[0].mxu0
    %v10868 = vadd.f32 %v10755, %v10867
    %v10869 = vpop.f32.mrb[0].mxu0
    %v10870 = vadd.f32 %v10757, %v10869
    %v10871 = vpop.f32.mrb[0].mxu0
    %v10872 = vadd.f32 %v10759, %v10871
    %v10873 = vpop.f32.mrb[0].mxu0
    %v10874 = vadd.f32 %v10761, %v10873
    %10875 = vmatprep.mubr.bf16.mxu0 %v8558
    %10876 = vmatmul.mubr.bf16.gmra.mrb[0].mxu0 %v8557
    %v10877 = vpop.f32.mrb[0].mxu0
    %v10878 = vadd.f32 %v10765, %v10877
    %v10879 = vpop.f32.mrb[0].mxu0
    %v10880 = vadd.f32 %v10767, %v10879
    %v10881 = vpop.f32.mrb[0].mxu0
    %v10882 = vadd.f32 %v10769, %v10881
    %v10883 = vpop.f32.mrb[0].mxu0
    %v10884 = vadd.f32 %v10771, %v10883
    %10885 = vdwg.mxu0
    %10886 = vmatprep.subr.bf16.mxu0 %v9940
    %10887 = vmatpush1.bf16.msra.mxu0 %v9939
    %10888 = vmatprep.subr.bf16.mxu0 %v9946
    %10889 = vmatpush1.bf16.msra.mxu0 %v9945
    %10890 = vmatprep.subr.bf16.mxu0 %v9952
    %10891 = vmatpush1.bf16.msra.mxu0 %v9951
    %10892 = vmatprep.subr.bf16.mxu0 %v9958
    %10893 = vmatpush1.bf16.msra.mxu0 %v9957
    %10894 = vmatprep.subr.bf16.mxu0 %v9964
    %10895 = vmatpush1.bf16.msra.mxu0 %v9963
    %10896 = vmatprep.subr.bf16.mxu0 %v9970
    %10897 = vmatpush1.bf16.msra.mxu0 %v9969
    %10898 = vmatprep.subr.bf16.mxu0 %v9976
    %10899 = vmatpush1.bf16.msra.mxu0 %v9975
    %10900 = vmatprep.subr.bf16.mxu0 %v9982
    %10901 = vmatpush1.bf16.msra.mxu0 %v9981
    %10902 = vmatprep.subr.bf16.mxu0 %v9988
    %10903 = vmatpush1.bf16.msra.mxu0 %v9987
    %10904 = vmatprep.subr.bf16.mxu0 %v9994
    %10905 = vmatpush1.bf16.msra.mxu0 %v9993
    %10906 = vmatprep.subr.bf16.mxu0 %v10000
    %10907 = vmatpush1.bf16.msra.mxu0 %v9999
    %10908 = vmatprep.subr.bf16.mxu0 %v10006
    %10909 = vmatpush1.bf16.msra.mxu0 %v10005
    %10910 = vmatprep.subr.bf16.mxu0 %v10012
    %10911 = vmatpush1.bf16.msra.mxu0 %v10011
    %10912 = vmatprep.subr.bf16.mxu0 %v10018
    %10913 = vmatpush1.bf16.msra.mxu0 %v10017
    %10914 = vmatprep.subr.bf16.mxu0 %v10024
    %10915 = vmatpush1.bf16.msra.mxu0 %v10023
    %10916 = vmatprep.subr.bf16.mxu0 %v10030
    %10917 = vmatpush1.bf16.msra.mxu0 %v10029
    %10918 = vmatprep.mubr.bf16.mxu0 %v8518
    %10919 = vmatmul.mubr.bf16.gmra.mrb[0].mxu0 %v8517
    %v10920 = vpop.f32.mrb[0].mxu0
    %v10921 = vadd.f32 %v10808, %v10920
    %v10922 = vpop.f32.mrb[0].mxu0
    %v10923 = vadd.f32 %v10810, %v10922
    %v10924 = vpop.f32.mrb[0].mxu0
    %v10925 = vadd.f32 %v10812, %v10924
    %v10926 = vpop.f32.mrb[0].mxu0
    %v10927 = vadd.f32 %v10814, %v10926
    %10928 = vmatprep.mubr.bf16.mxu0 %v8524
    %10929 = vmatmul.mubr.bf16.gmra.mrb[0].mxu0 %v8523
    %v10930 = vpop.f32.mrb[0].mxu0
    %v10931 = vadd.f32 %v10818, %v10930
    %v10932 = vpop.f32.mrb[0].mxu0
    %v10933 = vadd.f32 %v10820, %v10932
    %v10934 = vpop.f32.mrb[0].mxu0
    %v10935 = vadd.f32 %v10822, %v10934
    %v10936 = vpop.f32.mrb[0].mxu0
    %v10937 = vadd.f32 %v10824, %v10936
    %10938 = vmatprep.mubr.bf16.mxu0 %v8530
    %10939 = vmatmul.mubr.bf16.gmra.mrb[0].mxu0 %v8529
    %v10940 = vpop.f32.mrb[0].mxu0
    %v10941 = vadd.f32 %v10828, %v10940
    %v10942 = vpop.f32.mrb[0].mxu0
    %v10943 = vadd.f32 %v10830, %v10942
    %v10944 = vpop.f32.mrb[0].mxu0
    %v10945 = vadd.f32 %v10832, %v10944
    %v10946 = vpop.f32.mrb[0].mxu0
    %v10947 = vadd.f32 %v10834, %v10946
    %10948 = vmatprep.mubr.bf16.mxu0 %v8536
    %10949 = vmatmul.mubr.bf16.gmra.mrb[0].mxu0 %v8535
    %v10950 = vpop.f32.mrb[0].mxu0
    %v10951 = vadd.f32 %v10838, %v10950
    %v10952 = vpop.f32.mrb[0].mxu0
    %v10953 = vadd.f32 %v10840, %v10952
    %v10954 = vpop.f32.mrb[0].mxu0
    %v10955 = vadd.f32 %v10842, %v10954
    %v10956 = vpop.f32.mrb[0].mxu0
    %v10957 = vadd.f32 %v10844, %v10956
    %10958 = vmatprep.mubr.bf16.mxu0 %v8542
    %10959 = vmatmul.mubr.bf16.gmra.mrb[0].mxu0 %v8541
    %v10960 = vpop.f32.mrb[0].mxu0
    %v10961 = vadd.f32 %v10848, %v10960
    %v10962 = vpop.f32.mrb[0].mxu0
    %v10963 = vadd.f32 %v10850, %v10962
    %v10964 = vpop.f32.mrb[0].mxu0
    %v10965 = vadd.f32 %v10852, %v10964
    %v10966 = vpop.f32.mrb[0].mxu0
    %v10967 = vadd.f32 %v10854, %v10966
    %10968 = vmatprep.mubr.bf16.mxu0 %v8548
    %10969 = vmatmul.mubr.bf16.gmra.mrb[0].mxu0 %v8547
    %v10970 = vpop.f32.mrb[0].mxu0
    %v10971 = vadd.f32 %v10858, %v10970
    %v10972 = vpop.f32.mrb[0].mxu0
    %v10973 = vadd.f32 %v10860, %v10972
    %v10974 = vpop.f32.mrb[0].mxu0
    %v10975 = vadd.f32 %v10862, %v10974
    %v10976 = vpop.f32.mrb[0].mxu0
    %v10977 = vadd.f32 %v10864, %v10976
    %10978 = vmatprep.mubr.bf16.mxu0 %v8554
    %10979 = vmatmul.mubr.bf16.gmra.mrb[0].mxu0 %v8553
    %v10980 = vpop.f32.mrb[0].mxu0
    %v10981 = vadd.f32 %v10868, %v10980
    %v10982 = vpop.f32.mrb[0].mxu0
    %v10983 = vadd.f32 %v10870, %v10982
    %v10984 = vpop.f32.mrb[0].mxu0
    %v10985 = vadd.f32 %v10872, %v10984
    %v10986 = vpop.f32.mrb[0].mxu0
    %v10987 = vadd.f32 %v10874, %v10986
    %10988 = vmatprep.mubr.bf16.mxu0 %v8560
    %10989 = vmatmul.mubr.bf16.gmra.mrb[0].mxu0 %v8559
    %v10990 = vpop.f32.mrb[0].mxu0
    %v10991 = vadd.f32 %v10878, %v10990
    %v10992 = vpop.f32.mrb[0].mxu0
    %v10993 = vadd.f32 %v10880, %v10992
    %v10994 = vpop.f32.mrb[0].mxu0
    %v10995 = vadd.f32 %v10882, %v10994
    %v10996 = vpop.f32.mrb[0].mxu0
    %v10997 = vadd.f32 %v10884, %v10996
    %10998 = vdwg.mxu0
    %10999 = vmatprep.subr.bf16.mxu0 %v9750
    %11000 = vmatpush1.bf16.msra.mxu0 %v9749
    %11001 = vmatprep.subr.bf16.mxu0 %v9756
    %11002 = vmatpush1.bf16.msra.mxu0 %v9755
    %11003 = vmatprep.subr.bf16.mxu0 %v9762
    %11004 = vmatpush1.bf16.msra.mxu0 %v9761
    %11005 = vmatprep.subr.bf16.mxu0 %v9768
    %11006 = vmatpush1.bf16.msra.mxu0 %v9767
    %11007 = vmatprep.subr.bf16.mxu0 %v9774
    %11008 = vmatpush1.bf16.msra.mxu0 %v9773
    %11009 = vmatprep.subr.bf16.mxu0 %v9780
    %11010 = vmatpush1.bf16.msra.mxu0 %v9779
    %11011 = vmatprep.subr.bf16.mxu0 %v9786
    %11012 = vmatpush1.bf16.msra.mxu0 %v9785
    %11013 = vmatprep.subr.bf16.mxu0 %v9792
    %11014 = vmatpush1.bf16.msra.mxu0 %v9791
    %11015 = vmatprep.subr.bf16.mxu0 %v9798
    %11016 = vmatpush1.bf16.msra.mxu0 %v9797
    %11017 = vmatprep.subr.bf16.mxu0 %v9804
    %11018 = vmatpush1.bf16.msra.mxu0 %v9803
    %11019 = vmatprep.subr.bf16.mxu0 %v9810
    %11020 = vmatpush1.bf16.msra.mxu0 %v9809
    %11021 = vmatprep.subr.bf16.mxu0 %v9816
    %11022 = vmatpush1.bf16.msra.mxu0 %v9815
    %11023 = vmatprep.subr.bf16.mxu0 %v9822
    %11024 = vmatpush1.bf16.msra.mxu0 %v9821
    %11025 = vmatprep.subr.bf16.mxu0 %v9828
    %11026 = vmatpush1.bf16.msra.mxu0 %v9827
    %11027 = vmatprep.subr.bf16.mxu0 %v9834
    %11028 = vmatpush1.bf16.msra.mxu0 %v9833
    %11029 = vmatprep.subr.bf16.mxu0 %v9840
    %11030 = vmatpush1.bf16.msra.mxu0 %v9839
    %11031 = vmatprep.mubr.bf16.mxu0 %v8514
    %11032 = vmatmul.mubr.bf16.gmra.mrb[0].mxu0 %v8513
    %v11033 = vpop.f32.mrb[0].mxu0
    %v11034 = vadd.f32 %v8870, %v11033
    %v11035 = vpop.f32.mrb[0].mxu0
    %v11036 = vadd.f32 %v8874, %v11035
    %v11037 = vpop.f32.mrb[0].mxu0
    %v11038 = vadd.f32 %v8870, %v11037
    %v11039 = vpop.f32.mrb[0].mxu0
    %v11040 = vadd.f32 %v8874, %v11039
    %11041 = vmatprep.mubr.bf16.mxu0 %v8520
    %11042 = vmatmul.mubr.bf16.gmra.mrb[0].mxu0 %v8519
    %v11043 = vpop.f32.mrb[0].mxu0
    %v11044 = vadd.f32 %v8870, %v11043
    %v11045 = vpop.f32.mrb[0].mxu0
    %v11046 = vadd.f32 %v8874, %v11045
    %v11047 = vpop.f32.mrb[0].mxu0
    %v11048 = vadd.f32 %v8870, %v11047
    %v11049 = vpop.f32.mrb[0].mxu0
    %v11050 = vadd.f32 %v8874, %v11049
    %11051 = vmatprep.mubr.bf16.mxu0 %v8526
    %11052 = vmatmul.mubr.bf16.gmra.mrb[0].mxu0 %v8525
    %v11053 = vpop.f32.mrb[0].mxu0
    %v11054 = vadd.f32 %v8870, %v11053
    %v11055 = vpop.f32.mrb[0].mxu0
    %v11056 = vadd.f32 %v8874, %v11055
    %v11057 = vpop.f32.mrb[0].mxu0
    %v11058 = vadd.f32 %v8870, %v11057
    %v11059 = vpop.f32.mrb[0].mxu0
    %v11060 = vadd.f32 %v8874, %v11059
    %11061 = vmatprep.mubr.bf16.mxu0 %v8532
    %11062 = vmatmul.mubr.bf16.gmra.mrb[0].mxu0 %v8531
    %v11063 = vpop.f32.mrb[0].mxu0
    %v11064 = vadd.f32 %v8870, %v11063
    %v11065 = vpop.f32.mrb[0].mxu0
    %v11066 = vadd.f32 %v8874, %v11065
    %v11067 = vpop.f32.mrb[0].mxu0
    %v11068 = vadd.f32 %v8870, %v11067
    %v11069 = vpop.f32.mrb[0].mxu0
    %v11070 = vadd.f32 %v8874, %v11069
    %11071 = vmatprep.mubr.bf16.mxu0 %v8538
    %11072 = vmatmul.mubr.bf16.gmra.mrb[0].mxu0 %v8537
    %v11073 = vpop.f32.mrb[0].mxu0
    %v11074 = vadd.f32 %v8870, %v11073
    %v11075 = vpop.f32.mrb[0].mxu0
    %v11076 = vadd.f32 %v8874, %v11075
    %v11077 = vpop.f32.mrb[0].mxu0
    %v11078 = vadd.f32 %v8870, %v11077
    %v11079 = vpop.f32.mrb[0].mxu0
    %v11080 = vadd.f32 %v8874, %v11079
    %11081 = vmatprep.mubr.bf16.mxu0 %v8544
    %11082 = vmatmul.mubr.bf16.gmra.mrb[0].mxu0 %v8543
    %v11083 = vpop.f32.mrb[0].mxu0
    %v11084 = vadd.f32 %v8870, %v11083
    %v11085 = vpop.f32.mrb[0].mxu0
    %v11086 = vadd.f32 %v8874, %v11085
    %v11087 = vpop.f32.mrb[0].mxu0
    %v11088 = vadd.f32 %v8870, %v11087
    %v11089 = vpop.f32.mrb[0].mxu0
    %v11090 = vadd.f32 %v8874, %v11089
    %11091 = vmatprep.mubr.bf16.mxu0 %v8550
    %11092 = vmatmul.mubr.bf16.gmra.mrb[0].mxu0 %v8549
    %v11093 = vpop.f32.mrb[0].mxu0
    %v11094 = vadd.f32 %v8870, %v11093
    %v11095 = vpop.f32.mrb[0].mxu0
    %v11096 = vadd.f32 %v8874, %v11095
    %v11097 = vpop.f32.mrb[0].mxu0
    %v11098 = vadd.f32 %v8870, %v11097
    %v11099 = vpop.f32.mrb[0].mxu0
    %v11100 = vadd.f32 %v8874, %v11099
    %11101 = vmatprep.mubr.bf16.mxu0 %v8556
    %11102 = vmatmul.mubr.bf16.gmra.mrb[0].mxu0 %v8555
    %v11103 = vpop.f32.mrb[0].mxu0
    %v11104 = vadd.f32 %v8870, %v11103
    %v11105 = vpop.f32.mrb[0].mxu0
    %v11106 = vadd.f32 %v8874, %v11105
    %v11107 = vpop.f32.mrb[0].mxu0
    %v11108 = vadd.f32 %v8870, %v11107
    %v11109 = vpop.f32.mrb[0].mxu0
    %v11110 = vadd.f32 %v8874, %v11109
    %11111 = vdwg.mxu0
    %11112 = vmatprep.subr.bf16.mxu0 %v9846
    %11113 = vmatpush1.bf16.msra.mxu0 %v9845
    %11114 = vmatprep.subr.bf16.mxu0 %v9852
    %11115 = vmatpush1.bf16.msra.mxu0 %v9851
    %11116 = vmatprep.subr.bf16.mxu0 %v9858
    %11117 = vmatpush1.bf16.msra.mxu0 %v9857
    %11118 = vmatprep.subr.bf16.mxu0 %v9864
    %11119 = vmatpush1.bf16.msra.mxu0 %v9863
    %11120 = vmatprep.subr.bf16.mxu0 %v9870
    %11121 = vmatpush1.bf16.msra.mxu0 %v9869
    %11122 = vmatprep.subr.bf16.mxu0 %v9876
    %11123 = vmatpush1.bf16.msra.mxu0 %v9875
    %11124 = vmatprep.subr.bf16.mxu0 %v9882
    %11125 = vmatpush1.bf16.msra.mxu0 %v9881
    %11126 = vmatprep.subr.bf16.mxu0 %v9888
    %11127 = vmatpush1.bf16.msra.mxu0 %v9887
    %11128 = vmatprep.subr.bf16.mxu0 %v9894
    %11129 = vmatpush1.bf16.msra.mxu0 %v9893
    %11130 = vmatprep.subr.bf16.mxu0 %v9900
    %11131 = vmatpush1.bf16.msra.mxu0 %v9899
    %11132 = vmatprep.subr.bf16.mxu0 %v9906
    %11133 = vmatpush1.bf16.msra.mxu0 %v9905
    %11134 = vmatprep.subr.bf16.mxu0 %v9912
    %11135 = vmatpush1.bf16.msra.mxu0 %v9911
    %11136 = vmatprep.subr.bf16.mxu0 %v9918
    %11137 = vmatpush1.bf16.msra.mxu0 %v9917
    %11138 = vmatprep.subr.bf16.mxu0 %v9924
    %11139 = vmatpush1.bf16.msra.mxu0 %v9923
    %11140 = vmatprep.subr.bf16.mxu0 %v9930
    %11141 = vmatpush1.bf16.msra.mxu0 %v9929
    %11142 = vmatprep.subr.bf16.mxu0 %v9936
    %11143 = vmatpush1.bf16.msra.mxu0 %v9935
    %11144 = vmatprep.mubr.bf16.mxu0 %v8516
    %11145 = vmatmul.mubr.bf16.gmra.mrb[0].mxu0 %v8515
    %v11146 = vpop.f32.mrb[0].mxu0
    %v11147 = vadd.f32 %v11034, %v11146
    %v11148 = vpop.f32.mrb[0].mxu0
    %v11149 = vadd.f32 %v11036, %v11148
    %v11150 = vpop.f32.mrb[0].mxu0
    %v11151 = vadd.f32 %v11038, %v11150
    %v11152 = vpop.f32.mrb[0].mxu0
    %v11153 = vadd.f32 %v11040, %v11152
    %11154 = vmatprep.mubr.bf16.mxu0 %v8522
    %11155 = vmatmul.mubr.bf16.gmra.mrb[0].mxu0 %v8521
    %v11156 = vpop.f32.mrb[0].mxu0
    %v11157 = vadd.f32 %v11044, %v11156
    %v11158 = vpop.f32.mrb[0].mxu0
    %v11159 = vadd.f32 %v11046, %v11158
    %v11160 = vpop.f32.mrb[0].mxu0
    %v11161 = vadd.f32 %v11048, %v11160
    %v11162 = vpop.f32.mrb[0].mxu0
    %v11163 = vadd.f32 %v11050, %v11162
    %11164 = vmatprep.mubr.bf16.mxu0 %v8528
    %11165 = vmatmul.mubr.bf16.gmra.mrb[0].mxu0 %v8527
    %v11166 = vpop.f32.mrb[0].mxu0
    %v11167 = vadd.f32 %v11054, %v11166
    %v11168 = vpop.f32.mrb[0].mxu0
    %v11169 = vadd.f32 %v11056, %v11168
    %v11170 = vpop.f32.mrb[0].mxu0
    %v11171 = vadd.f32 %v11058, %v11170
    %v11172 = vpop.f32.mrb[0].mxu0
    %v11173 = vadd.f32 %v11060, %v11172
    %11174 = vmatprep.mubr.bf16.mxu0 %v8534
    %11175 = vmatmul.mubr.bf16.gmra.mrb[0].mxu0 %v8533
    %v11176 = vpop.f32.mrb[0].mxu0
    %v11177 = vadd.f32 %v11064, %v11176
    %v11178 = vpop.f32.mrb[0].mxu0
    %v11179 = vadd.f32 %v11066, %v11178
    %v11180 = vpop.f32.mrb[0].mxu0
    %v11181 = vadd.f32 %v11068, %v11180
    %v11182 = vpop.f32.mrb[0].mxu0
    %v11183 = vadd.f32 %v11070, %v11182
    %11184 = vmatprep.mubr.bf16.mxu0 %v8540
    %11185 = vmatmul.mubr.bf16.gmra.mrb[0].mxu0 %v8539
    %v11186 = vpop.f32.mrb[0].mxu0
    %v11187 = vadd.f32 %v11074, %v11186
    %v11188 = vpop.f32.mrb[0].mxu0
    %v11189 = vadd.f32 %v11076, %v11188
    %v11190 = vpop.f32.mrb[0].mxu0
    %v11191 = vadd.f32 %v11078, %v11190
    %v11192 = vpop.f32.mrb[0].mxu0
    %v11193 = vadd.f32 %v11080, %v11192
    %11194 = vmatprep.mubr.bf16.mxu0 %v8546
    %11195 = vmatmul.mubr.bf16.gmra.mrb[0].mxu0 %v8545
    %v11196 = vpop.f32.mrb[0].mxu0
    %v11197 = vadd.f32 %v11084, %v11196
    %v11198 = vpop.f32.mrb[0].mxu0
    %v11199 = vadd.f32 %v11086, %v11198
    %v11200 = vpop.f32.mrb[0].mxu0
    %v11201 = vadd.f32 %v11088, %v11200
    %v11202 = vpop.f32.mrb[0].mxu0
    %v11203 = vadd.f32 %v11090, %v11202
    %11204 = vmatprep.mubr.bf16.mxu0 %v8552
    %11205 = vmatmul.mubr.bf16.gmra.mrb[0].mxu0 %v8551
    %v11206 = vpop.f32.mrb[0].mxu0
    %v11207 = vadd.f32 %v11094, %v11206
    %v11208 = vpop.f32.mrb[0].mxu0
    %v11209 = vadd.f32 %v11096, %v11208
    %v11210 = vpop.f32.mrb[0].mxu0
    %v11211 = vadd.f32 %v11098, %v11210
    %v11212 = vpop.f32.mrb[0].mxu0
    %v11213 = vadd.f32 %v11100, %v11212
    %11214 = vmatprep.mubr.bf16.mxu0 %v8558
    %11215 = vmatmul.mubr.bf16.gmra.mrb[0].mxu0 %v8557
    %v11216 = vpop.f32.mrb[0].mxu0
    %v11217 = vadd.f32 %v11104, %v11216
    %v11218 = vpop.f32.mrb[0].mxu0
    %v11219 = vadd.f32 %v11106, %v11218
    %v11220 = vpop.f32.mrb[0].mxu0
    %v11221 = vadd.f32 %v11108, %v11220
    %v11222 = vpop.f32.mrb[0].mxu0
    %v11223 = vadd.f32 %v11110, %v11222
    %11224 = vdwg.mxu0
    %11225 = vmatprep.subr.bf16.mxu0 %v9942
    %11226 = vmatpush1.bf16.msra.mxu0 %v9941
    %11227 = vmatprep.subr.bf16.mxu0 %v9948
    %11228 = vmatpush1.bf16.msra.mxu0 %v9947
    %11229 = vmatprep.subr.bf16.mxu0 %v9954
    %11230 = vmatpush1.bf16.msra.mxu0 %v9953
    %11231 = vmatprep.subr.bf16.mxu0 %v9960
    %11232 = vmatpush1.bf16.msra.mxu0 %v9959
    %11233 = vmatprep.subr.bf16.mxu0 %v9966
    %11234 = vmatpush1.bf16.msra.mxu0 %v9965
    %11235 = vmatprep.subr.bf16.mxu0 %v9972
    %11236 = vmatpush1.bf16.msra.mxu0 %v9971
    %11237 = vmatprep.subr.bf16.mxu0 %v9978
    %11238 = vmatpush1.bf16.msra.mxu0 %v9977
    %11239 = vmatprep.subr.bf16.mxu0 %v9984
    %11240 = vmatpush1.bf16.msra.mxu0 %v9983
    %11241 = vmatprep.subr.bf16.mxu0 %v9990
    %11242 = vmatpush1.bf16.msra.mxu0 %v9989
    %11243 = vmatprep.subr.bf16.mxu0 %v9996
    %11244 = vmatpush1.bf16.msra.mxu0 %v9995
    %11245 = vmatprep.subr.bf16.mxu0 %v10002
    %11246 = vmatpush1.bf16.msra.mxu0 %v10001
    %11247 = vmatprep.subr.bf16.mxu0 %v10008
    %11248 = vmatpush1.bf16.msra.mxu0 %v10007
    %11249 = vmatprep.subr.bf16.mxu0 %v10014
    %11250 = vmatpush1.bf16.msra.mxu0 %v10013
    %11251 = vmatprep.subr.bf16.mxu0 %v10020
    %11252 = vmatpush1.bf16.msra.mxu0 %v10019
    %11253 = vmatprep.subr.bf16.mxu0 %v10026
    %11254 = vmatpush1.bf16.msra.mxu0 %v10025
    %11255 = vmatprep.subr.bf16.mxu0 %v10032
    %11256 = vmatpush1.bf16.msra.mxu0 %v10031
    %11257 = vmatprep.mubr.bf16.mxu0 %v8518
    %11258 = vmatmul.mubr.bf16.gmra.mrb[0].mxu0 %v8517
    %v11259 = vpop.f32.mrb[0].mxu0
    %v11260 = vadd.f32 %v11147, %v11259
    %v11261 = vpop.f32.mrb[0].mxu0
    %v11262 = vadd.f32 %v11149, %v11261
    %v11263 = vpop.f32.mrb[0].mxu0
    %v11264 = vadd.f32 %v11151, %v11263
    %v11265 = vpop.f32.mrb[0].mxu0
    %v11266 = vadd.f32 %v11153, %v11265
    %11267 = vmatprep.mubr.bf16.mxu0 %v8524
    %11268 = vmatmul.mubr.bf16.gmra.mrb[0].mxu0 %v8523
    %v11269 = vpop.f32.mrb[0].mxu0
    %v11270 = vadd.f32 %v11157, %v11269
    %v11271 = vpop.f32.mrb[0].mxu0
    %v11272 = vadd.f32 %v11159, %v11271
    %v11273 = vpop.f32.mrb[0].mxu0
    %v11274 = vadd.f32 %v11161, %v11273
    %v11275 = vpop.f32.mrb[0].mxu0
    %v11276 = vadd.f32 %v11163, %v11275
    %11277 = vmatprep.mubr.bf16.mxu0 %v8530
    %11278 = vmatmul.mubr.bf16.gmra.mrb[0].mxu0 %v8529
    %v11279 = vpop.f32.mrb[0].mxu0
    %v11280 = vadd.f32 %v11167, %v11279
    %v11281 = vpop.f32.mrb[0].mxu0
    %v11282 = vadd.f32 %v11169, %v11281
    %v11283 = vpop.f32.mrb[0].mxu0
    %v11284 = vadd.f32 %v11171, %v11283
    %v11285 = vpop.f32.mrb[0].mxu0
    %v11286 = vadd.f32 %v11173, %v11285
    %11287 = vmatprep.mubr.bf16.mxu0 %v8536
    %11288 = vmatmul.mubr.bf16.gmra.mrb[0].mxu0 %v8535
    %v11289 = vpop.f32.mrb[0].mxu0
    %v11290 = vadd.f32 %v11177, %v11289
    %v11291 = vpop.f32.mrb[0].mxu0
    %v11292 = vadd.f32 %v11179, %v11291
    %v11293 = vpop.f32.mrb[0].mxu0
    %v11294 = vadd.f32 %v11181, %v11293
    %v11295 = vpop.f32.mrb[0].mxu0
    %v11296 = vadd.f32 %v11183, %v11295
    %11297 = vmatprep.mubr.bf16.mxu0 %v8542
    %11298 = vmatmul.mubr.bf16.gmra.mrb[0].mxu0 %v8541
    %v11299 = vpop.f32.mrb[0].mxu0
    %v11300 = vadd.f32 %v11187, %v11299
    %v11301 = vpop.f32.mrb[0].mxu0
    %v11302 = vadd.f32 %v11189, %v11301
    %v11303 = vpop.f32.mrb[0].mxu0
    %v11304 = vadd.f32 %v11191, %v11303
    %v11305 = vpop.f32.mrb[0].mxu0
    %v11306 = vadd.f32 %v11193, %v11305
    %11307 = vmatprep.mubr.bf16.mxu0 %v8548
    %11308 = vmatmul.mubr.bf16.gmra.mrb[0].mxu0 %v8547
    %v11309 = vpop.f32.mrb[0].mxu0
    %v11310 = vadd.f32 %v11197, %v11309
    %v11311 = vpop.f32.mrb[0].mxu0
    %v11312 = vadd.f32 %v11199, %v11311
    %v11313 = vpop.f32.mrb[0].mxu0
    %v11314 = vadd.f32 %v11201, %v11313
    %v11315 = vpop.f32.mrb[0].mxu0
    %v11316 = vadd.f32 %v11203, %v11315
    %11317 = vmatprep.mubr.bf16.mxu0 %v8554
    %11318 = vmatmul.mubr.bf16.gmra.mrb[0].mxu0 %v8553
    %v11319 = vpop.f32.mrb[0].mxu0
    %v11320 = vadd.f32 %v11207, %v11319
    %v11321 = vpop.f32.mrb[0].mxu0
    %v11322 = vadd.f32 %v11209, %v11321
    %v11323 = vpop.f32.mrb[0].mxu0
    %v11324 = vadd.f32 %v11211, %v11323
    %v11325 = vpop.f32.mrb[0].mxu0
    %v11326 = vadd.f32 %v11213, %v11325
    %11327 = vmatprep.mubr.bf16.mxu0 %v8560
    %11328 = vmatmul.mubr.bf16.gmra.mrb[0].mxu0 %v8559
    %v11329 = vpop.f32.mrb[0].mxu0
    %v11330 = vadd.f32 %v11217, %v11329
    %v11331 = vpop.f32.mrb[0].mxu0
    %v11332 = vadd.f32 %v11219, %v11331
    %v11333 = vpop.f32.mrb[0].mxu0
    %v11334 = vadd.f32 %v11221, %v11333
    %v11335 = vpop.f32.mrb[0].mxu0
    %v11336 = vadd.f32 %v11223, %v11335
    %11337 = vdwg.mxu0
    %v11338 = vtanh.pop %v10582
    %v11339 = vtanh.pop %v10584
    %v11340 = vtanh.pop %v10921
    %v11341 = vtanh.pop %v10923
    %v11342 = vtanh.pop %v11260
    %v11343 = vtanh.pop %v11262
    %v11344 = vtanh.pop %v10586
    %v11345 = vtanh.pop %v10588
    %v11346 = vtanh.pop %v10925
    %v11347 = vtanh.pop %v10927
    %v11348 = vtanh.pop %v11264
    %v11349 = vtanh.pop %v11266
    %v11350 = vtanh.pop %v10592
    %v11351 = vtanh.pop %v10594
    %v11352 = vtanh.pop %v10931
    %v11353 = vtanh.pop %v10933
    %v11354 = vtanh.pop %v11270
    %v11355 = vtanh.pop %v11272
    %v11356 = vtanh.pop %v10596
    %v11357 = vtanh.pop %v10598
    %v11358 = vtanh.pop %v10935
    %v11359 = vtanh.pop %v10937
    %v11360 = vtanh.pop %v11274
    %v11361 = vtanh.pop %v11276
    %v11362 = vtanh.pop %v10602
    %v11363 = vtanh.pop %v10604
    %v11364 = vtanh.pop %v10941
    %v11365 = vtanh.pop %v10943
    %v11366 = vtanh.pop %v11280
    %v11367 = vtanh.pop %v11282
    %v11368 = vtanh.pop %v10606
    %v11369 = vtanh.pop %v10608
    %v11370 = vtanh.pop %v10945
    %v11371 = vtanh.pop %v10947
    %v11372 = vtanh.pop %v11284
    %v11373 = vtanh.pop %v11286
    %v11374 = vtanh.pop %v10612
    %v11375 = vtanh.pop %v10614
    %v11376 = vtanh.pop %v10951
    %v11377 = vtanh.pop %v10953
    %v11378 = vtanh.pop %v11290
    %v11379 = vtanh.pop %v11292
    %v11380 = vtanh.pop %v10616
    %v11381 = vtanh.pop %v10618
    %v11382 = vtanh.pop %v10955
    %v11383 = vtanh.pop %v10957
    %v11384 = vtanh.pop %v11294
    %v11385 = vtanh.pop %v11296
    %v11386 = vtanh.pop %v10622
    %v11387 = vtanh.pop %v10624
    %v11388 = vtanh.pop %v10961
    %v11389 = vtanh.pop %v10963
    %v11390 = vtanh.pop %v11300
    %v11391 = vtanh.pop %v11302
    %v11392 = vtanh.pop %v10626
    %v11393 = vtanh.pop %v10628
    %v11394 = vtanh.pop %v10965
    %v11395 = vtanh.pop %v10967
    %v11396 = vtanh.pop %v11304
    %v11397 = vtanh.pop %v11306
    %v11398 = vtanh.pop %v10632
    %v11399 = vtanh.pop %v10634
    %v11400 = vtanh.pop %v10971
    %v11401 = vtanh.pop %v10973
    %v11402 = vtanh.pop %v11310
    %v11403 = vtanh.pop %v11312
    %v11404 = vtanh.pop %v10636
    %v11405 = vtanh.pop %v10638
    %v11406 = vtanh.pop %v10975
    %v11407 = vtanh.pop %v10977
    %v11408 = vtanh.pop %v11314
    %v11409 = vtanh.pop %v11316
    %v11410 = vtanh.pop %v10642
    %v11411 = vtanh.pop %v10644
    %v11412 = vtanh.pop %v10981
    %v11413 = vtanh.pop %v10983
    %v11414 = vtanh.pop %v11320
    %v11415 = vtanh.pop %v11322
    %v11416 = vtanh.pop %v10646
    %v11417 = vtanh.pop %v10648
    %v11418 = vtanh.pop %v10985
    %v11419 = vtanh.pop %v10987
    %v11420 = vtanh.pop %v11324
    %v11421 = vtanh.pop %v11326
    %v11422 = vtanh.pop %v10652
    %v11423 = vtanh.pop %v10654
    %v11424 = vtanh.pop %v10991
    %v11425 = vtanh.pop %v10993
    %v11426 = vtanh.pop %v11330
    %v11427 = vtanh.pop %v11332
    %v11428 = vtanh.pop %v10656
    %v11429 = vtanh.pop %v10658
    %v11430 = vtanh.pop %v10995
    %v11431 = vtanh.pop %v10997
    %v11432 = vtanh.pop %v11334
    %v11433 = vtanh.pop %v11336
    %v11434 = vpack.c.bf16 %v11344, %v11338
    %v11435 = vpack.c.bf16 %v11345, %v11339
    %v11436 = vpack.c.bf16 %v11346, %v11340
    %v11437 = vpack.c.bf16 %v11347, %v11341
    %v11438 = vpack.c.bf16 %v11348, %v11342
    %v11439 = vpack.c.bf16 %v11349, %v11343
    %v11440 = vpack.c.bf16 %v11356, %v11350
    %v11441 = vpack.c.bf16 %v11357, %v11351
    %v11442 = vpack.c.bf16 %v11358, %v11352
    %v11443 = vpack.c.bf16 %v11359, %v11353
    %v11444 = vpack.c.bf16 %v11360, %v11354
    %v11445 = vpack.c.bf16 %v11361, %v11355
    %v11446 = vpack.c.bf16 %v11368, %v11362
    %v11447 = vpack.c.bf16 %v11369, %v11363
    %v11448 = vpack.c.bf16 %v11370, %v11364
    %v11449 = vpack.c.bf16 %v11371, %v11365
    %v11450 = vpack.c.bf16 %v11372, %v11366
    %v11451 = vpack.c.bf16 %v11373, %v11367
    %v11452 = vpack.c.bf16 %v11380, %v11374
    %v11453 = vpack.c.bf16 %v11381, %v11375
    %v11454 = vpack.c.bf16 %v11382, %v11376
    %v11455 = vpack.c.bf16 %v11383, %v11377
    %v11456 = vpack.c.bf16 %v11384, %v11378
    %v11457 = vpack.c.bf16 %v11385, %v11379
    %v11458 = vpack.c.bf16 %v11392, %v11386
    %v11459 = vpack.c.bf16 %v11393, %v11387
    %v11460 = vpack.c.bf16 %v11394, %v11388
    %v11461 = vpack.c.bf16 %v11395, %v11389
    %v11462 = vpack.c.bf16 %v11396, %v11390
    %v11463 = vpack.c.bf16 %v11397, %v11391
    %v11464 = vpack.c.bf16 %v11404, %v11398
    %v11465 = vpack.c.bf16 %v11405, %v11399
    %v11466 = vpack.c.bf16 %v11406, %v11400
    %v11467 = vpack.c.bf16 %v11407, %v11401
    %v11468 = vpack.c.bf16 %v11408, %v11402
    %v11469 = vpack.c.bf16 %v11409, %v11403
    %v11470 = vpack.c.bf16 %v11416, %v11410
    %v11471 = vpack.c.bf16 %v11417, %v11411
    %v11472 = vpack.c.bf16 %v11418, %v11412
    %v11473 = vpack.c.bf16 %v11419, %v11413
    %v11474 = vpack.c.bf16 %v11420, %v11414
    %v11475 = vpack.c.bf16 %v11421, %v11415
    %v11476 = vpack.c.bf16 %v11428, %v11422
    %v11477 = vpack.c.bf16 %v11429, %v11423
    %v11478 = vpack.c.bf16 %v11430, %v11424
    %v11479 = vpack.c.bf16 %v11431, %v11425
    %v11480 = vpack.c.bf16 %v11432, %v11426
    %v11481 = vpack.c.bf16 %v11433, %v11427
    %v11482 = vld [vmem:[#allocation8] sm:$0xf]
    %v11483 = vld [vmem:[#allocation8 + $0x4] sm:$0xf]
    %v11484 = vld [vmem:[#allocation8 + $0x8] sm:$0xf]
    %v11485 = vld [vmem:[#allocation8 + $0xc] sm:$0xf]
    %v11486 = vld [vmem:[#allocation8 + $0x10] sm:$0xf]
    %v11487 = vld [vmem:[#allocation8 + $0x14] sm:$0xf]
    %v11488 = vld [vmem:[#allocation8 + $0x18] sm:$0xf]
    %v11489 = vld [vmem:[#allocation8 + $0x1c] sm:$0xf]
    %v11490 = vld [vmem:[#allocation8 + $0x20] sm:$0xf]
    %v11491 = vld [vmem:[#allocation8 + $0x24] sm:$0xf]
    %v11492 = vld [vmem:[#allocation8 + $0x28] sm:$0xf]
    %v11493 = vld [vmem:[#allocation8 + $0x2c] sm:$0xf]
    %v11494 = vld [vmem:[#allocation8 + $0x30] sm:$0xf]
    %v11495 = vld [vmem:[#allocation8 + $0x34] sm:$0xf]
    %v11496 = vld [vmem:[#allocation8 + $0x38] sm:$0xf]
    %v11497 = vld [vmem:[#allocation8 + $0x3c] sm:$0xf]
    %v11498 = vld [vmem:[#allocation8 + $0x40] sm:$0xf]
    %v11499 = vld [vmem:[#allocation8 + $0x44] sm:$0xf]
    %v11500 = vld [vmem:[#allocation8 + $0x48] sm:$0xf]
    %v11501 = vld [vmem:[#allocation8 + $0x4c] sm:$0xf]
    %v11502 = vld [vmem:[#allocation8 + $0x50] sm:$0xf]
    %v11503 = vld [vmem:[#allocation8 + $0x54] sm:$0xf]
    %v11504 = vld [vmem:[#allocation8 + $0x58] sm:$0xf]
    %v11505 = vld [vmem:[#allocation8 + $0x5c] sm:$0xf]
    %v11506 = vld [vmem:[#allocation8 + $0x60] sm:$0xf]
    %v11507 = vld [vmem:[#allocation8 + $0x64] sm:$0xf]
    %v11508 = vld [vmem:[#allocation8 + $0x68] sm:$0xf]
    %v11509 = vld [vmem:[#allocation8 + $0x6c] sm:$0xf]
    %v11510 = vld [vmem:[#allocation8 + $0x70] sm:$0xf]
    %v11511 = vld [vmem:[#allocation8 + $0x74] sm:$0xf]
    %v11512 = vld [vmem:[#allocation8 + $0x78] sm:$0xf]
    %v11513 = vld [vmem:[#allocation8 + $0x7c] sm:$0xf]
    %v11514 = vld [vmem:[#allocation8 + $0x80] sm:$0xf]
    %v11515 = vld [vmem:[#allocation8 + $0x84] sm:$0xf]
    %v11516 = vld [vmem:[#allocation8 + $0x88] sm:$0xf]
    %v11517 = vld [vmem:[#allocation8 + $0x8c] sm:$0xf]
    %v11518 = vld [vmem:[#allocation8 + $0x90] sm:$0xf]
    %v11519 = vld [vmem:[#allocation8 + $0x94] sm:$0xf]
    %v11520 = vld [vmem:[#allocation8 + $0x98] sm:$0xf]
    %v11521 = vld [vmem:[#allocation8 + $0x9c] sm:$0xf]
    %v11522 = vld [vmem:[#allocation8 + $0xa0] sm:$0xf]
    %v11523 = vld [vmem:[#allocation8 + $0xa4] sm:$0xf]
    %v11524 = vld [vmem:[#allocation8 + $0xa8] sm:$0xf]
    %v11525 = vld [vmem:[#allocation8 + $0xac] sm:$0xf]
    %v11526 = vld [vmem:[#allocation8 + $0xb0] sm:$0xf]
    %v11527 = vld [vmem:[#allocation8 + $0xb4] sm:$0xf]
    %v11528 = vld [vmem:[#allocation8 + $0xb8] sm:$0xf]
    %v11529 = vld [vmem:[#allocation8 + $0xbc] sm:$0xf]
    %v11530 = vld [vmem:[#allocation8 + $0xc0] sm:$0xf]
    %v11531 = vld [vmem:[#allocation8 + $0xc4] sm:$0xf]
    %v11532 = vld [vmem:[#allocation8 + $0xc8] sm:$0xf]
    %v11533 = vld [vmem:[#allocation8 + $0xcc] sm:$0xf]
    %v11534 = vld [vmem:[#allocation8 + $0xd0] sm:$0xf]
    %v11535 = vld [vmem:[#allocation8 + $0xd4] sm:$0xf]
    %v11536 = vld [vmem:[#allocation8 + $0xd8] sm:$0xf]
    %v11537 = vld [vmem:[#allocation8 + $0xdc] sm:$0xf]
    %v11538 = vld [vmem:[#allocation8 + $0xe0] sm:$0xf]
    %v11539 = vld [vmem:[#allocation8 + $0xe4] sm:$0xf]
    %v11540 = vld [vmem:[#allocation8 + $0xe8] sm:$0xf]
    %v11541 = vld [vmem:[#allocation8 + $0xec] sm:$0xf]
    %v11542 = vld [vmem:[#allocation8 + $0xf0] sm:$0xf]
    %v11543 = vld [vmem:[#allocation8 + $0xf4] sm:$0xf]
    %v11544 = vld [vmem:[#allocation8 + $0xf8] sm:$0xf]
    %v11545 = vld [vmem:[#allocation8 + $0xfc] sm:$0xf]
    %v11546 = vld [vmem:[#allocation8 + $0x100] sm:$0xf]
    %v11547 = vld [vmem:[#allocation8 + $0x104] sm:$0xf]
    %v11548 = vld [vmem:[#allocation8 + $0x108] sm:$0xf]
    %v11549 = vld [vmem:[#allocation8 + $0x10c] sm:$0xf]
    %v11550 = vld [vmem:[#allocation8 + $0x110] sm:$0xf]
    %v11551 = vld [vmem:[#allocation8 + $0x114] sm:$0xf]
    %v11552 = vld [vmem:[#allocation8 + $0x118] sm:$0xf]
    %v11553 = vld [vmem:[#allocation8 + $0x11c] sm:$0xf]
    %v11554 = vld [vmem:[#allocation8 + $0x120] sm:$0xf]
    %v11555 = vld [vmem:[#allocation8 + $0x124] sm:$0xf]
    %v11556 = vld [vmem:[#allocation8 + $0x128] sm:$0xf]
    %v11557 = vld [vmem:[#allocation8 + $0x12c] sm:$0xf]
    %v11558 = vld [vmem:[#allocation8 + $0x130] sm:$0xf]
    %v11559 = vld [vmem:[#allocation8 + $0x134] sm:$0xf]
    %v11560 = vld [vmem:[#allocation8 + $0x138] sm:$0xf]
    %v11561 = vld [vmem:[#allocation8 + $0x13c] sm:$0xf]
    %v11562 = vld [vmem:[#allocation8 + $0x140] sm:$0xf]
    %v11563 = vld [vmem:[#allocation8 + $0x144] sm:$0xf]
    %v11564 = vld [vmem:[#allocation8 + $0x148] sm:$0xf]
    %v11565 = vld [vmem:[#allocation8 + $0x14c] sm:$0xf]
    %v11566 = vld [vmem:[#allocation8 + $0x150] sm:$0xf]
    %v11567 = vld [vmem:[#allocation8 + $0x154] sm:$0xf]
    %v11568 = vld [vmem:[#allocation8 + $0x158] sm:$0xf]
    %v11569 = vld [vmem:[#allocation8 + $0x15c] sm:$0xf]
    %v11570 = vld [vmem:[#allocation8 + $0x160] sm:$0xf]
    %v11571 = vld [vmem:[#allocation8 + $0x164] sm:$0xf]
    %v11572 = vld [vmem:[#allocation8 + $0x168] sm:$0xf]
    %v11573 = vld [vmem:[#allocation8 + $0x16c] sm:$0xf]
    %v11574 = vld [vmem:[#allocation8 + $0x170] sm:$0xf]
    %v11575 = vld [vmem:[#allocation8 + $0x174] sm:$0xf]
    %v11576 = vld [vmem:[#allocation8 + $0x178] sm:$0xf]
    %v11577 = vld [vmem:[#allocation8 + $0x17c] sm:$0xf]
    %v11578 = vld [vmem:[#allocation10] sm:$0x1]
    %v11580 = vlaneseq
    %v11581 = vshrl.u32 %v11580, 7
    %v11582 = vsub.s32 0, %v11581
    %v11583 = vrot.slane %v11578, %v11582
    %v11681 = vunpack.c.l.b16 %v11482
    %v11682 = vunpack.c.l.b16 %v11483
    %v11683 = vunpack.c.l.b16 %v11484
    %v11684 = vunpack.c.l.b16 %v11485
    %v11685 = vunpack.c.l.b16 %v11486
    %v11686 = vunpack.c.l.b16 %v11487
    %v11687 = vunpack.c.l.b16 %v11488
    %v11688 = vunpack.c.l.b16 %v11489
    %v11689 = vunpack.c.l.b16 %v11490
    %v11690 = vunpack.c.l.b16 %v11491
    %v11691 = vunpack.c.l.b16 %v11492
    %v11692 = vunpack.c.l.b16 %v11493
    %v11693 = vunpack.c.l.b16 %v11494
    %v11694 = vunpack.c.l.b16 %v11495
    %v11695 = vunpack.c.l.b16 %v11496
    %v11696 = vunpack.c.l.b16 %v11497
    %v11697 = vunpack.c.l.b16 %v11498
    %v11698 = vunpack.c.l.b16 %v11499
    %v11699 = vunpack.c.l.b16 %v11500
    %v11700 = vunpack.c.l.b16 %v11501
    %v11701 = vunpack.c.l.b16 %v11502
    %v11702 = vunpack.c.l.b16 %v11503
    %v11703 = vunpack.c.l.b16 %v11504
    %v11704 = vunpack.c.l.b16 %v11505
    %v11705 = vunpack.c.l.b16 %v11506
    %v11706 = vunpack.c.l.b16 %v11507
    %v11707 = vunpack.c.l.b16 %v11508
    %v11708 = vunpack.c.l.b16 %v11509
    %v11709 = vunpack.c.l.b16 %v11510
    %v11710 = vunpack.c.l.b16 %v11511
    %v11711 = vunpack.c.l.b16 %v11512
    %v11712 = vunpack.c.l.b16 %v11513
    %v11713 = vunpack.c.l.b16 %v11514
    %v11714 = vunpack.c.l.b16 %v11515
    %v11715 = vunpack.c.l.b16 %v11516
    %v11716 = vunpack.c.l.b16 %v11517
    %v11717 = vunpack.c.l.b16 %v11518
    %v11718 = vunpack.c.l.b16 %v11519
    %v11719 = vunpack.c.l.b16 %v11520
    %v11720 = vunpack.c.l.b16 %v11521
    %v11721 = vunpack.c.l.b16 %v11522
    %v11722 = vunpack.c.l.b16 %v11523
    %v11723 = vunpack.c.l.b16 %v11524
    %v11724 = vunpack.c.l.b16 %v11525
    %v11725 = vunpack.c.l.b16 %v11526
    %v11726 = vunpack.c.l.b16 %v11527
    %v11727 = vunpack.c.l.b16 %v11528
    %v11728 = vunpack.c.l.b16 %v11529
    %v11729 = vunpack.c.l.b16 %v11530
    %v11730 = vunpack.c.l.b16 %v11531
    %v11731 = vunpack.c.l.b16 %v11532
    %v11732 = vunpack.c.l.b16 %v11533
    %v11733 = vunpack.c.l.b16 %v11534
    %v11734 = vunpack.c.l.b16 %v11535
    %v11735 = vunpack.c.l.b16 %v11536
    %v11736 = vunpack.c.l.b16 %v11537
    %v11737 = vunpack.c.l.b16 %v11538
    %v11738 = vunpack.c.l.b16 %v11539
    %v11739 = vunpack.c.l.b16 %v11540
    %v11740 = vunpack.c.l.b16 %v11541
    %v11741 = vunpack.c.l.b16 %v11542
    %v11742 = vunpack.c.l.b16 %v11543
    %v11743 = vunpack.c.l.b16 %v11544
    %v11744 = vunpack.c.l.b16 %v11545
    %v11745 = vunpack.c.l.b16 %v11546
    %v11746 = vunpack.c.l.b16 %v11547
    %v11747 = vunpack.c.l.b16 %v11548
    %v11748 = vunpack.c.l.b16 %v11549
    %v11749 = vunpack.c.l.b16 %v11550
    %v11750 = vunpack.c.l.b16 %v11551
    %v11751 = vunpack.c.l.b16 %v11552
    %v11752 = vunpack.c.l.b16 %v11553
    %v11753 = vunpack.c.l.b16 %v11554
    %v11754 = vunpack.c.l.b16 %v11555
    %v11755 = vunpack.c.l.b16 %v11556
    %v11756 = vunpack.c.l.b16 %v11557
    %v11757 = vunpack.c.l.b16 %v11558
    %v11758 = vunpack.c.l.b16 %v11559
    %v11759 = vunpack.c.l.b16 %v11560
    %v11760 = vunpack.c.l.b16 %v11561
    %v11761 = vunpack.c.l.b16 %v11562
    %v11762 = vunpack.c.l.b16 %v11563
    %v11763 = vunpack.c.l.b16 %v11564
    %v11764 = vunpack.c.l.b16 %v11565
    %v11765 = vunpack.c.l.b16 %v11566
    %v11766 = vunpack.c.l.b16 %v11567
    %v11767 = vunpack.c.l.b16 %v11568
    %v11768 = vunpack.c.l.b16 %v11569
    %v11769 = vunpack.c.l.b16 %v11570
    %v11770 = vunpack.c.l.b16 %v11571
    %v11771 = vunpack.c.l.b16 %v11572
    %v11772 = vunpack.c.l.b16 %v11573
    %v11773 = vunpack.c.l.b16 %v11574
    %v11774 = vunpack.c.l.b16 %v11575
    %v11775 = vunpack.c.l.b16 %v11576
    %v11776 = vunpack.c.l.b16 %v11577
    %v11777 = vpack.c.b16 %v11682, %v11681
    %v11778 = vpack.c.b16 %v11684, %v11683
    %v11779 = vpack.c.b16 %v11686, %v11685
    %v11780 = vpack.c.b16 %v11688, %v11687
    %v11781 = vpack.c.b16 %v11690, %v11689
    %v11782 = vpack.c.b16 %v11692, %v11691
    %v11783 = vpack.c.b16 %v11694, %v11693
    %v11784 = vpack.c.b16 %v11696, %v11695
    %v11785 = vpack.c.b16 %v11698, %v11697
    %v11786 = vpack.c.b16 %v11700, %v11699
    %v11787 = vpack.c.b16 %v11702, %v11701
    %v11788 = vpack.c.b16 %v11704, %v11703
    %v11789 = vpack.c.b16 %v11706, %v11705
    %v11790 = vpack.c.b16 %v11708, %v11707
    %v11791 = vpack.c.b16 %v11710, %v11709
    %v11792 = vpack.c.b16 %v11712, %v11711
    %v11793 = vpack.c.b16 %v11714, %v11713
    %v11794 = vpack.c.b16 %v11716, %v11715
    %v11795 = vpack.c.b16 %v11718, %v11717
    %v11796 = vpack.c.b16 %v11720, %v11719
    %v11797 = vpack.c.b16 %v11722, %v11721
    %v11798 = vpack.c.b16 %v11724, %v11723
    %v11799 = vpack.c.b16 %v11726, %v11725
    %v11800 = vpack.c.b16 %v11728, %v11727
    %v11801 = vpack.c.b16 %v11730, %v11729
    %v11802 = vpack.c.b16 %v11732, %v11731
    %v11803 = vpack.c.b16 %v11734, %v11733
    %v11804 = vpack.c.b16 %v11736, %v11735
    %v11805 = vpack.c.b16 %v11738, %v11737
    %v11806 = vpack.c.b16 %v11740, %v11739
    %v11807 = vpack.c.b16 %v11742, %v11741
    %v11808 = vpack.c.b16 %v11744, %v11743
    %v11809 = vpack.c.b16 %v11746, %v11745
    %v11810 = vpack.c.b16 %v11748, %v11747
    %v11811 = vpack.c.b16 %v11750, %v11749
    %v11812 = vpack.c.b16 %v11752, %v11751
    %v11813 = vpack.c.b16 %v11754, %v11753
    %v11814 = vpack.c.b16 %v11756, %v11755
    %v11815 = vpack.c.b16 %v11758, %v11757
    %v11816 = vpack.c.b16 %v11760, %v11759
    %v11817 = vpack.c.b16 %v11762, %v11761
    %v11818 = vpack.c.b16 %v11764, %v11763
    %v11819 = vpack.c.b16 %v11766, %v11765
    %v11820 = vpack.c.b16 %v11768, %v11767
    %v11821 = vpack.c.b16 %v11770, %v11769
    %v11822 = vpack.c.b16 %v11772, %v11771
    %v11823 = vpack.c.b16 %v11774, %v11773
    %v11824 = vpack.c.b16 %v11776, %v11775
    %11873 = vmatprep.subr.bf16.mxu0 0
    %11874 = vmatpush1.bf16.msra.mxu0 %v11777
    %11875 = vmatprep.subr.bf16.mxu0 0
    %11876 = vmatpush1.bf16.msra.mxu0 %v11778
    %11877 = vmatprep.subr.bf16.mxu0 0
    %11878 = vmatpush1.bf16.msra.mxu0 %v11779
    %11879 = vmatprep.subr.bf16.mxu0 0
    %11880 = vmatpush1.bf16.msra.mxu0 %v11780
    %11881 = vmatprep.subr.bf16.mxu0 0
    %11882 = vmatpush1.bf16.msra.mxu0 %v11781
    %11883 = vmatprep.subr.bf16.mxu0 0
    %11884 = vmatpush1.bf16.msra.mxu0 %v11782
    %11885 = vmatprep.subr.bf16.mxu0 0
    %11886 = vmatpush1.bf16.msra.mxu0 %v11783
    %11887 = vmatprep.subr.bf16.mxu0 0
    %11888 = vmatpush1.bf16.msra.mxu0 %v11784
    %11889 = vmatprep.subr.bf16.mxu0 0
    %11890 = vmatpush1.bf16.msra.mxu0 %v11785
    %11891 = vmatprep.subr.bf16.mxu0 0
    %11892 = vmatpush1.bf16.msra.mxu0 %v11786
    %11893 = vmatprep.subr.bf16.mxu0 0
    %11894 = vmatpush1.bf16.msra.mxu0 %v11787
    %11895 = vmatprep.subr.bf16.mxu0 0
    %11896 = vmatpush1.bf16.msra.mxu0 %v11788
    %11897 = vmatprep.subr.bf16.mxu0 0
    %11898 = vmatpush1.bf16.msra.mxu0 %v11789
    %11899 = vmatprep.subr.bf16.mxu0 0
    %11900 = vmatpush1.bf16.msra.mxu0 %v11790
    %11901 = vmatprep.subr.bf16.mxu0 0
    %11902 = vmatpush1.bf16.msra.mxu0 %v11791
    %11903 = vmatprep.subr.bf16.mxu0 0
    %11904 = vmatpush1.bf16.msra.mxu0 %v11792
    %11905 = vmatprep.mubr.bf16.mxu0 %v11435
    %11906 = vmatmul.mubr.bf16.gmra.mrb[0].mxu0 %v11434
    %v11907 = vpop.f32.mrb[0].mxu0
    %v11908 = vadd.f32 %v11583, %v11907
    %v11909 = vpop.f32.mrb[0].mxu0
    %v11910 = vpop.f32.mrb[0].mxu0
    %v11911 = vadd.f32 %v11583, %v11910
    %v11912 = vpop.f32.mrb[0].mxu0
    %11913 = vmatprep.mubr.bf16.mxu0 %v11441
    %11914 = vmatmul.mubr.bf16.gmra.mrb[0].mxu0 %v11440
    %v11915 = vpop.f32.mrb[0].mxu0
    %v11916 = vadd.f32 %v11583, %v11915
    %v11917 = vpop.f32.mrb[0].mxu0
    %v11918 = vpop.f32.mrb[0].mxu0
    %v11919 = vadd.f32 %v11583, %v11918
    %v11920 = vpop.f32.mrb[0].mxu0
    %11921 = vmatprep.mubr.bf16.mxu0 %v11447
    %11922 = vmatmul.mubr.bf16.gmra.mrb[0].mxu0 %v11446
    %v11923 = vpop.f32.mrb[0].mxu0
    %v11924 = vadd.f32 %v11583, %v11923
    %v11925 = vpop.f32.mrb[0].mxu0
    %v11926 = vpop.f32.mrb[0].mxu0
    %v11927 = vadd.f32 %v11583, %v11926
    %v11928 = vpop.f32.mrb[0].mxu0
    %11929 = vmatprep.mubr.bf16.mxu0 %v11453
    %11930 = vmatmul.mubr.bf16.gmra.mrb[0].mxu0 %v11452
    %v11931 = vpop.f32.mrb[0].mxu0
    %v11932 = vadd.f32 %v11583, %v11931
    %v11933 = vpop.f32.mrb[0].mxu0
    %v11934 = vpop.f32.mrb[0].mxu0
    %v11935 = vadd.f32 %v11583, %v11934
    %v11936 = vpop.f32.mrb[0].mxu0
    %11937 = vmatprep.mubr.bf16.mxu0 %v11459
    %11938 = vmatmul.mubr.bf16.gmra.mrb[0].mxu0 %v11458
    %v11939 = vpop.f32.mrb[0].mxu0
    %v11940 = vadd.f32 %v11583, %v11939
    %v11941 = vpop.f32.mrb[0].mxu0
    %v11942 = vpop.f32.mrb[0].mxu0
    %v11943 = vadd.f32 %v11583, %v11942
    %v11944 = vpop.f32.mrb[0].mxu0
    %11945 = vmatprep.mubr.bf16.mxu0 %v11465
    %11946 = vmatmul.mubr.bf16.gmra.mrb[0].mxu0 %v11464
    %v11947 = vpop.f32.mrb[0].mxu0
    %v11948 = vadd.f32 %v11583, %v11947
    %v11949 = vpop.f32.mrb[0].mxu0
    %v11950 = vpop.f32.mrb[0].mxu0
    %v11951 = vadd.f32 %v11583, %v11950
    %v11952 = vpop.f32.mrb[0].mxu0
    %11953 = vmatprep.mubr.bf16.mxu0 %v11471
    %11954 = vmatmul.mubr.bf16.gmra.mrb[0].mxu0 %v11470
    %v11955 = vpop.f32.mrb[0].mxu0
    %v11956 = vadd.f32 %v11583, %v11955
    %v11957 = vpop.f32.mrb[0].mxu0
    %v11958 = vpop.f32.mrb[0].mxu0
    %v11959 = vadd.f32 %v11583, %v11958
    %v11960 = vpop.f32.mrb[0].mxu0
    %11961 = vmatprep.mubr.bf16.mxu0 %v11477
    %11962 = vmatmul.mubr.bf16.gmra.mrb[0].mxu0 %v11476
    %v11963 = vpop.f32.mrb[0].mxu0
    %v11964 = vadd.f32 %v11583, %v11963
    %v11965 = vpop.f32.mrb[0].mxu0
    %v11966 = vpop.f32.mrb[0].mxu0
    %v11967 = vadd.f32 %v11583, %v11966
    %v11968 = vpop.f32.mrb[0].mxu0
    %11969 = vdwg.mxu0
    %11970 = vmatprep.subr.bf16.mxu0 0
    %11971 = vmatpush1.bf16.msra.mxu0 %v11793
    %11972 = vmatprep.subr.bf16.mxu0 0
    %11973 = vmatpush1.bf16.msra.mxu0 %v11794
    %11974 = vmatprep.subr.bf16.mxu0 0
    %11975 = vmatpush1.bf16.msra.mxu0 %v11795
    %11976 = vmatprep.subr.bf16.mxu0 0
    %11977 = vmatpush1.bf16.msra.mxu0 %v11796
    %11978 = vmatprep.subr.bf16.mxu0 0
    %11979 = vmatpush1.bf16.msra.mxu0 %v11797
    %11980 = vmatprep.subr.bf16.mxu0 0
    %11981 = vmatpush1.bf16.msra.mxu0 %v11798
    %11982 = vmatprep.subr.bf16.mxu0 0
    %11983 = vmatpush1.bf16.msra.mxu0 %v11799
    %11984 = vmatprep.subr.bf16.mxu0 0
    %11985 = vmatpush1.bf16.msra.mxu0 %v11800
    %11986 = vmatprep.subr.bf16.mxu0 0
    %11987 = vmatpush1.bf16.msra.mxu0 %v11801
    %11988 = vmatprep.subr.bf16.mxu0 0
    %11989 = vmatpush1.bf16.msra.mxu0 %v11802
    %11990 = vmatprep.subr.bf16.mxu0 0
    %11991 = vmatpush1.bf16.msra.mxu0 %v11803
    %11992 = vmatprep.subr.bf16.mxu0 0
    %11993 = vmatpush1.bf16.msra.mxu0 %v11804
    %11994 = vmatprep.subr.bf16.mxu0 0
    %11995 = vmatpush1.bf16.msra.mxu0 %v11805
    %11996 = vmatprep.subr.bf16.mxu0 0
    %11997 = vmatpush1.bf16.msra.mxu0 %v11806
    %11998 = vmatprep.subr.bf16.mxu0 0
    %11999 = vmatpush1.bf16.msra.mxu0 %v11807
    %12000 = vmatprep.subr.bf16.mxu0 0
    %12001 = vmatpush1.bf16.msra.mxu0 %v11808
    %12002 = vmatprep.mubr.bf16.mxu0 %v11437
    %12003 = vmatmul.mubr.bf16.gmra.mrb[0].mxu0 %v11436
    %v12004 = vpop.f32.mrb[0].mxu0
    %v12005 = vadd.f32 %v11908, %v12004
    %v12006 = vpop.f32.mrb[0].mxu0
    %v12007 = vpop.f32.mrb[0].mxu0
    %v12008 = vadd.f32 %v11911, %v12007
    %v12009 = vpop.f32.mrb[0].mxu0
    %12010 = vmatprep.mubr.bf16.mxu0 %v11443
    %12011 = vmatmul.mubr.bf16.gmra.mrb[0].mxu0 %v11442
    %v12012 = vpop.f32.mrb[0].mxu0
    %v12013 = vadd.f32 %v11916, %v12012
    %v12014 = vpop.f32.mrb[0].mxu0
    %v12015 = vpop.f32.mrb[0].mxu0
    %v12016 = vadd.f32 %v11919, %v12015
    %v12017 = vpop.f32.mrb[0].mxu0
    %12018 = vmatprep.mubr.bf16.mxu0 %v11449
    %12019 = vmatmul.mubr.bf16.gmra.mrb[0].mxu0 %v11448
    %v12020 = vpop.f32.mrb[0].mxu0
    %v12021 = vadd.f32 %v11924, %v12020
    %v12022 = vpop.f32.mrb[0].mxu0
    %v12023 = vpop.f32.mrb[0].mxu0
    %v12024 = vadd.f32 %v11927, %v12023
    %v12025 = vpop.f32.mrb[0].mxu0
    %12026 = vmatprep.mubr.bf16.mxu0 %v11455
    %12027 = vmatmul.mubr.bf16.gmra.mrb[0].mxu0 %v11454
    %v12028 = vpop.f32.mrb[0].mxu0
    %v12029 = vadd.f32 %v11932, %v12028
    %v12030 = vpop.f32.mrb[0].mxu0
    %v12031 = vpop.f32.mrb[0].mxu0
    %v12032 = vadd.f32 %v11935, %v12031
    %v12033 = vpop.f32.mrb[0].mxu0
    %12034 = vmatprep.mubr.bf16.mxu0 %v11461
    %12035 = vmatmul.mubr.bf16.gmra.mrb[0].mxu0 %v11460
    %v12036 = vpop.f32.mrb[0].mxu0
    %v12037 = vadd.f32 %v11940, %v12036
    %v12038 = vpop.f32.mrb[0].mxu0
    %v12039 = vpop.f32.mrb[0].mxu0
    %v12040 = vadd.f32 %v11943, %v12039
    %v12041 = vpop.f32.mrb[0].mxu0
    %12042 = vmatprep.mubr.bf16.mxu0 %v11467
    %12043 = vmatmul.mubr.bf16.gmra.mrb[0].mxu0 %v11466
    %v12044 = vpop.f32.mrb[0].mxu0
    %v12045 = vadd.f32 %v11948, %v12044
    %v12046 = vpop.f32.mrb[0].mxu0
    %v12047 = vpop.f32.mrb[0].mxu0
    %v12048 = vadd.f32 %v11951, %v12047
    %v12049 = vpop.f32.mrb[0].mxu0
    %12050 = vmatprep.mubr.bf16.mxu0 %v11473
    %12051 = vmatmul.mubr.bf16.gmra.mrb[0].mxu0 %v11472
    %v12052 = vpop.f32.mrb[0].mxu0
    %v12053 = vadd.f32 %v11956, %v12052
    %v12054 = vpop.f32.mrb[0].mxu0
    %v12055 = vpop.f32.mrb[0].mxu0
    %v12056 = vadd.f32 %v11959, %v12055
    %v12057 = vpop.f32.mrb[0].mxu0
    %12058 = vmatprep.mubr.bf16.mxu0 %v11479
    %12059 = vmatmul.mubr.bf16.gmra.mrb[0].mxu0 %v11478
    %v12060 = vpop.f32.mrb[0].mxu0
    %v12061 = vadd.f32 %v11964, %v12060
    %v12062 = vpop.f32.mrb[0].mxu0
    %v12063 = vpop.f32.mrb[0].mxu0
    %v12064 = vadd.f32 %v11967, %v12063
    %v12065 = vpop.f32.mrb[0].mxu0
    %12066 = vdwg.mxu0
    %12067 = vmatprep.subr.bf16.mxu0 0
    %12068 = vmatpush1.bf16.msra.mxu0 %v11809
    %12069 = vmatprep.subr.bf16.mxu0 0
    %12070 = vmatpush1.bf16.msra.mxu0 %v11810
    %12071 = vmatprep.subr.bf16.mxu0 0
    %12072 = vmatpush1.bf16.msra.mxu0 %v11811
    %12073 = vmatprep.subr.bf16.mxu0 0
    %12074 = vmatpush1.bf16.msra.mxu0 %v11812
    %12075 = vmatprep.subr.bf16.mxu0 0
    %12076 = vmatpush1.bf16.msra.mxu0 %v11813
    %12077 = vmatprep.subr.bf16.mxu0 0
    %12078 = vmatpush1.bf16.msra.mxu0 %v11814
    %12079 = vmatprep.subr.bf16.mxu0 0
    %12080 = vmatpush1.bf16.msra.mxu0 %v11815
    %12081 = vmatprep.subr.bf16.mxu0 0
    %12082 = vmatpush1.bf16.msra.mxu0 %v11816
    %12083 = vmatprep.subr.bf16.mxu0 0
    %12084 = vmatpush1.bf16.msra.mxu0 %v11817
    %12085 = vmatprep.subr.bf16.mxu0 0
    %12086 = vmatpush1.bf16.msra.mxu0 %v11818
    %12087 = vmatprep.subr.bf16.mxu0 0
    %12088 = vmatpush1.bf16.msra.mxu0 %v11819
    %12089 = vmatprep.subr.bf16.mxu0 0
    %12090 = vmatpush1.bf16.msra.mxu0 %v11820
    %12091 = vmatprep.subr.bf16.mxu0 0
    %12092 = vmatpush1.bf16.msra.mxu0 %v11821
    %12093 = vmatprep.subr.bf16.mxu0 0
    %12094 = vmatpush1.bf16.msra.mxu0 %v11822
    %12095 = vmatprep.subr.bf16.mxu0 0
    %12096 = vmatpush1.bf16.msra.mxu0 %v11823
    %12097 = vmatprep.subr.bf16.mxu0 0
    %12098 = vmatpush1.bf16.msra.mxu0 %v11824
    %12099 = vmatprep.mubr.bf16.mxu0 %v11439
    %12100 = vmatmul.mubr.bf16.gmra.mrb[0].mxu0 %v11438
    %v12101 = vpop.f32.mrb[0].mxu0
    %v12102 = vadd.f32 %v12005, %v12101
    %v12103 = vpop.f32.mrb[0].mxu0
    %v12104 = vpop.f32.mrb[0].mxu0
    %v12105 = vadd.f32 %v12008, %v12104
    %v12106 = vpop.f32.mrb[0].mxu0
    %12107 = vmatprep.mubr.bf16.mxu0 %v11445
    %12108 = vmatmul.mubr.bf16.gmra.mrb[0].mxu0 %v11444
    %v12109 = vpop.f32.mrb[0].mxu0
    %v12110 = vadd.f32 %v12013, %v12109
    %v12111 = vpop.f32.mrb[0].mxu0
    %v12112 = vpop.f32.mrb[0].mxu0
    %v12113 = vadd.f32 %v12016, %v12112
    %v12114 = vpop.f32.mrb[0].mxu0
    %12115 = vmatprep.mubr.bf16.mxu0 %v11451
    %12116 = vmatmul.mubr.bf16.gmra.mrb[0].mxu0 %v11450
    %v12117 = vpop.f32.mrb[0].mxu0
    %v12118 = vadd.f32 %v12021, %v12117
    %v12119 = vpop.f32.mrb[0].mxu0
    %v12120 = vpop.f32.mrb[0].mxu0
    %v12121 = vadd.f32 %v12024, %v12120
    %v12122 = vpop.f32.mrb[0].mxu0
    %12123 = vmatprep.mubr.bf16.mxu0 %v11457
    %12124 = vmatmul.mubr.bf16.gmra.mrb[0].mxu0 %v11456
    %v12125 = vpop.f32.mrb[0].mxu0
    %v12126 = vadd.f32 %v12029, %v12125
    %v12127 = vpop.f32.mrb[0].mxu0
    %v12128 = vpop.f32.mrb[0].mxu0
    %v12129 = vadd.f32 %v12032, %v12128
    %v12130 = vpop.f32.mrb[0].mxu0
    %12131 = vmatprep.mubr.bf16.mxu0 %v11463
    %12132 = vmatmul.mubr.bf16.gmra.mrb[0].mxu0 %v11462
    %v12133 = vpop.f32.mrb[0].mxu0
    %v12134 = vadd.f32 %v12037, %v12133
    %v12135 = vpop.f32.mrb[0].mxu0
    %v12136 = vpop.f32.mrb[0].mxu0
    %v12137 = vadd.f32 %v12040, %v12136
    %v12138 = vpop.f32.mrb[0].mxu0
    %12139 = vmatprep.mubr.bf16.mxu0 %v11469
    %12140 = vmatmul.mubr.bf16.gmra.mrb[0].mxu0 %v11468
    %v12141 = vpop.f32.mrb[0].mxu0
    %v12142 = vadd.f32 %v12045, %v12141
    %v12143 = vpop.f32.mrb[0].mxu0
    %v12144 = vpop.f32.mrb[0].mxu0
    %v12145 = vadd.f32 %v12048, %v12144
    %v12146 = vpop.f32.mrb[0].mxu0
    %12147 = vmatprep.mubr.bf16.mxu0 %v11475
    %12148 = vmatmul.mubr.bf16.gmra.mrb[0].mxu0 %v11474
    %v12149 = vpop.f32.mrb[0].mxu0
    %v12150 = vadd.f32 %v12053, %v12149
    %v12151 = vpop.f32.mrb[0].mxu0
    %v12152 = vpop.f32.mrb[0].mxu0
    %v12153 = vadd.f32 %v12056, %v12152
    %v12154 = vpop.f32.mrb[0].mxu0
    %12155 = vmatprep.mubr.bf16.mxu0 %v11481
    %12156 = vmatmul.mubr.bf16.gmra.mrb[0].mxu0 %v11480
    %v12157 = vpop.f32.mrb[0].mxu0
    %v12158 = vadd.f32 %v12061, %v12157
    %v12159 = vpop.f32.mrb[0].mxu0
    %v12160 = vpop.f32.mrb[0].mxu0
    %v12161 = vadd.f32 %v12064, %v12160
    %v12162 = vpop.f32.mrb[0].mxu0
    %12163 = vdwg.mxu0
    %v12164 = vmax.f32 %v12102, 0.0
    %v12165 = vmax.f32 %v12105, 0.0
    %v12166 = vmax.f32 %v12110, 0.0
    %v12167 = vmax.f32 %v12113, 0.0
    %v12168 = vmax.f32 %v12118, 0.0
    %v12169 = vmax.f32 %v12121, 0.0
    %v12170 = vmax.f32 %v12126, 0.0
    %v12171 = vmax.f32 %v12129, 0.0
    %v12172 = vmax.f32 %v12134, 0.0
    %v12173 = vmax.f32 %v12137, 0.0
    %v12174 = vmax.f32 %v12142, 0.0
    %v12175 = vmax.f32 %v12145, 0.0
    %v12176 = vmax.f32 %v12150, 0.0
    %v12177 = vmax.f32 %v12153, 0.0
    %v12178 = vmax.f32 %v12158, 0.0
    %v12179 = vmax.f32 %v12161, 0.0
    %12180 = vst [vmem:[#allocation11] sm:$0xff] %v12164
    %12181 = vst [vmem:[#allocation11 + $0x8] sm:$0xff] %v12165
    %12182 = vst [vmem:[#allocation11 + $0x10] sm:$0xff] %v12166
    %12183 = vst [vmem:[#allocation11 + $0x18] sm:$0xff] %v12167
    %12184 = vst [vmem:[#allocation11 + $0x20] sm:$0xff] %v12168
    %12185 = vst [vmem:[#allocation11 + $0x28] sm:$0xff] %v12169
    %12186 = vst [vmem:[#allocation11 + $0x30] sm:$0xff] %v12170
    %12187 = vst [vmem:[#allocation11 + $0x38] sm:$0xff] %v12171
    %12188 = vst [vmem:[#allocation11 + $0x40] sm:$0xff] %v12172
    %12189 = vst [vmem:[#allocation11 + $0x48] sm:$0xff] %v12173
    %12190 = vst [vmem:[#allocation11 + $0x50] sm:$0xff] %v12174
    %12191 = vst [vmem:[#allocation11 + $0x58] sm:$0xff] %v12175
    %12192 = vst [vmem:[#allocation11 + $0x60] sm:$0xff] %v12176
    %12193 = vst [vmem:[#allocation11 + $0x68] sm:$0xff] %v12177
    %12194 = vst [vmem:[#allocation11 + $0x70] sm:$0xff] %v12178
    %12195 = vst [vmem:[#allocation11 + $0x78] sm:$0xff] %v12179
    // Predicated region
    $region50: #{tpu_custom_call.1} parent=1 // pred_check
      _
    $region51: #{tpu_custom_call.1} parent=1 // pred_check_branch
      %12197 = sbr.rel (0) target = $region53
    $region52: #{tpu_custom_call.1} parent=1 // pred_region
      %s12199 = ssub.s32 2048, 2048
      %12200 = vsyncadd [#allocation4], %s12199
      %s12201 = sshll.u32 [#allocation11], 4
      %s12202 = int_to_ptr.vmem [resolvable:$true] %s12201
      %12207 = dma.vmem_to_hbm [thread:$0]  %s12202, 2048, %s7, [#allocation4], 128, 128, 8
    $region53: #{tpu_custom_call.1} parent=1 // pred_fallthru
      _
    // Predicated region
    $region54: #{tpu_custom_call.1} parent=1 // pred_check
      _
    $region55: #{tpu_custom_call.1} parent=1 // pred_check_branch
      %12209 = sbr.rel (0) target = $region57
    $region56: #{tpu_custom_call.1} parent=1 // pred_region
      %12210 = dma.done [#allocation4], 2048
    $region57: #{tpu_custom_call.1} parent=1 // pred_fallthru
      _
    %12211 = vsyncpa [#allocation3], 1
    %12212 = vsyncpa [#allocation6], 1
    %12213 = vsyncpa [#allocation9], 1
    %12214 = vsyncpa [#allocation4], 1

</llo_original>
